<compile_context>
chip_gen: v5e
topology: v5e:2x2
jax: 0.10.0
libtpu: 0.0.40
codegen_flags: <defaults>
</compile_context>

<pallas_src>
from functools import partial

import jax
import jax.numpy as jnp
import numpy as np
from jax.experimental import pallas as pl
from jax.experimental.pallas import tpu as pltpu


def _inception_kernel(xz_ref, wcv_ref, bcv_ref, sfc_ref, bfc_ref,
                      sfp_ref, bfp_ref, out_ref, *, H, W, K):
    """One batch element per grid step.

    xz_ref : (1, Cin, H+2P, W+2P)  zero-padded input, P = K//2 = 2
    wcv_ref: (Ccv, K*K*Cin)        fused conv weights (branch BN scale folded)
    bcv_ref: (Ccv, 1)              branch BN biases (per conv output channel)
    sfc/bfc: (Ccv, 1)              final BN scale/bias, conv channels
    sfp/bfp: (Cin, 1)              final BN scale/bias, pool channels
    out_ref: (1, Ctot, H*W)        lane-dense output (channels on sublanes)
    """
    Cin = xz_ref.shape[1]
    Ccv = wcv_ref.shape[0]
    xz = xz_ref[0]                                       # (Cin, H+4, W+4)

    # ---- im2col: rows ordered (ky, kx, c) to match the fused weight matrix --
    cols = []
    for ky in range(K):
        for kx in range(K):
            patch = xz[:, ky:ky + H, kx:kx + W]          # (Cin, H, W)
            cols.append(patch.reshape(Cin, H * W))
    patches = jnp.concatenate(cols, axis=0)              # (K*K*Cin, H*W)

    # ---- all three conv branches in ONE MXU matmul (K = 25*Cin = 200) ------
    acc = jnp.dot(wcv_ref[...], patches,
                  preferred_element_type=jnp.float32)    # (Ccv, H*W)
    # branch BN (scale already folded into weights) + ReLU
    y = jnp.maximum(acc + bcv_ref[...], 0.0)
    # final BN + ReLU for the conv channels
    y = jnp.maximum(y * sfc_ref[...] + bfc_ref[...], 0.0)
    out_ref[0, 0:Ccv, :] = y

    # ---- 3x3 / stride 1 / pad 1 max-pool (PyTorch pads with -inf) ----------
    P = K // 2
    sub = xz[:, P - 1:P - 1 + H + 2, P - 1:P - 1 + W + 2]  # (Cin, H+2, W+2)
    ri = jax.lax.broadcasted_iota(jnp.int32, (Cin, H + 2, W + 2), 1)
    ci = jax.lax.broadcasted_iota(jnp.int32, (Cin, H + 2, W + 2), 2)
    border = (ri == 0) | (ri == H + 1) | (ci == 0) | (ci == W + 1)
    xm = jnp.where(border, -jnp.inf, sub)
    pool = xm[:, 0:H, 0:W]
    for ky in range(3):
        for kx in range(3):
            if ky == 0 and kx == 0:
                continue
            pool = jnp.maximum(pool, xm[:, ky:ky + H, kx:kx + W])
    pool = pool.reshape(Cin, H * W)
    # final BN + ReLU for the pool channels
    out_ref[0, Ccv:Ccv + Cin, :] = jnp.maximum(
        pool * sfp_ref[...] + bfp_ref[...], 0.0)


def fold_bn(gamma, beta, mean, var, eps=1e-5):
    scale = gamma / jnp.sqrt(var + eps)
    bias = beta - mean * scale
    return scale.astype(jnp.float32), bias.astype(jnp.float32)


def inception_naive_block(x_nchw, w1, w3, w5, sb1, sb3, sb5, sbf):
    """x_nchw: (N, Cin, H, W) f32.  Returns (N, Ctot, H, W) f32."""
    N, Cin, H, W = x_nchw.shape
    C1, C3, C5 = w1.shape[-1], w3.shape[-1], w5.shape[-1]
    Ccv = C1 + C3 + C5
    Ctot = Ccv + Cin
    K = 5                       # largest kernel; 1x1 / 3x3 zero-extended to 5x5
    P = K // 2

    s1, b1 = sb1
    s3, b3 = sb3
    s5, b5 = sb5
    sf, bf = sbf

    # Fold each branch's BN scale into its conv weights (conv is linear).
    w1s = w1 * s1.reshape(1, 1, 1, C1)
    w3s = w3 * s3.reshape(1, 1, 1, C3)
    w5s = w5 * s5.reshape(1, 1, 1, C5)
    # Zero-extend 1x1 / 3x3 to 5x5 and fuse all branches along Cout.
    w1p = jnp.pad(w1s, ((2, 2), (2, 2), (0, 0), (0, 0)))
    w3p = jnp.pad(w3s, ((1, 1), (1, 1), (0, 0), (0, 0)))
    w_all = jnp.concatenate([w1p, w3p, w5s], axis=3)            # (5,5,Cin,Ccv)
    # Row index of the im2col matrix is (ky*5+kx)*Cin + c -> plain reshape.
    w_cv = jnp.asarray(w_all.reshape(K * K * Cin, Ccv).T, jnp.float32)  # (Ccv, 25*Cin)

    b_cv = jnp.concatenate([b1, b3, b5]).reshape(Ccv, 1).astype(jnp.float32)
    sf_cv = sf[:Ccv].reshape(Ccv, 1).astype(jnp.float32)
    bf_cv = bf[:Ccv].reshape(Ccv, 1).astype(jnp.float32)
    sf_pl = sf[Ccv:].reshape(Cin, 1).astype(jnp.float32)
    bf_pl = bf[Ccv:].reshape(Cin, 1).astype(jnp.float32)

    # Single zero-padded NCHW input (shared by convs and the maxpool).
    xz = jnp.pad(x_nchw.astype(jnp.float32),
                 ((0, 0), (0, 0), (P, P), (P, P)))              # (N,Cin,H+4,W+4)

    full = lambda shape: pl.BlockSpec(shape, lambda n: (0,) * len(shape))

    out = pl.pallas_call(
        partial(_inception_kernel, H=H, W=W, K=K),
        out_shape=jax.ShapeDtypeStruct((N, Ctot, H * W), jnp.float32),
        grid=(N,),
        in_specs=[
            pl.BlockSpec((1, Cin, H + 2 * P, W + 2 * P), lambda n: (n, 0, 0, 0)),
            full(w_cv.shape),
            full(b_cv.shape),
            full(sf_cv.shape), full(bf_cv.shape),
            full(sf_pl.shape), full(bf_pl.shape),
        ],
        out_specs=pl.BlockSpec((1, Ctot, H * W), lambda n: (n, 0, 0)),
        compiler_params=pltpu.CompilerParams(
            dimension_semantics=("parallel",)),
    )(xz, w_cv, b_cv, sf_cv, bf_cv, sf_pl, bf_pl)

    return out.reshape(N, Ctot, H, W)                           # already NCHW


def _reference(x_nchw, w1, w3, w5, sb1, sb3, sb5, sbf):
    """Pure-JAX reference (eval-mode BN) for a correctness cross-check."""
    x = jnp.transpose(x_nchw, (0, 2, 3, 1))

    def conv(xx, w, pad):
        return jax.lax.conv_general_dilated(
            xx, w, (1, 1), [(pad, pad), (pad, pad)],
            dimension_numbers=("NHWC", "HWIO", "NHWC"),
            precision=jax.lax.Precision.HIGHEST)

    def bnrelu(y, sb):
        s, b = sb
        return jnp.maximum(y * s.reshape(1, 1, 1, -1) + b.reshape(1, 1, 1, -1), 0.0)

    c1 = bnrelu(conv(x, w1, 0), sb1)
    c3 = bnrelu(conv(x, w3, 1), sb3)
    c5 = bnrelu(conv(x, w5, 2), sb5)
    pool = jax.lax.reduce_window(x, -jnp.inf, jax.lax.max,
                                 (1, 3, 3, 1), (1, 1, 1, 1),
                                 [(0, 0), (1, 1), (1, 1), (0, 0)])
    cat = jnp.concatenate([c1, c3, c5, pool], axis=-1)
    sf, bf = sbf
    out = jnp.maximum(cat * sf.reshape(1, 1, 1, -1) + bf.reshape(1, 1, 1, -1), 0.0)
    return jnp.transpose(out, (0, 3, 1, 2))


if __name__ == "__main__":
    # small shapes consistent with the module
    N, Cin, H, W = 2, 8, 16, 16
    C1, C3, C5 = 16, 16, 8

    key = jax.random.PRNGKey(0)
    ks = jax.random.split(key, 20)

    # conv weights (HWIO), no bias (bias=False in ConvBnBlock)
    w1 = jax.random.normal(ks[0], (1, 1, Cin, C1), jnp.float32) * 0.2
    w3 = jax.random.normal(ks[1], (3, 3, Cin, C3), jnp.float32) * 0.1
    w5 = jax.random.normal(ks[2], (5, 5, Cin, C5), jnp.float32) * 0.05

    def make_bn(kg, kb, km, kv, C):
        gamma = 1.0 + 0.1 * jax.random.normal(kg, (C,), jnp.float32)
        beta = 0.1 * jax.random.normal(kb, (C,), jnp.float32)
        mean = 0.1 * jax.random.normal(km, (C,), jnp.float32)
        var = 0.5 + jnp.abs(jax.random.normal(kv, (C,), jnp.float32))
        return fold_bn(gamma, beta, mean, var)

    sb1 = make_bn(ks[3], ks[4], ks[5], ks[6], C1)
    sb3 = make_bn(ks[7], ks[8], ks[9], ks[10], C3)
    sb5 = make_bn(ks[11], ks[12], ks[13], ks[14], C5)
    sbf = make_bn(ks[15], ks[16], ks[17], ks[18], C1 + C3 + C5 + Cin)

    x = jax.random.normal(ks[19], (N, Cin, H, W), jnp.float32)

    out = inception_naive_block(x, w1, w3, w5, sb1, sb3, sb5, sbf)
    out = jax.block_until_ready(out)

    ref = _reference(x, w1, w3, w5, sb1, sb3, sb5, sbf)
    assert out.shape == (N, C1 + C3 + C5 + Cin, H, W), out.shape
    assert np.allclose(np.asarray(out), np.asarray(ref), rtol=1e-2, atol=1e-2), (
        "max diff %g" % float(np.max(np.abs(np.asarray(out) - np.asarray(ref)))))

    print("KERNEL_OK")
</pallas_src>

<mosaic_0001>
module attributes {stable_mosaic.version = 11 : i64} {
  func.func @_inception_kernel(%arg0: i32, %arg1: memref<1x8x20x20xf32, #tpu.memory_space<vmem>>, %arg2: memref<40x200xf32, #tpu.memory_space<vmem>>, %arg3: memref<40x1xf32, #tpu.memory_space<vmem>>, %arg4: memref<40x1xf32, #tpu.memory_space<vmem>>, %arg5: memref<40x1xf32, #tpu.memory_space<vmem>>, %arg6: memref<8x1xf32, #tpu.memory_space<vmem>>, %arg7: memref<8x1xf32, #tpu.memory_space<vmem>>, %arg8: memref<1x48x256xf32, #tpu.memory_space<vmem>>) attributes {dimension_semantics = [#tpu.dimension_semantics<parallel>], iteration_bounds = array<i64: 2>, scalar_prefetch = 0 : i64, scratch_operands = 0 : i64, tpu.core_type = #tpu.core_type<tc>, window_params = [{transform_indices = @transform_0, window_bounds = array<i64: 1, 8, 20, 20>}, {pipeline_mode = #tpu.pipeline_mode<synchronous>, transform_indices = @transform_1, window_bounds = array<i64: 40, 200>}, {pipeline_mode = #tpu.pipeline_mode<synchronous>, transform_indices = @transform_2, window_bounds = array<i64: 40, 1>}, {pipeline_mode = #tpu.pipeline_mode<synchronous>, transform_indices = @transform_3, window_bounds = array<i64: 40, 1>}, {pipeline_mode = #tpu.pipeline_mode<synchronous>, transform_indices = @transform_4, window_bounds = array<i64: 40, 1>}, {pipeline_mode = #tpu.pipeline_mode<synchronous>, transform_indices = @transform_5, window_bounds = array<i64: 8, 1>}, {pipeline_mode = #tpu.pipeline_mode<synchronous>, transform_indices = @transform_6, window_bounds = array<i64: 8, 1>}, {transform_indices = @transform_7, window_bounds = array<i64: 1, 48, 256>}]} {
    %c0 = arith.constant 0 : index
    %c0_0 = arith.constant 0 : index
    %c0_1 = arith.constant 0 : index
    %c0_2 = arith.constant 0 : index
    %0 = vector.load %arg1[%c0, %c0_0, %c0_1, %c0_2] : memref<1x8x20x20xf32, #tpu.memory_space<vmem>>, vector<1x8x20x20xf32>
    %1 = vector.shape_cast %0 : vector<1x8x20x20xf32> to vector<8x20x20xf32>
    %2 = vector.extract_strided_slice %1 {offsets = [0, 0, 0], sizes = [8, 16, 16], strides = [1, 1, 1]} : vector<8x20x20xf32> to vector<8x16x16xf32>
    %3 = vector.shape_cast %2 : vector<8x16x16xf32> to vector<8x256xf32>
    %4 = vector.extract_strided_slice %1 {offsets = [0, 0, 1], sizes = [8, 16, 16], strides = [1, 1, 1]} : vector<8x20x20xf32> to vector<8x16x16xf32>
    %5 = vector.shape_cast %4 : vector<8x16x16xf32> to vector<8x256xf32>
    %6 = vector.extract_strided_slice %1 {offsets = [0, 0, 2], sizes = [8, 16, 16], strides = [1, 1, 1]} : vector<8x20x20xf32> to vector<8x16x16xf32>
    %7 = vector.shape_cast %6 : vector<8x16x16xf32> to vector<8x256xf32>
    %8 = vector.extract_strided_slice %1 {offsets = [0, 0, 3], sizes = [8, 16, 16], strides = [1, 1, 1]} : vector<8x20x20xf32> to vector<8x16x16xf32>
    %9 = vector.shape_cast %8 : vector<8x16x16xf32> to vector<8x256xf32>
    %10 = vector.extract_strided_slice %1 {offsets = [0, 0, 4], sizes = [8, 16, 16], strides = [1, 1, 1]} : vector<8x20x20xf32> to vector<8x16x16xf32>
    %11 = vector.shape_cast %10 : vector<8x16x16xf32> to vector<8x256xf32>
    %12 = vector.extract_strided_slice %1 {offsets = [0, 1, 0], sizes = [8, 16, 16], strides = [1, 1, 1]} : vector<8x20x20xf32> to vector<8x16x16xf32>
    %13 = vector.shape_cast %12 : vector<8x16x16xf32> to vector<8x256xf32>
    %14 = vector.extract_strided_slice %1 {offsets = [0, 1, 1], sizes = [8, 16, 16], strides = [1, 1, 1]} : vector<8x20x20xf32> to vector<8x16x16xf32>
    %15 = vector.shape_cast %14 : vector<8x16x16xf32> to vector<8x256xf32>
    %16 = vector.extract_strided_slice %1 {offsets = [0, 1, 2], sizes = [8, 16, 16], strides = [1, 1, 1]} : vector<8x20x20xf32> to vector<8x16x16xf32>
    %17 = vector.shape_cast %16 : vector<8x16x16xf32> to vector<8x256xf32>
    %18 = vector.extract_strided_slice %1 {offsets = [0, 1, 3], sizes = [8, 16, 16], strides = [1, 1, 1]} : vector<8x20x20xf32> to vector<8x16x16xf32>
    %19 = vector.shape_cast %18 : vector<8x16x16xf32> to vector<8x256xf32>
    %20 = vector.extract_strided_slice %1 {offsets = [0, 1, 4], sizes = [8, 16, 16], strides = [1, 1, 1]} : vector<8x20x20xf32> to vector<8x16x16xf32>
    %21 = vector.shape_cast %20 : vector<8x16x16xf32> to vector<8x256xf32>
    %22 = vector.extract_strided_slice %1 {offsets = [0, 2, 0], sizes = [8, 16, 16], strides = [1, 1, 1]} : vector<8x20x20xf32> to vector<8x16x16xf32>
    %23 = vector.shape_cast %22 : vector<8x16x16xf32> to vector<8x256xf32>
    %24 = vector.extract_strided_slice %1 {offsets = [0, 2, 1], sizes = [8, 16, 16], strides = [1, 1, 1]} : vector<8x20x20xf32> to vector<8x16x16xf32>
    %25 = vector.shape_cast %24 : vector<8x16x16xf32> to vector<8x256xf32>
    %26 = vector.extract_strided_slice %1 {offsets = [0, 2, 2], sizes = [8, 16, 16], strides = [1, 1, 1]} : vector<8x20x20xf32> to vector<8x16x16xf32>
    %27 = vector.shape_cast %26 : vector<8x16x16xf32> to vector<8x256xf32>
    %28 = vector.extract_strided_slice %1 {offsets = [0, 2, 3], sizes = [8, 16, 16], strides = [1, 1, 1]} : vector<8x20x20xf32> to vector<8x16x16xf32>
    %29 = vector.shape_cast %28 : vector<8x16x16xf32> to vector<8x256xf32>
    %30 = vector.extract_strided_slice %1 {offsets = [0, 2, 4], sizes = [8, 16, 16], strides = [1, 1, 1]} : vector<8x20x20xf32> to vector<8x16x16xf32>
    %31 = vector.shape_cast %30 : vector<8x16x16xf32> to vector<8x256xf32>
    %32 = vector.extract_strided_slice %1 {offsets = [0, 3, 0], sizes = [8, 16, 16], strides = [1, 1, 1]} : vector<8x20x20xf32> to vector<8x16x16xf32>
    %33 = vector.shape_cast %32 : vector<8x16x16xf32> to vector<8x256xf32>
    %34 = vector.extract_strided_slice %1 {offsets = [0, 3, 1], sizes = [8, 16, 16], strides = [1, 1, 1]} : vector<8x20x20xf32> to vector<8x16x16xf32>
    %35 = vector.shape_cast %34 : vector<8x16x16xf32> to vector<8x256xf32>
    %36 = vector.extract_strided_slice %1 {offsets = [0, 3, 2], sizes = [8, 16, 16], strides = [1, 1, 1]} : vector<8x20x20xf32> to vector<8x16x16xf32>
    %37 = vector.shape_cast %36 : vector<8x16x16xf32> to vector<8x256xf32>
    %38 = vector.extract_strided_slice %1 {offsets = [0, 3, 3], sizes = [8, 16, 16], strides = [1, 1, 1]} : vector<8x20x20xf32> to vector<8x16x16xf32>
    %39 = vector.shape_cast %38 : vector<8x16x16xf32> to vector<8x256xf32>
    %40 = vector.extract_strided_slice %1 {offsets = [0, 3, 4], sizes = [8, 16, 16], strides = [1, 1, 1]} : vector<8x20x20xf32> to vector<8x16x16xf32>
    %41 = vector.shape_cast %40 : vector<8x16x16xf32> to vector<8x256xf32>
    %42 = vector.extract_strided_slice %1 {offsets = [0, 4, 0], sizes = [8, 16, 16], strides = [1, 1, 1]} : vector<8x20x20xf32> to vector<8x16x16xf32>
    %43 = vector.shape_cast %42 : vector<8x16x16xf32> to vector<8x256xf32>
    %44 = vector.extract_strided_slice %1 {offsets = [0, 4, 1], sizes = [8, 16, 16], strides = [1, 1, 1]} : vector<8x20x20xf32> to vector<8x16x16xf32>
    %45 = vector.shape_cast %44 : vector<8x16x16xf32> to vector<8x256xf32>
    %46 = vector.extract_strided_slice %1 {offsets = [0, 4, 2], sizes = [8, 16, 16], strides = [1, 1, 1]} : vector<8x20x20xf32> to vector<8x16x16xf32>
    %47 = vector.shape_cast %46 : vector<8x16x16xf32> to vector<8x256xf32>
    %48 = vector.extract_strided_slice %1 {offsets = [0, 4, 3], sizes = [8, 16, 16], strides = [1, 1, 1]} : vector<8x20x20xf32> to vector<8x16x16xf32>
    %49 = vector.shape_cast %48 : vector<8x16x16xf32> to vector<8x256xf32>
    %50 = vector.extract_strided_slice %1 {offsets = [0, 4, 4], sizes = [8, 16, 16], strides = [1, 1, 1]} : vector<8x20x20xf32> to vector<8x16x16xf32>
    %51 = vector.shape_cast %50 : vector<8x16x16xf32> to vector<8x256xf32>
    %52 = tpu.concatenate %3, %5, %7, %9, %11, %13, %15, %17, %19, %21, %23, %25, %27, %29, %31, %33 in 0 : vector<8x256xf32>, vector<8x256xf32>, vector<8x256xf32>, vector<8x256xf32>, vector<8x256xf32>, vector<8x256xf32>, vector<8x256xf32>, vector<8x256xf32>, vector<8x256xf32>, vector<8x256xf32>, vector<8x256xf32>, vector<8x256xf32>, vector<8x256xf32>, vector<8x256xf32>, vector<8x256xf32>, vector<8x256xf32> -> vector<128x256xf32>
    %53 = tpu.concatenate %35, %37, %39, %41, %43, %45, %47, %49, %51 in 0 : vector<8x256xf32>, vector<8x256xf32>, vector<8x256xf32>, vector<8x256xf32>, vector<8x256xf32>, vector<8x256xf32>, vector<8x256xf32>, vector<8x256xf32>, vector<8x256xf32> -> vector<72x256xf32>
    %54 = tpu.concatenate %52, %53 in 0 : vector<128x256xf32>, vector<72x256xf32> -> vector<200x256xf32>
    %c0_3 = arith.constant 0 : index
    %c0_4 = arith.constant 0 : index
    %55 = vector.load %arg2[%c0_3, %c0_4] : memref<40x200xf32, #tpu.memory_space<vmem>>, vector<40x200xf32>
    %cst = arith.constant dense<0.000000e+00> : vector<40x256xf32>
    %56 = tpu.matmul %55, %54, %cst {dimension_numbers = #tpu.dot_dimension_numbers<[1], [0], [0], [1], [0, 0, 1, 1], [], []>} : vector<40x200xf32>, vector<200x256xf32>, vector<40x256xf32> -> vector<40x256xf32>
    %c0_5 = arith.constant 0 : index
    %c0_6 = arith.constant 0 : index
    %57 = vector.load %arg3[%c0_5, %c0_6] : memref<40x1xf32, #tpu.memory_space<vmem>>, vector<40x1xf32>
    %58 = vector.broadcast %57 : vector<40x1xf32> to vector<40x256xf32>
    %59 = arith.addf %56, %58 : vector<40x256xf32>
    %cst_7 = arith.constant 0.000000e+00 : f32
    %60 = vector.broadcast %cst_7 : f32 to vector<40x256xf32>
    %61 = arith.maximumf %59, %60 : vector<40x256xf32>
    %c0_8 = arith.constant 0 : index
    %c0_9 = arith.constant 0 : index
    %62 = vector.load %arg4[%c0_8, %c0_9] : memref<40x1xf32, #tpu.memory_space<vmem>>, vector<40x1xf32>
    %63 = vector.broadcast %62 : vector<40x1xf32> to vector<40x256xf32>
    %64 = arith.mulf %61, %63 : vector<40x256xf32>
    %c0_10 = arith.constant 0 : index
    %c0_11 = arith.constant 0 : index
    %65 = vector.load %arg5[%c0_10, %c0_11] : memref<40x1xf32, #tpu.memory_space<vmem>>, vector<40x1xf32>
    %66 = vector.broadcast %65 : vector<40x1xf32> to vector<40x256xf32>
    %67 = arith.addf %64, %66 : vector<40x256xf32>
    %cst_12 = arith.constant 0.000000e+00 : f32
    %68 = vector.broadcast %cst_12 : f32 to vector<40x256xf32>
    %69 = arith.maximumf %67, %68 : vector<40x256xf32>
    %c0_13 = arith.constant 0 : index
    %c0_14 = arith.constant 0 : index
    %c0_15 = arith.constant 0 : index
    %70 = vector.load %arg8[%c0_13, %c0_14, %c0_15] : memref<1x48x256xf32, #tpu.memory_space<vmem>>, vector<1x40x256xf32>
    %71 = vector.shape_cast %70 : vector<1x40x256xf32> to vector<40x256xf32>
    %72 = vector.shape_cast %69 : vector<40x256xf32> to vector<1x40x256xf32>
    tpu.vector_store %arg8[%c0_13, %c0_14, %c0_15], %72 {strides = array<i32>} : memref<1x48x256xf32, #tpu.memory_space<vmem>>, vector<1x40x256xf32>,
    %73 = vector.extract_strided_slice %1 {offsets = [0, 1, 1], sizes = [8, 18, 18], strides = [1, 1, 1]} : vector<8x20x20xf32> to vector<8x18x18xf32>
    %74 = tpu.iota {dimensions = array<i32: 1>} : vector<8x18x18xi32>
    %75 = tpu.iota {dimensions = array<i32: 2>} : vector<8x18x18xi32>
    %c0_i32 = arith.constant 0 : i32
    %76 = vector.broadcast %c0_i32 : i32 to vector<8x18x18xi32>
    %77 = arith.cmpi eq, %74, %76 : vector<8x18x18xi32>
    %c17_i32 = arith.constant 17 : i32
    %78 = vector.broadcast %c17_i32 : i32 to vector<8x18x18xi32>
    %79 = arith.cmpi eq, %74, %78 : vector<8x18x18xi32>
    %80 = arith.ori %77, %79 : vector<8x18x18xi1>
    %c0_i32_16 = arith.constant 0 : i32
    %81 = vector.broadcast %c0_i32_16 : i32 to vector<8x18x18xi32>
    %82 = arith.cmpi eq, %75, %81 : vector<8x18x18xi32>
    %83 = arith.ori %80, %82 : vector<8x18x18xi1>
    %c17_i32_17 = arith.constant 17 : i32
    %84 = vector.broadcast %c17_i32_17 : i32 to vector<8x18x18xi32>
    %85 = arith.cmpi eq, %75, %84 : vector<8x18x18xi32>
    %86 = arith.ori %83, %85 : vector<8x18x18xi1>
    %cst_18 = arith.constant 0xFF800000 : f32
    %87 = vector.broadcast %cst_18 : f32 to vector<8x18x18xf32>
    %88 = arith.select %86, %87, %73 : vector<8x18x18xi1>, vector<8x18x18xf32>
    %89 = vector.extract_strided_slice %88 {offsets = [0, 0, 0], sizes = [8, 16, 16], strides = [1, 1, 1]} : vector<8x18x18xf32> to vector<8x16x16xf32>
    %90 = vector.extract_strided_slice %88 {offsets = [0, 0, 1], sizes = [8, 16, 16], strides = [1, 1, 1]} : vector<8x18x18xf32> to vector<8x16x16xf32>
    %91 = arith.maximumf %89, %90 : vector<8x16x16xf32>
    %92 = vector.extract_strided_slice %88 {offsets = [0, 0, 2], sizes = [8, 16, 16], strides = [1, 1, 1]} : vector<8x18x18xf32> to vector<8x16x16xf32>
    %93 = arith.maximumf %91, %92 : vector<8x16x16xf32>
    %94 = vector.extract_strided_slice %88 {offsets = [0, 1, 0], sizes = [8, 16, 16], strides = [1, 1, 1]} : vector<8x18x18xf32> to vector<8x16x16xf32>
    %95 = arith.maximumf %93, %94 : vector<8x16x16xf32>
    %96 = vector.extract_strided_slice %88 {offsets = [0, 1, 1], sizes = [8, 16, 16], strides = [1, 1, 1]} : vector<8x18x18xf32> to vector<8x16x16xf32>
    %97 = arith.maximumf %95, %96 : vector<8x16x16xf32>
    %98 = vector.extract_strided_slice %88 {offsets = [0, 1, 2], sizes = [8, 16, 16], strides = [1, 1, 1]} : vector<8x18x18xf32> to vector<8x16x16xf32>
    %99 = arith.maximumf %97, %98 : vector<8x16x16xf32>
    %100 = vector.extract_strided_slice %88 {offsets = [0, 2, 0], sizes = [8, 16, 16], strides = [1, 1, 1]} : vector<8x18x18xf32> to vector<8x16x16xf32>
    %101 = arith.maximumf %99, %100 : vector<8x16x16xf32>
    %102 = vector.extract_strided_slice %88 {offsets = [0, 2, 1], sizes = [8, 16, 16], strides = [1, 1, 1]} : vector<8x18x18xf32> to vector<8x16x16xf32>
    %103 = arith.maximumf %101, %102 : vector<8x16x16xf32>
    %104 = vector.extract_strided_slice %88 {offsets = [0, 2, 2], sizes = [8, 16, 16], strides = [1, 1, 1]} : vector<8x18x18xf32> to vector<8x16x16xf32>
    %105 = arith.maximumf %103, %104 : vector<8x16x16xf32>
    %106 = vector.shape_cast %105 : vector<8x16x16xf32> to vector<8x256xf32>
    %c0_19 = arith.constant 0 : index
    %c0_20 = arith.constant 0 : index
    %107 = vector.load %arg6[%c0_19, %c0_20] : memref<8x1xf32, #tpu.memory_space<vmem>>, vector<8x1xf32>
    %108 = vector.broadcast %107 : vector<8x1xf32> to vector<8x256xf32>
    %109 = arith.mulf %106, %108 : vector<8x256xf32>
    %c0_21 = arith.constant 0 : index
    %c0_22 = arith.constant 0 : index
    %110 = vector.load %arg7[%c0_21, %c0_22] : memref<8x1xf32, #tpu.memory_space<vmem>>, vector<8x1xf32>
    %111 = vector.broadcast %110 : vector<8x1xf32> to vector<8x256xf32>
    %112 = arith.addf %109, %111 : vector<8x256xf32>
    %cst_23 = arith.constant 0.000000e+00 : f32
    %113 = vector.broadcast %cst_23 : f32 to vector<8x256xf32>
    %114 = arith.maximumf %112, %113 : vector<8x256xf32>
    %c0_24 = arith.constant 0 : index
    %c40 = arith.constant 40 : index
    %c0_25 = arith.constant 0 : index
    %115 = vector.load %arg8[%c0_24, %c40, %c0_25] : memref<1x48x256xf32, #tpu.memory_space<vmem>>, vector<1x8x256xf32>
    %116 = vector.shape_cast %115 : vector<1x8x256xf32> to vector<8x256xf32>
    %117 = vector.shape_cast %114 : vector<8x256xf32> to vector<1x8x256xf32>
    tpu.vector_store %arg8[%c0_24, %c40, %c0_25], %117 {strides = array<i32>} : memref<1x48x256xf32, #tpu.memory_space<vmem>>, vector<1x8x256xf32>,
    return
  }
  func.func @transform_0(%arg0: i32) -> (i32, i32, i32, i32) {
    %c0_i32 = arith.constant 0 : i32
    %c0_i32_0 = arith.constant 0 : i32
    %c0_i32_1 = arith.constant 0 : i32
    %c0_i32_2 = arith.constant 0 : i32
    return %arg0, %c0_i32, %c0_i32_0, %c0_i32_1 : i32, i32, i32, i32
  }
  func.func @transform_1(%arg0: i32) -> (i32, i32) {
    %c0_i32 = arith.constant 0 : i32
    %c0_i32_0 = arith.constant 0 : i32
    %c0_i32_1 = arith.constant 0 : i32
    return %c0_i32, %c0_i32_0 : i32, i32
  }
  func.func @transform_2(%arg0: i32) -> (i32, i32) {
    %c0_i32 = arith.constant 0 : i32
    %c0_i32_0 = arith.constant 0 : i32
    %c0_i32_1 = arith.constant 0 : i32
    return %c0_i32, %c0_i32_0 : i32, i32
  }
  func.func @transform_3(%arg0: i32) -> (i32, i32) {
    %c0_i32 = arith.constant 0 : i32
    %c0_i32_0 = arith.constant 0 : i32
    %c0_i32_1 = arith.constant 0 : i32
    return %c0_i32, %c0_i32_0 : i32, i32
  }
  func.func @transform_4(%arg0: i32) -> (i32, i32) {
    %c0_i32 = arith.constant 0 : i32
    %c0_i32_0 = arith.constant 0 : i32
    %c0_i32_1 = arith.constant 0 : i32
    return %c0_i32, %c0_i32_0 : i32, i32
  }
  func.func @transform_5(%arg0: i32) -> (i32, i32) {
    %c0_i32 = arith.constant 0 : i32
    %c0_i32_0 = arith.constant 0 : i32
    %c0_i32_1 = arith.constant 0 : i32
    return %c0_i32, %c0_i32_0 : i32, i32
  }
  func.func @transform_6(%arg0: i32) -> (i32, i32) {
    %c0_i32 = arith.constant 0 : i32
    %c0_i32_0 = arith.constant 0 : i32
    %c0_i32_1 = arith.constant 0 : i32
    return %c0_i32, %c0_i32_0 : i32, i32
  }
  func.func @transform_7(%arg0: i32) -> (i32, i32, i32) {
    %c0_i32 = arith.constant 0 : i32
    %c0_i32_0 = arith.constant 0 : i32
    %c0_i32_1 = arith.constant 0 : i32
    return %arg0, %c0_i32, %c0_i32_0 : i32, i32, i32
  }
}

</mosaic_0001>

<llo_original>
// kernel: tpu_custom_call.1
$region0: #{tpu_custom_call.1}
  #allocation0 [shape = 'u32[]', space=smem, size = 0x4, offset = 0x4, fixed_abs, tag = 'smem constant byte address 0x4 - core index']
  #allocation1 [shape = 'u32[72,128]{1,0:T(1,128)}', space=vmem, size = 0x9000, scoped, tag = 'internal scratch']
  %s0 = inlined_call_operand.vmem [shape: f32[2,8,20,20], index: 0, kind: input, shape index: {}]
  %s1 = inlined_call_operand.vmem [shape: f32[40,200], index: 1, kind: input, shape index: {}]
  %s2 = inlined_call_operand.vmem [shape: f32[40,1], index: 2, kind: input, shape index: {}]
  %s3 = inlined_call_operand.vmem [shape: f32[40,1], index: 3, kind: input, shape index: {}]
  %s4 = inlined_call_operand.vmem [shape: f32[40,1], index: 4, kind: input, shape index: {}]
  %s5 = inlined_call_operand.vmem [shape: f32[8,1], index: 5, kind: input, shape index: {}]
  %s6 = inlined_call_operand.vmem [shape: f32[8,1], index: 6, kind: input, shape index: {}]
  %s7 = inlined_call_operand.hbm [shape: f32[2,48,256], index: 7, kind: output, shape index: {}]
  %s8 = sld [smem:[#allocation0]]
  $region61: #{tpu_custom_call.1} parent=0
    _
  %s10 = ssub.s32 1, %s8
  %s11 = scalar_select 0, %s10, %s8
  $region1: #{tpu_custom_call.1} parent=0
    #allocation2 [shape = 'u8[98304]{0}', space=vmem, size = 0x18000, scoped, tag = 'output window, operand 0']
    #allocation3 [shape = 's32[2]{0}', space=sflag, size = 0x8, scoped, tag = 'scoped memory for tpu_custom_call.1']
    %12 = vsyncpa [#allocation3], 0
    %s13 = scalar_lea.sflag [#allocation3], 1
    %14 = vsyncpa %s13, 0
    loop: start=0, step=1, limit=4
    $region2: #{tpu_custom_call.1} parent=1 // loop_pre_header
      _
    $region3: #{tpu_custom_call.1} parent=1 // loop_header
      %s16 = sphi 0, %s20
      %p17 = scmp.ge.s32.totalorder %s16, 4
      %s26 = sphi 0, %s28
      %s29 = sphi 0, %s26
      %s30 = sphi 0, %s29
      %s46 = sphi 0, %s30
      %s50 = sphi 0, %s50
      %s52 = sphi 0, %s50
      %s53 = sphi 0, %s52
      %s67 = sphi 0, %s53
      %s71 = sphi 0, %s71
      %s73 = sphi 0, %s71
      %s74 = sphi 0, %s73
      %s88 = sphi 0, %s74
      %s92 = sphi 0, %s92
      %s94 = sphi 0, %s92
      %s95 = sphi 0, %s94
      %s109 = sphi 0, %s95
      %s113 = sphi 0, %s113
      %s115 = sphi 0, %s113
      %s116 = sphi 0, %s115
      %s130 = sphi 0, %s116
      %s134 = sphi 0, %s134
      %s136 = sphi 0, %s134
      %s137 = sphi 0, %s136
      %s151 = sphi 0, %s137
      %s155 = sphi 0, %s155
      %s157 = sphi 0, %s155
      %s158 = sphi 0, %s157
      %s172 = sphi 0, %s158
      %s178 = sphi 0, %s180
      %s181 = sphi 0, %s178
      %s182 = sphi 0, %s181
      %s198 = sphi 0, %s182
    $region4: #{tpu_custom_call.1} parent=1 // loop_header_branch
      %19 = sbr.rel (%p17) target = $region8
    $region5: #{tpu_custom_call.1} parent=1 // loop_body
      %s21 = ssub.s32 %s16, 1
      %s22 = ssub.s32 %s16, 2
      %s23 = sadd.s32 %s16, 1
      %s24 = ssub.s32 %s16, %s23
      %p25 = scmp.eq.s32.totalorder %s24, 0
      %s27 = sadd.s32 %s26, 1
      %s28 = scalar_select %p25, %s26, %s27
      %p31 = pneg %p25
      %p32 = scmp.eq.s32.totalorder %s16, 1
      %p33 = por %p31, %p32
      %p34 = scmp.ne.s32.totalorder %s26, %s29
      %p35 = scmp.eq.s32.totalorder %s16, 0
      %p36 = por %p34, %p35
      %p37 = scmp.ne.s32.totalorder %s26, %s29
      %p38 = scmp.eq.s32.totalorder %s21, 1
      %p39 = por %p37, %p38
      %p40 = scmp.ne.s32.totalorder %s29, %s30
      %p41 = scmp.eq.s32.totalorder %s21, 0
      %p42 = por %p40, %p41
      %p43 = scmp.ne.s32.totalorder %s29, %s30
      %p44 = scmp.eq.s32.totalorder %s22, 1
      %p45 = por %p43, %p44
      %p47 = scmp.ne.s32.totalorder %s30, %s46
      %p48 = scmp.eq.s32.totalorder %s22, 0
      %p49 = por %p47, %p48
      %s51 = sadd.s32 %s50, 1
      %p54 = scmp.eq.s32.totalorder %s16, 1
      %p55 = scmp.ne.s32.totalorder %s50, %s52
      %p56 = scmp.eq.s32.totalorder %s16, 0
      %p57 = por %p55, %p56
      %p58 = scmp.ne.s32.totalorder %s50, %s52
      %p59 = scmp.eq.s32.totalorder %s21, 1
      %p60 = por %p58, %p59
      %p61 = scmp.ne.s32.totalorder %s52, %s53
      %p62 = scmp.eq.s32.totalorder %s21, 0
      %p63 = por %p61, %p62
      %p64 = scmp.ne.s32.totalorder %s52, %s53
      %p65 = scmp.eq.s32.totalorder %s22, 1
      %p66 = por %p64, %p65
      %p68 = scmp.ne.s32.totalorder %s53, %s67
      %p69 = scmp.eq.s32.totalorder %s22, 0
      %p70 = por %p68, %p69
      %s72 = sadd.s32 %s71, 1
      %p75 = scmp.eq.s32.totalorder %s16, 1
      %p76 = scmp.ne.s32.totalorder %s71, %s73
      %p77 = scmp.eq.s32.totalorder %s16, 0
      %p78 = por %p76, %p77
      %p79 = scmp.ne.s32.totalorder %s71, %s73
      %p80 = scmp.eq.s32.totalorder %s21, 1
      %p81 = por %p79, %p80
      %p82 = scmp.ne.s32.totalorder %s73, %s74
      %p83 = scmp.eq.s32.totalorder %s21, 0
      %p84 = por %p82, %p83
      %p85 = scmp.ne.s32.totalorder %s73, %s74
      %p86 = scmp.eq.s32.totalorder %s22, 1
      %p87 = por %p85, %p86
      %p89 = scmp.ne.s32.totalorder %s74, %s88
      %p90 = scmp.eq.s32.totalorder %s22, 0
      %p91 = por %p89, %p90
      %s93 = sadd.s32 %s92, 1
      %p96 = scmp.eq.s32.totalorder %s16, 1
      %p97 = scmp.ne.s32.totalorder %s92, %s94
      %p98 = scmp.eq.s32.totalorder %s16, 0
      %p99 = por %p97, %p98
      %p100 = scmp.ne.s32.totalorder %s92, %s94
      %p101 = scmp.eq.s32.totalorder %s21, 1
      %p102 = por %p100, %p101
      %p103 = scmp.ne.s32.totalorder %s94, %s95
      %p104 = scmp.eq.s32.totalorder %s21, 0
      %p105 = por %p103, %p104
      %p106 = scmp.ne.s32.totalorder %s94, %s95
      %p107 = scmp.eq.s32.totalorder %s22, 1
      %p108 = por %p106, %p107
      %p110 = scmp.ne.s32.totalorder %s95, %s109
      %p111 = scmp.eq.s32.totalorder %s22, 0
      %p112 = por %p110, %p111
      %s114 = sadd.s32 %s113, 1
      %p117 = scmp.eq.s32.totalorder %s16, 1
      %p118 = scmp.ne.s32.totalorder %s113, %s115
      %p119 = scmp.eq.s32.totalorder %s16, 0
      %p120 = por %p118, %p119
      %p121 = scmp.ne.s32.totalorder %s113, %s115
      %p122 = scmp.eq.s32.totalorder %s21, 1
      %p123 = por %p121, %p122
      %p124 = scmp.ne.s32.totalorder %s115, %s116
      %p125 = scmp.eq.s32.totalorder %s21, 0
      %p126 = por %p124, %p125
      %p127 = scmp.ne.s32.totalorder %s115, %s116
      %p128 = scmp.eq.s32.totalorder %s22, 1
      %p129 = por %p127, %p128
      %p131 = scmp.ne.s32.totalorder %s116, %s130
      %p132 = scmp.eq.s32.totalorder %s22, 0
      %p133 = por %p131, %p132
      %s135 = sadd.s32 %s134, 1
      %p138 = scmp.eq.s32.totalorder %s16, 1
      %p139 = scmp.ne.s32.totalorder %s134, %s136
      %p140 = scmp.eq.s32.totalorder %s16, 0
      %p141 = por %p139, %p140
      %p142 = scmp.ne.s32.totalorder %s134, %s136
      %p143 = scmp.eq.s32.totalorder %s21, 1
      %p144 = por %p142, %p143
      %p145 = scmp.ne.s32.totalorder %s136, %s137
      %p146 = scmp.eq.s32.totalorder %s21, 0
      %p147 = por %p145, %p146
      %p148 = scmp.ne.s32.totalorder %s136, %s137
      %p149 = scmp.eq.s32.totalorder %s22, 1
      %p150 = por %p148, %p149
      %p152 = scmp.ne.s32.totalorder %s137, %s151
      %p153 = scmp.eq.s32.totalorder %s22, 0
      %p154 = por %p152, %p153
      %s156 = sadd.s32 %s155, 1
      %p159 = scmp.eq.s32.totalorder %s16, 1
      %p160 = scmp.ne.s32.totalorder %s155, %s157
      %p161 = scmp.eq.s32.totalorder %s16, 0
      %p162 = por %p160, %p161
      %p163 = scmp.ne.s32.totalorder %s155, %s157
      %p164 = scmp.eq.s32.totalorder %s21, 1
      %p165 = por %p163, %p164
      %p166 = scmp.ne.s32.totalorder %s157, %s158
      %p167 = scmp.eq.s32.totalorder %s21, 0
      %p168 = por %p166, %p167
      %p169 = scmp.ne.s32.totalorder %s157, %s158
      %p170 = scmp.eq.s32.totalorder %s22, 1
      %p171 = por %p169, %p170
      %p173 = scmp.ne.s32.totalorder %s158, %s172
      %p174 = scmp.eq.s32.totalorder %s22, 0
      %p175 = por %p173, %p174
      %s176 = ssub.s32 %s16, %s23
      %p177 = scmp.eq.s32.totalorder %s176, 0
      %s179 = sadd.s32 %s178, 1
      %s180 = scalar_select %p177, %s178, %s179
      %p183 = pneg %p177
      %p184 = scmp.eq.s32.totalorder %s16, 1
      %p185 = por %p183, %p184
      %p186 = scmp.ne.s32.totalorder %s178, %s181
      %p187 = scmp.eq.s32.totalorder %s16, 0
      %p188 = por %p186, %p187
      %p189 = scmp.ne.s32.totalorder %s178, %s181
      %p190 = scmp.eq.s32.totalorder %s21, 1
      %p191 = por %p189, %p190
      %p192 = scmp.ne.s32.totalorder %s181, %s182
      %p193 = scmp.eq.s32.totalorder %s21, 0
      %p194 = por %p192, %p193
      %p195 = scmp.ne.s32.totalorder %s181, %s182
      %p196 = scmp.eq.s32.totalorder %s22, 1
      %p197 = por %p195, %p196
      %p199 = scmp.ne.s32.totalorder %s182, %s198
      %p200 = scmp.eq.s32.totalorder %s22, 0
      %p201 = por %p199, %p200
      %p202 = scmp.le.s32.totalorder 1, %s16
      %p203 = scmp.lt.s32.totalorder %s16, 3
      %p204 = pnand %p202, %p203
      %p205 = pneg %p204
      // Predicated region
      $region9: #{tpu_custom_call.1} parent=5 // pred_check
        _
      $region10: #{tpu_custom_call.1} parent=5 // pred_check_branch
        %207 = sbr.rel (%p204) target = $region12
      $region11: #{tpu_custom_call.1} parent=5 // pred_region
        %s208 = ssub.s32 %s16, 1
        // Predicated region
        $region13: #{tpu_custom_call.1} parent=11 // pred_check
          %p209 = pneg %p63
        $region14: #{tpu_custom_call.1} parent=11 // pred_check_branch
          %211 = sbr.rel (%p209) target = $region16
        $region15: #{tpu_custom_call.1} parent=11 // pred_region
          _
        $region16: #{tpu_custom_call.1} parent=11 // pred_fallthru
          _
        // Predicated region
        $region17: #{tpu_custom_call.1} parent=11 // pred_check
          %p212 = pneg %p84
        $region18: #{tpu_custom_call.1} parent=11 // pred_check_branch
          %214 = sbr.rel (%p212) target = $region20
        $region19: #{tpu_custom_call.1} parent=11 // pred_region
          _
        $region20: #{tpu_custom_call.1} parent=11 // pred_fallthru
          _
        // Predicated region
        $region21: #{tpu_custom_call.1} parent=11 // pred_check
          %p215 = pneg %p105
        $region22: #{tpu_custom_call.1} parent=11 // pred_check_branch
          %217 = sbr.rel (%p215) target = $region24
        $region23: #{tpu_custom_call.1} parent=11 // pred_region
          _
        $region24: #{tpu_custom_call.1} parent=11 // pred_fallthru
          _
        // Predicated region
        $region25: #{tpu_custom_call.1} parent=11 // pred_check
          %p218 = pneg %p126
        $region26: #{tpu_custom_call.1} parent=11 // pred_check_branch
          %220 = sbr.rel (%p218) target = $region28
        $region27: #{tpu_custom_call.1} parent=11 // pred_region
          _
        $region28: #{tpu_custom_call.1} parent=11 // pred_fallthru
          _
        // Predicated region
        $region29: #{tpu_custom_call.1} parent=11 // pred_check
          %p221 = pneg %p147
        $region30: #{tpu_custom_call.1} parent=11 // pred_check_branch
          %223 = sbr.rel (%p221) target = $region32
        $region31: #{tpu_custom_call.1} parent=11 // pred_region
          _
        $region32: #{tpu_custom_call.1} parent=11 // pred_fallthru
          _
        // Predicated region
        $region33: #{tpu_custom_call.1} parent=11 // pred_check
          %p224 = pneg %p168
        $region34: #{tpu_custom_call.1} parent=11 // pred_check_branch
          %226 = sbr.rel (%p224) target = $region36
        $region35: #{tpu_custom_call.1} parent=11 // pred_region
          _
        $region36: #{tpu_custom_call.1} parent=11 // pred_fallthru
          _
      $region12: #{tpu_custom_call.1} parent=5 // pred_fallthru
        _
      %p227 = scmp.lt.s32.totalorder %s16, 2
      // Predicated region
      $region37: #{tpu_custom_call.1} parent=5 // pred_check
        %p228 = pneg %p227
      $region38: #{tpu_custom_call.1} parent=5 // pred_check_branch
        %230 = sbr.rel (%p228) target = $region40
      $region39: #{tpu_custom_call.1} parent=5 // pred_region
        // Predicated region
        $region41: #{tpu_custom_call.1} parent=39 // pred_check
          %p231 = pneg %p36
        $region42: #{tpu_custom_call.1} parent=39 // pred_check_branch
          %233 = sbr.rel (%p231) target = $region44
        $region43: #{tpu_custom_call.1} parent=39 // pred_region
          %p234 = scmp.lt.s32.totalorder %s16, 1
          %s235 = scalar_select %p234, %s16, 1
          %s236 = smul.addr %s235, 24
          %s237 = smul.addr %s236, 8
          %s238 = scalar_lea.vmem %s0, %s237
        $region44: #{tpu_custom_call.1} parent=39 // pred_fallthru
          _
      $region40: #{tpu_custom_call.1} parent=5 // pred_fallthru
        _
      %p239 = scmp.le.s32.totalorder 1, %s16
      %p240 = scmp.lt.s32.totalorder %s16, 3
      %p241 = pnand %p239, %p240
      %p242 = pneg %p241
      // Predicated region
      $region45: #{tpu_custom_call.1} parent=5 // pred_check
        _
      $region46: #{tpu_custom_call.1} parent=5 // pred_check_branch
        %244 = sbr.rel (%p241) target = $region48
      $region47: #{tpu_custom_call.1} parent=5 // pred_region
        %s245 = ssub.s32 %s16, 1
        %p246 = scmp.lt.s32.totalorder %s21, 1
        %s247 = scalar_select %p246, %s21, 1
        %s248 = smul.addr %s247, 24
        %s249 = smul.addr %s248, 8
        %s250 = scalar_lea.vmem %s0, %s249
        %p251 = pneg %p42
        %p252 = pneg %p39
        %p253 = pneg %p63
        %p254 = pneg %p60
        %p255 = pneg %p84
        %p256 = pneg %p81
        %p257 = pneg %p105
        %p258 = pneg %p102
        %p259 = pneg %p126
        %p260 = pneg %p123
        %p261 = pneg %p147
        %p262 = pneg %p144
        %p263 = pneg %p168
        %p264 = pneg %p165
        %p265 = pneg %p194
        %p266 = pneg %p191
        %s267 = sand.u32 %s181, 1
        %s268 = scalar_lea.sflag [#allocation3], %s267
        %s269 = sand.u32 %s181, 1
        %s270 = smul.addr %s269, 96
        %s271 = scalar_lea.vmem [#allocation2], %s270
        %p272 = scmp.lt.s32.totalorder %s21, 1
        %s273 = scalar_select %p272, %s21, 1
        %s274 = smul.addr %s273, 24
        %s275 = smul.addr %s274, 8
        %s276 = scalar_lea.vmem %s0, %s275
        %v277 = vld [vmem:[%s276] sm:$0xff]
        %v278 = vld [vmem:[%s276 + $0x8] sm:$0xff]
        %v279 = vld [vmem:[%s276 + $0x10] sm:$0xf]
        %v280 = vld [vmem:[%s276 + $0x18] sm:$0xff]
        %v281 = vld [vmem:[%s276 + $0x20] sm:$0xff]
        %v282 = vld [vmem:[%s276 + $0x28] sm:$0xf]
        %v283 = vld [vmem:[%s276 + $0x30] sm:$0xff]
        %v284 = vld [vmem:[%s276 + $0x38] sm:$0xff]
        %v285 = vld [vmem:[%s276 + $0x40] sm:$0xf]
        %v286 = vld [vmem:[%s276 + $0x48] sm:$0xff]
        %v287 = vld [vmem:[%s276 + $0x50] sm:$0xff]
        %v288 = vld [vmem:[%s276 + $0x58] sm:$0xf]
        %v289 = vld [vmem:[%s276 + $0x60] sm:$0xff]
        %v290 = vld [vmem:[%s276 + $0x68] sm:$0xff]
        %v291 = vld [vmem:[%s276 + $0x70] sm:$0xf]
        %v292 = vld [vmem:[%s276 + $0x78] sm:$0xff]
        %v293 = vld [vmem:[%s276 + $0x80] sm:$0xff]
        %v294 = vld [vmem:[%s276 + $0x88] sm:$0xf]
        %v295 = vld [vmem:[%s276 + $0x90] sm:$0xff]
        %v296 = vld [vmem:[%s276 + $0x98] sm:$0xff]
        %v297 = vld [vmem:[%s276 + $0xa0] sm:$0xf]
        %v298 = vld [vmem:[%s276 + $0xa8] sm:$0xff]
        %v299 = vld [vmem:[%s276 + $0xb0] sm:$0xff]
        %v300 = vld [vmem:[%s276 + $0xb8] sm:$0xf]
        %v301 = vrot.slane %v283, 4
        %vm302 = vcmask 1047556
        %v303 = vsel %vm302, %v301, %v277
        %v304 = vrot.slane %v277, 4
        %v305 = vsel %vm302, %v283, %v304
        %v307 = vunpack.c.l.s4 1983009808
        %v308 = vunpack.c.0.s8 %v307
        %v309 = vperm.slane %v303, %v308
        %v311 = vunpack.c.l.s4 1983009808
        %v312 = vunpack.c.0.s8 %v311
        %v313 = vperm.slane %v305, %v312
        %v314 = vrot.slane %v286, 4
        %v315 = vsel %vm302, %v314, %v280
        %v316 = vrot.slane %v280, 4
        %v317 = vsel %vm302, %v286, %v316
        %v319 = vunpack.c.l.s4 1983009808
        %v320 = vunpack.c.0.s8 %v319
        %v321 = vperm.slane %v315, %v320
        %v323 = vunpack.c.l.s4 1983009808
        %v324 = vunpack.c.0.s8 %v323
        %v325 = vperm.slane %v317, %v324
        %v326 = vrot.slane %v295, 4
        %v327 = vsel %vm302, %v326, %v289
        %v328 = vrot.slane %v289, 4
        %v329 = vsel %vm302, %v295, %v328
        %v331 = vunpack.c.l.s4 1983009808
        %v332 = vunpack.c.0.s8 %v331
        %v333 = vperm.slane %v327, %v332
        %v335 = vunpack.c.l.s4 1983009808
        %v336 = vunpack.c.0.s8 %v335
        %v337 = vperm.slane %v329, %v336
        %v338 = vrot.slane %v298, 4
        %v339 = vsel %vm302, %v338, %v292
        %v340 = vrot.slane %v292, 4
        %v341 = vsel %vm302, %v298, %v340
        %v343 = vunpack.c.l.s4 1983009808
        %v344 = vunpack.c.0.s8 %v343
        %v345 = vperm.slane %v339, %v344
        %v347 = vunpack.c.l.s4 1983009808
        %v348 = vunpack.c.0.s8 %v347
        %v349 = vperm.slane %v341, %v348
        %v350 = vrot.slane %v321, 4
        %v351 = vsel %vm302, %v350, %v309
        %v352 = vrot.slane %v309, 4
        %v353 = vsel %vm302, %v321, %v352
        %v355 = vunpack.c.l.s4 1934713408
        %v356 = vunpack.c.0.s8 %v355
        %v357 = vperm.slane %v351, %v356
        %v359 = vunpack.c.l.s4 1934713408
        %v360 = vunpack.c.0.s8 %v359
        %v361 = vperm.slane %v353, %v360
        %v362 = vrot.slane %v325, 4
        %v363 = vsel %vm302, %v362, %v313
        %v364 = vrot.slane %v313, 4
        %v365 = vsel %vm302, %v325, %v364
        %v367 = vunpack.c.l.s4 1934713408
        %v368 = vunpack.c.0.s8 %v367
        %v369 = vperm.slane %v363, %v368
        %v371 = vunpack.c.l.s4 1934713408
        %v372 = vunpack.c.0.s8 %v371
        %v373 = vperm.slane %v365, %v372
        %v374 = vrot.slane %v345, 4
        %v375 = vsel %vm302, %v374, %v333
        %v376 = vrot.slane %v333, 4
        %v377 = vsel %vm302, %v345, %v376
        %v379 = vunpack.c.l.s4 1934713408
        %v380 = vunpack.c.0.s8 %v379
        %v381 = vperm.slane %v375, %v380
        %v383 = vunpack.c.l.s4 1934713408
        %v384 = vunpack.c.0.s8 %v383
        %v385 = vperm.slane %v377, %v384
        %v386 = vrot.slane %v349, 4
        %v387 = vsel %vm302, %v386, %v337
        %v388 = vrot.slane %v337, 4
        %v389 = vsel %vm302, %v349, %v388
        %v391 = vunpack.c.l.s4 1934713408
        %v392 = vunpack.c.0.s8 %v391
        %v393 = vperm.slane %v387, %v392
        %v395 = vunpack.c.l.s4 1934713408
        %v396 = vunpack.c.0.s8 %v395
        %v397 = vperm.slane %v389, %v396
        %v398 = vrot.slane %v381, 4
        %v399 = vsel %vm302, %v398, %v357
        %v400 = vrot.slane %v357, 4
        %v401 = vsel %vm302, %v381, %v400
        %v402 = vrot.slane %v385, 4
        %v403 = vsel %vm302, %v402, %v361
        %v404 = vrot.slane %v361, 4
        %v405 = vsel %vm302, %v385, %v404
        %v406 = vrot.slane %v393, 4
        %v407 = vsel %vm302, %v406, %v369
        %v408 = vrot.slane %v369, 4
        %v409 = vsel %vm302, %v393, %v408
        %v410 = vrot.slane %v397, 4
        %v411 = vsel %vm302, %v410, %v373
        %v412 = vrot.slane %v373, 4
        %v413 = vsel %vm302, %v397, %v412
        %v414 = vrot.slane %v284, 4
        %v415 = vsel %vm302, %v414, %v278
        %v416 = vrot.slane %v278, 4
        %v417 = vsel %vm302, %v284, %v416
        %v419 = vunpack.c.l.s4 1983009808
        %v420 = vunpack.c.0.s8 %v419
        %v421 = vperm.slane %v415, %v420
        %v423 = vunpack.c.l.s4 1983009808
        %v424 = vunpack.c.0.s8 %v423
        %v425 = vperm.slane %v417, %v424
        %v426 = vrot.slane %v287, 4
        %v427 = vsel %vm302, %v426, %v281
        %v428 = vrot.slane %v281, 4
        %v429 = vsel %vm302, %v287, %v428
        %v431 = vunpack.c.l.s4 1983009808
        %v432 = vunpack.c.0.s8 %v431
        %v433 = vperm.slane %v427, %v432
        %v435 = vunpack.c.l.s4 1983009808
        %v436 = vunpack.c.0.s8 %v435
        %v437 = vperm.slane %v429, %v436
        %v438 = vrot.slane %v296, 4
        %v439 = vsel %vm302, %v438, %v290
        %v440 = vrot.slane %v290, 4
        %v441 = vsel %vm302, %v296, %v440
        %v443 = vunpack.c.l.s4 1983009808
        %v444 = vunpack.c.0.s8 %v443
        %v445 = vperm.slane %v439, %v444
        %v447 = vunpack.c.l.s4 1983009808
        %v448 = vunpack.c.0.s8 %v447
        %v449 = vperm.slane %v441, %v448
        %v450 = vrot.slane %v299, 4
        %v451 = vsel %vm302, %v450, %v293
        %v452 = vrot.slane %v293, 4
        %v453 = vsel %vm302, %v299, %v452
        %v455 = vunpack.c.l.s4 1983009808
        %v456 = vunpack.c.0.s8 %v455
        %v457 = vperm.slane %v451, %v456
        %v459 = vunpack.c.l.s4 1983009808
        %v460 = vunpack.c.0.s8 %v459
        %v461 = vperm.slane %v453, %v460
        %v462 = vrot.slane %v433, 4
        %v463 = vsel %vm302, %v462, %v421
        %v464 = vrot.slane %v421, 4
        %v465 = vsel %vm302, %v433, %v464
        %v467 = vunpack.c.l.s4 1934713408
        %v468 = vunpack.c.0.s8 %v467
        %v469 = vperm.slane %v463, %v468
        %v471 = vunpack.c.l.s4 1934713408
        %v472 = vunpack.c.0.s8 %v471
        %v473 = vperm.slane %v465, %v472
        %v474 = vrot.slane %v437, 4
        %v475 = vsel %vm302, %v474, %v425
        %v476 = vrot.slane %v425, 4
        %v477 = vsel %vm302, %v437, %v476
        %v479 = vunpack.c.l.s4 1934713408
        %v480 = vunpack.c.0.s8 %v479
        %v481 = vperm.slane %v475, %v480
        %v483 = vunpack.c.l.s4 1934713408
        %v484 = vunpack.c.0.s8 %v483
        %v485 = vperm.slane %v477, %v484
        %v486 = vrot.slane %v457, 4
        %v487 = vsel %vm302, %v486, %v445
        %v488 = vrot.slane %v445, 4
        %v489 = vsel %vm302, %v457, %v488
        %v491 = vunpack.c.l.s4 1934713408
        %v492 = vunpack.c.0.s8 %v491
        %v493 = vperm.slane %v487, %v492
        %v495 = vunpack.c.l.s4 1934713408
        %v496 = vunpack.c.0.s8 %v495
        %v497 = vperm.slane %v489, %v496
        %v498 = vrot.slane %v461, 4
        %v499 = vsel %vm302, %v498, %v449
        %v500 = vrot.slane %v449, 4
        %v501 = vsel %vm302, %v461, %v500
        %v503 = vunpack.c.l.s4 1934713408
        %v504 = vunpack.c.0.s8 %v503
        %v505 = vperm.slane %v499, %v504
        %v507 = vunpack.c.l.s4 1934713408
        %v508 = vunpack.c.0.s8 %v507
        %v509 = vperm.slane %v501, %v508
        %v510 = vrot.slane %v493, 4
        %v511 = vsel %vm302, %v510, %v469
        %v512 = vrot.slane %v469, 4
        %v513 = vsel %vm302, %v493, %v512
        %v514 = vrot.slane %v497, 4
        %v515 = vsel %vm302, %v514, %v473
        %v516 = vrot.slane %v473, 4
        %v517 = vsel %vm302, %v497, %v516
        %v518 = vrot.slane %v505, 4
        %v519 = vsel %vm302, %v518, %v481
        %v520 = vrot.slane %v481, 4
        %v521 = vsel %vm302, %v505, %v520
        %v522 = vrot.slane %v509, 4
        %v523 = vsel %vm302, %v522, %v485
        %v524 = vrot.slane %v485, 4
        %v525 = vsel %vm302, %v509, %v524
        %527 = vrot.lane.b32.xlu0 %v401, 16
        %v528 = vpop.permute.xlu0 %527
        %531 = vrot.lane.b32.xlu0 %v403, 32
        %v532 = vpop.permute.xlu0 %531
        %535 = vrot.lane.b32.xlu0 %v405, 48
        %v536 = vpop.permute.xlu0 %535
        %539 = vrot.lane.b32.xlu0 %v407, 64
        %v540 = vpop.permute.xlu0 %539
        %543 = vrot.lane.b32.xlu0 %v409, 80
        %v544 = vpop.permute.xlu0 %543
        %547 = vrot.lane.b32.xlu0 %v411, 96
        %v548 = vpop.permute.xlu0 %547
        %551 = vrot.lane.b32.xlu0 %v413, 112
        %v552 = vpop.permute.xlu0 %551
        %555 = vrot.lane.b32.xlu0 %v513, 16
        %v556 = vpop.permute.xlu0 %555
        %559 = vrot.lane.b32.xlu0 %v515, 32
        %v560 = vpop.permute.xlu0 %559
        %563 = vrot.lane.b32.xlu0 %v517, 48
        %v564 = vpop.permute.xlu0 %563
        %567 = vrot.lane.b32.xlu0 %v519, 64
        %v568 = vpop.permute.xlu0 %567
        %571 = vrot.lane.b32.xlu0 %v521, 80
        %v572 = vpop.permute.xlu0 %571
        %575 = vrot.lane.b32.xlu0 %v523, 96
        %v576 = vpop.permute.xlu0 %575
        %579 = vrot.lane.b32.xlu0 %v525, 112
        %v580 = vpop.permute.xlu0 %579
        %vm582 = vcmask 130048
        %v583 = vsel %vm582, %v399, %v528
        %vm584 = vcmask 261120
        %v585 = vsel %vm584, %v583, %v532
        %vm586 = vcmask 392192
        %v587 = vsel %vm586, %v585, %v536
        %vm588 = vcmask 523264
        %v589 = vsel %vm588, %v587, %v540
        %vm590 = vcmask 654336
        %v591 = vsel %vm590, %v589, %v544
        %vm592 = vcmask 785408
        %v593 = vsel %vm592, %v591, %v548
        %vm594 = vcmask 916480
        %v595 = vsel %vm594, %v593, %v552
        %v596 = vsel %vm582, %v511, %v556
        %v597 = vsel %vm584, %v596, %v560
        %v598 = vsel %vm586, %v597, %v564
        %v599 = vsel %vm588, %v598, %v568
        %v600 = vsel %vm590, %v599, %v572
        %v601 = vsel %vm592, %v600, %v576
        %v602 = vsel %vm594, %v601, %v580
        %619 = vrot.lane.b32.xlu0 %v277, 127
        %v620 = vpop.permute.xlu0 %619
        %621 = vrot.lane.b32.xlu0 %v278, 127
        %v622 = vpop.permute.xlu0 %621
        %623 = vrot.lane.b32.xlu0 %v280, 127
        %v624 = vpop.permute.xlu0 %623
        %625 = vrot.lane.b32.xlu0 %v281, 127
        %v626 = vpop.permute.xlu0 %625
        %627 = vrot.lane.b32.xlu0 %v283, 127
        %v628 = vpop.permute.xlu0 %627
        %629 = vrot.lane.b32.xlu0 %v284, 127
        %v630 = vpop.permute.xlu0 %629
        %631 = vrot.lane.b32.xlu0 %v286, 127
        %v632 = vpop.permute.xlu0 %631
        %633 = vrot.lane.b32.xlu0 %v287, 127
        %v634 = vpop.permute.xlu0 %633
        %635 = vrot.lane.b32.xlu0 %v289, 127
        %v636 = vpop.permute.xlu0 %635
        %637 = vrot.lane.b32.xlu0 %v290, 127
        %v638 = vpop.permute.xlu0 %637
        %639 = vrot.lane.b32.xlu0 %v292, 127
        %v640 = vpop.permute.xlu0 %639
        %641 = vrot.lane.b32.xlu0 %v293, 127
        %v642 = vpop.permute.xlu0 %641
        %643 = vrot.lane.b32.xlu0 %v295, 127
        %v644 = vpop.permute.xlu0 %643
        %645 = vrot.lane.b32.xlu0 %v296, 127
        %v646 = vpop.permute.xlu0 %645
        %647 = vrot.lane.b32.xlu0 %v298, 127
        %v648 = vpop.permute.xlu0 %647
        %649 = vrot.lane.b32.xlu0 %v299, 127
        %v650 = vpop.permute.xlu0 %649
        %v667 = vrot.slane %v628, 4
        %v668 = vsel %vm302, %v667, %v620
        %v669 = vrot.slane %v620, 4
        %v670 = vsel %vm302, %v628, %v669
        %v672 = vunpack.c.l.s4 1983009808
        %v673 = vunpack.c.0.s8 %v672
        %v674 = vperm.slane %v668, %v673
        %v676 = vunpack.c.l.s4 1983009808
        %v677 = vunpack.c.0.s8 %v676
        %v678 = vperm.slane %v670, %v677
        %v679 = vrot.slane %v632, 4
        %v680 = vsel %vm302, %v679, %v624
        %v681 = vrot.slane %v624, 4
        %v682 = vsel %vm302, %v632, %v681
        %v684 = vunpack.c.l.s4 1983009808
        %v685 = vunpack.c.0.s8 %v684
        %v686 = vperm.slane %v680, %v685
        %v688 = vunpack.c.l.s4 1983009808
        %v689 = vunpack.c.0.s8 %v688
        %v690 = vperm.slane %v682, %v689
        %v691 = vrot.slane %v644, 4
        %v692 = vsel %vm302, %v691, %v636
        %v693 = vrot.slane %v636, 4
        %v694 = vsel %vm302, %v644, %v693
        %v696 = vunpack.c.l.s4 1983009808
        %v697 = vunpack.c.0.s8 %v696
        %v698 = vperm.slane %v692, %v697
        %v700 = vunpack.c.l.s4 1983009808
        %v701 = vunpack.c.0.s8 %v700
        %v702 = vperm.slane %v694, %v701
        %v703 = vrot.slane %v648, 4
        %v704 = vsel %vm302, %v703, %v640
        %v705 = vrot.slane %v640, 4
        %v706 = vsel %vm302, %v648, %v705
        %v708 = vunpack.c.l.s4 1983009808
        %v709 = vunpack.c.0.s8 %v708
        %v710 = vperm.slane %v704, %v709
        %v712 = vunpack.c.l.s4 1983009808
        %v713 = vunpack.c.0.s8 %v712
        %v714 = vperm.slane %v706, %v713
        %v715 = vrot.slane %v686, 4
        %v716 = vsel %vm302, %v715, %v674
        %v717 = vrot.slane %v674, 4
        %v718 = vsel %vm302, %v686, %v717
        %v720 = vunpack.c.l.s4 1934713408
        %v721 = vunpack.c.0.s8 %v720
        %v722 = vperm.slane %v716, %v721
        %v724 = vunpack.c.l.s4 1934713408
        %v725 = vunpack.c.0.s8 %v724
        %v726 = vperm.slane %v718, %v725
        %v727 = vrot.slane %v690, 4
        %v728 = vsel %vm302, %v727, %v678
        %v729 = vrot.slane %v678, 4
        %v730 = vsel %vm302, %v690, %v729
        %v732 = vunpack.c.l.s4 1934713408
        %v733 = vunpack.c.0.s8 %v732
        %v734 = vperm.slane %v728, %v733
        %v736 = vunpack.c.l.s4 1934713408
        %v737 = vunpack.c.0.s8 %v736
        %v738 = vperm.slane %v730, %v737
        %v739 = vrot.slane %v710, 4
        %v740 = vsel %vm302, %v739, %v698
        %v741 = vrot.slane %v698, 4
        %v742 = vsel %vm302, %v710, %v741
        %v744 = vunpack.c.l.s4 1934713408
        %v745 = vunpack.c.0.s8 %v744
        %v746 = vperm.slane %v740, %v745
        %v748 = vunpack.c.l.s4 1934713408
        %v749 = vunpack.c.0.s8 %v748
        %v750 = vperm.slane %v742, %v749
        %v751 = vrot.slane %v714, 4
        %v752 = vsel %vm302, %v751, %v702
        %v753 = vrot.slane %v702, 4
        %v754 = vsel %vm302, %v714, %v753
        %v756 = vunpack.c.l.s4 1934713408
        %v757 = vunpack.c.0.s8 %v756
        %v758 = vperm.slane %v752, %v757
        %v760 = vunpack.c.l.s4 1934713408
        %v761 = vunpack.c.0.s8 %v760
        %v762 = vperm.slane %v754, %v761
        %v763 = vrot.slane %v746, 4
        %v764 = vsel %vm302, %v763, %v722
        %v765 = vrot.slane %v722, 4
        %v766 = vsel %vm302, %v746, %v765
        %v767 = vrot.slane %v750, 4
        %v768 = vsel %vm302, %v767, %v726
        %v769 = vrot.slane %v726, 4
        %v770 = vsel %vm302, %v750, %v769
        %v771 = vrot.slane %v758, 4
        %v772 = vsel %vm302, %v771, %v734
        %v773 = vrot.slane %v734, 4
        %v774 = vsel %vm302, %v758, %v773
        %v775 = vrot.slane %v762, 4
        %v776 = vsel %vm302, %v775, %v738
        %v777 = vrot.slane %v738, 4
        %v778 = vsel %vm302, %v762, %v777
        %v779 = vrot.slane %v630, 4
        %v780 = vsel %vm302, %v779, %v622
        %v781 = vrot.slane %v622, 4
        %v782 = vsel %vm302, %v630, %v781
        %v784 = vunpack.c.l.s4 1983009808
        %v785 = vunpack.c.0.s8 %v784
        %v786 = vperm.slane %v780, %v785
        %v788 = vunpack.c.l.s4 1983009808
        %v789 = vunpack.c.0.s8 %v788
        %v790 = vperm.slane %v782, %v789
        %v791 = vrot.slane %v634, 4
        %v792 = vsel %vm302, %v791, %v626
        %v793 = vrot.slane %v626, 4
        %v794 = vsel %vm302, %v634, %v793
        %v796 = vunpack.c.l.s4 1983009808
        %v797 = vunpack.c.0.s8 %v796
        %v798 = vperm.slane %v792, %v797
        %v800 = vunpack.c.l.s4 1983009808
        %v801 = vunpack.c.0.s8 %v800
        %v802 = vperm.slane %v794, %v801
        %v803 = vrot.slane %v646, 4
        %v804 = vsel %vm302, %v803, %v638
        %v805 = vrot.slane %v638, 4
        %v806 = vsel %vm302, %v646, %v805
        %v808 = vunpack.c.l.s4 1983009808
        %v809 = vunpack.c.0.s8 %v808
        %v810 = vperm.slane %v804, %v809
        %v812 = vunpack.c.l.s4 1983009808
        %v813 = vunpack.c.0.s8 %v812
        %v814 = vperm.slane %v806, %v813
        %v815 = vrot.slane %v650, 4
        %v816 = vsel %vm302, %v815, %v642
        %v817 = vrot.slane %v642, 4
        %v818 = vsel %vm302, %v650, %v817
        %v820 = vunpack.c.l.s4 1983009808
        %v821 = vunpack.c.0.s8 %v820
        %v822 = vperm.slane %v816, %v821
        %v824 = vunpack.c.l.s4 1983009808
        %v825 = vunpack.c.0.s8 %v824
        %v826 = vperm.slane %v818, %v825
        %v827 = vrot.slane %v798, 4
        %v828 = vsel %vm302, %v827, %v786
        %v829 = vrot.slane %v786, 4
        %v830 = vsel %vm302, %v798, %v829
        %v832 = vunpack.c.l.s4 1934713408
        %v833 = vunpack.c.0.s8 %v832
        %v834 = vperm.slane %v828, %v833
        %v836 = vunpack.c.l.s4 1934713408
        %v837 = vunpack.c.0.s8 %v836
        %v838 = vperm.slane %v830, %v837
        %v839 = vrot.slane %v802, 4
        %v840 = vsel %vm302, %v839, %v790
        %v841 = vrot.slane %v790, 4
        %v842 = vsel %vm302, %v802, %v841
        %v844 = vunpack.c.l.s4 1934713408
        %v845 = vunpack.c.0.s8 %v844
        %v846 = vperm.slane %v840, %v845
        %v848 = vunpack.c.l.s4 1934713408
        %v849 = vunpack.c.0.s8 %v848
        %v850 = vperm.slane %v842, %v849
        %v851 = vrot.slane %v822, 4
        %v852 = vsel %vm302, %v851, %v810
        %v853 = vrot.slane %v810, 4
        %v854 = vsel %vm302, %v822, %v853
        %v856 = vunpack.c.l.s4 1934713408
        %v857 = vunpack.c.0.s8 %v856
        %v858 = vperm.slane %v852, %v857
        %v860 = vunpack.c.l.s4 1934713408
        %v861 = vunpack.c.0.s8 %v860
        %v862 = vperm.slane %v854, %v861
        %v863 = vrot.slane %v826, 4
        %v864 = vsel %vm302, %v863, %v814
        %v865 = vrot.slane %v814, 4
        %v866 = vsel %vm302, %v826, %v865
        %v868 = vunpack.c.l.s4 1934713408
        %v869 = vunpack.c.0.s8 %v868
        %v870 = vperm.slane %v864, %v869
        %v872 = vunpack.c.l.s4 1934713408
        %v873 = vunpack.c.0.s8 %v872
        %v874 = vperm.slane %v866, %v873
        %v875 = vrot.slane %v858, 4
        %v876 = vsel %vm302, %v875, %v834
        %v877 = vrot.slane %v834, 4
        %v878 = vsel %vm302, %v858, %v877
        %v879 = vrot.slane %v862, 4
        %v880 = vsel %vm302, %v879, %v838
        %v881 = vrot.slane %v838, 4
        %v882 = vsel %vm302, %v862, %v881
        %v883 = vrot.slane %v870, 4
        %v884 = vsel %vm302, %v883, %v846
        %v885 = vrot.slane %v846, 4
        %v886 = vsel %vm302, %v870, %v885
        %v887 = vrot.slane %v874, 4
        %v888 = vsel %vm302, %v887, %v850
        %v889 = vrot.slane %v850, 4
        %v890 = vsel %vm302, %v874, %v889
        %892 = vrot.lane.b32.xlu0 %v766, 16
        %v893 = vpop.permute.xlu0 %892
        %896 = vrot.lane.b32.xlu0 %v768, 32
        %v897 = vpop.permute.xlu0 %896
        %900 = vrot.lane.b32.xlu0 %v770, 48
        %v901 = vpop.permute.xlu0 %900
        %904 = vrot.lane.b32.xlu0 %v772, 64
        %v905 = vpop.permute.xlu0 %904
        %908 = vrot.lane.b32.xlu0 %v774, 80
        %v909 = vpop.permute.xlu0 %908
        %912 = vrot.lane.b32.xlu0 %v776, 96
        %v913 = vpop.permute.xlu0 %912
        %916 = vrot.lane.b32.xlu0 %v778, 112
        %v917 = vpop.permute.xlu0 %916
        %920 = vrot.lane.b32.xlu0 %v878, 16
        %v921 = vpop.permute.xlu0 %920
        %924 = vrot.lane.b32.xlu0 %v880, 32
        %v925 = vpop.permute.xlu0 %924
        %928 = vrot.lane.b32.xlu0 %v882, 48
        %v929 = vpop.permute.xlu0 %928
        %932 = vrot.lane.b32.xlu0 %v884, 64
        %v933 = vpop.permute.xlu0 %932
        %936 = vrot.lane.b32.xlu0 %v886, 80
        %v937 = vpop.permute.xlu0 %936
        %940 = vrot.lane.b32.xlu0 %v888, 96
        %v941 = vpop.permute.xlu0 %940
        %944 = vrot.lane.b32.xlu0 %v890, 112
        %v945 = vpop.permute.xlu0 %944
        %v947 = vsel %vm582, %v764, %v893
        %v948 = vsel %vm584, %v947, %v897
        %v949 = vsel %vm586, %v948, %v901
        %v950 = vsel %vm588, %v949, %v905
        %v951 = vsel %vm590, %v950, %v909
        %v952 = vsel %vm592, %v951, %v913
        %v953 = vsel %vm594, %v952, %v917
        %v954 = vsel %vm582, %v876, %v921
        %v955 = vsel %vm584, %v954, %v925
        %v956 = vsel %vm586, %v955, %v929
        %v957 = vsel %vm588, %v956, %v933
        %v958 = vsel %vm590, %v957, %v937
        %v959 = vsel %vm592, %v958, %v941
        %v960 = vsel %vm594, %v959, %v945
        %961 = vrot.lane.b32.xlu0 %v277, 126
        %v962 = vpop.permute.xlu0 %961
        %963 = vrot.lane.b32.xlu0 %v278, 126
        %v964 = vpop.permute.xlu0 %963
        %965 = vrot.lane.b32.xlu0 %v280, 126
        %v966 = vpop.permute.xlu0 %965
        %967 = vrot.lane.b32.xlu0 %v281, 126
        %v968 = vpop.permute.xlu0 %967
        %969 = vrot.lane.b32.xlu0 %v283, 126
        %v970 = vpop.permute.xlu0 %969
        %971 = vrot.lane.b32.xlu0 %v284, 126
        %v972 = vpop.permute.xlu0 %971
        %973 = vrot.lane.b32.xlu0 %v286, 126
        %v974 = vpop.permute.xlu0 %973
        %975 = vrot.lane.b32.xlu0 %v287, 126
        %v976 = vpop.permute.xlu0 %975
        %977 = vrot.lane.b32.xlu0 %v289, 126
        %v978 = vpop.permute.xlu0 %977
        %979 = vrot.lane.b32.xlu0 %v290, 126
        %v980 = vpop.permute.xlu0 %979
        %981 = vrot.lane.b32.xlu0 %v292, 126
        %v982 = vpop.permute.xlu0 %981
        %983 = vrot.lane.b32.xlu0 %v293, 126
        %v984 = vpop.permute.xlu0 %983
        %985 = vrot.lane.b32.xlu0 %v295, 126
        %v986 = vpop.permute.xlu0 %985
        %987 = vrot.lane.b32.xlu0 %v296, 126
        %v988 = vpop.permute.xlu0 %987
        %989 = vrot.lane.b32.xlu0 %v298, 126
        %v990 = vpop.permute.xlu0 %989
        %991 = vrot.lane.b32.xlu0 %v299, 126
        %v992 = vpop.permute.xlu0 %991
        %v1009 = vrot.slane %v970, 4
        %v1010 = vsel %vm302, %v1009, %v962
        %v1011 = vrot.slane %v962, 4
        %v1012 = vsel %vm302, %v970, %v1011
        %v1014 = vunpack.c.l.s4 1983009808
        %v1015 = vunpack.c.0.s8 %v1014
        %v1016 = vperm.slane %v1010, %v1015
        %v1018 = vunpack.c.l.s4 1983009808
        %v1019 = vunpack.c.0.s8 %v1018
        %v1020 = vperm.slane %v1012, %v1019
        %v1021 = vrot.slane %v974, 4
        %v1022 = vsel %vm302, %v1021, %v966
        %v1023 = vrot.slane %v966, 4
        %v1024 = vsel %vm302, %v974, %v1023
        %v1026 = vunpack.c.l.s4 1983009808
        %v1027 = vunpack.c.0.s8 %v1026
        %v1028 = vperm.slane %v1022, %v1027
        %v1030 = vunpack.c.l.s4 1983009808
        %v1031 = vunpack.c.0.s8 %v1030
        %v1032 = vperm.slane %v1024, %v1031
        %v1033 = vrot.slane %v986, 4
        %v1034 = vsel %vm302, %v1033, %v978
        %v1035 = vrot.slane %v978, 4
        %v1036 = vsel %vm302, %v986, %v1035
        %v1038 = vunpack.c.l.s4 1983009808
        %v1039 = vunpack.c.0.s8 %v1038
        %v1040 = vperm.slane %v1034, %v1039
        %v1042 = vunpack.c.l.s4 1983009808
        %v1043 = vunpack.c.0.s8 %v1042
        %v1044 = vperm.slane %v1036, %v1043
        %v1045 = vrot.slane %v990, 4
        %v1046 = vsel %vm302, %v1045, %v982
        %v1047 = vrot.slane %v982, 4
        %v1048 = vsel %vm302, %v990, %v1047
        %v1050 = vunpack.c.l.s4 1983009808
        %v1051 = vunpack.c.0.s8 %v1050
        %v1052 = vperm.slane %v1046, %v1051
        %v1054 = vunpack.c.l.s4 1983009808
        %v1055 = vunpack.c.0.s8 %v1054
        %v1056 = vperm.slane %v1048, %v1055
        %v1057 = vrot.slane %v1028, 4
        %v1058 = vsel %vm302, %v1057, %v1016
        %v1059 = vrot.slane %v1016, 4
        %v1060 = vsel %vm302, %v1028, %v1059
        %v1062 = vunpack.c.l.s4 1934713408
        %v1063 = vunpack.c.0.s8 %v1062
        %v1064 = vperm.slane %v1058, %v1063
        %v1066 = vunpack.c.l.s4 1934713408
        %v1067 = vunpack.c.0.s8 %v1066
        %v1068 = vperm.slane %v1060, %v1067
        %v1069 = vrot.slane %v1032, 4
        %v1070 = vsel %vm302, %v1069, %v1020
        %v1071 = vrot.slane %v1020, 4
        %v1072 = vsel %vm302, %v1032, %v1071
        %v1074 = vunpack.c.l.s4 1934713408
        %v1075 = vunpack.c.0.s8 %v1074
        %v1076 = vperm.slane %v1070, %v1075
        %v1078 = vunpack.c.l.s4 1934713408
        %v1079 = vunpack.c.0.s8 %v1078
        %v1080 = vperm.slane %v1072, %v1079
        %v1081 = vrot.slane %v1052, 4
        %v1082 = vsel %vm302, %v1081, %v1040
        %v1083 = vrot.slane %v1040, 4
        %v1084 = vsel %vm302, %v1052, %v1083
        %v1086 = vunpack.c.l.s4 1934713408
        %v1087 = vunpack.c.0.s8 %v1086
        %v1088 = vperm.slane %v1082, %v1087
        %v1090 = vunpack.c.l.s4 1934713408
        %v1091 = vunpack.c.0.s8 %v1090
        %v1092 = vperm.slane %v1084, %v1091
        %v1093 = vrot.slane %v1056, 4
        %v1094 = vsel %vm302, %v1093, %v1044
        %v1095 = vrot.slane %v1044, 4
        %v1096 = vsel %vm302, %v1056, %v1095
        %v1098 = vunpack.c.l.s4 1934713408
        %v1099 = vunpack.c.0.s8 %v1098
        %v1100 = vperm.slane %v1094, %v1099
        %v1102 = vunpack.c.l.s4 1934713408
        %v1103 = vunpack.c.0.s8 %v1102
        %v1104 = vperm.slane %v1096, %v1103
        %v1105 = vrot.slane %v1088, 4
        %v1106 = vsel %vm302, %v1105, %v1064
        %v1107 = vrot.slane %v1064, 4
        %v1108 = vsel %vm302, %v1088, %v1107
        %v1109 = vrot.slane %v1092, 4
        %v1110 = vsel %vm302, %v1109, %v1068
        %v1111 = vrot.slane %v1068, 4
        %v1112 = vsel %vm302, %v1092, %v1111
        %v1113 = vrot.slane %v1100, 4
        %v1114 = vsel %vm302, %v1113, %v1076
        %v1115 = vrot.slane %v1076, 4
        %v1116 = vsel %vm302, %v1100, %v1115
        %v1117 = vrot.slane %v1104, 4
        %v1118 = vsel %vm302, %v1117, %v1080
        %v1119 = vrot.slane %v1080, 4
        %v1120 = vsel %vm302, %v1104, %v1119
        %v1121 = vrot.slane %v972, 4
        %v1122 = vsel %vm302, %v1121, %v964
        %v1123 = vrot.slane %v964, 4
        %v1124 = vsel %vm302, %v972, %v1123
        %v1126 = vunpack.c.l.s4 1983009808
        %v1127 = vunpack.c.0.s8 %v1126
        %v1128 = vperm.slane %v1122, %v1127
        %v1130 = vunpack.c.l.s4 1983009808
        %v1131 = vunpack.c.0.s8 %v1130
        %v1132 = vperm.slane %v1124, %v1131
        %v1133 = vrot.slane %v976, 4
        %v1134 = vsel %vm302, %v1133, %v968
        %v1135 = vrot.slane %v968, 4
        %v1136 = vsel %vm302, %v976, %v1135
        %v1138 = vunpack.c.l.s4 1983009808
        %v1139 = vunpack.c.0.s8 %v1138
        %v1140 = vperm.slane %v1134, %v1139
        %v1142 = vunpack.c.l.s4 1983009808
        %v1143 = vunpack.c.0.s8 %v1142
        %v1144 = vperm.slane %v1136, %v1143
        %v1145 = vrot.slane %v988, 4
        %v1146 = vsel %vm302, %v1145, %v980
        %v1147 = vrot.slane %v980, 4
        %v1148 = vsel %vm302, %v988, %v1147
        %v1150 = vunpack.c.l.s4 1983009808
        %v1151 = vunpack.c.0.s8 %v1150
        %v1152 = vperm.slane %v1146, %v1151
        %v1154 = vunpack.c.l.s4 1983009808
        %v1155 = vunpack.c.0.s8 %v1154
        %v1156 = vperm.slane %v1148, %v1155
        %v1157 = vrot.slane %v992, 4
        %v1158 = vsel %vm302, %v1157, %v984
        %v1159 = vrot.slane %v984, 4
        %v1160 = vsel %vm302, %v992, %v1159
        %v1162 = vunpack.c.l.s4 1983009808
        %v1163 = vunpack.c.0.s8 %v1162
        %v1164 = vperm.slane %v1158, %v1163
        %v1166 = vunpack.c.l.s4 1983009808
        %v1167 = vunpack.c.0.s8 %v1166
        %v1168 = vperm.slane %v1160, %v1167
        %v1169 = vrot.slane %v1140, 4
        %v1170 = vsel %vm302, %v1169, %v1128
        %v1171 = vrot.slane %v1128, 4
        %v1172 = vsel %vm302, %v1140, %v1171
        %v1174 = vunpack.c.l.s4 1934713408
        %v1175 = vunpack.c.0.s8 %v1174
        %v1176 = vperm.slane %v1170, %v1175
        %v1178 = vunpack.c.l.s4 1934713408
        %v1179 = vunpack.c.0.s8 %v1178
        %v1180 = vperm.slane %v1172, %v1179
        %v1181 = vrot.slane %v1144, 4
        %v1182 = vsel %vm302, %v1181, %v1132
        %v1183 = vrot.slane %v1132, 4
        %v1184 = vsel %vm302, %v1144, %v1183
        %v1186 = vunpack.c.l.s4 1934713408
        %v1187 = vunpack.c.0.s8 %v1186
        %v1188 = vperm.slane %v1182, %v1187
        %v1190 = vunpack.c.l.s4 1934713408
        %v1191 = vunpack.c.0.s8 %v1190
        %v1192 = vperm.slane %v1184, %v1191
        %v1193 = vrot.slane %v1164, 4
        %v1194 = vsel %vm302, %v1193, %v1152
        %v1195 = vrot.slane %v1152, 4
        %v1196 = vsel %vm302, %v1164, %v1195
        %v1198 = vunpack.c.l.s4 1934713408
        %v1199 = vunpack.c.0.s8 %v1198
        %v1200 = vperm.slane %v1194, %v1199
        %v1202 = vunpack.c.l.s4 1934713408
        %v1203 = vunpack.c.0.s8 %v1202
        %v1204 = vperm.slane %v1196, %v1203
        %v1205 = vrot.slane %v1168, 4
        %v1206 = vsel %vm302, %v1205, %v1156
        %v1207 = vrot.slane %v1156, 4
        %v1208 = vsel %vm302, %v1168, %v1207
        %v1210 = vunpack.c.l.s4 1934713408
        %v1211 = vunpack.c.0.s8 %v1210
        %v1212 = vperm.slane %v1206, %v1211
        %v1214 = vunpack.c.l.s4 1934713408
        %v1215 = vunpack.c.0.s8 %v1214
        %v1216 = vperm.slane %v1208, %v1215
        %v1217 = vrot.slane %v1200, 4
        %v1218 = vsel %vm302, %v1217, %v1176
        %v1219 = vrot.slane %v1176, 4
        %v1220 = vsel %vm302, %v1200, %v1219
        %v1221 = vrot.slane %v1204, 4
        %v1222 = vsel %vm302, %v1221, %v1180
        %v1223 = vrot.slane %v1180, 4
        %v1224 = vsel %vm302, %v1204, %v1223
        %v1225 = vrot.slane %v1212, 4
        %v1226 = vsel %vm302, %v1225, %v1188
        %v1227 = vrot.slane %v1188, 4
        %v1228 = vsel %vm302, %v1212, %v1227
        %v1229 = vrot.slane %v1216, 4
        %v1230 = vsel %vm302, %v1229, %v1192
        %v1231 = vrot.slane %v1192, 4
        %v1232 = vsel %vm302, %v1216, %v1231
        %1234 = vrot.lane.b32.xlu0 %v1108, 16
        %v1235 = vpop.permute.xlu0 %1234
        %1238 = vrot.lane.b32.xlu0 %v1110, 32
        %v1239 = vpop.permute.xlu0 %1238
        %1242 = vrot.lane.b32.xlu0 %v1112, 48
        %v1243 = vpop.permute.xlu0 %1242
        %1246 = vrot.lane.b32.xlu0 %v1114, 64
        %v1247 = vpop.permute.xlu0 %1246
        %1250 = vrot.lane.b32.xlu0 %v1116, 80
        %v1251 = vpop.permute.xlu0 %1250
        %1254 = vrot.lane.b32.xlu0 %v1118, 96
        %v1255 = vpop.permute.xlu0 %1254
        %1258 = vrot.lane.b32.xlu0 %v1120, 112
        %v1259 = vpop.permute.xlu0 %1258
        %1262 = vrot.lane.b32.xlu0 %v1220, 16
        %v1263 = vpop.permute.xlu0 %1262
        %1266 = vrot.lane.b32.xlu0 %v1222, 32
        %v1267 = vpop.permute.xlu0 %1266
        %1270 = vrot.lane.b32.xlu0 %v1224, 48
        %v1271 = vpop.permute.xlu0 %1270
        %1274 = vrot.lane.b32.xlu0 %v1226, 64
        %v1275 = vpop.permute.xlu0 %1274
        %1278 = vrot.lane.b32.xlu0 %v1228, 80
        %v1279 = vpop.permute.xlu0 %1278
        %1282 = vrot.lane.b32.xlu0 %v1230, 96
        %v1283 = vpop.permute.xlu0 %1282
        %1286 = vrot.lane.b32.xlu0 %v1232, 112
        %v1287 = vpop.permute.xlu0 %1286
        %v1289 = vsel %vm582, %v1106, %v1235
        %v1290 = vsel %vm584, %v1289, %v1239
        %v1291 = vsel %vm586, %v1290, %v1243
        %v1292 = vsel %vm588, %v1291, %v1247
        %v1293 = vsel %vm590, %v1292, %v1251
        %v1294 = vsel %vm592, %v1293, %v1255
        %v1295 = vsel %vm594, %v1294, %v1259
        %v1296 = vsel %vm582, %v1218, %v1263
        %v1297 = vsel %vm584, %v1296, %v1267
        %v1298 = vsel %vm586, %v1297, %v1271
        %v1299 = vsel %vm588, %v1298, %v1275
        %v1300 = vsel %vm590, %v1299, %v1279
        %v1301 = vsel %vm592, %v1300, %v1283
        %v1302 = vsel %vm594, %v1301, %v1287
        %1303 = vrot.lane.b32.xlu0 %v277, 125
        %v1304 = vpop.permute.xlu0 %1303
        %1305 = vrot.lane.b32.xlu0 %v278, 125
        %v1306 = vpop.permute.xlu0 %1305
        %1307 = vrot.lane.b32.xlu0 %v280, 125
        %v1308 = vpop.permute.xlu0 %1307
        %1309 = vrot.lane.b32.xlu0 %v281, 125
        %v1310 = vpop.permute.xlu0 %1309
        %1311 = vrot.lane.b32.xlu0 %v283, 125
        %v1312 = vpop.permute.xlu0 %1311
        %1313 = vrot.lane.b32.xlu0 %v284, 125
        %v1314 = vpop.permute.xlu0 %1313
        %1315 = vrot.lane.b32.xlu0 %v286, 125
        %v1316 = vpop.permute.xlu0 %1315
        %1317 = vrot.lane.b32.xlu0 %v287, 125
        %v1318 = vpop.permute.xlu0 %1317
        %1319 = vrot.lane.b32.xlu0 %v289, 125
        %v1320 = vpop.permute.xlu0 %1319
        %1321 = vrot.lane.b32.xlu0 %v290, 125
        %v1322 = vpop.permute.xlu0 %1321
        %1323 = vrot.lane.b32.xlu0 %v292, 125
        %v1324 = vpop.permute.xlu0 %1323
        %1325 = vrot.lane.b32.xlu0 %v293, 125
        %v1326 = vpop.permute.xlu0 %1325
        %1327 = vrot.lane.b32.xlu0 %v295, 125
        %v1328 = vpop.permute.xlu0 %1327
        %1329 = vrot.lane.b32.xlu0 %v296, 125
        %v1330 = vpop.permute.xlu0 %1329
        %1331 = vrot.lane.b32.xlu0 %v298, 125
        %v1332 = vpop.permute.xlu0 %1331
        %1333 = vrot.lane.b32.xlu0 %v299, 125
        %v1334 = vpop.permute.xlu0 %1333
        %v1351 = vrot.slane %v1312, 4
        %v1352 = vsel %vm302, %v1351, %v1304
        %v1353 = vrot.slane %v1304, 4
        %v1354 = vsel %vm302, %v1312, %v1353
        %v1356 = vunpack.c.l.s4 1983009808
        %v1357 = vunpack.c.0.s8 %v1356
        %v1358 = vperm.slane %v1352, %v1357
        %v1360 = vunpack.c.l.s4 1983009808
        %v1361 = vunpack.c.0.s8 %v1360
        %v1362 = vperm.slane %v1354, %v1361
        %v1363 = vrot.slane %v1316, 4
        %v1364 = vsel %vm302, %v1363, %v1308
        %v1365 = vrot.slane %v1308, 4
        %v1366 = vsel %vm302, %v1316, %v1365
        %v1368 = vunpack.c.l.s4 1983009808
        %v1369 = vunpack.c.0.s8 %v1368
        %v1370 = vperm.slane %v1364, %v1369
        %v1372 = vunpack.c.l.s4 1983009808
        %v1373 = vunpack.c.0.s8 %v1372
        %v1374 = vperm.slane %v1366, %v1373
        %v1375 = vrot.slane %v1328, 4
        %v1376 = vsel %vm302, %v1375, %v1320
        %v1377 = vrot.slane %v1320, 4
        %v1378 = vsel %vm302, %v1328, %v1377
        %v1380 = vunpack.c.l.s4 1983009808
        %v1381 = vunpack.c.0.s8 %v1380
        %v1382 = vperm.slane %v1376, %v1381
        %v1384 = vunpack.c.l.s4 1983009808
        %v1385 = vunpack.c.0.s8 %v1384
        %v1386 = vperm.slane %v1378, %v1385
        %v1387 = vrot.slane %v1332, 4
        %v1388 = vsel %vm302, %v1387, %v1324
        %v1389 = vrot.slane %v1324, 4
        %v1390 = vsel %vm302, %v1332, %v1389
        %v1392 = vunpack.c.l.s4 1983009808
        %v1393 = vunpack.c.0.s8 %v1392
        %v1394 = vperm.slane %v1388, %v1393
        %v1396 = vunpack.c.l.s4 1983009808
        %v1397 = vunpack.c.0.s8 %v1396
        %v1398 = vperm.slane %v1390, %v1397
        %v1399 = vrot.slane %v1370, 4
        %v1400 = vsel %vm302, %v1399, %v1358
        %v1401 = vrot.slane %v1358, 4
        %v1402 = vsel %vm302, %v1370, %v1401
        %v1404 = vunpack.c.l.s4 1934713408
        %v1405 = vunpack.c.0.s8 %v1404
        %v1406 = vperm.slane %v1400, %v1405
        %v1408 = vunpack.c.l.s4 1934713408
        %v1409 = vunpack.c.0.s8 %v1408
        %v1410 = vperm.slane %v1402, %v1409
        %v1411 = vrot.slane %v1374, 4
        %v1412 = vsel %vm302, %v1411, %v1362
        %v1413 = vrot.slane %v1362, 4
        %v1414 = vsel %vm302, %v1374, %v1413
        %v1416 = vunpack.c.l.s4 1934713408
        %v1417 = vunpack.c.0.s8 %v1416
        %v1418 = vperm.slane %v1412, %v1417
        %v1420 = vunpack.c.l.s4 1934713408
        %v1421 = vunpack.c.0.s8 %v1420
        %v1422 = vperm.slane %v1414, %v1421
        %v1423 = vrot.slane %v1394, 4
        %v1424 = vsel %vm302, %v1423, %v1382
        %v1425 = vrot.slane %v1382, 4
        %v1426 = vsel %vm302, %v1394, %v1425
        %v1428 = vunpack.c.l.s4 1934713408
        %v1429 = vunpack.c.0.s8 %v1428
        %v1430 = vperm.slane %v1424, %v1429
        %v1432 = vunpack.c.l.s4 1934713408
        %v1433 = vunpack.c.0.s8 %v1432
        %v1434 = vperm.slane %v1426, %v1433
        %v1435 = vrot.slane %v1398, 4
        %v1436 = vsel %vm302, %v1435, %v1386
        %v1437 = vrot.slane %v1386, 4
        %v1438 = vsel %vm302, %v1398, %v1437
        %v1440 = vunpack.c.l.s4 1934713408
        %v1441 = vunpack.c.0.s8 %v1440
        %v1442 = vperm.slane %v1436, %v1441
        %v1444 = vunpack.c.l.s4 1934713408
        %v1445 = vunpack.c.0.s8 %v1444
        %v1446 = vperm.slane %v1438, %v1445
        %v1447 = vrot.slane %v1430, 4
        %v1448 = vsel %vm302, %v1447, %v1406
        %v1449 = vrot.slane %v1406, 4
        %v1450 = vsel %vm302, %v1430, %v1449
        %v1451 = vrot.slane %v1434, 4
        %v1452 = vsel %vm302, %v1451, %v1410
        %v1453 = vrot.slane %v1410, 4
        %v1454 = vsel %vm302, %v1434, %v1453
        %v1455 = vrot.slane %v1442, 4
        %v1456 = vsel %vm302, %v1455, %v1418
        %v1457 = vrot.slane %v1418, 4
        %v1458 = vsel %vm302, %v1442, %v1457
        %v1459 = vrot.slane %v1446, 4
        %v1460 = vsel %vm302, %v1459, %v1422
        %v1461 = vrot.slane %v1422, 4
        %v1462 = vsel %vm302, %v1446, %v1461
        %v1463 = vrot.slane %v1314, 4
        %v1464 = vsel %vm302, %v1463, %v1306
        %v1465 = vrot.slane %v1306, 4
        %v1466 = vsel %vm302, %v1314, %v1465
        %v1468 = vunpack.c.l.s4 1983009808
        %v1469 = vunpack.c.0.s8 %v1468
        %v1470 = vperm.slane %v1464, %v1469
        %v1472 = vunpack.c.l.s4 1983009808
        %v1473 = vunpack.c.0.s8 %v1472
        %v1474 = vperm.slane %v1466, %v1473
        %v1475 = vrot.slane %v1318, 4
        %v1476 = vsel %vm302, %v1475, %v1310
        %v1477 = vrot.slane %v1310, 4
        %v1478 = vsel %vm302, %v1318, %v1477
        %v1480 = vunpack.c.l.s4 1983009808
        %v1481 = vunpack.c.0.s8 %v1480
        %v1482 = vperm.slane %v1476, %v1481
        %v1484 = vunpack.c.l.s4 1983009808
        %v1485 = vunpack.c.0.s8 %v1484
        %v1486 = vperm.slane %v1478, %v1485
        %v1487 = vrot.slane %v1330, 4
        %v1488 = vsel %vm302, %v1487, %v1322
        %v1489 = vrot.slane %v1322, 4
        %v1490 = vsel %vm302, %v1330, %v1489
        %v1492 = vunpack.c.l.s4 1983009808
        %v1493 = vunpack.c.0.s8 %v1492
        %v1494 = vperm.slane %v1488, %v1493
        %v1496 = vunpack.c.l.s4 1983009808
        %v1497 = vunpack.c.0.s8 %v1496
        %v1498 = vperm.slane %v1490, %v1497
        %v1499 = vrot.slane %v1334, 4
        %v1500 = vsel %vm302, %v1499, %v1326
        %v1501 = vrot.slane %v1326, 4
        %v1502 = vsel %vm302, %v1334, %v1501
        %v1504 = vunpack.c.l.s4 1983009808
        %v1505 = vunpack.c.0.s8 %v1504
        %v1506 = vperm.slane %v1500, %v1505
        %v1508 = vunpack.c.l.s4 1983009808
        %v1509 = vunpack.c.0.s8 %v1508
        %v1510 = vperm.slane %v1502, %v1509
        %v1511 = vrot.slane %v1482, 4
        %v1512 = vsel %vm302, %v1511, %v1470
        %v1513 = vrot.slane %v1470, 4
        %v1514 = vsel %vm302, %v1482, %v1513
        %v1516 = vunpack.c.l.s4 1934713408
        %v1517 = vunpack.c.0.s8 %v1516
        %v1518 = vperm.slane %v1512, %v1517
        %v1520 = vunpack.c.l.s4 1934713408
        %v1521 = vunpack.c.0.s8 %v1520
        %v1522 = vperm.slane %v1514, %v1521
        %v1523 = vrot.slane %v1486, 4
        %v1524 = vsel %vm302, %v1523, %v1474
        %v1525 = vrot.slane %v1474, 4
        %v1526 = vsel %vm302, %v1486, %v1525
        %v1528 = vunpack.c.l.s4 1934713408
        %v1529 = vunpack.c.0.s8 %v1528
        %v1530 = vperm.slane %v1524, %v1529
        %v1532 = vunpack.c.l.s4 1934713408
        %v1533 = vunpack.c.0.s8 %v1532
        %v1534 = vperm.slane %v1526, %v1533
        %v1535 = vrot.slane %v1506, 4
        %v1536 = vsel %vm302, %v1535, %v1494
        %v1537 = vrot.slane %v1494, 4
        %v1538 = vsel %vm302, %v1506, %v1537
        %v1540 = vunpack.c.l.s4 1934713408
        %v1541 = vunpack.c.0.s8 %v1540
        %v1542 = vperm.slane %v1536, %v1541
        %v1544 = vunpack.c.l.s4 1934713408
        %v1545 = vunpack.c.0.s8 %v1544
        %v1546 = vperm.slane %v1538, %v1545
        %v1547 = vrot.slane %v1510, 4
        %v1548 = vsel %vm302, %v1547, %v1498
        %v1549 = vrot.slane %v1498, 4
        %v1550 = vsel %vm302, %v1510, %v1549
        %v1552 = vunpack.c.l.s4 1934713408
        %v1553 = vunpack.c.0.s8 %v1552
        %v1554 = vperm.slane %v1548, %v1553
        %v1556 = vunpack.c.l.s4 1934713408
        %v1557 = vunpack.c.0.s8 %v1556
        %v1558 = vperm.slane %v1550, %v1557
        %v1559 = vrot.slane %v1542, 4
        %v1560 = vsel %vm302, %v1559, %v1518
        %v1561 = vrot.slane %v1518, 4
        %v1562 = vsel %vm302, %v1542, %v1561
        %v1563 = vrot.slane %v1546, 4
        %v1564 = vsel %vm302, %v1563, %v1522
        %v1565 = vrot.slane %v1522, 4
        %v1566 = vsel %vm302, %v1546, %v1565
        %v1567 = vrot.slane %v1554, 4
        %v1568 = vsel %vm302, %v1567, %v1530
        %v1569 = vrot.slane %v1530, 4
        %v1570 = vsel %vm302, %v1554, %v1569
        %v1571 = vrot.slane %v1558, 4
        %v1572 = vsel %vm302, %v1571, %v1534
        %v1573 = vrot.slane %v1534, 4
        %v1574 = vsel %vm302, %v1558, %v1573
        %1576 = vrot.lane.b32.xlu0 %v1450, 16
        %v1577 = vpop.permute.xlu0 %1576
        %1580 = vrot.lane.b32.xlu0 %v1452, 32
        %v1581 = vpop.permute.xlu0 %1580
        %1584 = vrot.lane.b32.xlu0 %v1454, 48
        %v1585 = vpop.permute.xlu0 %1584
        %1588 = vrot.lane.b32.xlu0 %v1456, 64
        %v1589 = vpop.permute.xlu0 %1588
        %1592 = vrot.lane.b32.xlu0 %v1458, 80
        %v1593 = vpop.permute.xlu0 %1592
        %1596 = vrot.lane.b32.xlu0 %v1460, 96
        %v1597 = vpop.permute.xlu0 %1596
        %1600 = vrot.lane.b32.xlu0 %v1462, 112
        %v1601 = vpop.permute.xlu0 %1600
        %1604 = vrot.lane.b32.xlu0 %v1562, 16
        %v1605 = vpop.permute.xlu0 %1604
        %1608 = vrot.lane.b32.xlu0 %v1564, 32
        %v1609 = vpop.permute.xlu0 %1608
        %1612 = vrot.lane.b32.xlu0 %v1566, 48
        %v1613 = vpop.permute.xlu0 %1612
        %1616 = vrot.lane.b32.xlu0 %v1568, 64
        %v1617 = vpop.permute.xlu0 %1616
        %1620 = vrot.lane.b32.xlu0 %v1570, 80
        %v1621 = vpop.permute.xlu0 %1620
        %1624 = vrot.lane.b32.xlu0 %v1572, 96
        %v1625 = vpop.permute.xlu0 %1624
        %1628 = vrot.lane.b32.xlu0 %v1574, 112
        %v1629 = vpop.permute.xlu0 %1628
        %v1631 = vsel %vm582, %v1448, %v1577
        %v1632 = vsel %vm584, %v1631, %v1581
        %v1633 = vsel %vm586, %v1632, %v1585
        %v1634 = vsel %vm588, %v1633, %v1589
        %v1635 = vsel %vm590, %v1634, %v1593
        %v1636 = vsel %vm592, %v1635, %v1597
        %v1637 = vsel %vm594, %v1636, %v1601
        %v1638 = vsel %vm582, %v1560, %v1605
        %v1639 = vsel %vm584, %v1638, %v1609
        %v1640 = vsel %vm586, %v1639, %v1613
        %v1641 = vsel %vm588, %v1640, %v1617
        %v1642 = vsel %vm590, %v1641, %v1621
        %v1643 = vsel %vm592, %v1642, %v1625
        %v1644 = vsel %vm594, %v1643, %v1629
        %1645 = vrot.lane.b32.xlu0 %v277, 124
        %v1646 = vpop.permute.xlu0 %1645
        %1647 = vrot.lane.b32.xlu0 %v278, 124
        %v1648 = vpop.permute.xlu0 %1647
        %1649 = vrot.lane.b32.xlu0 %v280, 124
        %v1650 = vpop.permute.xlu0 %1649
        %1651 = vrot.lane.b32.xlu0 %v281, 124
        %v1652 = vpop.permute.xlu0 %1651
        %1653 = vrot.lane.b32.xlu0 %v283, 124
        %v1654 = vpop.permute.xlu0 %1653
        %1655 = vrot.lane.b32.xlu0 %v284, 124
        %v1656 = vpop.permute.xlu0 %1655
        %1657 = vrot.lane.b32.xlu0 %v286, 124
        %v1658 = vpop.permute.xlu0 %1657
        %1659 = vrot.lane.b32.xlu0 %v287, 124
        %v1660 = vpop.permute.xlu0 %1659
        %1661 = vrot.lane.b32.xlu0 %v289, 124
        %v1662 = vpop.permute.xlu0 %1661
        %1663 = vrot.lane.b32.xlu0 %v290, 124
        %v1664 = vpop.permute.xlu0 %1663
        %1665 = vrot.lane.b32.xlu0 %v292, 124
        %v1666 = vpop.permute.xlu0 %1665
        %1667 = vrot.lane.b32.xlu0 %v293, 124
        %v1668 = vpop.permute.xlu0 %1667
        %1669 = vrot.lane.b32.xlu0 %v295, 124
        %v1670 = vpop.permute.xlu0 %1669
        %1671 = vrot.lane.b32.xlu0 %v296, 124
        %v1672 = vpop.permute.xlu0 %1671
        %1673 = vrot.lane.b32.xlu0 %v298, 124
        %v1674 = vpop.permute.xlu0 %1673
        %1675 = vrot.lane.b32.xlu0 %v299, 124
        %v1676 = vpop.permute.xlu0 %1675
        %v1693 = vrot.slane %v1654, 4
        %v1694 = vsel %vm302, %v1693, %v1646
        %v1695 = vrot.slane %v1646, 4
        %v1696 = vsel %vm302, %v1654, %v1695
        %v1698 = vunpack.c.l.s4 1983009808
        %v1699 = vunpack.c.0.s8 %v1698
        %v1700 = vperm.slane %v1694, %v1699
        %v1702 = vunpack.c.l.s4 1983009808
        %v1703 = vunpack.c.0.s8 %v1702
        %v1704 = vperm.slane %v1696, %v1703
        %v1705 = vrot.slane %v1658, 4
        %v1706 = vsel %vm302, %v1705, %v1650
        %v1707 = vrot.slane %v1650, 4
        %v1708 = vsel %vm302, %v1658, %v1707
        %v1710 = vunpack.c.l.s4 1983009808
        %v1711 = vunpack.c.0.s8 %v1710
        %v1712 = vperm.slane %v1706, %v1711
        %v1714 = vunpack.c.l.s4 1983009808
        %v1715 = vunpack.c.0.s8 %v1714
        %v1716 = vperm.slane %v1708, %v1715
        %v1717 = vrot.slane %v1670, 4
        %v1718 = vsel %vm302, %v1717, %v1662
        %v1719 = vrot.slane %v1662, 4
        %v1720 = vsel %vm302, %v1670, %v1719
        %v1722 = vunpack.c.l.s4 1983009808
        %v1723 = vunpack.c.0.s8 %v1722
        %v1724 = vperm.slane %v1718, %v1723
        %v1726 = vunpack.c.l.s4 1983009808
        %v1727 = vunpack.c.0.s8 %v1726
        %v1728 = vperm.slane %v1720, %v1727
        %v1729 = vrot.slane %v1674, 4
        %v1730 = vsel %vm302, %v1729, %v1666
        %v1731 = vrot.slane %v1666, 4
        %v1732 = vsel %vm302, %v1674, %v1731
        %v1734 = vunpack.c.l.s4 1983009808
        %v1735 = vunpack.c.0.s8 %v1734
        %v1736 = vperm.slane %v1730, %v1735
        %v1738 = vunpack.c.l.s4 1983009808
        %v1739 = vunpack.c.0.s8 %v1738
        %v1740 = vperm.slane %v1732, %v1739
        %v1741 = vrot.slane %v1712, 4
        %v1742 = vsel %vm302, %v1741, %v1700
        %v1743 = vrot.slane %v1700, 4
        %v1744 = vsel %vm302, %v1712, %v1743
        %v1746 = vunpack.c.l.s4 1934713408
        %v1747 = vunpack.c.0.s8 %v1746
        %v1748 = vperm.slane %v1742, %v1747
        %v1750 = vunpack.c.l.s4 1934713408
        %v1751 = vunpack.c.0.s8 %v1750
        %v1752 = vperm.slane %v1744, %v1751
        %v1753 = vrot.slane %v1716, 4
        %v1754 = vsel %vm302, %v1753, %v1704
        %v1755 = vrot.slane %v1704, 4
        %v1756 = vsel %vm302, %v1716, %v1755
        %v1758 = vunpack.c.l.s4 1934713408
        %v1759 = vunpack.c.0.s8 %v1758
        %v1760 = vperm.slane %v1754, %v1759
        %v1762 = vunpack.c.l.s4 1934713408
        %v1763 = vunpack.c.0.s8 %v1762
        %v1764 = vperm.slane %v1756, %v1763
        %v1765 = vrot.slane %v1736, 4
        %v1766 = vsel %vm302, %v1765, %v1724
        %v1767 = vrot.slane %v1724, 4
        %v1768 = vsel %vm302, %v1736, %v1767
        %v1770 = vunpack.c.l.s4 1934713408
        %v1771 = vunpack.c.0.s8 %v1770
        %v1772 = vperm.slane %v1766, %v1771
        %v1774 = vunpack.c.l.s4 1934713408
        %v1775 = vunpack.c.0.s8 %v1774
        %v1776 = vperm.slane %v1768, %v1775
        %v1777 = vrot.slane %v1740, 4
        %v1778 = vsel %vm302, %v1777, %v1728
        %v1779 = vrot.slane %v1728, 4
        %v1780 = vsel %vm302, %v1740, %v1779
        %v1782 = vunpack.c.l.s4 1934713408
        %v1783 = vunpack.c.0.s8 %v1782
        %v1784 = vperm.slane %v1778, %v1783
        %v1786 = vunpack.c.l.s4 1934713408
        %v1787 = vunpack.c.0.s8 %v1786
        %v1788 = vperm.slane %v1780, %v1787
        %v1789 = vrot.slane %v1772, 4
        %v1790 = vsel %vm302, %v1789, %v1748
        %v1791 = vrot.slane %v1748, 4
        %v1792 = vsel %vm302, %v1772, %v1791
        %v1793 = vrot.slane %v1776, 4
        %v1794 = vsel %vm302, %v1793, %v1752
        %v1795 = vrot.slane %v1752, 4
        %v1796 = vsel %vm302, %v1776, %v1795
        %v1797 = vrot.slane %v1784, 4
        %v1798 = vsel %vm302, %v1797, %v1760
        %v1799 = vrot.slane %v1760, 4
        %v1800 = vsel %vm302, %v1784, %v1799
        %v1801 = vrot.slane %v1788, 4
        %v1802 = vsel %vm302, %v1801, %v1764
        %v1803 = vrot.slane %v1764, 4
        %v1804 = vsel %vm302, %v1788, %v1803
        %v1805 = vrot.slane %v1656, 4
        %v1806 = vsel %vm302, %v1805, %v1648
        %v1807 = vrot.slane %v1648, 4
        %v1808 = vsel %vm302, %v1656, %v1807
        %v1810 = vunpack.c.l.s4 1983009808
        %v1811 = vunpack.c.0.s8 %v1810
        %v1812 = vperm.slane %v1806, %v1811
        %v1814 = vunpack.c.l.s4 1983009808
        %v1815 = vunpack.c.0.s8 %v1814
        %v1816 = vperm.slane %v1808, %v1815
        %v1817 = vrot.slane %v1660, 4
        %v1818 = vsel %vm302, %v1817, %v1652
        %v1819 = vrot.slane %v1652, 4
        %v1820 = vsel %vm302, %v1660, %v1819
        %v1822 = vunpack.c.l.s4 1983009808
        %v1823 = vunpack.c.0.s8 %v1822
        %v1824 = vperm.slane %v1818, %v1823
        %v1826 = vunpack.c.l.s4 1983009808
        %v1827 = vunpack.c.0.s8 %v1826
        %v1828 = vperm.slane %v1820, %v1827
        %v1829 = vrot.slane %v1672, 4
        %v1830 = vsel %vm302, %v1829, %v1664
        %v1831 = vrot.slane %v1664, 4
        %v1832 = vsel %vm302, %v1672, %v1831
        %v1834 = vunpack.c.l.s4 1983009808
        %v1835 = vunpack.c.0.s8 %v1834
        %v1836 = vperm.slane %v1830, %v1835
        %v1838 = vunpack.c.l.s4 1983009808
        %v1839 = vunpack.c.0.s8 %v1838
        %v1840 = vperm.slane %v1832, %v1839
        %v1841 = vrot.slane %v1676, 4
        %v1842 = vsel %vm302, %v1841, %v1668
        %v1843 = vrot.slane %v1668, 4
        %v1844 = vsel %vm302, %v1676, %v1843
        %v1846 = vunpack.c.l.s4 1983009808
        %v1847 = vunpack.c.0.s8 %v1846
        %v1848 = vperm.slane %v1842, %v1847
        %v1850 = vunpack.c.l.s4 1983009808
        %v1851 = vunpack.c.0.s8 %v1850
        %v1852 = vperm.slane %v1844, %v1851
        %v1853 = vrot.slane %v1824, 4
        %v1854 = vsel %vm302, %v1853, %v1812
        %v1855 = vrot.slane %v1812, 4
        %v1856 = vsel %vm302, %v1824, %v1855
        %v1858 = vunpack.c.l.s4 1934713408
        %v1859 = vunpack.c.0.s8 %v1858
        %v1860 = vperm.slane %v1854, %v1859
        %v1862 = vunpack.c.l.s4 1934713408
        %v1863 = vunpack.c.0.s8 %v1862
        %v1864 = vperm.slane %v1856, %v1863
        %v1865 = vrot.slane %v1828, 4
        %v1866 = vsel %vm302, %v1865, %v1816
        %v1867 = vrot.slane %v1816, 4
        %v1868 = vsel %vm302, %v1828, %v1867
        %v1870 = vunpack.c.l.s4 1934713408
        %v1871 = vunpack.c.0.s8 %v1870
        %v1872 = vperm.slane %v1866, %v1871
        %v1874 = vunpack.c.l.s4 1934713408
        %v1875 = vunpack.c.0.s8 %v1874
        %v1876 = vperm.slane %v1868, %v1875
        %v1877 = vrot.slane %v1848, 4
        %v1878 = vsel %vm302, %v1877, %v1836
        %v1879 = vrot.slane %v1836, 4
        %v1880 = vsel %vm302, %v1848, %v1879
        %v1882 = vunpack.c.l.s4 1934713408
        %v1883 = vunpack.c.0.s8 %v1882
        %v1884 = vperm.slane %v1878, %v1883
        %v1886 = vunpack.c.l.s4 1934713408
        %v1887 = vunpack.c.0.s8 %v1886
        %v1888 = vperm.slane %v1880, %v1887
        %v1889 = vrot.slane %v1852, 4
        %v1890 = vsel %vm302, %v1889, %v1840
        %v1891 = vrot.slane %v1840, 4
        %v1892 = vsel %vm302, %v1852, %v1891
        %v1894 = vunpack.c.l.s4 1934713408
        %v1895 = vunpack.c.0.s8 %v1894
        %v1896 = vperm.slane %v1890, %v1895
        %v1898 = vunpack.c.l.s4 1934713408
        %v1899 = vunpack.c.0.s8 %v1898
        %v1900 = vperm.slane %v1892, %v1899
        %v1901 = vrot.slane %v1884, 4
        %v1902 = vsel %vm302, %v1901, %v1860
        %v1903 = vrot.slane %v1860, 4
        %v1904 = vsel %vm302, %v1884, %v1903
        %v1905 = vrot.slane %v1888, 4
        %v1906 = vsel %vm302, %v1905, %v1864
        %v1907 = vrot.slane %v1864, 4
        %v1908 = vsel %vm302, %v1888, %v1907
        %v1909 = vrot.slane %v1896, 4
        %v1910 = vsel %vm302, %v1909, %v1872
        %v1911 = vrot.slane %v1872, 4
        %v1912 = vsel %vm302, %v1896, %v1911
        %v1913 = vrot.slane %v1900, 4
        %v1914 = vsel %vm302, %v1913, %v1876
        %v1915 = vrot.slane %v1876, 4
        %v1916 = vsel %vm302, %v1900, %v1915
        %1918 = vrot.lane.b32.xlu0 %v1792, 16
        %v1919 = vpop.permute.xlu0 %1918
        %1922 = vrot.lane.b32.xlu0 %v1794, 32
        %v1923 = vpop.permute.xlu0 %1922
        %1926 = vrot.lane.b32.xlu0 %v1796, 48
        %v1927 = vpop.permute.xlu0 %1926
        %1930 = vrot.lane.b32.xlu0 %v1798, 64
        %v1931 = vpop.permute.xlu0 %1930
        %1934 = vrot.lane.b32.xlu0 %v1800, 80
        %v1935 = vpop.permute.xlu0 %1934
        %1938 = vrot.lane.b32.xlu0 %v1802, 96
        %v1939 = vpop.permute.xlu0 %1938
        %1942 = vrot.lane.b32.xlu0 %v1804, 112
        %v1943 = vpop.permute.xlu0 %1942
        %1946 = vrot.lane.b32.xlu0 %v1904, 16
        %v1947 = vpop.permute.xlu0 %1946
        %1950 = vrot.lane.b32.xlu0 %v1906, 32
        %v1951 = vpop.permute.xlu0 %1950
        %1954 = vrot.lane.b32.xlu0 %v1908, 48
        %v1955 = vpop.permute.xlu0 %1954
        %1958 = vrot.lane.b32.xlu0 %v1910, 64
        %v1959 = vpop.permute.xlu0 %1958
        %1962 = vrot.lane.b32.xlu0 %v1912, 80
        %v1963 = vpop.permute.xlu0 %1962
        %1966 = vrot.lane.b32.xlu0 %v1914, 96
        %v1967 = vpop.permute.xlu0 %1966
        %1970 = vrot.lane.b32.xlu0 %v1916, 112
        %v1971 = vpop.permute.xlu0 %1970
        %v1973 = vsel %vm582, %v1790, %v1919
        %v1974 = vsel %vm584, %v1973, %v1923
        %v1975 = vsel %vm586, %v1974, %v1927
        %v1976 = vsel %vm588, %v1975, %v1931
        %v1977 = vsel %vm590, %v1976, %v1935
        %v1978 = vsel %vm592, %v1977, %v1939
        %v1979 = vsel %vm594, %v1978, %v1943
        %v1980 = vsel %vm582, %v1902, %v1947
        %v1981 = vsel %vm584, %v1980, %v1951
        %v1982 = vsel %vm586, %v1981, %v1955
        %v1983 = vsel %vm588, %v1982, %v1959
        %v1984 = vsel %vm590, %v1983, %v1963
        %v1985 = vsel %vm592, %v1984, %v1967
        %v1986 = vsel %vm594, %v1985, %v1971
        %vm1995 = vcmask 1046528
        %v1996 = vrot.slane %v277, 1
        %v1997 = vrot.slane %v278, 1
        %v1998 = vsel %vm1995, %v1996, %v1997
        %v1999 = vrot.slane %v279, 1
        %v2000 = vsel %vm1995, %v1997, %v1999
        %v2001 = vrot.slane %v280, 1
        %v2002 = vrot.slane %v281, 1
        %v2003 = vsel %vm1995, %v2001, %v2002
        %v2004 = vrot.slane %v282, 1
        %v2005 = vsel %vm1995, %v2002, %v2004
        %v2006 = vrot.slane %v283, 1
        %v2007 = vrot.slane %v284, 1
        %v2008 = vsel %vm1995, %v2006, %v2007
        %v2009 = vrot.slane %v285, 1
        %v2010 = vsel %vm1995, %v2007, %v2009
        %v2011 = vrot.slane %v286, 1
        %v2012 = vrot.slane %v287, 1
        %v2013 = vsel %vm1995, %v2011, %v2012
        %v2014 = vrot.slane %v288, 1
        %v2015 = vsel %vm1995, %v2012, %v2014
        %v2016 = vrot.slane %v289, 1
        %v2017 = vrot.slane %v290, 1
        %v2018 = vsel %vm1995, %v2016, %v2017
        %v2019 = vrot.slane %v291, 1
        %v2020 = vsel %vm1995, %v2017, %v2019
        %v2021 = vrot.slane %v292, 1
        %v2022 = vrot.slane %v293, 1
        %v2023 = vsel %vm1995, %v2021, %v2022
        %v2024 = vrot.slane %v294, 1
        %v2025 = vsel %vm1995, %v2022, %v2024
        %v2026 = vrot.slane %v295, 1
        %v2027 = vrot.slane %v296, 1
        %v2028 = vsel %vm1995, %v2026, %v2027
        %v2029 = vrot.slane %v297, 1
        %v2030 = vsel %vm1995, %v2027, %v2029
        %v2031 = vrot.slane %v298, 1
        %v2032 = vrot.slane %v299, 1
        %v2033 = vsel %vm1995, %v2031, %v2032
        %v2034 = vrot.slane %v300, 1
        %v2035 = vsel %vm1995, %v2032, %v2034
        %v2052 = vrot.slane %v2008, 4
        %v2053 = vsel %vm302, %v2052, %v1998
        %v2054 = vrot.slane %v1998, 4
        %v2055 = vsel %vm302, %v2008, %v2054
        %v2057 = vunpack.c.l.s4 1983009808
        %v2058 = vunpack.c.0.s8 %v2057
        %v2059 = vperm.slane %v2053, %v2058
        %v2061 = vunpack.c.l.s4 1983009808
        %v2062 = vunpack.c.0.s8 %v2061
        %v2063 = vperm.slane %v2055, %v2062
        %v2064 = vrot.slane %v2013, 4
        %v2065 = vsel %vm302, %v2064, %v2003
        %v2066 = vrot.slane %v2003, 4
        %v2067 = vsel %vm302, %v2013, %v2066
        %v2069 = vunpack.c.l.s4 1983009808
        %v2070 = vunpack.c.0.s8 %v2069
        %v2071 = vperm.slane %v2065, %v2070
        %v2073 = vunpack.c.l.s4 1983009808
        %v2074 = vunpack.c.0.s8 %v2073
        %v2075 = vperm.slane %v2067, %v2074
        %v2076 = vrot.slane %v2028, 4
        %v2077 = vsel %vm302, %v2076, %v2018
        %v2078 = vrot.slane %v2018, 4
        %v2079 = vsel %vm302, %v2028, %v2078
        %v2081 = vunpack.c.l.s4 1983009808
        %v2082 = vunpack.c.0.s8 %v2081
        %v2083 = vperm.slane %v2077, %v2082
        %v2085 = vunpack.c.l.s4 1983009808
        %v2086 = vunpack.c.0.s8 %v2085
        %v2087 = vperm.slane %v2079, %v2086
        %v2088 = vrot.slane %v2033, 4
        %v2089 = vsel %vm302, %v2088, %v2023
        %v2090 = vrot.slane %v2023, 4
        %v2091 = vsel %vm302, %v2033, %v2090
        %v2093 = vunpack.c.l.s4 1983009808
        %v2094 = vunpack.c.0.s8 %v2093
        %v2095 = vperm.slane %v2089, %v2094
        %v2097 = vunpack.c.l.s4 1983009808
        %v2098 = vunpack.c.0.s8 %v2097
        %v2099 = vperm.slane %v2091, %v2098
        %v2100 = vrot.slane %v2071, 4
        %v2101 = vsel %vm302, %v2100, %v2059
        %v2102 = vrot.slane %v2059, 4
        %v2103 = vsel %vm302, %v2071, %v2102
        %v2105 = vunpack.c.l.s4 1934713408
        %v2106 = vunpack.c.0.s8 %v2105
        %v2107 = vperm.slane %v2101, %v2106
        %v2109 = vunpack.c.l.s4 1934713408
        %v2110 = vunpack.c.0.s8 %v2109
        %v2111 = vperm.slane %v2103, %v2110
        %v2112 = vrot.slane %v2075, 4
        %v2113 = vsel %vm302, %v2112, %v2063
        %v2114 = vrot.slane %v2063, 4
        %v2115 = vsel %vm302, %v2075, %v2114
        %v2117 = vunpack.c.l.s4 1934713408
        %v2118 = vunpack.c.0.s8 %v2117
        %v2119 = vperm.slane %v2113, %v2118
        %v2121 = vunpack.c.l.s4 1934713408
        %v2122 = vunpack.c.0.s8 %v2121
        %v2123 = vperm.slane %v2115, %v2122
        %v2124 = vrot.slane %v2095, 4
        %v2125 = vsel %vm302, %v2124, %v2083
        %v2126 = vrot.slane %v2083, 4
        %v2127 = vsel %vm302, %v2095, %v2126
        %v2129 = vunpack.c.l.s4 1934713408
        %v2130 = vunpack.c.0.s8 %v2129
        %v2131 = vperm.slane %v2125, %v2130
        %v2133 = vunpack.c.l.s4 1934713408
        %v2134 = vunpack.c.0.s8 %v2133
        %v2135 = vperm.slane %v2127, %v2134
        %v2136 = vrot.slane %v2099, 4
        %v2137 = vsel %vm302, %v2136, %v2087
        %v2138 = vrot.slane %v2087, 4
        %v2139 = vsel %vm302, %v2099, %v2138
        %v2141 = vunpack.c.l.s4 1934713408
        %v2142 = vunpack.c.0.s8 %v2141
        %v2143 = vperm.slane %v2137, %v2142
        %v2145 = vunpack.c.l.s4 1934713408
        %v2146 = vunpack.c.0.s8 %v2145
        %v2147 = vperm.slane %v2139, %v2146
        %v2148 = vrot.slane %v2131, 4
        %v2149 = vsel %vm302, %v2148, %v2107
        %v2150 = vrot.slane %v2107, 4
        %v2151 = vsel %vm302, %v2131, %v2150
        %v2152 = vrot.slane %v2135, 4
        %v2153 = vsel %vm302, %v2152, %v2111
        %v2154 = vrot.slane %v2111, 4
        %v2155 = vsel %vm302, %v2135, %v2154
        %v2156 = vrot.slane %v2143, 4
        %v2157 = vsel %vm302, %v2156, %v2119
        %v2158 = vrot.slane %v2119, 4
        %v2159 = vsel %vm302, %v2143, %v2158
        %v2160 = vrot.slane %v2147, 4
        %v2161 = vsel %vm302, %v2160, %v2123
        %v2162 = vrot.slane %v2123, 4
        %v2163 = vsel %vm302, %v2147, %v2162
        %v2164 = vrot.slane %v2010, 4
        %v2165 = vsel %vm302, %v2164, %v2000
        %v2166 = vrot.slane %v2000, 4
        %v2167 = vsel %vm302, %v2010, %v2166
        %v2169 = vunpack.c.l.s4 1983009808
        %v2170 = vunpack.c.0.s8 %v2169
        %v2171 = vperm.slane %v2165, %v2170
        %v2173 = vunpack.c.l.s4 1983009808
        %v2174 = vunpack.c.0.s8 %v2173
        %v2175 = vperm.slane %v2167, %v2174
        %v2176 = vrot.slane %v2015, 4
        %v2177 = vsel %vm302, %v2176, %v2005
        %v2178 = vrot.slane %v2005, 4
        %v2179 = vsel %vm302, %v2015, %v2178
        %v2181 = vunpack.c.l.s4 1983009808
        %v2182 = vunpack.c.0.s8 %v2181
        %v2183 = vperm.slane %v2177, %v2182
        %v2185 = vunpack.c.l.s4 1983009808
        %v2186 = vunpack.c.0.s8 %v2185
        %v2187 = vperm.slane %v2179, %v2186
        %v2188 = vrot.slane %v2030, 4
        %v2189 = vsel %vm302, %v2188, %v2020
        %v2190 = vrot.slane %v2020, 4
        %v2191 = vsel %vm302, %v2030, %v2190
        %v2193 = vunpack.c.l.s4 1983009808
        %v2194 = vunpack.c.0.s8 %v2193
        %v2195 = vperm.slane %v2189, %v2194
        %v2197 = vunpack.c.l.s4 1983009808
        %v2198 = vunpack.c.0.s8 %v2197
        %v2199 = vperm.slane %v2191, %v2198
        %v2200 = vrot.slane %v2035, 4
        %v2201 = vsel %vm302, %v2200, %v2025
        %v2202 = vrot.slane %v2025, 4
        %v2203 = vsel %vm302, %v2035, %v2202
        %v2205 = vunpack.c.l.s4 1983009808
        %v2206 = vunpack.c.0.s8 %v2205
        %v2207 = vperm.slane %v2201, %v2206
        %v2209 = vunpack.c.l.s4 1983009808
        %v2210 = vunpack.c.0.s8 %v2209
        %v2211 = vperm.slane %v2203, %v2210
        %v2212 = vrot.slane %v2183, 4
        %v2213 = vsel %vm302, %v2212, %v2171
        %v2214 = vrot.slane %v2171, 4
        %v2215 = vsel %vm302, %v2183, %v2214
        %v2217 = vunpack.c.l.s4 1934713408
        %v2218 = vunpack.c.0.s8 %v2217
        %v2219 = vperm.slane %v2213, %v2218
        %v2221 = vunpack.c.l.s4 1934713408
        %v2222 = vunpack.c.0.s8 %v2221
        %v2223 = vperm.slane %v2215, %v2222
        %v2224 = vrot.slane %v2187, 4
        %v2225 = vsel %vm302, %v2224, %v2175
        %v2226 = vrot.slane %v2175, 4
        %v2227 = vsel %vm302, %v2187, %v2226
        %v2229 = vunpack.c.l.s4 1934713408
        %v2230 = vunpack.c.0.s8 %v2229
        %v2231 = vperm.slane %v2225, %v2230
        %v2233 = vunpack.c.l.s4 1934713408
        %v2234 = vunpack.c.0.s8 %v2233
        %v2235 = vperm.slane %v2227, %v2234
        %v2236 = vrot.slane %v2207, 4
        %v2237 = vsel %vm302, %v2236, %v2195
        %v2238 = vrot.slane %v2195, 4
        %v2239 = vsel %vm302, %v2207, %v2238
        %v2241 = vunpack.c.l.s4 1934713408
        %v2242 = vunpack.c.0.s8 %v2241
        %v2243 = vperm.slane %v2237, %v2242
        %v2245 = vunpack.c.l.s4 1934713408
        %v2246 = vunpack.c.0.s8 %v2245
        %v2247 = vperm.slane %v2239, %v2246
        %v2248 = vrot.slane %v2211, 4
        %v2249 = vsel %vm302, %v2248, %v2199
        %v2250 = vrot.slane %v2199, 4
        %v2251 = vsel %vm302, %v2211, %v2250
        %v2253 = vunpack.c.l.s4 1934713408
        %v2254 = vunpack.c.0.s8 %v2253
        %v2255 = vperm.slane %v2249, %v2254
        %v2257 = vunpack.c.l.s4 1934713408
        %v2258 = vunpack.c.0.s8 %v2257
        %v2259 = vperm.slane %v2251, %v2258
        %v2260 = vrot.slane %v2243, 4
        %v2261 = vsel %vm302, %v2260, %v2219
        %v2262 = vrot.slane %v2219, 4
        %v2263 = vsel %vm302, %v2243, %v2262
        %v2264 = vrot.slane %v2247, 4
        %v2265 = vsel %vm302, %v2264, %v2223
        %v2266 = vrot.slane %v2223, 4
        %v2267 = vsel %vm302, %v2247, %v2266
        %v2268 = vrot.slane %v2255, 4
        %v2269 = vsel %vm302, %v2268, %v2231
        %v2270 = vrot.slane %v2231, 4
        %v2271 = vsel %vm302, %v2255, %v2270
        %v2272 = vrot.slane %v2259, 4
        %v2273 = vsel %vm302, %v2272, %v2235
        %v2274 = vrot.slane %v2235, 4
        %v2275 = vsel %vm302, %v2259, %v2274
        %2277 = vrot.lane.b32.xlu0 %v2151, 16
        %v2278 = vpop.permute.xlu0 %2277
        %2281 = vrot.lane.b32.xlu0 %v2153, 32
        %v2282 = vpop.permute.xlu0 %2281
        %2285 = vrot.lane.b32.xlu0 %v2155, 48
        %v2286 = vpop.permute.xlu0 %2285
        %2289 = vrot.lane.b32.xlu0 %v2157, 64
        %v2290 = vpop.permute.xlu0 %2289
        %2293 = vrot.lane.b32.xlu0 %v2159, 80
        %v2294 = vpop.permute.xlu0 %2293
        %2297 = vrot.lane.b32.xlu0 %v2161, 96
        %v2298 = vpop.permute.xlu0 %2297
        %2301 = vrot.lane.b32.xlu0 %v2163, 112
        %v2302 = vpop.permute.xlu0 %2301
        %2305 = vrot.lane.b32.xlu0 %v2263, 16
        %v2306 = vpop.permute.xlu0 %2305
        %2309 = vrot.lane.b32.xlu0 %v2265, 32
        %v2310 = vpop.permute.xlu0 %2309
        %2313 = vrot.lane.b32.xlu0 %v2267, 48
        %v2314 = vpop.permute.xlu0 %2313
        %2317 = vrot.lane.b32.xlu0 %v2269, 64
        %v2318 = vpop.permute.xlu0 %2317
        %2321 = vrot.lane.b32.xlu0 %v2271, 80
        %v2322 = vpop.permute.xlu0 %2321
        %2325 = vrot.lane.b32.xlu0 %v2273, 96
        %v2326 = vpop.permute.xlu0 %2325
        %2329 = vrot.lane.b32.xlu0 %v2275, 112
        %v2330 = vpop.permute.xlu0 %2329
        %v2332 = vsel %vm582, %v2149, %v2278
        %v2333 = vsel %vm584, %v2332, %v2282
        %v2334 = vsel %vm586, %v2333, %v2286
        %v2335 = vsel %vm588, %v2334, %v2290
        %v2336 = vsel %vm590, %v2335, %v2294
        %v2337 = vsel %vm592, %v2336, %v2298
        %v2338 = vsel %vm594, %v2337, %v2302
        %v2339 = vsel %vm582, %v2261, %v2306
        %v2340 = vsel %vm584, %v2339, %v2310
        %v2341 = vsel %vm586, %v2340, %v2314
        %v2342 = vsel %vm588, %v2341, %v2318
        %v2343 = vsel %vm590, %v2342, %v2322
        %v2344 = vsel %vm592, %v2343, %v2326
        %v2345 = vsel %vm594, %v2344, %v2330
        %2346 = vrot.lane.b32.xlu0 %v1998, 127
        %v2347 = vpop.permute.xlu0 %2346
        %2348 = vrot.lane.b32.xlu0 %v2000, 127
        %v2349 = vpop.permute.xlu0 %2348
        %2350 = vrot.lane.b32.xlu0 %v2003, 127
        %v2351 = vpop.permute.xlu0 %2350
        %2352 = vrot.lane.b32.xlu0 %v2005, 127
        %v2353 = vpop.permute.xlu0 %2352
        %2354 = vrot.lane.b32.xlu0 %v2008, 127
        %v2355 = vpop.permute.xlu0 %2354
        %2356 = vrot.lane.b32.xlu0 %v2010, 127
        %v2357 = vpop.permute.xlu0 %2356
        %2358 = vrot.lane.b32.xlu0 %v2013, 127
        %v2359 = vpop.permute.xlu0 %2358
        %2360 = vrot.lane.b32.xlu0 %v2015, 127
        %v2361 = vpop.permute.xlu0 %2360
        %2362 = vrot.lane.b32.xlu0 %v2018, 127
        %v2363 = vpop.permute.xlu0 %2362
        %2364 = vrot.lane.b32.xlu0 %v2020, 127
        %v2365 = vpop.permute.xlu0 %2364
        %2366 = vrot.lane.b32.xlu0 %v2023, 127
        %v2367 = vpop.permute.xlu0 %2366
        %2368 = vrot.lane.b32.xlu0 %v2025, 127
        %v2369 = vpop.permute.xlu0 %2368
        %2370 = vrot.lane.b32.xlu0 %v2028, 127
        %v2371 = vpop.permute.xlu0 %2370
        %2372 = vrot.lane.b32.xlu0 %v2030, 127
        %v2373 = vpop.permute.xlu0 %2372
        %2374 = vrot.lane.b32.xlu0 %v2033, 127
        %v2375 = vpop.permute.xlu0 %2374
        %2376 = vrot.lane.b32.xlu0 %v2035, 127
        %v2377 = vpop.permute.xlu0 %2376
        %v2394 = vrot.slane %v2355, 4
        %v2395 = vsel %vm302, %v2394, %v2347
        %v2396 = vrot.slane %v2347, 4
        %v2397 = vsel %vm302, %v2355, %v2396
        %v2399 = vunpack.c.l.s4 1983009808
        %v2400 = vunpack.c.0.s8 %v2399
        %v2401 = vperm.slane %v2395, %v2400
        %v2403 = vunpack.c.l.s4 1983009808
        %v2404 = vunpack.c.0.s8 %v2403
        %v2405 = vperm.slane %v2397, %v2404
        %v2406 = vrot.slane %v2359, 4
        %v2407 = vsel %vm302, %v2406, %v2351
        %v2408 = vrot.slane %v2351, 4
        %v2409 = vsel %vm302, %v2359, %v2408
        %v2411 = vunpack.c.l.s4 1983009808
        %v2412 = vunpack.c.0.s8 %v2411
        %v2413 = vperm.slane %v2407, %v2412
        %v2415 = vunpack.c.l.s4 1983009808
        %v2416 = vunpack.c.0.s8 %v2415
        %v2417 = vperm.slane %v2409, %v2416
        %v2418 = vrot.slane %v2371, 4
        %v2419 = vsel %vm302, %v2418, %v2363
        %v2420 = vrot.slane %v2363, 4
        %v2421 = vsel %vm302, %v2371, %v2420
        %v2423 = vunpack.c.l.s4 1983009808
        %v2424 = vunpack.c.0.s8 %v2423
        %v2425 = vperm.slane %v2419, %v2424
        %v2427 = vunpack.c.l.s4 1983009808
        %v2428 = vunpack.c.0.s8 %v2427
        %v2429 = vperm.slane %v2421, %v2428
        %v2430 = vrot.slane %v2375, 4
        %v2431 = vsel %vm302, %v2430, %v2367
        %v2432 = vrot.slane %v2367, 4
        %v2433 = vsel %vm302, %v2375, %v2432
        %v2435 = vunpack.c.l.s4 1983009808
        %v2436 = vunpack.c.0.s8 %v2435
        %v2437 = vperm.slane %v2431, %v2436
        %v2439 = vunpack.c.l.s4 1983009808
        %v2440 = vunpack.c.0.s8 %v2439
        %v2441 = vperm.slane %v2433, %v2440
        %v2442 = vrot.slane %v2413, 4
        %v2443 = vsel %vm302, %v2442, %v2401
        %v2444 = vrot.slane %v2401, 4
        %v2445 = vsel %vm302, %v2413, %v2444
        %v2447 = vunpack.c.l.s4 1934713408
        %v2448 = vunpack.c.0.s8 %v2447
        %v2449 = vperm.slane %v2443, %v2448
        %v2451 = vunpack.c.l.s4 1934713408
        %v2452 = vunpack.c.0.s8 %v2451
        %v2453 = vperm.slane %v2445, %v2452
        %v2454 = vrot.slane %v2417, 4
        %v2455 = vsel %vm302, %v2454, %v2405
        %v2456 = vrot.slane %v2405, 4
        %v2457 = vsel %vm302, %v2417, %v2456
        %v2459 = vunpack.c.l.s4 1934713408
        %v2460 = vunpack.c.0.s8 %v2459
        %v2461 = vperm.slane %v2455, %v2460
        %v2463 = vunpack.c.l.s4 1934713408
        %v2464 = vunpack.c.0.s8 %v2463
        %v2465 = vperm.slane %v2457, %v2464
        %v2466 = vrot.slane %v2437, 4
        %v2467 = vsel %vm302, %v2466, %v2425
        %v2468 = vrot.slane %v2425, 4
        %v2469 = vsel %vm302, %v2437, %v2468
        %v2471 = vunpack.c.l.s4 1934713408
        %v2472 = vunpack.c.0.s8 %v2471
        %v2473 = vperm.slane %v2467, %v2472
        %v2475 = vunpack.c.l.s4 1934713408
        %v2476 = vunpack.c.0.s8 %v2475
        %v2477 = vperm.slane %v2469, %v2476
        %v2478 = vrot.slane %v2441, 4
        %v2479 = vsel %vm302, %v2478, %v2429
        %v2480 = vrot.slane %v2429, 4
        %v2481 = vsel %vm302, %v2441, %v2480
        %v2483 = vunpack.c.l.s4 1934713408
        %v2484 = vunpack.c.0.s8 %v2483
        %v2485 = vperm.slane %v2479, %v2484
        %v2487 = vunpack.c.l.s4 1934713408
        %v2488 = vunpack.c.0.s8 %v2487
        %v2489 = vperm.slane %v2481, %v2488
        %v2490 = vrot.slane %v2473, 4
        %v2491 = vsel %vm302, %v2490, %v2449
        %v2492 = vrot.slane %v2449, 4
        %v2493 = vsel %vm302, %v2473, %v2492
        %v2494 = vrot.slane %v2477, 4
        %v2495 = vsel %vm302, %v2494, %v2453
        %v2496 = vrot.slane %v2453, 4
        %v2497 = vsel %vm302, %v2477, %v2496
        %v2498 = vrot.slane %v2485, 4
        %v2499 = vsel %vm302, %v2498, %v2461
        %v2500 = vrot.slane %v2461, 4
        %v2501 = vsel %vm302, %v2485, %v2500
        %v2502 = vrot.slane %v2489, 4
        %v2503 = vsel %vm302, %v2502, %v2465
        %v2504 = vrot.slane %v2465, 4
        %v2505 = vsel %vm302, %v2489, %v2504
        %v2506 = vrot.slane %v2357, 4
        %v2507 = vsel %vm302, %v2506, %v2349
        %v2508 = vrot.slane %v2349, 4
        %v2509 = vsel %vm302, %v2357, %v2508
        %v2511 = vunpack.c.l.s4 1983009808
        %v2512 = vunpack.c.0.s8 %v2511
        %v2513 = vperm.slane %v2507, %v2512
        %v2515 = vunpack.c.l.s4 1983009808
        %v2516 = vunpack.c.0.s8 %v2515
        %v2517 = vperm.slane %v2509, %v2516
        %v2518 = vrot.slane %v2361, 4
        %v2519 = vsel %vm302, %v2518, %v2353
        %v2520 = vrot.slane %v2353, 4
        %v2521 = vsel %vm302, %v2361, %v2520
        %v2523 = vunpack.c.l.s4 1983009808
        %v2524 = vunpack.c.0.s8 %v2523
        %v2525 = vperm.slane %v2519, %v2524
        %v2527 = vunpack.c.l.s4 1983009808
        %v2528 = vunpack.c.0.s8 %v2527
        %v2529 = vperm.slane %v2521, %v2528
        %v2530 = vrot.slane %v2373, 4
        %v2531 = vsel %vm302, %v2530, %v2365
        %v2532 = vrot.slane %v2365, 4
        %v2533 = vsel %vm302, %v2373, %v2532
        %v2535 = vunpack.c.l.s4 1983009808
        %v2536 = vunpack.c.0.s8 %v2535
        %v2537 = vperm.slane %v2531, %v2536
        %v2539 = vunpack.c.l.s4 1983009808
        %v2540 = vunpack.c.0.s8 %v2539
        %v2541 = vperm.slane %v2533, %v2540
        %v2542 = vrot.slane %v2377, 4
        %v2543 = vsel %vm302, %v2542, %v2369
        %v2544 = vrot.slane %v2369, 4
        %v2545 = vsel %vm302, %v2377, %v2544
        %v2547 = vunpack.c.l.s4 1983009808
        %v2548 = vunpack.c.0.s8 %v2547
        %v2549 = vperm.slane %v2543, %v2548
        %v2551 = vunpack.c.l.s4 1983009808
        %v2552 = vunpack.c.0.s8 %v2551
        %v2553 = vperm.slane %v2545, %v2552
        %v2554 = vrot.slane %v2525, 4
        %v2555 = vsel %vm302, %v2554, %v2513
        %v2556 = vrot.slane %v2513, 4
        %v2557 = vsel %vm302, %v2525, %v2556
        %v2559 = vunpack.c.l.s4 1934713408
        %v2560 = vunpack.c.0.s8 %v2559
        %v2561 = vperm.slane %v2555, %v2560
        %v2563 = vunpack.c.l.s4 1934713408
        %v2564 = vunpack.c.0.s8 %v2563
        %v2565 = vperm.slane %v2557, %v2564
        %v2566 = vrot.slane %v2529, 4
        %v2567 = vsel %vm302, %v2566, %v2517
        %v2568 = vrot.slane %v2517, 4
        %v2569 = vsel %vm302, %v2529, %v2568
        %v2571 = vunpack.c.l.s4 1934713408
        %v2572 = vunpack.c.0.s8 %v2571
        %v2573 = vperm.slane %v2567, %v2572
        %v2575 = vunpack.c.l.s4 1934713408
        %v2576 = vunpack.c.0.s8 %v2575
        %v2577 = vperm.slane %v2569, %v2576
        %v2578 = vrot.slane %v2549, 4
        %v2579 = vsel %vm302, %v2578, %v2537
        %v2580 = vrot.slane %v2537, 4
        %v2581 = vsel %vm302, %v2549, %v2580
        %v2583 = vunpack.c.l.s4 1934713408
        %v2584 = vunpack.c.0.s8 %v2583
        %v2585 = vperm.slane %v2579, %v2584
        %v2587 = vunpack.c.l.s4 1934713408
        %v2588 = vunpack.c.0.s8 %v2587
        %v2589 = vperm.slane %v2581, %v2588
        %v2590 = vrot.slane %v2553, 4
        %v2591 = vsel %vm302, %v2590, %v2541
        %v2592 = vrot.slane %v2541, 4
        %v2593 = vsel %vm302, %v2553, %v2592
        %v2595 = vunpack.c.l.s4 1934713408
        %v2596 = vunpack.c.0.s8 %v2595
        %v2597 = vperm.slane %v2591, %v2596
        %v2599 = vunpack.c.l.s4 1934713408
        %v2600 = vunpack.c.0.s8 %v2599
        %v2601 = vperm.slane %v2593, %v2600
        %v2602 = vrot.slane %v2585, 4
        %v2603 = vsel %vm302, %v2602, %v2561
        %v2604 = vrot.slane %v2561, 4
        %v2605 = vsel %vm302, %v2585, %v2604
        %v2606 = vrot.slane %v2589, 4
        %v2607 = vsel %vm302, %v2606, %v2565
        %v2608 = vrot.slane %v2565, 4
        %v2609 = vsel %vm302, %v2589, %v2608
        %v2610 = vrot.slane %v2597, 4
        %v2611 = vsel %vm302, %v2610, %v2573
        %v2612 = vrot.slane %v2573, 4
        %v2613 = vsel %vm302, %v2597, %v2612
        %v2614 = vrot.slane %v2601, 4
        %v2615 = vsel %vm302, %v2614, %v2577
        %v2616 = vrot.slane %v2577, 4
        %v2617 = vsel %vm302, %v2601, %v2616
        %2619 = vrot.lane.b32.xlu0 %v2493, 16
        %v2620 = vpop.permute.xlu0 %2619
        %2623 = vrot.lane.b32.xlu0 %v2495, 32
        %v2624 = vpop.permute.xlu0 %2623
        %2627 = vrot.lane.b32.xlu0 %v2497, 48
        %v2628 = vpop.permute.xlu0 %2627
        %2631 = vrot.lane.b32.xlu0 %v2499, 64
        %v2632 = vpop.permute.xlu0 %2631
        %2635 = vrot.lane.b32.xlu0 %v2501, 80
        %v2636 = vpop.permute.xlu0 %2635
        %2639 = vrot.lane.b32.xlu0 %v2503, 96
        %v2640 = vpop.permute.xlu0 %2639
        %2643 = vrot.lane.b32.xlu0 %v2505, 112
        %v2644 = vpop.permute.xlu0 %2643
        %2647 = vrot.lane.b32.xlu0 %v2605, 16
        %v2648 = vpop.permute.xlu0 %2647
        %2651 = vrot.lane.b32.xlu0 %v2607, 32
        %v2652 = vpop.permute.xlu0 %2651
        %2655 = vrot.lane.b32.xlu0 %v2609, 48
        %v2656 = vpop.permute.xlu0 %2655
        %2659 = vrot.lane.b32.xlu0 %v2611, 64
        %v2660 = vpop.permute.xlu0 %2659
        %2663 = vrot.lane.b32.xlu0 %v2613, 80
        %v2664 = vpop.permute.xlu0 %2663
        %2667 = vrot.lane.b32.xlu0 %v2615, 96
        %v2668 = vpop.permute.xlu0 %2667
        %2671 = vrot.lane.b32.xlu0 %v2617, 112
        %v2672 = vpop.permute.xlu0 %2671
        %v2674 = vsel %vm582, %v2491, %v2620
        %v2675 = vsel %vm584, %v2674, %v2624
        %v2676 = vsel %vm586, %v2675, %v2628
        %v2677 = vsel %vm588, %v2676, %v2632
        %v2678 = vsel %vm590, %v2677, %v2636
        %v2679 = vsel %vm592, %v2678, %v2640
        %v2680 = vsel %vm594, %v2679, %v2644
        %v2681 = vsel %vm582, %v2603, %v2648
        %v2682 = vsel %vm584, %v2681, %v2652
        %v2683 = vsel %vm586, %v2682, %v2656
        %v2684 = vsel %vm588, %v2683, %v2660
        %v2685 = vsel %vm590, %v2684, %v2664
        %v2686 = vsel %vm592, %v2685, %v2668
        %v2687 = vsel %vm594, %v2686, %v2672
        %2688 = vrot.lane.b32.xlu0 %v1998, 126
        %v2689 = vpop.permute.xlu0 %2688
        %2690 = vrot.lane.b32.xlu0 %v2000, 126
        %v2691 = vpop.permute.xlu0 %2690
        %2692 = vrot.lane.b32.xlu0 %v2003, 126
        %v2693 = vpop.permute.xlu0 %2692
        %2694 = vrot.lane.b32.xlu0 %v2005, 126
        %v2695 = vpop.permute.xlu0 %2694
        %2696 = vrot.lane.b32.xlu0 %v2008, 126
        %v2697 = vpop.permute.xlu0 %2696
        %2698 = vrot.lane.b32.xlu0 %v2010, 126
        %v2699 = vpop.permute.xlu0 %2698
        %2700 = vrot.lane.b32.xlu0 %v2013, 126
        %v2701 = vpop.permute.xlu0 %2700
        %2702 = vrot.lane.b32.xlu0 %v2015, 126
        %v2703 = vpop.permute.xlu0 %2702
        %2704 = vrot.lane.b32.xlu0 %v2018, 126
        %v2705 = vpop.permute.xlu0 %2704
        %2706 = vrot.lane.b32.xlu0 %v2020, 126
        %v2707 = vpop.permute.xlu0 %2706
        %2708 = vrot.lane.b32.xlu0 %v2023, 126
        %v2709 = vpop.permute.xlu0 %2708
        %2710 = vrot.lane.b32.xlu0 %v2025, 126
        %v2711 = vpop.permute.xlu0 %2710
        %2712 = vrot.lane.b32.xlu0 %v2028, 126
        %v2713 = vpop.permute.xlu0 %2712
        %2714 = vrot.lane.b32.xlu0 %v2030, 126
        %v2715 = vpop.permute.xlu0 %2714
        %2716 = vrot.lane.b32.xlu0 %v2033, 126
        %v2717 = vpop.permute.xlu0 %2716
        %2718 = vrot.lane.b32.xlu0 %v2035, 126
        %v2719 = vpop.permute.xlu0 %2718
        %v2736 = vrot.slane %v2697, 4
        %v2737 = vsel %vm302, %v2736, %v2689
        %v2738 = vrot.slane %v2689, 4
        %v2739 = vsel %vm302, %v2697, %v2738
        %v2741 = vunpack.c.l.s4 1983009808
        %v2742 = vunpack.c.0.s8 %v2741
        %v2743 = vperm.slane %v2737, %v2742
        %v2745 = vunpack.c.l.s4 1983009808
        %v2746 = vunpack.c.0.s8 %v2745
        %v2747 = vperm.slane %v2739, %v2746
        %v2748 = vrot.slane %v2701, 4
        %v2749 = vsel %vm302, %v2748, %v2693
        %v2750 = vrot.slane %v2693, 4
        %v2751 = vsel %vm302, %v2701, %v2750
        %v2753 = vunpack.c.l.s4 1983009808
        %v2754 = vunpack.c.0.s8 %v2753
        %v2755 = vperm.slane %v2749, %v2754
        %v2757 = vunpack.c.l.s4 1983009808
        %v2758 = vunpack.c.0.s8 %v2757
        %v2759 = vperm.slane %v2751, %v2758
        %v2760 = vrot.slane %v2713, 4
        %v2761 = vsel %vm302, %v2760, %v2705
        %v2762 = vrot.slane %v2705, 4
        %v2763 = vsel %vm302, %v2713, %v2762
        %v2765 = vunpack.c.l.s4 1983009808
        %v2766 = vunpack.c.0.s8 %v2765
        %v2767 = vperm.slane %v2761, %v2766
        %v2769 = vunpack.c.l.s4 1983009808
        %v2770 = vunpack.c.0.s8 %v2769
        %v2771 = vperm.slane %v2763, %v2770
        %v2772 = vrot.slane %v2717, 4
        %v2773 = vsel %vm302, %v2772, %v2709
        %v2774 = vrot.slane %v2709, 4
        %v2775 = vsel %vm302, %v2717, %v2774
        %v2777 = vunpack.c.l.s4 1983009808
        %v2778 = vunpack.c.0.s8 %v2777
        %v2779 = vperm.slane %v2773, %v2778
        %v2781 = vunpack.c.l.s4 1983009808
        %v2782 = vunpack.c.0.s8 %v2781
        %v2783 = vperm.slane %v2775, %v2782
        %v2784 = vrot.slane %v2755, 4
        %v2785 = vsel %vm302, %v2784, %v2743
        %v2786 = vrot.slane %v2743, 4
        %v2787 = vsel %vm302, %v2755, %v2786
        %v2789 = vunpack.c.l.s4 1934713408
        %v2790 = vunpack.c.0.s8 %v2789
        %v2791 = vperm.slane %v2785, %v2790
        %v2793 = vunpack.c.l.s4 1934713408
        %v2794 = vunpack.c.0.s8 %v2793
        %v2795 = vperm.slane %v2787, %v2794
        %v2796 = vrot.slane %v2759, 4
        %v2797 = vsel %vm302, %v2796, %v2747
        %v2798 = vrot.slane %v2747, 4
        %v2799 = vsel %vm302, %v2759, %v2798
        %v2801 = vunpack.c.l.s4 1934713408
        %v2802 = vunpack.c.0.s8 %v2801
        %v2803 = vperm.slane %v2797, %v2802
        %v2805 = vunpack.c.l.s4 1934713408
        %v2806 = vunpack.c.0.s8 %v2805
        %v2807 = vperm.slane %v2799, %v2806
        %v2808 = vrot.slane %v2779, 4
        %v2809 = vsel %vm302, %v2808, %v2767
        %v2810 = vrot.slane %v2767, 4
        %v2811 = vsel %vm302, %v2779, %v2810
        %v2813 = vunpack.c.l.s4 1934713408
        %v2814 = vunpack.c.0.s8 %v2813
        %v2815 = vperm.slane %v2809, %v2814
        %v2817 = vunpack.c.l.s4 1934713408
        %v2818 = vunpack.c.0.s8 %v2817
        %v2819 = vperm.slane %v2811, %v2818
        %v2820 = vrot.slane %v2783, 4
        %v2821 = vsel %vm302, %v2820, %v2771
        %v2822 = vrot.slane %v2771, 4
        %v2823 = vsel %vm302, %v2783, %v2822
        %v2825 = vunpack.c.l.s4 1934713408
        %v2826 = vunpack.c.0.s8 %v2825
        %v2827 = vperm.slane %v2821, %v2826
        %v2829 = vunpack.c.l.s4 1934713408
        %v2830 = vunpack.c.0.s8 %v2829
        %v2831 = vperm.slane %v2823, %v2830
        %v2832 = vrot.slane %v2815, 4
        %v2833 = vsel %vm302, %v2832, %v2791
        %v2834 = vrot.slane %v2791, 4
        %v2835 = vsel %vm302, %v2815, %v2834
        %v2836 = vrot.slane %v2819, 4
        %v2837 = vsel %vm302, %v2836, %v2795
        %v2838 = vrot.slane %v2795, 4
        %v2839 = vsel %vm302, %v2819, %v2838
        %v2840 = vrot.slane %v2827, 4
        %v2841 = vsel %vm302, %v2840, %v2803
        %v2842 = vrot.slane %v2803, 4
        %v2843 = vsel %vm302, %v2827, %v2842
        %v2844 = vrot.slane %v2831, 4
        %v2845 = vsel %vm302, %v2844, %v2807
        %v2846 = vrot.slane %v2807, 4
        %v2847 = vsel %vm302, %v2831, %v2846
        %v2848 = vrot.slane %v2699, 4
        %v2849 = vsel %vm302, %v2848, %v2691
        %v2850 = vrot.slane %v2691, 4
        %v2851 = vsel %vm302, %v2699, %v2850
        %v2853 = vunpack.c.l.s4 1983009808
        %v2854 = vunpack.c.0.s8 %v2853
        %v2855 = vperm.slane %v2849, %v2854
        %v2857 = vunpack.c.l.s4 1983009808
        %v2858 = vunpack.c.0.s8 %v2857
        %v2859 = vperm.slane %v2851, %v2858
        %v2860 = vrot.slane %v2703, 4
        %v2861 = vsel %vm302, %v2860, %v2695
        %v2862 = vrot.slane %v2695, 4
        %v2863 = vsel %vm302, %v2703, %v2862
        %v2865 = vunpack.c.l.s4 1983009808
        %v2866 = vunpack.c.0.s8 %v2865
        %v2867 = vperm.slane %v2861, %v2866
        %v2869 = vunpack.c.l.s4 1983009808
        %v2870 = vunpack.c.0.s8 %v2869
        %v2871 = vperm.slane %v2863, %v2870
        %v2872 = vrot.slane %v2715, 4
        %v2873 = vsel %vm302, %v2872, %v2707
        %v2874 = vrot.slane %v2707, 4
        %v2875 = vsel %vm302, %v2715, %v2874
        %v2877 = vunpack.c.l.s4 1983009808
        %v2878 = vunpack.c.0.s8 %v2877
        %v2879 = vperm.slane %v2873, %v2878
        %v2881 = vunpack.c.l.s4 1983009808
        %v2882 = vunpack.c.0.s8 %v2881
        %v2883 = vperm.slane %v2875, %v2882
        %v2884 = vrot.slane %v2719, 4
        %v2885 = vsel %vm302, %v2884, %v2711
        %v2886 = vrot.slane %v2711, 4
        %v2887 = vsel %vm302, %v2719, %v2886
        %v2889 = vunpack.c.l.s4 1983009808
        %v2890 = vunpack.c.0.s8 %v2889
        %v2891 = vperm.slane %v2885, %v2890
        %v2893 = vunpack.c.l.s4 1983009808
        %v2894 = vunpack.c.0.s8 %v2893
        %v2895 = vperm.slane %v2887, %v2894
        %v2896 = vrot.slane %v2867, 4
        %v2897 = vsel %vm302, %v2896, %v2855
        %v2898 = vrot.slane %v2855, 4
        %v2899 = vsel %vm302, %v2867, %v2898
        %v2901 = vunpack.c.l.s4 1934713408
        %v2902 = vunpack.c.0.s8 %v2901
        %v2903 = vperm.slane %v2897, %v2902
        %v2905 = vunpack.c.l.s4 1934713408
        %v2906 = vunpack.c.0.s8 %v2905
        %v2907 = vperm.slane %v2899, %v2906
        %v2908 = vrot.slane %v2871, 4
        %v2909 = vsel %vm302, %v2908, %v2859
        %v2910 = vrot.slane %v2859, 4
        %v2911 = vsel %vm302, %v2871, %v2910
        %v2913 = vunpack.c.l.s4 1934713408
        %v2914 = vunpack.c.0.s8 %v2913
        %v2915 = vperm.slane %v2909, %v2914
        %v2917 = vunpack.c.l.s4 1934713408
        %v2918 = vunpack.c.0.s8 %v2917
        %v2919 = vperm.slane %v2911, %v2918
        %v2920 = vrot.slane %v2891, 4
        %v2921 = vsel %vm302, %v2920, %v2879
        %v2922 = vrot.slane %v2879, 4
        %v2923 = vsel %vm302, %v2891, %v2922
        %v2925 = vunpack.c.l.s4 1934713408
        %v2926 = vunpack.c.0.s8 %v2925
        %v2927 = vperm.slane %v2921, %v2926
        %v2929 = vunpack.c.l.s4 1934713408
        %v2930 = vunpack.c.0.s8 %v2929
        %v2931 = vperm.slane %v2923, %v2930
        %v2932 = vrot.slane %v2895, 4
        %v2933 = vsel %vm302, %v2932, %v2883
        %v2934 = vrot.slane %v2883, 4
        %v2935 = vsel %vm302, %v2895, %v2934
        %v2937 = vunpack.c.l.s4 1934713408
        %v2938 = vunpack.c.0.s8 %v2937
        %v2939 = vperm.slane %v2933, %v2938
        %v2941 = vunpack.c.l.s4 1934713408
        %v2942 = vunpack.c.0.s8 %v2941
        %v2943 = vperm.slane %v2935, %v2942
        %v2944 = vrot.slane %v2927, 4
        %v2945 = vsel %vm302, %v2944, %v2903
        %v2946 = vrot.slane %v2903, 4
        %v2947 = vsel %vm302, %v2927, %v2946
        %v2948 = vrot.slane %v2931, 4
        %v2949 = vsel %vm302, %v2948, %v2907
        %v2950 = vrot.slane %v2907, 4
        %v2951 = vsel %vm302, %v2931, %v2950
        %v2952 = vrot.slane %v2939, 4
        %v2953 = vsel %vm302, %v2952, %v2915
        %v2954 = vrot.slane %v2915, 4
        %v2955 = vsel %vm302, %v2939, %v2954
        %v2956 = vrot.slane %v2943, 4
        %v2957 = vsel %vm302, %v2956, %v2919
        %v2958 = vrot.slane %v2919, 4
        %v2959 = vsel %vm302, %v2943, %v2958
        %2961 = vrot.lane.b32.xlu0 %v2835, 16
        %v2962 = vpop.permute.xlu0 %2961
        %2965 = vrot.lane.b32.xlu0 %v2837, 32
        %v2966 = vpop.permute.xlu0 %2965
        %2969 = vrot.lane.b32.xlu0 %v2839, 48
        %v2970 = vpop.permute.xlu0 %2969
        %2973 = vrot.lane.b32.xlu0 %v2841, 64
        %v2974 = vpop.permute.xlu0 %2973
        %2977 = vrot.lane.b32.xlu0 %v2843, 80
        %v2978 = vpop.permute.xlu0 %2977
        %2981 = vrot.lane.b32.xlu0 %v2845, 96
        %v2982 = vpop.permute.xlu0 %2981
        %2985 = vrot.lane.b32.xlu0 %v2847, 112
        %v2986 = vpop.permute.xlu0 %2985
        %2989 = vrot.lane.b32.xlu0 %v2947, 16
        %v2990 = vpop.permute.xlu0 %2989
        %2993 = vrot.lane.b32.xlu0 %v2949, 32
        %v2994 = vpop.permute.xlu0 %2993
        %2997 = vrot.lane.b32.xlu0 %v2951, 48
        %v2998 = vpop.permute.xlu0 %2997
        %3001 = vrot.lane.b32.xlu0 %v2953, 64
        %v3002 = vpop.permute.xlu0 %3001
        %3005 = vrot.lane.b32.xlu0 %v2955, 80
        %v3006 = vpop.permute.xlu0 %3005
        %3009 = vrot.lane.b32.xlu0 %v2957, 96
        %v3010 = vpop.permute.xlu0 %3009
        %3013 = vrot.lane.b32.xlu0 %v2959, 112
        %v3014 = vpop.permute.xlu0 %3013
        %v3016 = vsel %vm582, %v2833, %v2962
        %v3017 = vsel %vm584, %v3016, %v2966
        %v3018 = vsel %vm586, %v3017, %v2970
        %v3019 = vsel %vm588, %v3018, %v2974
        %v3020 = vsel %vm590, %v3019, %v2978
        %v3021 = vsel %vm592, %v3020, %v2982
        %v3022 = vsel %vm594, %v3021, %v2986
        %v3023 = vsel %vm582, %v2945, %v2990
        %v3024 = vsel %vm584, %v3023, %v2994
        %v3025 = vsel %vm586, %v3024, %v2998
        %v3026 = vsel %vm588, %v3025, %v3002
        %v3027 = vsel %vm590, %v3026, %v3006
        %v3028 = vsel %vm592, %v3027, %v3010
        %v3029 = vsel %vm594, %v3028, %v3014
        %3030 = vrot.lane.b32.xlu0 %v1998, 125
        %v3031 = vpop.permute.xlu0 %3030
        %3032 = vrot.lane.b32.xlu0 %v2000, 125
        %v3033 = vpop.permute.xlu0 %3032
        %3034 = vrot.lane.b32.xlu0 %v2003, 125
        %v3035 = vpop.permute.xlu0 %3034
        %3036 = vrot.lane.b32.xlu0 %v2005, 125
        %v3037 = vpop.permute.xlu0 %3036
        %3038 = vrot.lane.b32.xlu0 %v2008, 125
        %v3039 = vpop.permute.xlu0 %3038
        %3040 = vrot.lane.b32.xlu0 %v2010, 125
        %v3041 = vpop.permute.xlu0 %3040
        %3042 = vrot.lane.b32.xlu0 %v2013, 125
        %v3043 = vpop.permute.xlu0 %3042
        %3044 = vrot.lane.b32.xlu0 %v2015, 125
        %v3045 = vpop.permute.xlu0 %3044
        %3046 = vrot.lane.b32.xlu0 %v2018, 125
        %v3047 = vpop.permute.xlu0 %3046
        %3048 = vrot.lane.b32.xlu0 %v2020, 125
        %v3049 = vpop.permute.xlu0 %3048
        %3050 = vrot.lane.b32.xlu0 %v2023, 125
        %v3051 = vpop.permute.xlu0 %3050
        %3052 = vrot.lane.b32.xlu0 %v2025, 125
        %v3053 = vpop.permute.xlu0 %3052
        %3054 = vrot.lane.b32.xlu0 %v2028, 125
        %v3055 = vpop.permute.xlu0 %3054
        %3056 = vrot.lane.b32.xlu0 %v2030, 125
        %v3057 = vpop.permute.xlu0 %3056
        %3058 = vrot.lane.b32.xlu0 %v2033, 125
        %v3059 = vpop.permute.xlu0 %3058
        %3060 = vrot.lane.b32.xlu0 %v2035, 125
        %v3061 = vpop.permute.xlu0 %3060
        %v3078 = vrot.slane %v3039, 4
        %v3079 = vsel %vm302, %v3078, %v3031
        %v3080 = vrot.slane %v3031, 4
        %v3081 = vsel %vm302, %v3039, %v3080
        %v3083 = vunpack.c.l.s4 1983009808
        %v3084 = vunpack.c.0.s8 %v3083
        %v3085 = vperm.slane %v3079, %v3084
        %v3087 = vunpack.c.l.s4 1983009808
        %v3088 = vunpack.c.0.s8 %v3087
        %v3089 = vperm.slane %v3081, %v3088
        %v3090 = vrot.slane %v3043, 4
        %v3091 = vsel %vm302, %v3090, %v3035
        %v3092 = vrot.slane %v3035, 4
        %v3093 = vsel %vm302, %v3043, %v3092
        %v3095 = vunpack.c.l.s4 1983009808
        %v3096 = vunpack.c.0.s8 %v3095
        %v3097 = vperm.slane %v3091, %v3096
        %v3099 = vunpack.c.l.s4 1983009808
        %v3100 = vunpack.c.0.s8 %v3099
        %v3101 = vperm.slane %v3093, %v3100
        %v3102 = vrot.slane %v3055, 4
        %v3103 = vsel %vm302, %v3102, %v3047
        %v3104 = vrot.slane %v3047, 4
        %v3105 = vsel %vm302, %v3055, %v3104
        %v3107 = vunpack.c.l.s4 1983009808
        %v3108 = vunpack.c.0.s8 %v3107
        %v3109 = vperm.slane %v3103, %v3108
        %v3111 = vunpack.c.l.s4 1983009808
        %v3112 = vunpack.c.0.s8 %v3111
        %v3113 = vperm.slane %v3105, %v3112
        %v3114 = vrot.slane %v3059, 4
        %v3115 = vsel %vm302, %v3114, %v3051
        %v3116 = vrot.slane %v3051, 4
        %v3117 = vsel %vm302, %v3059, %v3116
        %v3119 = vunpack.c.l.s4 1983009808
        %v3120 = vunpack.c.0.s8 %v3119
        %v3121 = vperm.slane %v3115, %v3120
        %v3123 = vunpack.c.l.s4 1983009808
        %v3124 = vunpack.c.0.s8 %v3123
        %v3125 = vperm.slane %v3117, %v3124
        %v3126 = vrot.slane %v3097, 4
        %v3127 = vsel %vm302, %v3126, %v3085
        %v3128 = vrot.slane %v3085, 4
        %v3129 = vsel %vm302, %v3097, %v3128
        %v3131 = vunpack.c.l.s4 1934713408
        %v3132 = vunpack.c.0.s8 %v3131
        %v3133 = vperm.slane %v3127, %v3132
        %v3135 = vunpack.c.l.s4 1934713408
        %v3136 = vunpack.c.0.s8 %v3135
        %v3137 = vperm.slane %v3129, %v3136
        %v3138 = vrot.slane %v3101, 4
        %v3139 = vsel %vm302, %v3138, %v3089
        %v3140 = vrot.slane %v3089, 4
        %v3141 = vsel %vm302, %v3101, %v3140
        %v3143 = vunpack.c.l.s4 1934713408
        %v3144 = vunpack.c.0.s8 %v3143
        %v3145 = vperm.slane %v3139, %v3144
        %v3147 = vunpack.c.l.s4 1934713408
        %v3148 = vunpack.c.0.s8 %v3147
        %v3149 = vperm.slane %v3141, %v3148
        %v3150 = vrot.slane %v3121, 4
        %v3151 = vsel %vm302, %v3150, %v3109
        %v3152 = vrot.slane %v3109, 4
        %v3153 = vsel %vm302, %v3121, %v3152
        %v3155 = vunpack.c.l.s4 1934713408
        %v3156 = vunpack.c.0.s8 %v3155
        %v3157 = vperm.slane %v3151, %v3156
        %v3159 = vunpack.c.l.s4 1934713408
        %v3160 = vunpack.c.0.s8 %v3159
        %v3161 = vperm.slane %v3153, %v3160
        %v3162 = vrot.slane %v3125, 4
        %v3163 = vsel %vm302, %v3162, %v3113
        %v3164 = vrot.slane %v3113, 4
        %v3165 = vsel %vm302, %v3125, %v3164
        %v3167 = vunpack.c.l.s4 1934713408
        %v3168 = vunpack.c.0.s8 %v3167
        %v3169 = vperm.slane %v3163, %v3168
        %v3171 = vunpack.c.l.s4 1934713408
        %v3172 = vunpack.c.0.s8 %v3171
        %v3173 = vperm.slane %v3165, %v3172
        %v3174 = vrot.slane %v3157, 4
        %v3175 = vsel %vm302, %v3174, %v3133
        %v3176 = vrot.slane %v3133, 4
        %v3177 = vsel %vm302, %v3157, %v3176
        %v3178 = vrot.slane %v3161, 4
        %v3179 = vsel %vm302, %v3178, %v3137
        %v3180 = vrot.slane %v3137, 4
        %v3181 = vsel %vm302, %v3161, %v3180
        %v3182 = vrot.slane %v3169, 4
        %v3183 = vsel %vm302, %v3182, %v3145
        %v3184 = vrot.slane %v3145, 4
        %v3185 = vsel %vm302, %v3169, %v3184
        %v3186 = vrot.slane %v3173, 4
        %v3187 = vsel %vm302, %v3186, %v3149
        %v3188 = vrot.slane %v3149, 4
        %v3189 = vsel %vm302, %v3173, %v3188
        %v3190 = vrot.slane %v3041, 4
        %v3191 = vsel %vm302, %v3190, %v3033
        %v3192 = vrot.slane %v3033, 4
        %v3193 = vsel %vm302, %v3041, %v3192
        %v3195 = vunpack.c.l.s4 1983009808
        %v3196 = vunpack.c.0.s8 %v3195
        %v3197 = vperm.slane %v3191, %v3196
        %v3199 = vunpack.c.l.s4 1983009808
        %v3200 = vunpack.c.0.s8 %v3199
        %v3201 = vperm.slane %v3193, %v3200
        %v3202 = vrot.slane %v3045, 4
        %v3203 = vsel %vm302, %v3202, %v3037
        %v3204 = vrot.slane %v3037, 4
        %v3205 = vsel %vm302, %v3045, %v3204
        %v3207 = vunpack.c.l.s4 1983009808
        %v3208 = vunpack.c.0.s8 %v3207
        %v3209 = vperm.slane %v3203, %v3208
        %v3211 = vunpack.c.l.s4 1983009808
        %v3212 = vunpack.c.0.s8 %v3211
        %v3213 = vperm.slane %v3205, %v3212
        %v3214 = vrot.slane %v3057, 4
        %v3215 = vsel %vm302, %v3214, %v3049
        %v3216 = vrot.slane %v3049, 4
        %v3217 = vsel %vm302, %v3057, %v3216
        %v3219 = vunpack.c.l.s4 1983009808
        %v3220 = vunpack.c.0.s8 %v3219
        %v3221 = vperm.slane %v3215, %v3220
        %v3223 = vunpack.c.l.s4 1983009808
        %v3224 = vunpack.c.0.s8 %v3223
        %v3225 = vperm.slane %v3217, %v3224
        %v3226 = vrot.slane %v3061, 4
        %v3227 = vsel %vm302, %v3226, %v3053
        %v3228 = vrot.slane %v3053, 4
        %v3229 = vsel %vm302, %v3061, %v3228
        %v3231 = vunpack.c.l.s4 1983009808
        %v3232 = vunpack.c.0.s8 %v3231
        %v3233 = vperm.slane %v3227, %v3232
        %v3235 = vunpack.c.l.s4 1983009808
        %v3236 = vunpack.c.0.s8 %v3235
        %v3237 = vperm.slane %v3229, %v3236
        %v3238 = vrot.slane %v3209, 4
        %v3239 = vsel %vm302, %v3238, %v3197
        %v3240 = vrot.slane %v3197, 4
        %v3241 = vsel %vm302, %v3209, %v3240
        %v3243 = vunpack.c.l.s4 1934713408
        %v3244 = vunpack.c.0.s8 %v3243
        %v3245 = vperm.slane %v3239, %v3244
        %v3247 = vunpack.c.l.s4 1934713408
        %v3248 = vunpack.c.0.s8 %v3247
        %v3249 = vperm.slane %v3241, %v3248
        %v3250 = vrot.slane %v3213, 4
        %v3251 = vsel %vm302, %v3250, %v3201
        %v3252 = vrot.slane %v3201, 4
        %v3253 = vsel %vm302, %v3213, %v3252
        %v3255 = vunpack.c.l.s4 1934713408
        %v3256 = vunpack.c.0.s8 %v3255
        %v3257 = vperm.slane %v3251, %v3256
        %v3259 = vunpack.c.l.s4 1934713408
        %v3260 = vunpack.c.0.s8 %v3259
        %v3261 = vperm.slane %v3253, %v3260
        %v3262 = vrot.slane %v3233, 4
        %v3263 = vsel %vm302, %v3262, %v3221
        %v3264 = vrot.slane %v3221, 4
        %v3265 = vsel %vm302, %v3233, %v3264
        %v3267 = vunpack.c.l.s4 1934713408
        %v3268 = vunpack.c.0.s8 %v3267
        %v3269 = vperm.slane %v3263, %v3268
        %v3271 = vunpack.c.l.s4 1934713408
        %v3272 = vunpack.c.0.s8 %v3271
        %v3273 = vperm.slane %v3265, %v3272
        %v3274 = vrot.slane %v3237, 4
        %v3275 = vsel %vm302, %v3274, %v3225
        %v3276 = vrot.slane %v3225, 4
        %v3277 = vsel %vm302, %v3237, %v3276
        %v3279 = vunpack.c.l.s4 1934713408
        %v3280 = vunpack.c.0.s8 %v3279
        %v3281 = vperm.slane %v3275, %v3280
        %v3283 = vunpack.c.l.s4 1934713408
        %v3284 = vunpack.c.0.s8 %v3283
        %v3285 = vperm.slane %v3277, %v3284
        %v3286 = vrot.slane %v3269, 4
        %v3287 = vsel %vm302, %v3286, %v3245
        %v3288 = vrot.slane %v3245, 4
        %v3289 = vsel %vm302, %v3269, %v3288
        %v3290 = vrot.slane %v3273, 4
        %v3291 = vsel %vm302, %v3290, %v3249
        %v3292 = vrot.slane %v3249, 4
        %v3293 = vsel %vm302, %v3273, %v3292
        %v3294 = vrot.slane %v3281, 4
        %v3295 = vsel %vm302, %v3294, %v3257
        %v3296 = vrot.slane %v3257, 4
        %v3297 = vsel %vm302, %v3281, %v3296
        %v3298 = vrot.slane %v3285, 4
        %v3299 = vsel %vm302, %v3298, %v3261
        %v3300 = vrot.slane %v3261, 4
        %v3301 = vsel %vm302, %v3285, %v3300
        %3303 = vrot.lane.b32.xlu0 %v3177, 16
        %v3304 = vpop.permute.xlu0 %3303
        %3307 = vrot.lane.b32.xlu0 %v3179, 32
        %v3308 = vpop.permute.xlu0 %3307
        %3311 = vrot.lane.b32.xlu0 %v3181, 48
        %v3312 = vpop.permute.xlu0 %3311
        %3315 = vrot.lane.b32.xlu0 %v3183, 64
        %v3316 = vpop.permute.xlu0 %3315
        %3319 = vrot.lane.b32.xlu0 %v3185, 80
        %v3320 = vpop.permute.xlu0 %3319
        %3323 = vrot.lane.b32.xlu0 %v3187, 96
        %v3324 = vpop.permute.xlu0 %3323
        %3327 = vrot.lane.b32.xlu0 %v3189, 112
        %v3328 = vpop.permute.xlu0 %3327
        %3331 = vrot.lane.b32.xlu0 %v3289, 16
        %v3332 = vpop.permute.xlu0 %3331
        %3335 = vrot.lane.b32.xlu0 %v3291, 32
        %v3336 = vpop.permute.xlu0 %3335
        %3339 = vrot.lane.b32.xlu0 %v3293, 48
        %v3340 = vpop.permute.xlu0 %3339
        %3343 = vrot.lane.b32.xlu0 %v3295, 64
        %v3344 = vpop.permute.xlu0 %3343
        %3347 = vrot.lane.b32.xlu0 %v3297, 80
        %v3348 = vpop.permute.xlu0 %3347
        %3351 = vrot.lane.b32.xlu0 %v3299, 96
        %v3352 = vpop.permute.xlu0 %3351
        %3355 = vrot.lane.b32.xlu0 %v3301, 112
        %v3356 = vpop.permute.xlu0 %3355
        %v3358 = vsel %vm582, %v3175, %v3304
        %v3359 = vsel %vm584, %v3358, %v3308
        %v3360 = vsel %vm586, %v3359, %v3312
        %v3361 = vsel %vm588, %v3360, %v3316
        %v3362 = vsel %vm590, %v3361, %v3320
        %v3363 = vsel %vm592, %v3362, %v3324
        %v3364 = vsel %vm594, %v3363, %v3328
        %v3365 = vsel %vm582, %v3287, %v3332
        %v3366 = vsel %vm584, %v3365, %v3336
        %v3367 = vsel %vm586, %v3366, %v3340
        %v3368 = vsel %vm588, %v3367, %v3344
        %v3369 = vsel %vm590, %v3368, %v3348
        %v3370 = vsel %vm592, %v3369, %v3352
        %v3371 = vsel %vm594, %v3370, %v3356
        %3372 = vrot.lane.b32.xlu0 %v1998, 124
        %v3373 = vpop.permute.xlu0 %3372
        %3374 = vrot.lane.b32.xlu0 %v2000, 124
        %v3375 = vpop.permute.xlu0 %3374
        %3376 = vrot.lane.b32.xlu0 %v2003, 124
        %v3377 = vpop.permute.xlu0 %3376
        %3378 = vrot.lane.b32.xlu0 %v2005, 124
        %v3379 = vpop.permute.xlu0 %3378
        %3380 = vrot.lane.b32.xlu0 %v2008, 124
        %v3381 = vpop.permute.xlu0 %3380
        %3382 = vrot.lane.b32.xlu0 %v2010, 124
        %v3383 = vpop.permute.xlu0 %3382
        %3384 = vrot.lane.b32.xlu0 %v2013, 124
        %v3385 = vpop.permute.xlu0 %3384
        %3386 = vrot.lane.b32.xlu0 %v2015, 124
        %v3387 = vpop.permute.xlu0 %3386
        %3388 = vrot.lane.b32.xlu0 %v2018, 124
        %v3389 = vpop.permute.xlu0 %3388
        %3390 = vrot.lane.b32.xlu0 %v2020, 124
        %v3391 = vpop.permute.xlu0 %3390
        %3392 = vrot.lane.b32.xlu0 %v2023, 124
        %v3393 = vpop.permute.xlu0 %3392
        %3394 = vrot.lane.b32.xlu0 %v2025, 124
        %v3395 = vpop.permute.xlu0 %3394
        %3396 = vrot.lane.b32.xlu0 %v2028, 124
        %v3397 = vpop.permute.xlu0 %3396
        %3398 = vrot.lane.b32.xlu0 %v2030, 124
        %v3399 = vpop.permute.xlu0 %3398
        %3400 = vrot.lane.b32.xlu0 %v2033, 124
        %v3401 = vpop.permute.xlu0 %3400
        %3402 = vrot.lane.b32.xlu0 %v2035, 124
        %v3403 = vpop.permute.xlu0 %3402
        %v3420 = vrot.slane %v3381, 4
        %v3421 = vsel %vm302, %v3420, %v3373
        %v3422 = vrot.slane %v3373, 4
        %v3423 = vsel %vm302, %v3381, %v3422
        %v3425 = vunpack.c.l.s4 1983009808
        %v3426 = vunpack.c.0.s8 %v3425
        %v3427 = vperm.slane %v3421, %v3426
        %v3429 = vunpack.c.l.s4 1983009808
        %v3430 = vunpack.c.0.s8 %v3429
        %v3431 = vperm.slane %v3423, %v3430
        %v3432 = vrot.slane %v3385, 4
        %v3433 = vsel %vm302, %v3432, %v3377
        %v3434 = vrot.slane %v3377, 4
        %v3435 = vsel %vm302, %v3385, %v3434
        %v3437 = vunpack.c.l.s4 1983009808
        %v3438 = vunpack.c.0.s8 %v3437
        %v3439 = vperm.slane %v3433, %v3438
        %v3441 = vunpack.c.l.s4 1983009808
        %v3442 = vunpack.c.0.s8 %v3441
        %v3443 = vperm.slane %v3435, %v3442
        %v3444 = vrot.slane %v3397, 4
        %v3445 = vsel %vm302, %v3444, %v3389
        %v3446 = vrot.slane %v3389, 4
        %v3447 = vsel %vm302, %v3397, %v3446
        %v3449 = vunpack.c.l.s4 1983009808
        %v3450 = vunpack.c.0.s8 %v3449
        %v3451 = vperm.slane %v3445, %v3450
        %v3453 = vunpack.c.l.s4 1983009808
        %v3454 = vunpack.c.0.s8 %v3453
        %v3455 = vperm.slane %v3447, %v3454
        %v3456 = vrot.slane %v3401, 4
        %v3457 = vsel %vm302, %v3456, %v3393
        %v3458 = vrot.slane %v3393, 4
        %v3459 = vsel %vm302, %v3401, %v3458
        %v3461 = vunpack.c.l.s4 1983009808
        %v3462 = vunpack.c.0.s8 %v3461
        %v3463 = vperm.slane %v3457, %v3462
        %v3465 = vunpack.c.l.s4 1983009808
        %v3466 = vunpack.c.0.s8 %v3465
        %v3467 = vperm.slane %v3459, %v3466
        %v3468 = vrot.slane %v3439, 4
        %v3469 = vsel %vm302, %v3468, %v3427
        %v3470 = vrot.slane %v3427, 4
        %v3471 = vsel %vm302, %v3439, %v3470
        %v3473 = vunpack.c.l.s4 1934713408
        %v3474 = vunpack.c.0.s8 %v3473
        %v3475 = vperm.slane %v3469, %v3474
        %v3477 = vunpack.c.l.s4 1934713408
        %v3478 = vunpack.c.0.s8 %v3477
        %v3479 = vperm.slane %v3471, %v3478
        %v3480 = vrot.slane %v3443, 4
        %v3481 = vsel %vm302, %v3480, %v3431
        %v3482 = vrot.slane %v3431, 4
        %v3483 = vsel %vm302, %v3443, %v3482
        %v3485 = vunpack.c.l.s4 1934713408
        %v3486 = vunpack.c.0.s8 %v3485
        %v3487 = vperm.slane %v3481, %v3486
        %v3489 = vunpack.c.l.s4 1934713408
        %v3490 = vunpack.c.0.s8 %v3489
        %v3491 = vperm.slane %v3483, %v3490
        %v3492 = vrot.slane %v3463, 4
        %v3493 = vsel %vm302, %v3492, %v3451
        %v3494 = vrot.slane %v3451, 4
        %v3495 = vsel %vm302, %v3463, %v3494
        %v3497 = vunpack.c.l.s4 1934713408
        %v3498 = vunpack.c.0.s8 %v3497
        %v3499 = vperm.slane %v3493, %v3498
        %v3501 = vunpack.c.l.s4 1934713408
        %v3502 = vunpack.c.0.s8 %v3501
        %v3503 = vperm.slane %v3495, %v3502
        %v3504 = vrot.slane %v3467, 4
        %v3505 = vsel %vm302, %v3504, %v3455
        %v3506 = vrot.slane %v3455, 4
        %v3507 = vsel %vm302, %v3467, %v3506
        %v3509 = vunpack.c.l.s4 1934713408
        %v3510 = vunpack.c.0.s8 %v3509
        %v3511 = vperm.slane %v3505, %v3510
        %v3513 = vunpack.c.l.s4 1934713408
        %v3514 = vunpack.c.0.s8 %v3513
        %v3515 = vperm.slane %v3507, %v3514
        %v3516 = vrot.slane %v3499, 4
        %v3517 = vsel %vm302, %v3516, %v3475
        %v3518 = vrot.slane %v3475, 4
        %v3519 = vsel %vm302, %v3499, %v3518
        %v3520 = vrot.slane %v3503, 4
        %v3521 = vsel %vm302, %v3520, %v3479
        %v3522 = vrot.slane %v3479, 4
        %v3523 = vsel %vm302, %v3503, %v3522
        %v3524 = vrot.slane %v3511, 4
        %v3525 = vsel %vm302, %v3524, %v3487
        %v3526 = vrot.slane %v3487, 4
        %v3527 = vsel %vm302, %v3511, %v3526
        %v3528 = vrot.slane %v3515, 4
        %v3529 = vsel %vm302, %v3528, %v3491
        %v3530 = vrot.slane %v3491, 4
        %v3531 = vsel %vm302, %v3515, %v3530
        %v3532 = vrot.slane %v3383, 4
        %v3533 = vsel %vm302, %v3532, %v3375
        %v3534 = vrot.slane %v3375, 4
        %v3535 = vsel %vm302, %v3383, %v3534
        %v3537 = vunpack.c.l.s4 1983009808
        %v3538 = vunpack.c.0.s8 %v3537
        %v3539 = vperm.slane %v3533, %v3538
        %v3541 = vunpack.c.l.s4 1983009808
        %v3542 = vunpack.c.0.s8 %v3541
        %v3543 = vperm.slane %v3535, %v3542
        %v3544 = vrot.slane %v3387, 4
        %v3545 = vsel %vm302, %v3544, %v3379
        %v3546 = vrot.slane %v3379, 4
        %v3547 = vsel %vm302, %v3387, %v3546
        %v3549 = vunpack.c.l.s4 1983009808
        %v3550 = vunpack.c.0.s8 %v3549
        %v3551 = vperm.slane %v3545, %v3550
        %v3553 = vunpack.c.l.s4 1983009808
        %v3554 = vunpack.c.0.s8 %v3553
        %v3555 = vperm.slane %v3547, %v3554
        %v3556 = vrot.slane %v3399, 4
        %v3557 = vsel %vm302, %v3556, %v3391
        %v3558 = vrot.slane %v3391, 4
        %v3559 = vsel %vm302, %v3399, %v3558
        %v3561 = vunpack.c.l.s4 1983009808
        %v3562 = vunpack.c.0.s8 %v3561
        %v3563 = vperm.slane %v3557, %v3562
        %v3565 = vunpack.c.l.s4 1983009808
        %v3566 = vunpack.c.0.s8 %v3565
        %v3567 = vperm.slane %v3559, %v3566
        %v3568 = vrot.slane %v3403, 4
        %v3569 = vsel %vm302, %v3568, %v3395
        %v3570 = vrot.slane %v3395, 4
        %v3571 = vsel %vm302, %v3403, %v3570
        %v3573 = vunpack.c.l.s4 1983009808
        %v3574 = vunpack.c.0.s8 %v3573
        %v3575 = vperm.slane %v3569, %v3574
        %v3577 = vunpack.c.l.s4 1983009808
        %v3578 = vunpack.c.0.s8 %v3577
        %v3579 = vperm.slane %v3571, %v3578
        %v3580 = vrot.slane %v3551, 4
        %v3581 = vsel %vm302, %v3580, %v3539
        %v3582 = vrot.slane %v3539, 4
        %v3583 = vsel %vm302, %v3551, %v3582
        %v3585 = vunpack.c.l.s4 1934713408
        %v3586 = vunpack.c.0.s8 %v3585
        %v3587 = vperm.slane %v3581, %v3586
        %v3589 = vunpack.c.l.s4 1934713408
        %v3590 = vunpack.c.0.s8 %v3589
        %v3591 = vperm.slane %v3583, %v3590
        %v3592 = vrot.slane %v3555, 4
        %v3593 = vsel %vm302, %v3592, %v3543
        %v3594 = vrot.slane %v3543, 4
        %v3595 = vsel %vm302, %v3555, %v3594
        %v3597 = vunpack.c.l.s4 1934713408
        %v3598 = vunpack.c.0.s8 %v3597
        %v3599 = vperm.slane %v3593, %v3598
        %v3601 = vunpack.c.l.s4 1934713408
        %v3602 = vunpack.c.0.s8 %v3601
        %v3603 = vperm.slane %v3595, %v3602
        %v3604 = vrot.slane %v3575, 4
        %v3605 = vsel %vm302, %v3604, %v3563
        %v3606 = vrot.slane %v3563, 4
        %v3607 = vsel %vm302, %v3575, %v3606
        %v3609 = vunpack.c.l.s4 1934713408
        %v3610 = vunpack.c.0.s8 %v3609
        %v3611 = vperm.slane %v3605, %v3610
        %v3613 = vunpack.c.l.s4 1934713408
        %v3614 = vunpack.c.0.s8 %v3613
        %v3615 = vperm.slane %v3607, %v3614
        %v3616 = vrot.slane %v3579, 4
        %v3617 = vsel %vm302, %v3616, %v3567
        %v3618 = vrot.slane %v3567, 4
        %v3619 = vsel %vm302, %v3579, %v3618
        %v3621 = vunpack.c.l.s4 1934713408
        %v3622 = vunpack.c.0.s8 %v3621
        %v3623 = vperm.slane %v3617, %v3622
        %v3625 = vunpack.c.l.s4 1934713408
        %v3626 = vunpack.c.0.s8 %v3625
        %v3627 = vperm.slane %v3619, %v3626
        %v3628 = vrot.slane %v3611, 4
        %v3629 = vsel %vm302, %v3628, %v3587
        %v3630 = vrot.slane %v3587, 4
        %v3631 = vsel %vm302, %v3611, %v3630
        %v3632 = vrot.slane %v3615, 4
        %v3633 = vsel %vm302, %v3632, %v3591
        %v3634 = vrot.slane %v3591, 4
        %v3635 = vsel %vm302, %v3615, %v3634
        %v3636 = vrot.slane %v3623, 4
        %v3637 = vsel %vm302, %v3636, %v3599
        %v3638 = vrot.slane %v3599, 4
        %v3639 = vsel %vm302, %v3623, %v3638
        %v3640 = vrot.slane %v3627, 4
        %v3641 = vsel %vm302, %v3640, %v3603
        %v3642 = vrot.slane %v3603, 4
        %v3643 = vsel %vm302, %v3627, %v3642
        %3645 = vrot.lane.b32.xlu0 %v3519, 16
        %v3646 = vpop.permute.xlu0 %3645
        %3649 = vrot.lane.b32.xlu0 %v3521, 32
        %v3650 = vpop.permute.xlu0 %3649
        %3653 = vrot.lane.b32.xlu0 %v3523, 48
        %v3654 = vpop.permute.xlu0 %3653
        %3657 = vrot.lane.b32.xlu0 %v3525, 64
        %v3658 = vpop.permute.xlu0 %3657
        %3661 = vrot.lane.b32.xlu0 %v3527, 80
        %v3662 = vpop.permute.xlu0 %3661
        %3665 = vrot.lane.b32.xlu0 %v3529, 96
        %v3666 = vpop.permute.xlu0 %3665
        %3669 = vrot.lane.b32.xlu0 %v3531, 112
        %v3670 = vpop.permute.xlu0 %3669
        %3673 = vrot.lane.b32.xlu0 %v3631, 16
        %v3674 = vpop.permute.xlu0 %3673
        %3677 = vrot.lane.b32.xlu0 %v3633, 32
        %v3678 = vpop.permute.xlu0 %3677
        %3681 = vrot.lane.b32.xlu0 %v3635, 48
        %v3682 = vpop.permute.xlu0 %3681
        %3685 = vrot.lane.b32.xlu0 %v3637, 64
        %v3686 = vpop.permute.xlu0 %3685
        %3689 = vrot.lane.b32.xlu0 %v3639, 80
        %v3690 = vpop.permute.xlu0 %3689
        %3693 = vrot.lane.b32.xlu0 %v3641, 96
        %v3694 = vpop.permute.xlu0 %3693
        %3697 = vrot.lane.b32.xlu0 %v3643, 112
        %v3698 = vpop.permute.xlu0 %3697
        %v3700 = vsel %vm582, %v3517, %v3646
        %v3701 = vsel %vm584, %v3700, %v3650
        %v3702 = vsel %vm586, %v3701, %v3654
        %v3703 = vsel %vm588, %v3702, %v3658
        %v3704 = vsel %vm590, %v3703, %v3662
        %v3705 = vsel %vm592, %v3704, %v3666
        %v3706 = vsel %vm594, %v3705, %v3670
        %v3707 = vsel %vm582, %v3629, %v3674
        %v3708 = vsel %vm584, %v3707, %v3678
        %v3709 = vsel %vm586, %v3708, %v3682
        %v3710 = vsel %vm588, %v3709, %v3686
        %v3711 = vsel %vm590, %v3710, %v3690
        %v3712 = vsel %vm592, %v3711, %v3694
        %v3713 = vsel %vm594, %v3712, %v3698
        %vm3714 = vcmask 1045504
        %v3715 = vrot.slane %v277, 2
        %v3716 = vrot.slane %v278, 2
        %v3717 = vsel %vm3714, %v3715, %v3716
        %v3718 = vrot.slane %v279, 2
        %v3719 = vsel %vm3714, %v3716, %v3718
        %v3720 = vrot.slane %v280, 2
        %v3721 = vrot.slane %v281, 2
        %v3722 = vsel %vm3714, %v3720, %v3721
        %v3723 = vrot.slane %v282, 2
        %v3724 = vsel %vm3714, %v3721, %v3723
        %v3725 = vrot.slane %v283, 2
        %v3726 = vrot.slane %v284, 2
        %v3727 = vsel %vm3714, %v3725, %v3726
        %v3728 = vrot.slane %v285, 2
        %v3729 = vsel %vm3714, %v3726, %v3728
        %v3730 = vrot.slane %v286, 2
        %v3731 = vrot.slane %v287, 2
        %v3732 = vsel %vm3714, %v3730, %v3731
        %v3733 = vrot.slane %v288, 2
        %v3734 = vsel %vm3714, %v3731, %v3733
        %v3735 = vrot.slane %v289, 2
        %v3736 = vrot.slane %v290, 2
        %v3737 = vsel %vm3714, %v3735, %v3736
        %v3738 = vrot.slane %v291, 2
        %v3739 = vsel %vm3714, %v3736, %v3738
        %v3740 = vrot.slane %v292, 2
        %v3741 = vrot.slane %v293, 2
        %v3742 = vsel %vm3714, %v3740, %v3741
        %v3743 = vrot.slane %v294, 2
        %v3744 = vsel %vm3714, %v3741, %v3743
        %v3745 = vrot.slane %v295, 2
        %v3746 = vrot.slane %v296, 2
        %v3747 = vsel %vm3714, %v3745, %v3746
        %v3748 = vrot.slane %v297, 2
        %v3749 = vsel %vm3714, %v3746, %v3748
        %v3750 = vrot.slane %v298, 2
        %v3751 = vrot.slane %v299, 2
        %v3752 = vsel %vm3714, %v3750, %v3751
        %v3753 = vrot.slane %v300, 2
        %v3754 = vsel %vm3714, %v3751, %v3753
        %v3771 = vrot.slane %v3727, 4
        %v3772 = vsel %vm302, %v3771, %v3717
        %v3773 = vrot.slane %v3717, 4
        %v3774 = vsel %vm302, %v3727, %v3773
        %v3776 = vunpack.c.l.s4 1983009808
        %v3777 = vunpack.c.0.s8 %v3776
        %v3778 = vperm.slane %v3772, %v3777
        %v3780 = vunpack.c.l.s4 1983009808
        %v3781 = vunpack.c.0.s8 %v3780
        %v3782 = vperm.slane %v3774, %v3781
        %v3783 = vrot.slane %v3732, 4
        %v3784 = vsel %vm302, %v3783, %v3722
        %v3785 = vrot.slane %v3722, 4
        %v3786 = vsel %vm302, %v3732, %v3785
        %v3788 = vunpack.c.l.s4 1983009808
        %v3789 = vunpack.c.0.s8 %v3788
        %v3790 = vperm.slane %v3784, %v3789
        %v3792 = vunpack.c.l.s4 1983009808
        %v3793 = vunpack.c.0.s8 %v3792
        %v3794 = vperm.slane %v3786, %v3793
        %v3795 = vrot.slane %v3747, 4
        %v3796 = vsel %vm302, %v3795, %v3737
        %v3797 = vrot.slane %v3737, 4
        %v3798 = vsel %vm302, %v3747, %v3797
        %v3800 = vunpack.c.l.s4 1983009808
        %v3801 = vunpack.c.0.s8 %v3800
        %v3802 = vperm.slane %v3796, %v3801
        %v3804 = vunpack.c.l.s4 1983009808
        %v3805 = vunpack.c.0.s8 %v3804
        %v3806 = vperm.slane %v3798, %v3805
        %v3807 = vrot.slane %v3752, 4
        %v3808 = vsel %vm302, %v3807, %v3742
        %v3809 = vrot.slane %v3742, 4
        %v3810 = vsel %vm302, %v3752, %v3809
        %v3812 = vunpack.c.l.s4 1983009808
        %v3813 = vunpack.c.0.s8 %v3812
        %v3814 = vperm.slane %v3808, %v3813
        %v3816 = vunpack.c.l.s4 1983009808
        %v3817 = vunpack.c.0.s8 %v3816
        %v3818 = vperm.slane %v3810, %v3817
        %v3819 = vrot.slane %v3790, 4
        %v3820 = vsel %vm302, %v3819, %v3778
        %v3821 = vrot.slane %v3778, 4
        %v3822 = vsel %vm302, %v3790, %v3821
        %v3824 = vunpack.c.l.s4 1934713408
        %v3825 = vunpack.c.0.s8 %v3824
        %v3826 = vperm.slane %v3820, %v3825
        %v3828 = vunpack.c.l.s4 1934713408
        %v3829 = vunpack.c.0.s8 %v3828
        %v3830 = vperm.slane %v3822, %v3829
        %v3831 = vrot.slane %v3794, 4
        %v3832 = vsel %vm302, %v3831, %v3782
        %v3833 = vrot.slane %v3782, 4
        %v3834 = vsel %vm302, %v3794, %v3833
        %v3836 = vunpack.c.l.s4 1934713408
        %v3837 = vunpack.c.0.s8 %v3836
        %v3838 = vperm.slane %v3832, %v3837
        %v3840 = vunpack.c.l.s4 1934713408
        %v3841 = vunpack.c.0.s8 %v3840
        %v3842 = vperm.slane %v3834, %v3841
        %v3843 = vrot.slane %v3814, 4
        %v3844 = vsel %vm302, %v3843, %v3802
        %v3845 = vrot.slane %v3802, 4
        %v3846 = vsel %vm302, %v3814, %v3845
        %v3848 = vunpack.c.l.s4 1934713408
        %v3849 = vunpack.c.0.s8 %v3848
        %v3850 = vperm.slane %v3844, %v3849
        %v3852 = vunpack.c.l.s4 1934713408
        %v3853 = vunpack.c.0.s8 %v3852
        %v3854 = vperm.slane %v3846, %v3853
        %v3855 = vrot.slane %v3818, 4
        %v3856 = vsel %vm302, %v3855, %v3806
        %v3857 = vrot.slane %v3806, 4
        %v3858 = vsel %vm302, %v3818, %v3857
        %v3860 = vunpack.c.l.s4 1934713408
        %v3861 = vunpack.c.0.s8 %v3860
        %v3862 = vperm.slane %v3856, %v3861
        %v3864 = vunpack.c.l.s4 1934713408
        %v3865 = vunpack.c.0.s8 %v3864
        %v3866 = vperm.slane %v3858, %v3865
        %v3867 = vrot.slane %v3850, 4
        %v3868 = vsel %vm302, %v3867, %v3826
        %v3869 = vrot.slane %v3826, 4
        %v3870 = vsel %vm302, %v3850, %v3869
        %v3871 = vrot.slane %v3854, 4
        %v3872 = vsel %vm302, %v3871, %v3830
        %v3873 = vrot.slane %v3830, 4
        %v3874 = vsel %vm302, %v3854, %v3873
        %v3875 = vrot.slane %v3862, 4
        %v3876 = vsel %vm302, %v3875, %v3838
        %v3877 = vrot.slane %v3838, 4
        %v3878 = vsel %vm302, %v3862, %v3877
        %v3879 = vrot.slane %v3866, 4
        %v3880 = vsel %vm302, %v3879, %v3842
        %v3881 = vrot.slane %v3842, 4
        %v3882 = vsel %vm302, %v3866, %v3881
        %v3883 = vrot.slane %v3729, 4
        %v3884 = vsel %vm302, %v3883, %v3719
        %v3885 = vrot.slane %v3719, 4
        %v3886 = vsel %vm302, %v3729, %v3885
        %v3888 = vunpack.c.l.s4 1983009808
        %v3889 = vunpack.c.0.s8 %v3888
        %v3890 = vperm.slane %v3884, %v3889
        %v3892 = vunpack.c.l.s4 1983009808
        %v3893 = vunpack.c.0.s8 %v3892
        %v3894 = vperm.slane %v3886, %v3893
        %v3895 = vrot.slane %v3734, 4
        %v3896 = vsel %vm302, %v3895, %v3724
        %v3897 = vrot.slane %v3724, 4
        %v3898 = vsel %vm302, %v3734, %v3897
        %v3900 = vunpack.c.l.s4 1983009808
        %v3901 = vunpack.c.0.s8 %v3900
        %v3902 = vperm.slane %v3896, %v3901
        %v3904 = vunpack.c.l.s4 1983009808
        %v3905 = vunpack.c.0.s8 %v3904
        %v3906 = vperm.slane %v3898, %v3905
        %v3907 = vrot.slane %v3749, 4
        %v3908 = vsel %vm302, %v3907, %v3739
        %v3909 = vrot.slane %v3739, 4
        %v3910 = vsel %vm302, %v3749, %v3909
        %v3912 = vunpack.c.l.s4 1983009808
        %v3913 = vunpack.c.0.s8 %v3912
        %v3914 = vperm.slane %v3908, %v3913
        %v3916 = vunpack.c.l.s4 1983009808
        %v3917 = vunpack.c.0.s8 %v3916
        %v3918 = vperm.slane %v3910, %v3917
        %v3919 = vrot.slane %v3754, 4
        %v3920 = vsel %vm302, %v3919, %v3744
        %v3921 = vrot.slane %v3744, 4
        %v3922 = vsel %vm302, %v3754, %v3921
        %v3924 = vunpack.c.l.s4 1983009808
        %v3925 = vunpack.c.0.s8 %v3924
        %v3926 = vperm.slane %v3920, %v3925
        %v3928 = vunpack.c.l.s4 1983009808
        %v3929 = vunpack.c.0.s8 %v3928
        %v3930 = vperm.slane %v3922, %v3929
        %v3931 = vrot.slane %v3902, 4
        %v3932 = vsel %vm302, %v3931, %v3890
        %v3933 = vrot.slane %v3890, 4
        %v3934 = vsel %vm302, %v3902, %v3933
        %v3936 = vunpack.c.l.s4 1934713408
        %v3937 = vunpack.c.0.s8 %v3936
        %v3938 = vperm.slane %v3932, %v3937
        %v3940 = vunpack.c.l.s4 1934713408
        %v3941 = vunpack.c.0.s8 %v3940
        %v3942 = vperm.slane %v3934, %v3941
        %v3943 = vrot.slane %v3906, 4
        %v3944 = vsel %vm302, %v3943, %v3894
        %v3945 = vrot.slane %v3894, 4
        %v3946 = vsel %vm302, %v3906, %v3945
        %v3948 = vunpack.c.l.s4 1934713408
        %v3949 = vunpack.c.0.s8 %v3948
        %v3950 = vperm.slane %v3944, %v3949
        %v3952 = vunpack.c.l.s4 1934713408
        %v3953 = vunpack.c.0.s8 %v3952
        %v3954 = vperm.slane %v3946, %v3953
        %v3955 = vrot.slane %v3926, 4
        %v3956 = vsel %vm302, %v3955, %v3914
        %v3957 = vrot.slane %v3914, 4
        %v3958 = vsel %vm302, %v3926, %v3957
        %v3960 = vunpack.c.l.s4 1934713408
        %v3961 = vunpack.c.0.s8 %v3960
        %v3962 = vperm.slane %v3956, %v3961
        %v3964 = vunpack.c.l.s4 1934713408
        %v3965 = vunpack.c.0.s8 %v3964
        %v3966 = vperm.slane %v3958, %v3965
        %v3967 = vrot.slane %v3930, 4
        %v3968 = vsel %vm302, %v3967, %v3918
        %v3969 = vrot.slane %v3918, 4
        %v3970 = vsel %vm302, %v3930, %v3969
        %v3972 = vunpack.c.l.s4 1934713408
        %v3973 = vunpack.c.0.s8 %v3972
        %v3974 = vperm.slane %v3968, %v3973
        %v3976 = vunpack.c.l.s4 1934713408
        %v3977 = vunpack.c.0.s8 %v3976
        %v3978 = vperm.slane %v3970, %v3977
        %v3979 = vrot.slane %v3962, 4
        %v3980 = vsel %vm302, %v3979, %v3938
        %v3981 = vrot.slane %v3938, 4
        %v3982 = vsel %vm302, %v3962, %v3981
        %v3983 = vrot.slane %v3966, 4
        %v3984 = vsel %vm302, %v3983, %v3942
        %v3985 = vrot.slane %v3942, 4
        %v3986 = vsel %vm302, %v3966, %v3985
        %v3987 = vrot.slane %v3974, 4
        %v3988 = vsel %vm302, %v3987, %v3950
        %v3989 = vrot.slane %v3950, 4
        %v3990 = vsel %vm302, %v3974, %v3989
        %v3991 = vrot.slane %v3978, 4
        %v3992 = vsel %vm302, %v3991, %v3954
        %v3993 = vrot.slane %v3954, 4
        %v3994 = vsel %vm302, %v3978, %v3993
        %3996 = vrot.lane.b32.xlu0 %v3870, 16
        %v3997 = vpop.permute.xlu0 %3996
        %4000 = vrot.lane.b32.xlu0 %v3872, 32
        %v4001 = vpop.permute.xlu0 %4000
        %4004 = vrot.lane.b32.xlu0 %v3874, 48
        %v4005 = vpop.permute.xlu0 %4004
        %4008 = vrot.lane.b32.xlu0 %v3876, 64
        %v4009 = vpop.permute.xlu0 %4008
        %4012 = vrot.lane.b32.xlu0 %v3878, 80
        %v4013 = vpop.permute.xlu0 %4012
        %4016 = vrot.lane.b32.xlu0 %v3880, 96
        %v4017 = vpop.permute.xlu0 %4016
        %4020 = vrot.lane.b32.xlu0 %v3882, 112
        %v4021 = vpop.permute.xlu0 %4020
        %4024 = vrot.lane.b32.xlu0 %v3982, 16
        %v4025 = vpop.permute.xlu0 %4024
        %4028 = vrot.lane.b32.xlu0 %v3984, 32
        %v4029 = vpop.permute.xlu0 %4028
        %4032 = vrot.lane.b32.xlu0 %v3986, 48
        %v4033 = vpop.permute.xlu0 %4032
        %4036 = vrot.lane.b32.xlu0 %v3988, 64
        %v4037 = vpop.permute.xlu0 %4036
        %4040 = vrot.lane.b32.xlu0 %v3990, 80
        %v4041 = vpop.permute.xlu0 %4040
        %4044 = vrot.lane.b32.xlu0 %v3992, 96
        %v4045 = vpop.permute.xlu0 %4044
        %4048 = vrot.lane.b32.xlu0 %v3994, 112
        %v4049 = vpop.permute.xlu0 %4048
        %v4051 = vsel %vm582, %v3868, %v3997
        %v4052 = vsel %vm584, %v4051, %v4001
        %v4053 = vsel %vm586, %v4052, %v4005
        %v4054 = vsel %vm588, %v4053, %v4009
        %v4055 = vsel %vm590, %v4054, %v4013
        %v4056 = vsel %vm592, %v4055, %v4017
        %v4057 = vsel %vm594, %v4056, %v4021
        %v4058 = vsel %vm582, %v3980, %v4025
        %v4059 = vsel %vm584, %v4058, %v4029
        %v4060 = vsel %vm586, %v4059, %v4033
        %v4061 = vsel %vm588, %v4060, %v4037
        %v4062 = vsel %vm590, %v4061, %v4041
        %v4063 = vsel %vm592, %v4062, %v4045
        %v4064 = vsel %vm594, %v4063, %v4049
        %4065 = vrot.lane.b32.xlu0 %v3717, 127
        %v4066 = vpop.permute.xlu0 %4065
        %4067 = vrot.lane.b32.xlu0 %v3719, 127
        %v4068 = vpop.permute.xlu0 %4067
        %4069 = vrot.lane.b32.xlu0 %v3722, 127
        %v4070 = vpop.permute.xlu0 %4069
        %4071 = vrot.lane.b32.xlu0 %v3724, 127
        %v4072 = vpop.permute.xlu0 %4071
        %4073 = vrot.lane.b32.xlu0 %v3727, 127
        %v4074 = vpop.permute.xlu0 %4073
        %4075 = vrot.lane.b32.xlu0 %v3729, 127
        %v4076 = vpop.permute.xlu0 %4075
        %4077 = vrot.lane.b32.xlu0 %v3732, 127
        %v4078 = vpop.permute.xlu0 %4077
        %4079 = vrot.lane.b32.xlu0 %v3734, 127
        %v4080 = vpop.permute.xlu0 %4079
        %4081 = vrot.lane.b32.xlu0 %v3737, 127
        %v4082 = vpop.permute.xlu0 %4081
        %4083 = vrot.lane.b32.xlu0 %v3739, 127
        %v4084 = vpop.permute.xlu0 %4083
        %4085 = vrot.lane.b32.xlu0 %v3742, 127
        %v4086 = vpop.permute.xlu0 %4085
        %4087 = vrot.lane.b32.xlu0 %v3744, 127
        %v4088 = vpop.permute.xlu0 %4087
        %4089 = vrot.lane.b32.xlu0 %v3747, 127
        %v4090 = vpop.permute.xlu0 %4089
        %4091 = vrot.lane.b32.xlu0 %v3749, 127
        %v4092 = vpop.permute.xlu0 %4091
        %4093 = vrot.lane.b32.xlu0 %v3752, 127
        %v4094 = vpop.permute.xlu0 %4093
        %4095 = vrot.lane.b32.xlu0 %v3754, 127
        %v4096 = vpop.permute.xlu0 %4095
        %v4113 = vrot.slane %v4074, 4
        %v4114 = vsel %vm302, %v4113, %v4066
        %v4115 = vrot.slane %v4066, 4
        %v4116 = vsel %vm302, %v4074, %v4115
        %v4118 = vunpack.c.l.s4 1983009808
        %v4119 = vunpack.c.0.s8 %v4118
        %v4120 = vperm.slane %v4114, %v4119
        %v4122 = vunpack.c.l.s4 1983009808
        %v4123 = vunpack.c.0.s8 %v4122
        %v4124 = vperm.slane %v4116, %v4123
        %v4125 = vrot.slane %v4078, 4
        %v4126 = vsel %vm302, %v4125, %v4070
        %v4127 = vrot.slane %v4070, 4
        %v4128 = vsel %vm302, %v4078, %v4127
        %v4130 = vunpack.c.l.s4 1983009808
        %v4131 = vunpack.c.0.s8 %v4130
        %v4132 = vperm.slane %v4126, %v4131
        %v4134 = vunpack.c.l.s4 1983009808
        %v4135 = vunpack.c.0.s8 %v4134
        %v4136 = vperm.slane %v4128, %v4135
        %v4137 = vrot.slane %v4090, 4
        %v4138 = vsel %vm302, %v4137, %v4082
        %v4139 = vrot.slane %v4082, 4
        %v4140 = vsel %vm302, %v4090, %v4139
        %v4142 = vunpack.c.l.s4 1983009808
        %v4143 = vunpack.c.0.s8 %v4142
        %v4144 = vperm.slane %v4138, %v4143
        %v4146 = vunpack.c.l.s4 1983009808
        %v4147 = vunpack.c.0.s8 %v4146
        %v4148 = vperm.slane %v4140, %v4147
        %v4149 = vrot.slane %v4094, 4
        %v4150 = vsel %vm302, %v4149, %v4086
        %v4151 = vrot.slane %v4086, 4
        %v4152 = vsel %vm302, %v4094, %v4151
        %v4154 = vunpack.c.l.s4 1983009808
        %v4155 = vunpack.c.0.s8 %v4154
        %v4156 = vperm.slane %v4150, %v4155
        %v4158 = vunpack.c.l.s4 1983009808
        %v4159 = vunpack.c.0.s8 %v4158
        %v4160 = vperm.slane %v4152, %v4159
        %v4161 = vrot.slane %v4132, 4
        %v4162 = vsel %vm302, %v4161, %v4120
        %v4163 = vrot.slane %v4120, 4
        %v4164 = vsel %vm302, %v4132, %v4163
        %v4166 = vunpack.c.l.s4 1934713408
        %v4167 = vunpack.c.0.s8 %v4166
        %v4168 = vperm.slane %v4162, %v4167
        %v4170 = vunpack.c.l.s4 1934713408
        %v4171 = vunpack.c.0.s8 %v4170
        %v4172 = vperm.slane %v4164, %v4171
        %v4173 = vrot.slane %v4136, 4
        %v4174 = vsel %vm302, %v4173, %v4124
        %v4175 = vrot.slane %v4124, 4
        %v4176 = vsel %vm302, %v4136, %v4175
        %v4178 = vunpack.c.l.s4 1934713408
        %v4179 = vunpack.c.0.s8 %v4178
        %v4180 = vperm.slane %v4174, %v4179
        %v4182 = vunpack.c.l.s4 1934713408
        %v4183 = vunpack.c.0.s8 %v4182
        %v4184 = vperm.slane %v4176, %v4183
        %v4185 = vrot.slane %v4156, 4
        %v4186 = vsel %vm302, %v4185, %v4144
        %v4187 = vrot.slane %v4144, 4
        %v4188 = vsel %vm302, %v4156, %v4187
        %v4190 = vunpack.c.l.s4 1934713408
        %v4191 = vunpack.c.0.s8 %v4190
        %v4192 = vperm.slane %v4186, %v4191
        %v4194 = vunpack.c.l.s4 1934713408
        %v4195 = vunpack.c.0.s8 %v4194
        %v4196 = vperm.slane %v4188, %v4195
        %v4197 = vrot.slane %v4160, 4
        %v4198 = vsel %vm302, %v4197, %v4148
        %v4199 = vrot.slane %v4148, 4
        %v4200 = vsel %vm302, %v4160, %v4199
        %v4202 = vunpack.c.l.s4 1934713408
        %v4203 = vunpack.c.0.s8 %v4202
        %v4204 = vperm.slane %v4198, %v4203
        %v4206 = vunpack.c.l.s4 1934713408
        %v4207 = vunpack.c.0.s8 %v4206
        %v4208 = vperm.slane %v4200, %v4207
        %v4209 = vrot.slane %v4192, 4
        %v4210 = vsel %vm302, %v4209, %v4168
        %v4211 = vrot.slane %v4168, 4
        %v4212 = vsel %vm302, %v4192, %v4211
        %v4213 = vrot.slane %v4196, 4
        %v4214 = vsel %vm302, %v4213, %v4172
        %v4215 = vrot.slane %v4172, 4
        %v4216 = vsel %vm302, %v4196, %v4215
        %v4217 = vrot.slane %v4204, 4
        %v4218 = vsel %vm302, %v4217, %v4180
        %v4219 = vrot.slane %v4180, 4
        %v4220 = vsel %vm302, %v4204, %v4219
        %v4221 = vrot.slane %v4208, 4
        %v4222 = vsel %vm302, %v4221, %v4184
        %v4223 = vrot.slane %v4184, 4
        %v4224 = vsel %vm302, %v4208, %v4223
        %v4225 = vrot.slane %v4076, 4
        %v4226 = vsel %vm302, %v4225, %v4068
        %v4227 = vrot.slane %v4068, 4
        %v4228 = vsel %vm302, %v4076, %v4227
        %v4230 = vunpack.c.l.s4 1983009808
        %v4231 = vunpack.c.0.s8 %v4230
        %v4232 = vperm.slane %v4226, %v4231
        %v4234 = vunpack.c.l.s4 1983009808
        %v4235 = vunpack.c.0.s8 %v4234
        %v4236 = vperm.slane %v4228, %v4235
        %v4237 = vrot.slane %v4080, 4
        %v4238 = vsel %vm302, %v4237, %v4072
        %v4239 = vrot.slane %v4072, 4
        %v4240 = vsel %vm302, %v4080, %v4239
        %v4242 = vunpack.c.l.s4 1983009808
        %v4243 = vunpack.c.0.s8 %v4242
        %v4244 = vperm.slane %v4238, %v4243
        %v4246 = vunpack.c.l.s4 1983009808
        %v4247 = vunpack.c.0.s8 %v4246
        %v4248 = vperm.slane %v4240, %v4247
        %v4249 = vrot.slane %v4092, 4
        %v4250 = vsel %vm302, %v4249, %v4084
        %v4251 = vrot.slane %v4084, 4
        %v4252 = vsel %vm302, %v4092, %v4251
        %v4254 = vunpack.c.l.s4 1983009808
        %v4255 = vunpack.c.0.s8 %v4254
        %v4256 = vperm.slane %v4250, %v4255
        %v4258 = vunpack.c.l.s4 1983009808
        %v4259 = vunpack.c.0.s8 %v4258
        %v4260 = vperm.slane %v4252, %v4259
        %v4261 = vrot.slane %v4096, 4
        %v4262 = vsel %vm302, %v4261, %v4088
        %v4263 = vrot.slane %v4088, 4
        %v4264 = vsel %vm302, %v4096, %v4263
        %v4266 = vunpack.c.l.s4 1983009808
        %v4267 = vunpack.c.0.s8 %v4266
        %v4268 = vperm.slane %v4262, %v4267
        %v4270 = vunpack.c.l.s4 1983009808
        %v4271 = vunpack.c.0.s8 %v4270
        %v4272 = vperm.slane %v4264, %v4271
        %v4273 = vrot.slane %v4244, 4
        %v4274 = vsel %vm302, %v4273, %v4232
        %v4275 = vrot.slane %v4232, 4
        %v4276 = vsel %vm302, %v4244, %v4275
        %v4278 = vunpack.c.l.s4 1934713408
        %v4279 = vunpack.c.0.s8 %v4278
        %v4280 = vperm.slane %v4274, %v4279
        %v4282 = vunpack.c.l.s4 1934713408
        %v4283 = vunpack.c.0.s8 %v4282
        %v4284 = vperm.slane %v4276, %v4283
        %v4285 = vrot.slane %v4248, 4
        %v4286 = vsel %vm302, %v4285, %v4236
        %v4287 = vrot.slane %v4236, 4
        %v4288 = vsel %vm302, %v4248, %v4287
        %v4290 = vunpack.c.l.s4 1934713408
        %v4291 = vunpack.c.0.s8 %v4290
        %v4292 = vperm.slane %v4286, %v4291
        %v4294 = vunpack.c.l.s4 1934713408
        %v4295 = vunpack.c.0.s8 %v4294
        %v4296 = vperm.slane %v4288, %v4295
        %v4297 = vrot.slane %v4268, 4
        %v4298 = vsel %vm302, %v4297, %v4256
        %v4299 = vrot.slane %v4256, 4
        %v4300 = vsel %vm302, %v4268, %v4299
        %v4302 = vunpack.c.l.s4 1934713408
        %v4303 = vunpack.c.0.s8 %v4302
        %v4304 = vperm.slane %v4298, %v4303
        %v4306 = vunpack.c.l.s4 1934713408
        %v4307 = vunpack.c.0.s8 %v4306
        %v4308 = vperm.slane %v4300, %v4307
        %v4309 = vrot.slane %v4272, 4
        %v4310 = vsel %vm302, %v4309, %v4260
        %v4311 = vrot.slane %v4260, 4
        %v4312 = vsel %vm302, %v4272, %v4311
        %v4314 = vunpack.c.l.s4 1934713408
        %v4315 = vunpack.c.0.s8 %v4314
        %v4316 = vperm.slane %v4310, %v4315
        %v4318 = vunpack.c.l.s4 1934713408
        %v4319 = vunpack.c.0.s8 %v4318
        %v4320 = vperm.slane %v4312, %v4319
        %v4321 = vrot.slane %v4304, 4
        %v4322 = vsel %vm302, %v4321, %v4280
        %v4323 = vrot.slane %v4280, 4
        %v4324 = vsel %vm302, %v4304, %v4323
        %v4325 = vrot.slane %v4308, 4
        %v4326 = vsel %vm302, %v4325, %v4284
        %v4327 = vrot.slane %v4284, 4
        %v4328 = vsel %vm302, %v4308, %v4327
        %v4329 = vrot.slane %v4316, 4
        %v4330 = vsel %vm302, %v4329, %v4292
        %v4331 = vrot.slane %v4292, 4
        %v4332 = vsel %vm302, %v4316, %v4331
        %v4333 = vrot.slane %v4320, 4
        %v4334 = vsel %vm302, %v4333, %v4296
        %v4335 = vrot.slane %v4296, 4
        %v4336 = vsel %vm302, %v4320, %v4335
        %4338 = vrot.lane.b32.xlu0 %v4212, 16
        %v4339 = vpop.permute.xlu0 %4338
        %4342 = vrot.lane.b32.xlu0 %v4214, 32
        %v4343 = vpop.permute.xlu0 %4342
        %4346 = vrot.lane.b32.xlu0 %v4216, 48
        %v4347 = vpop.permute.xlu0 %4346
        %4350 = vrot.lane.b32.xlu0 %v4218, 64
        %v4351 = vpop.permute.xlu0 %4350
        %4354 = vrot.lane.b32.xlu0 %v4220, 80
        %v4355 = vpop.permute.xlu0 %4354
        %4358 = vrot.lane.b32.xlu0 %v4222, 96
        %v4359 = vpop.permute.xlu0 %4358
        %4362 = vrot.lane.b32.xlu0 %v4224, 112
        %v4363 = vpop.permute.xlu0 %4362
        %4366 = vrot.lane.b32.xlu0 %v4324, 16
        %v4367 = vpop.permute.xlu0 %4366
        %4370 = vrot.lane.b32.xlu0 %v4326, 32
        %v4371 = vpop.permute.xlu0 %4370
        %4374 = vrot.lane.b32.xlu0 %v4328, 48
        %v4375 = vpop.permute.xlu0 %4374
        %4378 = vrot.lane.b32.xlu0 %v4330, 64
        %v4379 = vpop.permute.xlu0 %4378
        %4382 = vrot.lane.b32.xlu0 %v4332, 80
        %v4383 = vpop.permute.xlu0 %4382
        %4386 = vrot.lane.b32.xlu0 %v4334, 96
        %v4387 = vpop.permute.xlu0 %4386
        %4390 = vrot.lane.b32.xlu0 %v4336, 112
        %v4391 = vpop.permute.xlu0 %4390
        %v4393 = vsel %vm582, %v4210, %v4339
        %v4394 = vsel %vm584, %v4393, %v4343
        %v4395 = vsel %vm586, %v4394, %v4347
        %v4396 = vsel %vm588, %v4395, %v4351
        %v4397 = vsel %vm590, %v4396, %v4355
        %v4398 = vsel %vm592, %v4397, %v4359
        %v4399 = vsel %vm594, %v4398, %v4363
        %v4400 = vsel %vm582, %v4322, %v4367
        %v4401 = vsel %vm584, %v4400, %v4371
        %v4402 = vsel %vm586, %v4401, %v4375
        %v4403 = vsel %vm588, %v4402, %v4379
        %v4404 = vsel %vm590, %v4403, %v4383
        %v4405 = vsel %vm592, %v4404, %v4387
        %v4406 = vsel %vm594, %v4405, %v4391
        %4407 = vrot.lane.b32.xlu0 %v3717, 126
        %v4408 = vpop.permute.xlu0 %4407
        %4409 = vrot.lane.b32.xlu0 %v3719, 126
        %v4410 = vpop.permute.xlu0 %4409
        %4411 = vrot.lane.b32.xlu0 %v3722, 126
        %v4412 = vpop.permute.xlu0 %4411
        %4413 = vrot.lane.b32.xlu0 %v3724, 126
        %v4414 = vpop.permute.xlu0 %4413
        %4415 = vrot.lane.b32.xlu0 %v3727, 126
        %v4416 = vpop.permute.xlu0 %4415
        %4417 = vrot.lane.b32.xlu0 %v3729, 126
        %v4418 = vpop.permute.xlu0 %4417
        %4419 = vrot.lane.b32.xlu0 %v3732, 126
        %v4420 = vpop.permute.xlu0 %4419
        %4421 = vrot.lane.b32.xlu0 %v3734, 126
        %v4422 = vpop.permute.xlu0 %4421
        %4423 = vrot.lane.b32.xlu0 %v3737, 126
        %v4424 = vpop.permute.xlu0 %4423
        %4425 = vrot.lane.b32.xlu0 %v3739, 126
        %v4426 = vpop.permute.xlu0 %4425
        %4427 = vrot.lane.b32.xlu0 %v3742, 126
        %v4428 = vpop.permute.xlu0 %4427
        %4429 = vrot.lane.b32.xlu0 %v3744, 126
        %v4430 = vpop.permute.xlu0 %4429
        %4431 = vrot.lane.b32.xlu0 %v3747, 126
        %v4432 = vpop.permute.xlu0 %4431
        %4433 = vrot.lane.b32.xlu0 %v3749, 126
        %v4434 = vpop.permute.xlu0 %4433
        %4435 = vrot.lane.b32.xlu0 %v3752, 126
        %v4436 = vpop.permute.xlu0 %4435
        %4437 = vrot.lane.b32.xlu0 %v3754, 126
        %v4438 = vpop.permute.xlu0 %4437
        %v4455 = vrot.slane %v4416, 4
        %v4456 = vsel %vm302, %v4455, %v4408
        %v4457 = vrot.slane %v4408, 4
        %v4458 = vsel %vm302, %v4416, %v4457
        %v4460 = vunpack.c.l.s4 1983009808
        %v4461 = vunpack.c.0.s8 %v4460
        %v4462 = vperm.slane %v4456, %v4461
        %v4464 = vunpack.c.l.s4 1983009808
        %v4465 = vunpack.c.0.s8 %v4464
        %v4466 = vperm.slane %v4458, %v4465
        %v4467 = vrot.slane %v4420, 4
        %v4468 = vsel %vm302, %v4467, %v4412
        %v4469 = vrot.slane %v4412, 4
        %v4470 = vsel %vm302, %v4420, %v4469
        %v4472 = vunpack.c.l.s4 1983009808
        %v4473 = vunpack.c.0.s8 %v4472
        %v4474 = vperm.slane %v4468, %v4473
        %v4476 = vunpack.c.l.s4 1983009808
        %v4477 = vunpack.c.0.s8 %v4476
        %v4478 = vperm.slane %v4470, %v4477
        %v4479 = vrot.slane %v4432, 4
        %v4480 = vsel %vm302, %v4479, %v4424
        %v4481 = vrot.slane %v4424, 4
        %v4482 = vsel %vm302, %v4432, %v4481
        %v4484 = vunpack.c.l.s4 1983009808
        %v4485 = vunpack.c.0.s8 %v4484
        %v4486 = vperm.slane %v4480, %v4485
        %v4488 = vunpack.c.l.s4 1983009808
        %v4489 = vunpack.c.0.s8 %v4488
        %v4490 = vperm.slane %v4482, %v4489
        %v4491 = vrot.slane %v4436, 4
        %v4492 = vsel %vm302, %v4491, %v4428
        %v4493 = vrot.slane %v4428, 4
        %v4494 = vsel %vm302, %v4436, %v4493
        %v4496 = vunpack.c.l.s4 1983009808
        %v4497 = vunpack.c.0.s8 %v4496
        %v4498 = vperm.slane %v4492, %v4497
        %v4500 = vunpack.c.l.s4 1983009808
        %v4501 = vunpack.c.0.s8 %v4500
        %v4502 = vperm.slane %v4494, %v4501
        %v4503 = vrot.slane %v4474, 4
        %v4504 = vsel %vm302, %v4503, %v4462
        %v4505 = vrot.slane %v4462, 4
        %v4506 = vsel %vm302, %v4474, %v4505
        %v4508 = vunpack.c.l.s4 1934713408
        %v4509 = vunpack.c.0.s8 %v4508
        %v4510 = vperm.slane %v4504, %v4509
        %v4512 = vunpack.c.l.s4 1934713408
        %v4513 = vunpack.c.0.s8 %v4512
        %v4514 = vperm.slane %v4506, %v4513
        %v4515 = vrot.slane %v4478, 4
        %v4516 = vsel %vm302, %v4515, %v4466
        %v4517 = vrot.slane %v4466, 4
        %v4518 = vsel %vm302, %v4478, %v4517
        %v4520 = vunpack.c.l.s4 1934713408
        %v4521 = vunpack.c.0.s8 %v4520
        %v4522 = vperm.slane %v4516, %v4521
        %v4524 = vunpack.c.l.s4 1934713408
        %v4525 = vunpack.c.0.s8 %v4524
        %v4526 = vperm.slane %v4518, %v4525
        %v4527 = vrot.slane %v4498, 4
        %v4528 = vsel %vm302, %v4527, %v4486
        %v4529 = vrot.slane %v4486, 4
        %v4530 = vsel %vm302, %v4498, %v4529
        %v4532 = vunpack.c.l.s4 1934713408
        %v4533 = vunpack.c.0.s8 %v4532
        %v4534 = vperm.slane %v4528, %v4533
        %v4536 = vunpack.c.l.s4 1934713408
        %v4537 = vunpack.c.0.s8 %v4536
        %v4538 = vperm.slane %v4530, %v4537
        %v4539 = vrot.slane %v4502, 4
        %v4540 = vsel %vm302, %v4539, %v4490
        %v4541 = vrot.slane %v4490, 4
        %v4542 = vsel %vm302, %v4502, %v4541
        %v4544 = vunpack.c.l.s4 1934713408
        %v4545 = vunpack.c.0.s8 %v4544
        %v4546 = vperm.slane %v4540, %v4545
        %v4548 = vunpack.c.l.s4 1934713408
        %v4549 = vunpack.c.0.s8 %v4548
        %v4550 = vperm.slane %v4542, %v4549
        %v4551 = vrot.slane %v4534, 4
        %v4552 = vsel %vm302, %v4551, %v4510
        %v4553 = vrot.slane %v4510, 4
        %v4554 = vsel %vm302, %v4534, %v4553
        %v4555 = vrot.slane %v4538, 4
        %v4556 = vsel %vm302, %v4555, %v4514
        %v4557 = vrot.slane %v4514, 4
        %v4558 = vsel %vm302, %v4538, %v4557
        %v4559 = vrot.slane %v4546, 4
        %v4560 = vsel %vm302, %v4559, %v4522
        %v4561 = vrot.slane %v4522, 4
        %v4562 = vsel %vm302, %v4546, %v4561
        %v4563 = vrot.slane %v4550, 4
        %v4564 = vsel %vm302, %v4563, %v4526
        %v4565 = vrot.slane %v4526, 4
        %v4566 = vsel %vm302, %v4550, %v4565
        %v4567 = vrot.slane %v4418, 4
        %v4568 = vsel %vm302, %v4567, %v4410
        %v4569 = vrot.slane %v4410, 4
        %v4570 = vsel %vm302, %v4418, %v4569
        %v4572 = vunpack.c.l.s4 1983009808
        %v4573 = vunpack.c.0.s8 %v4572
        %v4574 = vperm.slane %v4568, %v4573
        %v4576 = vunpack.c.l.s4 1983009808
        %v4577 = vunpack.c.0.s8 %v4576
        %v4578 = vperm.slane %v4570, %v4577
        %v4579 = vrot.slane %v4422, 4
        %v4580 = vsel %vm302, %v4579, %v4414
        %v4581 = vrot.slane %v4414, 4
        %v4582 = vsel %vm302, %v4422, %v4581
        %v4584 = vunpack.c.l.s4 1983009808
        %v4585 = vunpack.c.0.s8 %v4584
        %v4586 = vperm.slane %v4580, %v4585
        %v4588 = vunpack.c.l.s4 1983009808
        %v4589 = vunpack.c.0.s8 %v4588
        %v4590 = vperm.slane %v4582, %v4589
        %v4591 = vrot.slane %v4434, 4
        %v4592 = vsel %vm302, %v4591, %v4426
        %v4593 = vrot.slane %v4426, 4
        %v4594 = vsel %vm302, %v4434, %v4593
        %v4596 = vunpack.c.l.s4 1983009808
        %v4597 = vunpack.c.0.s8 %v4596
        %v4598 = vperm.slane %v4592, %v4597
        %v4600 = vunpack.c.l.s4 1983009808
        %v4601 = vunpack.c.0.s8 %v4600
        %v4602 = vperm.slane %v4594, %v4601
        %v4603 = vrot.slane %v4438, 4
        %v4604 = vsel %vm302, %v4603, %v4430
        %v4605 = vrot.slane %v4430, 4
        %v4606 = vsel %vm302, %v4438, %v4605
        %v4608 = vunpack.c.l.s4 1983009808
        %v4609 = vunpack.c.0.s8 %v4608
        %v4610 = vperm.slane %v4604, %v4609
        %v4612 = vunpack.c.l.s4 1983009808
        %v4613 = vunpack.c.0.s8 %v4612
        %v4614 = vperm.slane %v4606, %v4613
        %v4615 = vrot.slane %v4586, 4
        %v4616 = vsel %vm302, %v4615, %v4574
        %v4617 = vrot.slane %v4574, 4
        %v4618 = vsel %vm302, %v4586, %v4617
        %v4620 = vunpack.c.l.s4 1934713408
        %v4621 = vunpack.c.0.s8 %v4620
        %v4622 = vperm.slane %v4616, %v4621
        %v4624 = vunpack.c.l.s4 1934713408
        %v4625 = vunpack.c.0.s8 %v4624
        %v4626 = vperm.slane %v4618, %v4625
        %v4627 = vrot.slane %v4590, 4
        %v4628 = vsel %vm302, %v4627, %v4578
        %v4629 = vrot.slane %v4578, 4
        %v4630 = vsel %vm302, %v4590, %v4629
        %v4632 = vunpack.c.l.s4 1934713408
        %v4633 = vunpack.c.0.s8 %v4632
        %v4634 = vperm.slane %v4628, %v4633
        %v4636 = vunpack.c.l.s4 1934713408
        %v4637 = vunpack.c.0.s8 %v4636
        %v4638 = vperm.slane %v4630, %v4637
        %v4639 = vrot.slane %v4610, 4
        %v4640 = vsel %vm302, %v4639, %v4598
        %v4641 = vrot.slane %v4598, 4
        %v4642 = vsel %vm302, %v4610, %v4641
        %v4644 = vunpack.c.l.s4 1934713408
        %v4645 = vunpack.c.0.s8 %v4644
        %v4646 = vperm.slane %v4640, %v4645
        %v4648 = vunpack.c.l.s4 1934713408
        %v4649 = vunpack.c.0.s8 %v4648
        %v4650 = vperm.slane %v4642, %v4649
        %v4651 = vrot.slane %v4614, 4
        %v4652 = vsel %vm302, %v4651, %v4602
        %v4653 = vrot.slane %v4602, 4
        %v4654 = vsel %vm302, %v4614, %v4653
        %v4656 = vunpack.c.l.s4 1934713408
        %v4657 = vunpack.c.0.s8 %v4656
        %v4658 = vperm.slane %v4652, %v4657
        %v4660 = vunpack.c.l.s4 1934713408
        %v4661 = vunpack.c.0.s8 %v4660
        %v4662 = vperm.slane %v4654, %v4661
        %v4663 = vrot.slane %v4646, 4
        %v4664 = vsel %vm302, %v4663, %v4622
        %v4665 = vrot.slane %v4622, 4
        %v4666 = vsel %vm302, %v4646, %v4665
        %v4667 = vrot.slane %v4650, 4
        %v4668 = vsel %vm302, %v4667, %v4626
        %v4669 = vrot.slane %v4626, 4
        %v4670 = vsel %vm302, %v4650, %v4669
        %v4671 = vrot.slane %v4658, 4
        %v4672 = vsel %vm302, %v4671, %v4634
        %v4673 = vrot.slane %v4634, 4
        %v4674 = vsel %vm302, %v4658, %v4673
        %v4675 = vrot.slane %v4662, 4
        %v4676 = vsel %vm302, %v4675, %v4638
        %v4677 = vrot.slane %v4638, 4
        %v4678 = vsel %vm302, %v4662, %v4677
        %4680 = vrot.lane.b32.xlu0 %v4554, 16
        %v4681 = vpop.permute.xlu0 %4680
        %4684 = vrot.lane.b32.xlu0 %v4556, 32
        %v4685 = vpop.permute.xlu0 %4684
        %4688 = vrot.lane.b32.xlu0 %v4558, 48
        %v4689 = vpop.permute.xlu0 %4688
        %4692 = vrot.lane.b32.xlu0 %v4560, 64
        %v4693 = vpop.permute.xlu0 %4692
        %4696 = vrot.lane.b32.xlu0 %v4562, 80
        %v4697 = vpop.permute.xlu0 %4696
        %4700 = vrot.lane.b32.xlu0 %v4564, 96
        %v4701 = vpop.permute.xlu0 %4700
        %4704 = vrot.lane.b32.xlu0 %v4566, 112
        %v4705 = vpop.permute.xlu0 %4704
        %4708 = vrot.lane.b32.xlu0 %v4666, 16
        %v4709 = vpop.permute.xlu0 %4708
        %4712 = vrot.lane.b32.xlu0 %v4668, 32
        %v4713 = vpop.permute.xlu0 %4712
        %4716 = vrot.lane.b32.xlu0 %v4670, 48
        %v4717 = vpop.permute.xlu0 %4716
        %4720 = vrot.lane.b32.xlu0 %v4672, 64
        %v4721 = vpop.permute.xlu0 %4720
        %4724 = vrot.lane.b32.xlu0 %v4674, 80
        %v4725 = vpop.permute.xlu0 %4724
        %4728 = vrot.lane.b32.xlu0 %v4676, 96
        %v4729 = vpop.permute.xlu0 %4728
        %4732 = vrot.lane.b32.xlu0 %v4678, 112
        %v4733 = vpop.permute.xlu0 %4732
        %v4735 = vsel %vm582, %v4552, %v4681
        %v4736 = vsel %vm584, %v4735, %v4685
        %v4737 = vsel %vm586, %v4736, %v4689
        %v4738 = vsel %vm588, %v4737, %v4693
        %v4739 = vsel %vm590, %v4738, %v4697
        %v4740 = vsel %vm592, %v4739, %v4701
        %v4741 = vsel %vm594, %v4740, %v4705
        %v4742 = vsel %vm582, %v4664, %v4709
        %v4743 = vsel %vm584, %v4742, %v4713
        %v4744 = vsel %vm586, %v4743, %v4717
        %v4745 = vsel %vm588, %v4744, %v4721
        %v4746 = vsel %vm590, %v4745, %v4725
        %v4747 = vsel %vm592, %v4746, %v4729
        %v4748 = vsel %vm594, %v4747, %v4733
        %4749 = vrot.lane.b32.xlu0 %v3717, 125
        %v4750 = vpop.permute.xlu0 %4749
        %4751 = vrot.lane.b32.xlu0 %v3719, 125
        %v4752 = vpop.permute.xlu0 %4751
        %4753 = vrot.lane.b32.xlu0 %v3722, 125
        %v4754 = vpop.permute.xlu0 %4753
        %4755 = vrot.lane.b32.xlu0 %v3724, 125
        %v4756 = vpop.permute.xlu0 %4755
        %4757 = vrot.lane.b32.xlu0 %v3727, 125
        %v4758 = vpop.permute.xlu0 %4757
        %4759 = vrot.lane.b32.xlu0 %v3729, 125
        %v4760 = vpop.permute.xlu0 %4759
        %4761 = vrot.lane.b32.xlu0 %v3732, 125
        %v4762 = vpop.permute.xlu0 %4761
        %4763 = vrot.lane.b32.xlu0 %v3734, 125
        %v4764 = vpop.permute.xlu0 %4763
        %4765 = vrot.lane.b32.xlu0 %v3737, 125
        %v4766 = vpop.permute.xlu0 %4765
        %4767 = vrot.lane.b32.xlu0 %v3739, 125
        %v4768 = vpop.permute.xlu0 %4767
        %4769 = vrot.lane.b32.xlu0 %v3742, 125
        %v4770 = vpop.permute.xlu0 %4769
        %4771 = vrot.lane.b32.xlu0 %v3744, 125
        %v4772 = vpop.permute.xlu0 %4771
        %4773 = vrot.lane.b32.xlu0 %v3747, 125
        %v4774 = vpop.permute.xlu0 %4773
        %4775 = vrot.lane.b32.xlu0 %v3749, 125
        %v4776 = vpop.permute.xlu0 %4775
        %4777 = vrot.lane.b32.xlu0 %v3752, 125
        %v4778 = vpop.permute.xlu0 %4777
        %4779 = vrot.lane.b32.xlu0 %v3754, 125
        %v4780 = vpop.permute.xlu0 %4779
        %v4797 = vrot.slane %v4758, 4
        %v4798 = vsel %vm302, %v4797, %v4750
        %v4799 = vrot.slane %v4750, 4
        %v4800 = vsel %vm302, %v4758, %v4799
        %v4802 = vunpack.c.l.s4 1983009808
        %v4803 = vunpack.c.0.s8 %v4802
        %v4804 = vperm.slane %v4798, %v4803
        %v4806 = vunpack.c.l.s4 1983009808
        %v4807 = vunpack.c.0.s8 %v4806
        %v4808 = vperm.slane %v4800, %v4807
        %v4809 = vrot.slane %v4762, 4
        %v4810 = vsel %vm302, %v4809, %v4754
        %v4811 = vrot.slane %v4754, 4
        %v4812 = vsel %vm302, %v4762, %v4811
        %v4814 = vunpack.c.l.s4 1983009808
        %v4815 = vunpack.c.0.s8 %v4814
        %v4816 = vperm.slane %v4810, %v4815
        %v4818 = vunpack.c.l.s4 1983009808
        %v4819 = vunpack.c.0.s8 %v4818
        %v4820 = vperm.slane %v4812, %v4819
        %v4821 = vrot.slane %v4774, 4
        %v4822 = vsel %vm302, %v4821, %v4766
        %v4823 = vrot.slane %v4766, 4
        %v4824 = vsel %vm302, %v4774, %v4823
        %v4826 = vunpack.c.l.s4 1983009808
        %v4827 = vunpack.c.0.s8 %v4826
        %v4828 = vperm.slane %v4822, %v4827
        %v4830 = vunpack.c.l.s4 1983009808
        %v4831 = vunpack.c.0.s8 %v4830
        %v4832 = vperm.slane %v4824, %v4831
        %v4833 = vrot.slane %v4778, 4
        %v4834 = vsel %vm302, %v4833, %v4770
        %v4835 = vrot.slane %v4770, 4
        %v4836 = vsel %vm302, %v4778, %v4835
        %v4838 = vunpack.c.l.s4 1983009808
        %v4839 = vunpack.c.0.s8 %v4838
        %v4840 = vperm.slane %v4834, %v4839
        %v4842 = vunpack.c.l.s4 1983009808
        %v4843 = vunpack.c.0.s8 %v4842
        %v4844 = vperm.slane %v4836, %v4843
        %v4845 = vrot.slane %v4816, 4
        %v4846 = vsel %vm302, %v4845, %v4804
        %v4847 = vrot.slane %v4804, 4
        %v4848 = vsel %vm302, %v4816, %v4847
        %v4850 = vunpack.c.l.s4 1934713408
        %v4851 = vunpack.c.0.s8 %v4850
        %v4852 = vperm.slane %v4846, %v4851
        %v4854 = vunpack.c.l.s4 1934713408
        %v4855 = vunpack.c.0.s8 %v4854
        %v4856 = vperm.slane %v4848, %v4855
        %v4857 = vrot.slane %v4820, 4
        %v4858 = vsel %vm302, %v4857, %v4808
        %v4859 = vrot.slane %v4808, 4
        %v4860 = vsel %vm302, %v4820, %v4859
        %v4862 = vunpack.c.l.s4 1934713408
        %v4863 = vunpack.c.0.s8 %v4862
        %v4864 = vperm.slane %v4858, %v4863
        %v4866 = vunpack.c.l.s4 1934713408
        %v4867 = vunpack.c.0.s8 %v4866
        %v4868 = vperm.slane %v4860, %v4867
        %v4869 = vrot.slane %v4840, 4
        %v4870 = vsel %vm302, %v4869, %v4828
        %v4871 = vrot.slane %v4828, 4
        %v4872 = vsel %vm302, %v4840, %v4871
        %v4874 = vunpack.c.l.s4 1934713408
        %v4875 = vunpack.c.0.s8 %v4874
        %v4876 = vperm.slane %v4870, %v4875
        %v4878 = vunpack.c.l.s4 1934713408
        %v4879 = vunpack.c.0.s8 %v4878
        %v4880 = vperm.slane %v4872, %v4879
        %v4881 = vrot.slane %v4844, 4
        %v4882 = vsel %vm302, %v4881, %v4832
        %v4883 = vrot.slane %v4832, 4
        %v4884 = vsel %vm302, %v4844, %v4883
        %v4886 = vunpack.c.l.s4 1934713408
        %v4887 = vunpack.c.0.s8 %v4886
        %v4888 = vperm.slane %v4882, %v4887
        %v4890 = vunpack.c.l.s4 1934713408
        %v4891 = vunpack.c.0.s8 %v4890
        %v4892 = vperm.slane %v4884, %v4891
        %v4893 = vrot.slane %v4876, 4
        %v4894 = vsel %vm302, %v4893, %v4852
        %v4895 = vrot.slane %v4852, 4
        %v4896 = vsel %vm302, %v4876, %v4895
        %v4897 = vrot.slane %v4880, 4
        %v4898 = vsel %vm302, %v4897, %v4856
        %v4899 = vrot.slane %v4856, 4
        %v4900 = vsel %vm302, %v4880, %v4899
        %v4901 = vrot.slane %v4888, 4
        %v4902 = vsel %vm302, %v4901, %v4864
        %v4903 = vrot.slane %v4864, 4
        %v4904 = vsel %vm302, %v4888, %v4903
        %v4905 = vrot.slane %v4892, 4
        %v4906 = vsel %vm302, %v4905, %v4868
        %v4907 = vrot.slane %v4868, 4
        %v4908 = vsel %vm302, %v4892, %v4907
        %v4909 = vrot.slane %v4760, 4
        %v4910 = vsel %vm302, %v4909, %v4752
        %v4911 = vrot.slane %v4752, 4
        %v4912 = vsel %vm302, %v4760, %v4911
        %v4914 = vunpack.c.l.s4 1983009808
        %v4915 = vunpack.c.0.s8 %v4914
        %v4916 = vperm.slane %v4910, %v4915
        %v4918 = vunpack.c.l.s4 1983009808
        %v4919 = vunpack.c.0.s8 %v4918
        %v4920 = vperm.slane %v4912, %v4919
        %v4921 = vrot.slane %v4764, 4
        %v4922 = vsel %vm302, %v4921, %v4756
        %v4923 = vrot.slane %v4756, 4
        %v4924 = vsel %vm302, %v4764, %v4923
        %v4926 = vunpack.c.l.s4 1983009808
        %v4927 = vunpack.c.0.s8 %v4926
        %v4928 = vperm.slane %v4922, %v4927
        %v4930 = vunpack.c.l.s4 1983009808
        %v4931 = vunpack.c.0.s8 %v4930
        %v4932 = vperm.slane %v4924, %v4931
        %v4933 = vrot.slane %v4776, 4
        %v4934 = vsel %vm302, %v4933, %v4768
        %v4935 = vrot.slane %v4768, 4
        %v4936 = vsel %vm302, %v4776, %v4935
        %v4938 = vunpack.c.l.s4 1983009808
        %v4939 = vunpack.c.0.s8 %v4938
        %v4940 = vperm.slane %v4934, %v4939
        %v4942 = vunpack.c.l.s4 1983009808
        %v4943 = vunpack.c.0.s8 %v4942
        %v4944 = vperm.slane %v4936, %v4943
        %v4945 = vrot.slane %v4780, 4
        %v4946 = vsel %vm302, %v4945, %v4772
        %v4947 = vrot.slane %v4772, 4
        %v4948 = vsel %vm302, %v4780, %v4947
        %v4950 = vunpack.c.l.s4 1983009808
        %v4951 = vunpack.c.0.s8 %v4950
        %v4952 = vperm.slane %v4946, %v4951
        %v4954 = vunpack.c.l.s4 1983009808
        %v4955 = vunpack.c.0.s8 %v4954
        %v4956 = vperm.slane %v4948, %v4955
        %v4957 = vrot.slane %v4928, 4
        %v4958 = vsel %vm302, %v4957, %v4916
        %v4959 = vrot.slane %v4916, 4
        %v4960 = vsel %vm302, %v4928, %v4959
        %v4962 = vunpack.c.l.s4 1934713408
        %v4963 = vunpack.c.0.s8 %v4962
        %v4964 = vperm.slane %v4958, %v4963
        %v4966 = vunpack.c.l.s4 1934713408
        %v4967 = vunpack.c.0.s8 %v4966
        %v4968 = vperm.slane %v4960, %v4967
        %v4969 = vrot.slane %v4932, 4
        %v4970 = vsel %vm302, %v4969, %v4920
        %v4971 = vrot.slane %v4920, 4
        %v4972 = vsel %vm302, %v4932, %v4971
        %v4974 = vunpack.c.l.s4 1934713408
        %v4975 = vunpack.c.0.s8 %v4974
        %v4976 = vperm.slane %v4970, %v4975
        %v4978 = vunpack.c.l.s4 1934713408
        %v4979 = vunpack.c.0.s8 %v4978
        %v4980 = vperm.slane %v4972, %v4979
        %v4981 = vrot.slane %v4952, 4
        %v4982 = vsel %vm302, %v4981, %v4940
        %v4983 = vrot.slane %v4940, 4
        %v4984 = vsel %vm302, %v4952, %v4983
        %v4986 = vunpack.c.l.s4 1934713408
        %v4987 = vunpack.c.0.s8 %v4986
        %v4988 = vperm.slane %v4982, %v4987
        %v4990 = vunpack.c.l.s4 1934713408
        %v4991 = vunpack.c.0.s8 %v4990
        %v4992 = vperm.slane %v4984, %v4991
        %v4993 = vrot.slane %v4956, 4
        %v4994 = vsel %vm302, %v4993, %v4944
        %v4995 = vrot.slane %v4944, 4
        %v4996 = vsel %vm302, %v4956, %v4995
        %v4998 = vunpack.c.l.s4 1934713408
        %v4999 = vunpack.c.0.s8 %v4998
        %v5000 = vperm.slane %v4994, %v4999
        %v5002 = vunpack.c.l.s4 1934713408
        %v5003 = vunpack.c.0.s8 %v5002
        %v5004 = vperm.slane %v4996, %v5003
        %v5005 = vrot.slane %v4988, 4
        %v5006 = vsel %vm302, %v5005, %v4964
        %v5007 = vrot.slane %v4964, 4
        %v5008 = vsel %vm302, %v4988, %v5007
        %v5009 = vrot.slane %v4992, 4
        %v5010 = vsel %vm302, %v5009, %v4968
        %v5011 = vrot.slane %v4968, 4
        %v5012 = vsel %vm302, %v4992, %v5011
        %v5013 = vrot.slane %v5000, 4
        %v5014 = vsel %vm302, %v5013, %v4976
        %v5015 = vrot.slane %v4976, 4
        %v5016 = vsel %vm302, %v5000, %v5015
        %v5017 = vrot.slane %v5004, 4
        %v5018 = vsel %vm302, %v5017, %v4980
        %v5019 = vrot.slane %v4980, 4
        %v5020 = vsel %vm302, %v5004, %v5019
        %5022 = vrot.lane.b32.xlu0 %v4896, 16
        %v5023 = vpop.permute.xlu0 %5022
        %5026 = vrot.lane.b32.xlu0 %v4898, 32
        %v5027 = vpop.permute.xlu0 %5026
        %5030 = vrot.lane.b32.xlu0 %v4900, 48
        %v5031 = vpop.permute.xlu0 %5030
        %5034 = vrot.lane.b32.xlu0 %v4902, 64
        %v5035 = vpop.permute.xlu0 %5034
        %5038 = vrot.lane.b32.xlu0 %v4904, 80
        %v5039 = vpop.permute.xlu0 %5038
        %5042 = vrot.lane.b32.xlu0 %v4906, 96
        %v5043 = vpop.permute.xlu0 %5042
        %5046 = vrot.lane.b32.xlu0 %v4908, 112
        %v5047 = vpop.permute.xlu0 %5046
        %5050 = vrot.lane.b32.xlu0 %v5008, 16
        %v5051 = vpop.permute.xlu0 %5050
        %5054 = vrot.lane.b32.xlu0 %v5010, 32
        %v5055 = vpop.permute.xlu0 %5054
        %5058 = vrot.lane.b32.xlu0 %v5012, 48
        %v5059 = vpop.permute.xlu0 %5058
        %5062 = vrot.lane.b32.xlu0 %v5014, 64
        %v5063 = vpop.permute.xlu0 %5062
        %5066 = vrot.lane.b32.xlu0 %v5016, 80
        %v5067 = vpop.permute.xlu0 %5066
        %5070 = vrot.lane.b32.xlu0 %v5018, 96
        %v5071 = vpop.permute.xlu0 %5070
        %5074 = vrot.lane.b32.xlu0 %v5020, 112
        %v5075 = vpop.permute.xlu0 %5074
        %v5077 = vsel %vm582, %v4894, %v5023
        %v5078 = vsel %vm584, %v5077, %v5027
        %v5079 = vsel %vm586, %v5078, %v5031
        %v5080 = vsel %vm588, %v5079, %v5035
        %v5081 = vsel %vm590, %v5080, %v5039
        %v5082 = vsel %vm592, %v5081, %v5043
        %v5083 = vsel %vm594, %v5082, %v5047
        %v5084 = vsel %vm582, %v5006, %v5051
        %v5085 = vsel %vm584, %v5084, %v5055
        %v5086 = vsel %vm586, %v5085, %v5059
        %v5087 = vsel %vm588, %v5086, %v5063
        %v5088 = vsel %vm590, %v5087, %v5067
        %v5089 = vsel %vm592, %v5088, %v5071
        %v5090 = vsel %vm594, %v5089, %v5075
        %5091 = vrot.lane.b32.xlu0 %v3717, 124
        %v5092 = vpop.permute.xlu0 %5091
        %5093 = vrot.lane.b32.xlu0 %v3719, 124
        %v5094 = vpop.permute.xlu0 %5093
        %5095 = vrot.lane.b32.xlu0 %v3722, 124
        %v5096 = vpop.permute.xlu0 %5095
        %5097 = vrot.lane.b32.xlu0 %v3724, 124
        %v5098 = vpop.permute.xlu0 %5097
        %5099 = vrot.lane.b32.xlu0 %v3727, 124
        %v5100 = vpop.permute.xlu0 %5099
        %5101 = vrot.lane.b32.xlu0 %v3729, 124
        %v5102 = vpop.permute.xlu0 %5101
        %5103 = vrot.lane.b32.xlu0 %v3732, 124
        %v5104 = vpop.permute.xlu0 %5103
        %5105 = vrot.lane.b32.xlu0 %v3734, 124
        %v5106 = vpop.permute.xlu0 %5105
        %5107 = vrot.lane.b32.xlu0 %v3737, 124
        %v5108 = vpop.permute.xlu0 %5107
        %5109 = vrot.lane.b32.xlu0 %v3739, 124
        %v5110 = vpop.permute.xlu0 %5109
        %5111 = vrot.lane.b32.xlu0 %v3742, 124
        %v5112 = vpop.permute.xlu0 %5111
        %5113 = vrot.lane.b32.xlu0 %v3744, 124
        %v5114 = vpop.permute.xlu0 %5113
        %5115 = vrot.lane.b32.xlu0 %v3747, 124
        %v5116 = vpop.permute.xlu0 %5115
        %5117 = vrot.lane.b32.xlu0 %v3749, 124
        %v5118 = vpop.permute.xlu0 %5117
        %5119 = vrot.lane.b32.xlu0 %v3752, 124
        %v5120 = vpop.permute.xlu0 %5119
        %5121 = vrot.lane.b32.xlu0 %v3754, 124
        %v5122 = vpop.permute.xlu0 %5121
        %v5139 = vrot.slane %v5100, 4
        %v5140 = vsel %vm302, %v5139, %v5092
        %v5141 = vrot.slane %v5092, 4
        %v5142 = vsel %vm302, %v5100, %v5141
        %v5144 = vunpack.c.l.s4 1983009808
        %v5145 = vunpack.c.0.s8 %v5144
        %v5146 = vperm.slane %v5140, %v5145
        %v5148 = vunpack.c.l.s4 1983009808
        %v5149 = vunpack.c.0.s8 %v5148
        %v5150 = vperm.slane %v5142, %v5149
        %v5151 = vrot.slane %v5104, 4
        %v5152 = vsel %vm302, %v5151, %v5096
        %v5153 = vrot.slane %v5096, 4
        %v5154 = vsel %vm302, %v5104, %v5153
        %v5156 = vunpack.c.l.s4 1983009808
        %v5157 = vunpack.c.0.s8 %v5156
        %v5158 = vperm.slane %v5152, %v5157
        %v5160 = vunpack.c.l.s4 1983009808
        %v5161 = vunpack.c.0.s8 %v5160
        %v5162 = vperm.slane %v5154, %v5161
        %v5163 = vrot.slane %v5116, 4
        %v5164 = vsel %vm302, %v5163, %v5108
        %v5165 = vrot.slane %v5108, 4
        %v5166 = vsel %vm302, %v5116, %v5165
        %v5168 = vunpack.c.l.s4 1983009808
        %v5169 = vunpack.c.0.s8 %v5168
        %v5170 = vperm.slane %v5164, %v5169
        %v5172 = vunpack.c.l.s4 1983009808
        %v5173 = vunpack.c.0.s8 %v5172
        %v5174 = vperm.slane %v5166, %v5173
        %v5175 = vrot.slane %v5120, 4
        %v5176 = vsel %vm302, %v5175, %v5112
        %v5177 = vrot.slane %v5112, 4
        %v5178 = vsel %vm302, %v5120, %v5177
        %v5180 = vunpack.c.l.s4 1983009808
        %v5181 = vunpack.c.0.s8 %v5180
        %v5182 = vperm.slane %v5176, %v5181
        %v5184 = vunpack.c.l.s4 1983009808
        %v5185 = vunpack.c.0.s8 %v5184
        %v5186 = vperm.slane %v5178, %v5185
        %v5187 = vrot.slane %v5158, 4
        %v5188 = vsel %vm302, %v5187, %v5146
        %v5189 = vrot.slane %v5146, 4
        %v5190 = vsel %vm302, %v5158, %v5189
        %v5192 = vunpack.c.l.s4 1934713408
        %v5193 = vunpack.c.0.s8 %v5192
        %v5194 = vperm.slane %v5188, %v5193
        %v5196 = vunpack.c.l.s4 1934713408
        %v5197 = vunpack.c.0.s8 %v5196
        %v5198 = vperm.slane %v5190, %v5197
        %v5199 = vrot.slane %v5162, 4
        %v5200 = vsel %vm302, %v5199, %v5150
        %v5201 = vrot.slane %v5150, 4
        %v5202 = vsel %vm302, %v5162, %v5201
        %v5204 = vunpack.c.l.s4 1934713408
        %v5205 = vunpack.c.0.s8 %v5204
        %v5206 = vperm.slane %v5200, %v5205
        %v5208 = vunpack.c.l.s4 1934713408
        %v5209 = vunpack.c.0.s8 %v5208
        %v5210 = vperm.slane %v5202, %v5209
        %v5211 = vrot.slane %v5182, 4
        %v5212 = vsel %vm302, %v5211, %v5170
        %v5213 = vrot.slane %v5170, 4
        %v5214 = vsel %vm302, %v5182, %v5213
        %v5216 = vunpack.c.l.s4 1934713408
        %v5217 = vunpack.c.0.s8 %v5216
        %v5218 = vperm.slane %v5212, %v5217
        %v5220 = vunpack.c.l.s4 1934713408
        %v5221 = vunpack.c.0.s8 %v5220
        %v5222 = vperm.slane %v5214, %v5221
        %v5223 = vrot.slane %v5186, 4
        %v5224 = vsel %vm302, %v5223, %v5174
        %v5225 = vrot.slane %v5174, 4
        %v5226 = vsel %vm302, %v5186, %v5225
        %v5228 = vunpack.c.l.s4 1934713408
        %v5229 = vunpack.c.0.s8 %v5228
        %v5230 = vperm.slane %v5224, %v5229
        %v5232 = vunpack.c.l.s4 1934713408
        %v5233 = vunpack.c.0.s8 %v5232
        %v5234 = vperm.slane %v5226, %v5233
        %v5235 = vrot.slane %v5218, 4
        %v5236 = vsel %vm302, %v5235, %v5194
        %v5237 = vrot.slane %v5194, 4
        %v5238 = vsel %vm302, %v5218, %v5237
        %v5239 = vrot.slane %v5222, 4
        %v5240 = vsel %vm302, %v5239, %v5198
        %v5241 = vrot.slane %v5198, 4
        %v5242 = vsel %vm302, %v5222, %v5241
        %v5243 = vrot.slane %v5230, 4
        %v5244 = vsel %vm302, %v5243, %v5206
        %v5245 = vrot.slane %v5206, 4
        %v5246 = vsel %vm302, %v5230, %v5245
        %v5247 = vrot.slane %v5234, 4
        %v5248 = vsel %vm302, %v5247, %v5210
        %v5249 = vrot.slane %v5210, 4
        %v5250 = vsel %vm302, %v5234, %v5249
        %v5251 = vrot.slane %v5102, 4
        %v5252 = vsel %vm302, %v5251, %v5094
        %v5253 = vrot.slane %v5094, 4
        %v5254 = vsel %vm302, %v5102, %v5253
        %v5256 = vunpack.c.l.s4 1983009808
        %v5257 = vunpack.c.0.s8 %v5256
        %v5258 = vperm.slane %v5252, %v5257
        %v5260 = vunpack.c.l.s4 1983009808
        %v5261 = vunpack.c.0.s8 %v5260
        %v5262 = vperm.slane %v5254, %v5261
        %v5263 = vrot.slane %v5106, 4
        %v5264 = vsel %vm302, %v5263, %v5098
        %v5265 = vrot.slane %v5098, 4
        %v5266 = vsel %vm302, %v5106, %v5265
        %v5268 = vunpack.c.l.s4 1983009808
        %v5269 = vunpack.c.0.s8 %v5268
        %v5270 = vperm.slane %v5264, %v5269
        %v5272 = vunpack.c.l.s4 1983009808
        %v5273 = vunpack.c.0.s8 %v5272
        %v5274 = vperm.slane %v5266, %v5273
        %v5275 = vrot.slane %v5118, 4
        %v5276 = vsel %vm302, %v5275, %v5110
        %v5277 = vrot.slane %v5110, 4
        %v5278 = vsel %vm302, %v5118, %v5277
        %v5280 = vunpack.c.l.s4 1983009808
        %v5281 = vunpack.c.0.s8 %v5280
        %v5282 = vperm.slane %v5276, %v5281
        %v5284 = vunpack.c.l.s4 1983009808
        %v5285 = vunpack.c.0.s8 %v5284
        %v5286 = vperm.slane %v5278, %v5285
        %v5287 = vrot.slane %v5122, 4
        %v5288 = vsel %vm302, %v5287, %v5114
        %v5289 = vrot.slane %v5114, 4
        %v5290 = vsel %vm302, %v5122, %v5289
        %v5292 = vunpack.c.l.s4 1983009808
        %v5293 = vunpack.c.0.s8 %v5292
        %v5294 = vperm.slane %v5288, %v5293
        %v5296 = vunpack.c.l.s4 1983009808
        %v5297 = vunpack.c.0.s8 %v5296
        %v5298 = vperm.slane %v5290, %v5297
        %v5299 = vrot.slane %v5270, 4
        %v5300 = vsel %vm302, %v5299, %v5258
        %v5301 = vrot.slane %v5258, 4
        %v5302 = vsel %vm302, %v5270, %v5301
        %v5304 = vunpack.c.l.s4 1934713408
        %v5305 = vunpack.c.0.s8 %v5304
        %v5306 = vperm.slane %v5300, %v5305
        %v5308 = vunpack.c.l.s4 1934713408
        %v5309 = vunpack.c.0.s8 %v5308
        %v5310 = vperm.slane %v5302, %v5309
        %v5311 = vrot.slane %v5274, 4
        %v5312 = vsel %vm302, %v5311, %v5262
        %v5313 = vrot.slane %v5262, 4
        %v5314 = vsel %vm302, %v5274, %v5313
        %v5316 = vunpack.c.l.s4 1934713408
        %v5317 = vunpack.c.0.s8 %v5316
        %v5318 = vperm.slane %v5312, %v5317
        %v5320 = vunpack.c.l.s4 1934713408
        %v5321 = vunpack.c.0.s8 %v5320
        %v5322 = vperm.slane %v5314, %v5321
        %v5323 = vrot.slane %v5294, 4
        %v5324 = vsel %vm302, %v5323, %v5282
        %v5325 = vrot.slane %v5282, 4
        %v5326 = vsel %vm302, %v5294, %v5325
        %v5328 = vunpack.c.l.s4 1934713408
        %v5329 = vunpack.c.0.s8 %v5328
        %v5330 = vperm.slane %v5324, %v5329
        %v5332 = vunpack.c.l.s4 1934713408
        %v5333 = vunpack.c.0.s8 %v5332
        %v5334 = vperm.slane %v5326, %v5333
        %v5335 = vrot.slane %v5298, 4
        %v5336 = vsel %vm302, %v5335, %v5286
        %v5337 = vrot.slane %v5286, 4
        %v5338 = vsel %vm302, %v5298, %v5337
        %v5340 = vunpack.c.l.s4 1934713408
        %v5341 = vunpack.c.0.s8 %v5340
        %v5342 = vperm.slane %v5336, %v5341
        %v5344 = vunpack.c.l.s4 1934713408
        %v5345 = vunpack.c.0.s8 %v5344
        %v5346 = vperm.slane %v5338, %v5345
        %v5347 = vrot.slane %v5330, 4
        %v5348 = vsel %vm302, %v5347, %v5306
        %v5349 = vrot.slane %v5306, 4
        %v5350 = vsel %vm302, %v5330, %v5349
        %v5351 = vrot.slane %v5334, 4
        %v5352 = vsel %vm302, %v5351, %v5310
        %v5353 = vrot.slane %v5310, 4
        %v5354 = vsel %vm302, %v5334, %v5353
        %v5355 = vrot.slane %v5342, 4
        %v5356 = vsel %vm302, %v5355, %v5318
        %v5357 = vrot.slane %v5318, 4
        %v5358 = vsel %vm302, %v5342, %v5357
        %v5359 = vrot.slane %v5346, 4
        %v5360 = vsel %vm302, %v5359, %v5322
        %v5361 = vrot.slane %v5322, 4
        %v5362 = vsel %vm302, %v5346, %v5361
        %5364 = vrot.lane.b32.xlu0 %v5238, 16
        %v5365 = vpop.permute.xlu0 %5364
        %5368 = vrot.lane.b32.xlu0 %v5240, 32
        %v5369 = vpop.permute.xlu0 %5368
        %5372 = vrot.lane.b32.xlu0 %v5242, 48
        %v5373 = vpop.permute.xlu0 %5372
        %5376 = vrot.lane.b32.xlu0 %v5244, 64
        %v5377 = vpop.permute.xlu0 %5376
        %5380 = vrot.lane.b32.xlu0 %v5246, 80
        %v5381 = vpop.permute.xlu0 %5380
        %5384 = vrot.lane.b32.xlu0 %v5248, 96
        %v5385 = vpop.permute.xlu0 %5384
        %5388 = vrot.lane.b32.xlu0 %v5250, 112
        %v5389 = vpop.permute.xlu0 %5388
        %5392 = vrot.lane.b32.xlu0 %v5350, 16
        %v5393 = vpop.permute.xlu0 %5392
        %5396 = vrot.lane.b32.xlu0 %v5352, 32
        %v5397 = vpop.permute.xlu0 %5396
        %5400 = vrot.lane.b32.xlu0 %v5354, 48
        %v5401 = vpop.permute.xlu0 %5400
        %5404 = vrot.lane.b32.xlu0 %v5356, 64
        %v5405 = vpop.permute.xlu0 %5404
        %5408 = vrot.lane.b32.xlu0 %v5358, 80
        %v5409 = vpop.permute.xlu0 %5408
        %5412 = vrot.lane.b32.xlu0 %v5360, 96
        %v5413 = vpop.permute.xlu0 %5412
        %5416 = vrot.lane.b32.xlu0 %v5362, 112
        %v5417 = vpop.permute.xlu0 %5416
        %v5419 = vsel %vm582, %v5236, %v5365
        %v5420 = vsel %vm584, %v5419, %v5369
        %v5421 = vsel %vm586, %v5420, %v5373
        %v5422 = vsel %vm588, %v5421, %v5377
        %v5423 = vsel %vm590, %v5422, %v5381
        %v5424 = vsel %vm592, %v5423, %v5385
        %v5425 = vsel %vm594, %v5424, %v5389
        %v5426 = vsel %vm582, %v5348, %v5393
        %v5427 = vsel %vm584, %v5426, %v5397
        %v5428 = vsel %vm586, %v5427, %v5401
        %v5429 = vsel %vm588, %v5428, %v5405
        %v5430 = vsel %vm590, %v5429, %v5409
        %v5431 = vsel %vm592, %v5430, %v5413
        %v5432 = vsel %vm594, %v5431, %v5417
        %vm5433 = vcmask 1044480
        %v5434 = vrot.slane %v277, 3
        %v5435 = vrot.slane %v278, 3
        %v5436 = vsel %vm5433, %v5434, %v5435
        %v5437 = vrot.slane %v279, 3
        %v5438 = vsel %vm5433, %v5435, %v5437
        %v5439 = vrot.slane %v280, 3
        %v5440 = vrot.slane %v281, 3
        %v5441 = vsel %vm5433, %v5439, %v5440
        %v5442 = vrot.slane %v282, 3
        %v5443 = vsel %vm5433, %v5440, %v5442
        %v5444 = vrot.slane %v283, 3
        %v5445 = vrot.slane %v284, 3
        %v5446 = vsel %vm5433, %v5444, %v5445
        %v5447 = vrot.slane %v285, 3
        %v5448 = vsel %vm5433, %v5445, %v5447
        %v5449 = vrot.slane %v286, 3
        %v5450 = vrot.slane %v287, 3
        %v5451 = vsel %vm5433, %v5449, %v5450
        %v5452 = vrot.slane %v288, 3
        %v5453 = vsel %vm5433, %v5450, %v5452
        %v5454 = vrot.slane %v289, 3
        %v5455 = vrot.slane %v290, 3
        %v5456 = vsel %vm5433, %v5454, %v5455
        %v5457 = vrot.slane %v291, 3
        %v5458 = vsel %vm5433, %v5455, %v5457
        %v5459 = vrot.slane %v292, 3
        %v5460 = vrot.slane %v293, 3
        %v5461 = vsel %vm5433, %v5459, %v5460
        %v5462 = vrot.slane %v294, 3
        %v5463 = vsel %vm5433, %v5460, %v5462
        %v5464 = vrot.slane %v295, 3
        %v5465 = vrot.slane %v296, 3
        %v5466 = vsel %vm5433, %v5464, %v5465
        %v5467 = vrot.slane %v297, 3
        %v5468 = vsel %vm5433, %v5465, %v5467
        %v5469 = vrot.slane %v298, 3
        %v5470 = vrot.slane %v299, 3
        %v5471 = vsel %vm5433, %v5469, %v5470
        %v5472 = vrot.slane %v300, 3
        %v5473 = vsel %vm5433, %v5470, %v5472
        %v5490 = vrot.slane %v5446, 4
        %v5491 = vsel %vm302, %v5490, %v5436
        %v5492 = vrot.slane %v5436, 4
        %v5493 = vsel %vm302, %v5446, %v5492
        %v5495 = vunpack.c.l.s4 1983009808
        %v5496 = vunpack.c.0.s8 %v5495
        %v5497 = vperm.slane %v5491, %v5496
        %v5499 = vunpack.c.l.s4 1983009808
        %v5500 = vunpack.c.0.s8 %v5499
        %v5501 = vperm.slane %v5493, %v5500
        %v5502 = vrot.slane %v5451, 4
        %v5503 = vsel %vm302, %v5502, %v5441
        %v5504 = vrot.slane %v5441, 4
        %v5505 = vsel %vm302, %v5451, %v5504
        %v5507 = vunpack.c.l.s4 1983009808
        %v5508 = vunpack.c.0.s8 %v5507
        %v5509 = vperm.slane %v5503, %v5508
        %v5511 = vunpack.c.l.s4 1983009808
        %v5512 = vunpack.c.0.s8 %v5511
        %v5513 = vperm.slane %v5505, %v5512
        %v5514 = vrot.slane %v5466, 4
        %v5515 = vsel %vm302, %v5514, %v5456
        %v5516 = vrot.slane %v5456, 4
        %v5517 = vsel %vm302, %v5466, %v5516
        %v5519 = vunpack.c.l.s4 1983009808
        %v5520 = vunpack.c.0.s8 %v5519
        %v5521 = vperm.slane %v5515, %v5520
        %v5523 = vunpack.c.l.s4 1983009808
        %v5524 = vunpack.c.0.s8 %v5523
        %v5525 = vperm.slane %v5517, %v5524
        %v5526 = vrot.slane %v5471, 4
        %v5527 = vsel %vm302, %v5526, %v5461
        %v5528 = vrot.slane %v5461, 4
        %v5529 = vsel %vm302, %v5471, %v5528
        %v5531 = vunpack.c.l.s4 1983009808
        %v5532 = vunpack.c.0.s8 %v5531
        %v5533 = vperm.slane %v5527, %v5532
        %v5535 = vunpack.c.l.s4 1983009808
        %v5536 = vunpack.c.0.s8 %v5535
        %v5537 = vperm.slane %v5529, %v5536
        %v5538 = vrot.slane %v5509, 4
        %v5539 = vsel %vm302, %v5538, %v5497
        %v5540 = vrot.slane %v5497, 4
        %v5541 = vsel %vm302, %v5509, %v5540
        %v5543 = vunpack.c.l.s4 1934713408
        %v5544 = vunpack.c.0.s8 %v5543
        %v5545 = vperm.slane %v5539, %v5544
        %v5547 = vunpack.c.l.s4 1934713408
        %v5548 = vunpack.c.0.s8 %v5547
        %v5549 = vperm.slane %v5541, %v5548
        %v5550 = vrot.slane %v5513, 4
        %v5551 = vsel %vm302, %v5550, %v5501
        %v5552 = vrot.slane %v5501, 4
        %v5553 = vsel %vm302, %v5513, %v5552
        %v5555 = vunpack.c.l.s4 1934713408
        %v5556 = vunpack.c.0.s8 %v5555
        %v5557 = vperm.slane %v5551, %v5556
        %v5559 = vunpack.c.l.s4 1934713408
        %v5560 = vunpack.c.0.s8 %v5559
        %v5561 = vperm.slane %v5553, %v5560
        %v5562 = vrot.slane %v5533, 4
        %v5563 = vsel %vm302, %v5562, %v5521
        %v5564 = vrot.slane %v5521, 4
        %v5565 = vsel %vm302, %v5533, %v5564
        %v5567 = vunpack.c.l.s4 1934713408
        %v5568 = vunpack.c.0.s8 %v5567
        %v5569 = vperm.slane %v5563, %v5568
        %v5571 = vunpack.c.l.s4 1934713408
        %v5572 = vunpack.c.0.s8 %v5571
        %v5573 = vperm.slane %v5565, %v5572
        %v5574 = vrot.slane %v5537, 4
        %v5575 = vsel %vm302, %v5574, %v5525
        %v5576 = vrot.slane %v5525, 4
        %v5577 = vsel %vm302, %v5537, %v5576
        %v5579 = vunpack.c.l.s4 1934713408
        %v5580 = vunpack.c.0.s8 %v5579
        %v5581 = vperm.slane %v5575, %v5580
        %v5583 = vunpack.c.l.s4 1934713408
        %v5584 = vunpack.c.0.s8 %v5583
        %v5585 = vperm.slane %v5577, %v5584
        %v5586 = vrot.slane %v5569, 4
        %v5587 = vsel %vm302, %v5586, %v5545
        %v5588 = vrot.slane %v5545, 4
        %v5589 = vsel %vm302, %v5569, %v5588
        %v5590 = vrot.slane %v5573, 4
        %v5591 = vsel %vm302, %v5590, %v5549
        %v5592 = vrot.slane %v5549, 4
        %v5593 = vsel %vm302, %v5573, %v5592
        %v5594 = vrot.slane %v5581, 4
        %v5595 = vsel %vm302, %v5594, %v5557
        %v5596 = vrot.slane %v5557, 4
        %v5597 = vsel %vm302, %v5581, %v5596
        %v5598 = vrot.slane %v5585, 4
        %v5599 = vsel %vm302, %v5598, %v5561
        %v5600 = vrot.slane %v5561, 4
        %v5601 = vsel %vm302, %v5585, %v5600
        %v5602 = vrot.slane %v5448, 4
        %v5603 = vsel %vm302, %v5602, %v5438
        %v5604 = vrot.slane %v5438, 4
        %v5605 = vsel %vm302, %v5448, %v5604
        %v5607 = vunpack.c.l.s4 1983009808
        %v5608 = vunpack.c.0.s8 %v5607
        %v5609 = vperm.slane %v5603, %v5608
        %v5611 = vunpack.c.l.s4 1983009808
        %v5612 = vunpack.c.0.s8 %v5611
        %v5613 = vperm.slane %v5605, %v5612
        %v5614 = vrot.slane %v5453, 4
        %v5615 = vsel %vm302, %v5614, %v5443
        %v5616 = vrot.slane %v5443, 4
        %v5617 = vsel %vm302, %v5453, %v5616
        %v5619 = vunpack.c.l.s4 1983009808
        %v5620 = vunpack.c.0.s8 %v5619
        %v5621 = vperm.slane %v5615, %v5620
        %v5623 = vunpack.c.l.s4 1983009808
        %v5624 = vunpack.c.0.s8 %v5623
        %v5625 = vperm.slane %v5617, %v5624
        %v5626 = vrot.slane %v5468, 4
        %v5627 = vsel %vm302, %v5626, %v5458
        %v5628 = vrot.slane %v5458, 4
        %v5629 = vsel %vm302, %v5468, %v5628
        %v5631 = vunpack.c.l.s4 1983009808
        %v5632 = vunpack.c.0.s8 %v5631
        %v5633 = vperm.slane %v5627, %v5632
        %v5635 = vunpack.c.l.s4 1983009808
        %v5636 = vunpack.c.0.s8 %v5635
        %v5637 = vperm.slane %v5629, %v5636
        %v5638 = vrot.slane %v5473, 4
        %v5639 = vsel %vm302, %v5638, %v5463
        %v5640 = vrot.slane %v5463, 4
        %v5641 = vsel %vm302, %v5473, %v5640
        %v5643 = vunpack.c.l.s4 1983009808
        %v5644 = vunpack.c.0.s8 %v5643
        %v5645 = vperm.slane %v5639, %v5644
        %v5647 = vunpack.c.l.s4 1983009808
        %v5648 = vunpack.c.0.s8 %v5647
        %v5649 = vperm.slane %v5641, %v5648
        %v5650 = vrot.slane %v5621, 4
        %v5651 = vsel %vm302, %v5650, %v5609
        %v5652 = vrot.slane %v5609, 4
        %v5653 = vsel %vm302, %v5621, %v5652
        %v5655 = vunpack.c.l.s4 1934713408
        %v5656 = vunpack.c.0.s8 %v5655
        %v5657 = vperm.slane %v5651, %v5656
        %v5659 = vunpack.c.l.s4 1934713408
        %v5660 = vunpack.c.0.s8 %v5659
        %v5661 = vperm.slane %v5653, %v5660
        %v5662 = vrot.slane %v5625, 4
        %v5663 = vsel %vm302, %v5662, %v5613
        %v5664 = vrot.slane %v5613, 4
        %v5665 = vsel %vm302, %v5625, %v5664
        %v5667 = vunpack.c.l.s4 1934713408
        %v5668 = vunpack.c.0.s8 %v5667
        %v5669 = vperm.slane %v5663, %v5668
        %v5671 = vunpack.c.l.s4 1934713408
        %v5672 = vunpack.c.0.s8 %v5671
        %v5673 = vperm.slane %v5665, %v5672
        %v5674 = vrot.slane %v5645, 4
        %v5675 = vsel %vm302, %v5674, %v5633
        %v5676 = vrot.slane %v5633, 4
        %v5677 = vsel %vm302, %v5645, %v5676
        %v5679 = vunpack.c.l.s4 1934713408
        %v5680 = vunpack.c.0.s8 %v5679
        %v5681 = vperm.slane %v5675, %v5680
        %v5683 = vunpack.c.l.s4 1934713408
        %v5684 = vunpack.c.0.s8 %v5683
        %v5685 = vperm.slane %v5677, %v5684
        %v5686 = vrot.slane %v5649, 4
        %v5687 = vsel %vm302, %v5686, %v5637
        %v5688 = vrot.slane %v5637, 4
        %v5689 = vsel %vm302, %v5649, %v5688
        %v5691 = vunpack.c.l.s4 1934713408
        %v5692 = vunpack.c.0.s8 %v5691
        %v5693 = vperm.slane %v5687, %v5692
        %v5695 = vunpack.c.l.s4 1934713408
        %v5696 = vunpack.c.0.s8 %v5695
        %v5697 = vperm.slane %v5689, %v5696
        %v5698 = vrot.slane %v5681, 4
        %v5699 = vsel %vm302, %v5698, %v5657
        %v5700 = vrot.slane %v5657, 4
        %v5701 = vsel %vm302, %v5681, %v5700
        %v5702 = vrot.slane %v5685, 4
        %v5703 = vsel %vm302, %v5702, %v5661
        %v5704 = vrot.slane %v5661, 4
        %v5705 = vsel %vm302, %v5685, %v5704
        %v5706 = vrot.slane %v5693, 4
        %v5707 = vsel %vm302, %v5706, %v5669
        %v5708 = vrot.slane %v5669, 4
        %v5709 = vsel %vm302, %v5693, %v5708
        %v5710 = vrot.slane %v5697, 4
        %v5711 = vsel %vm302, %v5710, %v5673
        %v5712 = vrot.slane %v5673, 4
        %v5713 = vsel %vm302, %v5697, %v5712
        %5715 = vrot.lane.b32.xlu0 %v5589, 16
        %v5716 = vpop.permute.xlu0 %5715
        %5719 = vrot.lane.b32.xlu0 %v5591, 32
        %v5720 = vpop.permute.xlu0 %5719
        %5723 = vrot.lane.b32.xlu0 %v5593, 48
        %v5724 = vpop.permute.xlu0 %5723
        %5727 = vrot.lane.b32.xlu0 %v5595, 64
        %v5728 = vpop.permute.xlu0 %5727
        %5731 = vrot.lane.b32.xlu0 %v5597, 80
        %v5732 = vpop.permute.xlu0 %5731
        %5735 = vrot.lane.b32.xlu0 %v5599, 96
        %v5736 = vpop.permute.xlu0 %5735
        %5739 = vrot.lane.b32.xlu0 %v5601, 112
        %v5740 = vpop.permute.xlu0 %5739
        %5743 = vrot.lane.b32.xlu0 %v5701, 16
        %v5744 = vpop.permute.xlu0 %5743
        %5747 = vrot.lane.b32.xlu0 %v5703, 32
        %v5748 = vpop.permute.xlu0 %5747
        %5751 = vrot.lane.b32.xlu0 %v5705, 48
        %v5752 = vpop.permute.xlu0 %5751
        %5755 = vrot.lane.b32.xlu0 %v5707, 64
        %v5756 = vpop.permute.xlu0 %5755
        %5759 = vrot.lane.b32.xlu0 %v5709, 80
        %v5760 = vpop.permute.xlu0 %5759
        %5763 = vrot.lane.b32.xlu0 %v5711, 96
        %v5764 = vpop.permute.xlu0 %5763
        %5767 = vrot.lane.b32.xlu0 %v5713, 112
        %v5768 = vpop.permute.xlu0 %5767
        %v5770 = vsel %vm582, %v5587, %v5716
        %v5771 = vsel %vm584, %v5770, %v5720
        %v5772 = vsel %vm586, %v5771, %v5724
        %v5773 = vsel %vm588, %v5772, %v5728
        %v5774 = vsel %vm590, %v5773, %v5732
        %v5775 = vsel %vm592, %v5774, %v5736
        %v5776 = vsel %vm594, %v5775, %v5740
        %v5777 = vsel %vm582, %v5699, %v5744
        %v5778 = vsel %vm584, %v5777, %v5748
        %v5779 = vsel %vm586, %v5778, %v5752
        %v5780 = vsel %vm588, %v5779, %v5756
        %v5781 = vsel %vm590, %v5780, %v5760
        %v5782 = vsel %vm592, %v5781, %v5764
        %v5783 = vsel %vm594, %v5782, %v5768
        %5784 = vrot.lane.b32.xlu0 %v5436, 127
        %v5785 = vpop.permute.xlu0 %5784
        %5786 = vrot.lane.b32.xlu0 %v5438, 127
        %v5787 = vpop.permute.xlu0 %5786
        %5788 = vrot.lane.b32.xlu0 %v5441, 127
        %v5789 = vpop.permute.xlu0 %5788
        %5790 = vrot.lane.b32.xlu0 %v5443, 127
        %v5791 = vpop.permute.xlu0 %5790
        %5792 = vrot.lane.b32.xlu0 %v5446, 127
        %v5793 = vpop.permute.xlu0 %5792
        %5794 = vrot.lane.b32.xlu0 %v5448, 127
        %v5795 = vpop.permute.xlu0 %5794
        %5796 = vrot.lane.b32.xlu0 %v5451, 127
        %v5797 = vpop.permute.xlu0 %5796
        %5798 = vrot.lane.b32.xlu0 %v5453, 127
        %v5799 = vpop.permute.xlu0 %5798
        %5800 = vrot.lane.b32.xlu0 %v5456, 127
        %v5801 = vpop.permute.xlu0 %5800
        %5802 = vrot.lane.b32.xlu0 %v5458, 127
        %v5803 = vpop.permute.xlu0 %5802
        %5804 = vrot.lane.b32.xlu0 %v5461, 127
        %v5805 = vpop.permute.xlu0 %5804
        %5806 = vrot.lane.b32.xlu0 %v5463, 127
        %v5807 = vpop.permute.xlu0 %5806
        %5808 = vrot.lane.b32.xlu0 %v5466, 127
        %v5809 = vpop.permute.xlu0 %5808
        %5810 = vrot.lane.b32.xlu0 %v5468, 127
        %v5811 = vpop.permute.xlu0 %5810
        %5812 = vrot.lane.b32.xlu0 %v5471, 127
        %v5813 = vpop.permute.xlu0 %5812
        %5814 = vrot.lane.b32.xlu0 %v5473, 127
        %v5815 = vpop.permute.xlu0 %5814
        %v5832 = vrot.slane %v5793, 4
        %v5833 = vsel %vm302, %v5832, %v5785
        %v5834 = vrot.slane %v5785, 4
        %v5835 = vsel %vm302, %v5793, %v5834
        %v5837 = vunpack.c.l.s4 1983009808
        %v5838 = vunpack.c.0.s8 %v5837
        %v5839 = vperm.slane %v5833, %v5838
        %v5841 = vunpack.c.l.s4 1983009808
        %v5842 = vunpack.c.0.s8 %v5841
        %v5843 = vperm.slane %v5835, %v5842
        %v5844 = vrot.slane %v5797, 4
        %v5845 = vsel %vm302, %v5844, %v5789
        %v5846 = vrot.slane %v5789, 4
        %v5847 = vsel %vm302, %v5797, %v5846
        %v5849 = vunpack.c.l.s4 1983009808
        %v5850 = vunpack.c.0.s8 %v5849
        %v5851 = vperm.slane %v5845, %v5850
        %v5853 = vunpack.c.l.s4 1983009808
        %v5854 = vunpack.c.0.s8 %v5853
        %v5855 = vperm.slane %v5847, %v5854
        %v5856 = vrot.slane %v5809, 4
        %v5857 = vsel %vm302, %v5856, %v5801
        %v5858 = vrot.slane %v5801, 4
        %v5859 = vsel %vm302, %v5809, %v5858
        %v5861 = vunpack.c.l.s4 1983009808
        %v5862 = vunpack.c.0.s8 %v5861
        %v5863 = vperm.slane %v5857, %v5862
        %v5865 = vunpack.c.l.s4 1983009808
        %v5866 = vunpack.c.0.s8 %v5865
        %v5867 = vperm.slane %v5859, %v5866
        %v5868 = vrot.slane %v5813, 4
        %v5869 = vsel %vm302, %v5868, %v5805
        %v5870 = vrot.slane %v5805, 4
        %v5871 = vsel %vm302, %v5813, %v5870
        %v5873 = vunpack.c.l.s4 1983009808
        %v5874 = vunpack.c.0.s8 %v5873
        %v5875 = vperm.slane %v5869, %v5874
        %v5877 = vunpack.c.l.s4 1983009808
        %v5878 = vunpack.c.0.s8 %v5877
        %v5879 = vperm.slane %v5871, %v5878
        %v5880 = vrot.slane %v5851, 4
        %v5881 = vsel %vm302, %v5880, %v5839
        %v5882 = vrot.slane %v5839, 4
        %v5883 = vsel %vm302, %v5851, %v5882
        %v5885 = vunpack.c.l.s4 1934713408
        %v5886 = vunpack.c.0.s8 %v5885
        %v5887 = vperm.slane %v5881, %v5886
        %v5889 = vunpack.c.l.s4 1934713408
        %v5890 = vunpack.c.0.s8 %v5889
        %v5891 = vperm.slane %v5883, %v5890
        %v5892 = vrot.slane %v5855, 4
        %v5893 = vsel %vm302, %v5892, %v5843
        %v5894 = vrot.slane %v5843, 4
        %v5895 = vsel %vm302, %v5855, %v5894
        %v5897 = vunpack.c.l.s4 1934713408
        %v5898 = vunpack.c.0.s8 %v5897
        %v5899 = vperm.slane %v5893, %v5898
        %v5901 = vunpack.c.l.s4 1934713408
        %v5902 = vunpack.c.0.s8 %v5901
        %v5903 = vperm.slane %v5895, %v5902
        %v5904 = vrot.slane %v5875, 4
        %v5905 = vsel %vm302, %v5904, %v5863
        %v5906 = vrot.slane %v5863, 4
        %v5907 = vsel %vm302, %v5875, %v5906
        %v5909 = vunpack.c.l.s4 1934713408
        %v5910 = vunpack.c.0.s8 %v5909
        %v5911 = vperm.slane %v5905, %v5910
        %v5913 = vunpack.c.l.s4 1934713408
        %v5914 = vunpack.c.0.s8 %v5913
        %v5915 = vperm.slane %v5907, %v5914
        %v5916 = vrot.slane %v5879, 4
        %v5917 = vsel %vm302, %v5916, %v5867
        %v5918 = vrot.slane %v5867, 4
        %v5919 = vsel %vm302, %v5879, %v5918
        %v5921 = vunpack.c.l.s4 1934713408
        %v5922 = vunpack.c.0.s8 %v5921
        %v5923 = vperm.slane %v5917, %v5922
        %v5925 = vunpack.c.l.s4 1934713408
        %v5926 = vunpack.c.0.s8 %v5925
        %v5927 = vperm.slane %v5919, %v5926
        %v5928 = vrot.slane %v5911, 4
        %v5929 = vsel %vm302, %v5928, %v5887
        %v5930 = vrot.slane %v5887, 4
        %v5931 = vsel %vm302, %v5911, %v5930
        %v5932 = vrot.slane %v5915, 4
        %v5933 = vsel %vm302, %v5932, %v5891
        %v5934 = vrot.slane %v5891, 4
        %v5935 = vsel %vm302, %v5915, %v5934
        %v5936 = vrot.slane %v5923, 4
        %v5937 = vsel %vm302, %v5936, %v5899
        %v5938 = vrot.slane %v5899, 4
        %v5939 = vsel %vm302, %v5923, %v5938
        %v5940 = vrot.slane %v5927, 4
        %v5941 = vsel %vm302, %v5940, %v5903
        %v5942 = vrot.slane %v5903, 4
        %v5943 = vsel %vm302, %v5927, %v5942
        %v5944 = vrot.slane %v5795, 4
        %v5945 = vsel %vm302, %v5944, %v5787
        %v5946 = vrot.slane %v5787, 4
        %v5947 = vsel %vm302, %v5795, %v5946
        %v5949 = vunpack.c.l.s4 1983009808
        %v5950 = vunpack.c.0.s8 %v5949
        %v5951 = vperm.slane %v5945, %v5950
        %v5953 = vunpack.c.l.s4 1983009808
        %v5954 = vunpack.c.0.s8 %v5953
        %v5955 = vperm.slane %v5947, %v5954
        %v5956 = vrot.slane %v5799, 4
        %v5957 = vsel %vm302, %v5956, %v5791
        %v5958 = vrot.slane %v5791, 4
        %v5959 = vsel %vm302, %v5799, %v5958
        %v5961 = vunpack.c.l.s4 1983009808
        %v5962 = vunpack.c.0.s8 %v5961
        %v5963 = vperm.slane %v5957, %v5962
        %v5965 = vunpack.c.l.s4 1983009808
        %v5966 = vunpack.c.0.s8 %v5965
        %v5967 = vperm.slane %v5959, %v5966
        %v5968 = vrot.slane %v5811, 4
        %v5969 = vsel %vm302, %v5968, %v5803
        %v5970 = vrot.slane %v5803, 4
        %v5971 = vsel %vm302, %v5811, %v5970
        %v5973 = vunpack.c.l.s4 1983009808
        %v5974 = vunpack.c.0.s8 %v5973
        %v5975 = vperm.slane %v5969, %v5974
        %v5977 = vunpack.c.l.s4 1983009808
        %v5978 = vunpack.c.0.s8 %v5977
        %v5979 = vperm.slane %v5971, %v5978
        %v5980 = vrot.slane %v5815, 4
        %v5981 = vsel %vm302, %v5980, %v5807
        %v5982 = vrot.slane %v5807, 4
        %v5983 = vsel %vm302, %v5815, %v5982
        %v5985 = vunpack.c.l.s4 1983009808
        %v5986 = vunpack.c.0.s8 %v5985
        %v5987 = vperm.slane %v5981, %v5986
        %v5989 = vunpack.c.l.s4 1983009808
        %v5990 = vunpack.c.0.s8 %v5989
        %v5991 = vperm.slane %v5983, %v5990
        %v5992 = vrot.slane %v5963, 4
        %v5993 = vsel %vm302, %v5992, %v5951
        %v5994 = vrot.slane %v5951, 4
        %v5995 = vsel %vm302, %v5963, %v5994
        %v5997 = vunpack.c.l.s4 1934713408
        %v5998 = vunpack.c.0.s8 %v5997
        %v5999 = vperm.slane %v5993, %v5998
        %v6001 = vunpack.c.l.s4 1934713408
        %v6002 = vunpack.c.0.s8 %v6001
        %v6003 = vperm.slane %v5995, %v6002
        %v6004 = vrot.slane %v5967, 4
        %v6005 = vsel %vm302, %v6004, %v5955
        %v6006 = vrot.slane %v5955, 4
        %v6007 = vsel %vm302, %v5967, %v6006
        %v6009 = vunpack.c.l.s4 1934713408
        %v6010 = vunpack.c.0.s8 %v6009
        %v6011 = vperm.slane %v6005, %v6010
        %v6013 = vunpack.c.l.s4 1934713408
        %v6014 = vunpack.c.0.s8 %v6013
        %v6015 = vperm.slane %v6007, %v6014
        %v6016 = vrot.slane %v5987, 4
        %v6017 = vsel %vm302, %v6016, %v5975
        %v6018 = vrot.slane %v5975, 4
        %v6019 = vsel %vm302, %v5987, %v6018
        %v6021 = vunpack.c.l.s4 1934713408
        %v6022 = vunpack.c.0.s8 %v6021
        %v6023 = vperm.slane %v6017, %v6022
        %v6025 = vunpack.c.l.s4 1934713408
        %v6026 = vunpack.c.0.s8 %v6025
        %v6027 = vperm.slane %v6019, %v6026
        %v6028 = vrot.slane %v5991, 4
        %v6029 = vsel %vm302, %v6028, %v5979
        %v6030 = vrot.slane %v5979, 4
        %v6031 = vsel %vm302, %v5991, %v6030
        %v6033 = vunpack.c.l.s4 1934713408
        %v6034 = vunpack.c.0.s8 %v6033
        %v6035 = vperm.slane %v6029, %v6034
        %v6037 = vunpack.c.l.s4 1934713408
        %v6038 = vunpack.c.0.s8 %v6037
        %v6039 = vperm.slane %v6031, %v6038
        %v6040 = vrot.slane %v6023, 4
        %v6041 = vsel %vm302, %v6040, %v5999
        %v6042 = vrot.slane %v5999, 4
        %v6043 = vsel %vm302, %v6023, %v6042
        %v6044 = vrot.slane %v6027, 4
        %v6045 = vsel %vm302, %v6044, %v6003
        %v6046 = vrot.slane %v6003, 4
        %v6047 = vsel %vm302, %v6027, %v6046
        %v6048 = vrot.slane %v6035, 4
        %v6049 = vsel %vm302, %v6048, %v6011
        %v6050 = vrot.slane %v6011, 4
        %v6051 = vsel %vm302, %v6035, %v6050
        %v6052 = vrot.slane %v6039, 4
        %v6053 = vsel %vm302, %v6052, %v6015
        %v6054 = vrot.slane %v6015, 4
        %v6055 = vsel %vm302, %v6039, %v6054
        %6057 = vrot.lane.b32.xlu0 %v5931, 16
        %v6058 = vpop.permute.xlu0 %6057
        %6061 = vrot.lane.b32.xlu0 %v5933, 32
        %v6062 = vpop.permute.xlu0 %6061
        %6065 = vrot.lane.b32.xlu0 %v5935, 48
        %v6066 = vpop.permute.xlu0 %6065
        %6069 = vrot.lane.b32.xlu0 %v5937, 64
        %v6070 = vpop.permute.xlu0 %6069
        %6073 = vrot.lane.b32.xlu0 %v5939, 80
        %v6074 = vpop.permute.xlu0 %6073
        %6077 = vrot.lane.b32.xlu0 %v5941, 96
        %v6078 = vpop.permute.xlu0 %6077
        %6081 = vrot.lane.b32.xlu0 %v5943, 112
        %v6082 = vpop.permute.xlu0 %6081
        %6085 = vrot.lane.b32.xlu0 %v6043, 16
        %v6086 = vpop.permute.xlu0 %6085
        %6089 = vrot.lane.b32.xlu0 %v6045, 32
        %v6090 = vpop.permute.xlu0 %6089
        %6093 = vrot.lane.b32.xlu0 %v6047, 48
        %v6094 = vpop.permute.xlu0 %6093
        %6097 = vrot.lane.b32.xlu0 %v6049, 64
        %v6098 = vpop.permute.xlu0 %6097
        %6101 = vrot.lane.b32.xlu0 %v6051, 80
        %v6102 = vpop.permute.xlu0 %6101
        %6105 = vrot.lane.b32.xlu0 %v6053, 96
        %v6106 = vpop.permute.xlu0 %6105
        %6109 = vrot.lane.b32.xlu0 %v6055, 112
        %v6110 = vpop.permute.xlu0 %6109
        %v6112 = vsel %vm582, %v5929, %v6058
        %v6113 = vsel %vm584, %v6112, %v6062
        %v6114 = vsel %vm586, %v6113, %v6066
        %v6115 = vsel %vm588, %v6114, %v6070
        %v6116 = vsel %vm590, %v6115, %v6074
        %v6117 = vsel %vm592, %v6116, %v6078
        %v6118 = vsel %vm594, %v6117, %v6082
        %v6119 = vsel %vm582, %v6041, %v6086
        %v6120 = vsel %vm584, %v6119, %v6090
        %v6121 = vsel %vm586, %v6120, %v6094
        %v6122 = vsel %vm588, %v6121, %v6098
        %v6123 = vsel %vm590, %v6122, %v6102
        %v6124 = vsel %vm592, %v6123, %v6106
        %v6125 = vsel %vm594, %v6124, %v6110
        %6126 = vrot.lane.b32.xlu0 %v5436, 126
        %v6127 = vpop.permute.xlu0 %6126
        %6128 = vrot.lane.b32.xlu0 %v5438, 126
        %v6129 = vpop.permute.xlu0 %6128
        %6130 = vrot.lane.b32.xlu0 %v5441, 126
        %v6131 = vpop.permute.xlu0 %6130
        %6132 = vrot.lane.b32.xlu0 %v5443, 126
        %v6133 = vpop.permute.xlu0 %6132
        %6134 = vrot.lane.b32.xlu0 %v5446, 126
        %v6135 = vpop.permute.xlu0 %6134
        %6136 = vrot.lane.b32.xlu0 %v5448, 126
        %v6137 = vpop.permute.xlu0 %6136
        %6138 = vrot.lane.b32.xlu0 %v5451, 126
        %v6139 = vpop.permute.xlu0 %6138
        %6140 = vrot.lane.b32.xlu0 %v5453, 126
        %v6141 = vpop.permute.xlu0 %6140
        %6142 = vrot.lane.b32.xlu0 %v5456, 126
        %v6143 = vpop.permute.xlu0 %6142
        %6144 = vrot.lane.b32.xlu0 %v5458, 126
        %v6145 = vpop.permute.xlu0 %6144
        %6146 = vrot.lane.b32.xlu0 %v5461, 126
        %v6147 = vpop.permute.xlu0 %6146
        %6148 = vrot.lane.b32.xlu0 %v5463, 126
        %v6149 = vpop.permute.xlu0 %6148
        %6150 = vrot.lane.b32.xlu0 %v5466, 126
        %v6151 = vpop.permute.xlu0 %6150
        %6152 = vrot.lane.b32.xlu0 %v5468, 126
        %v6153 = vpop.permute.xlu0 %6152
        %6154 = vrot.lane.b32.xlu0 %v5471, 126
        %v6155 = vpop.permute.xlu0 %6154
        %6156 = vrot.lane.b32.xlu0 %v5473, 126
        %v6157 = vpop.permute.xlu0 %6156
        %v6174 = vrot.slane %v6135, 4
        %v6175 = vsel %vm302, %v6174, %v6127
        %v6176 = vrot.slane %v6127, 4
        %v6177 = vsel %vm302, %v6135, %v6176
        %v6179 = vunpack.c.l.s4 1983009808
        %v6180 = vunpack.c.0.s8 %v6179
        %v6181 = vperm.slane %v6175, %v6180
        %v6183 = vunpack.c.l.s4 1983009808
        %v6184 = vunpack.c.0.s8 %v6183
        %v6185 = vperm.slane %v6177, %v6184
        %v6186 = vrot.slane %v6139, 4
        %v6187 = vsel %vm302, %v6186, %v6131
        %v6188 = vrot.slane %v6131, 4
        %v6189 = vsel %vm302, %v6139, %v6188
        %v6191 = vunpack.c.l.s4 1983009808
        %v6192 = vunpack.c.0.s8 %v6191
        %v6193 = vperm.slane %v6187, %v6192
        %v6195 = vunpack.c.l.s4 1983009808
        %v6196 = vunpack.c.0.s8 %v6195
        %v6197 = vperm.slane %v6189, %v6196
        %v6198 = vrot.slane %v6151, 4
        %v6199 = vsel %vm302, %v6198, %v6143
        %v6200 = vrot.slane %v6143, 4
        %v6201 = vsel %vm302, %v6151, %v6200
        %v6203 = vunpack.c.l.s4 1983009808
        %v6204 = vunpack.c.0.s8 %v6203
        %v6205 = vperm.slane %v6199, %v6204
        %v6207 = vunpack.c.l.s4 1983009808
        %v6208 = vunpack.c.0.s8 %v6207
        %v6209 = vperm.slane %v6201, %v6208
        %v6210 = vrot.slane %v6155, 4
        %v6211 = vsel %vm302, %v6210, %v6147
        %v6212 = vrot.slane %v6147, 4
        %v6213 = vsel %vm302, %v6155, %v6212
        %v6215 = vunpack.c.l.s4 1983009808
        %v6216 = vunpack.c.0.s8 %v6215
        %v6217 = vperm.slane %v6211, %v6216
        %v6219 = vunpack.c.l.s4 1983009808
        %v6220 = vunpack.c.0.s8 %v6219
        %v6221 = vperm.slane %v6213, %v6220
        %v6222 = vrot.slane %v6193, 4
        %v6223 = vsel %vm302, %v6222, %v6181
        %v6224 = vrot.slane %v6181, 4
        %v6225 = vsel %vm302, %v6193, %v6224
        %v6227 = vunpack.c.l.s4 1934713408
        %v6228 = vunpack.c.0.s8 %v6227
        %v6229 = vperm.slane %v6223, %v6228
        %v6231 = vunpack.c.l.s4 1934713408
        %v6232 = vunpack.c.0.s8 %v6231
        %v6233 = vperm.slane %v6225, %v6232
        %v6234 = vrot.slane %v6197, 4
        %v6235 = vsel %vm302, %v6234, %v6185
        %v6236 = vrot.slane %v6185, 4
        %v6237 = vsel %vm302, %v6197, %v6236
        %v6239 = vunpack.c.l.s4 1934713408
        %v6240 = vunpack.c.0.s8 %v6239
        %v6241 = vperm.slane %v6235, %v6240
        %v6243 = vunpack.c.l.s4 1934713408
        %v6244 = vunpack.c.0.s8 %v6243
        %v6245 = vperm.slane %v6237, %v6244
        %v6246 = vrot.slane %v6217, 4
        %v6247 = vsel %vm302, %v6246, %v6205
        %v6248 = vrot.slane %v6205, 4
        %v6249 = vsel %vm302, %v6217, %v6248
        %v6251 = vunpack.c.l.s4 1934713408
        %v6252 = vunpack.c.0.s8 %v6251
        %v6253 = vperm.slane %v6247, %v6252
        %v6255 = vunpack.c.l.s4 1934713408
        %v6256 = vunpack.c.0.s8 %v6255
        %v6257 = vperm.slane %v6249, %v6256
        %v6258 = vrot.slane %v6221, 4
        %v6259 = vsel %vm302, %v6258, %v6209
        %v6260 = vrot.slane %v6209, 4
        %v6261 = vsel %vm302, %v6221, %v6260
        %v6263 = vunpack.c.l.s4 1934713408
        %v6264 = vunpack.c.0.s8 %v6263
        %v6265 = vperm.slane %v6259, %v6264
        %v6267 = vunpack.c.l.s4 1934713408
        %v6268 = vunpack.c.0.s8 %v6267
        %v6269 = vperm.slane %v6261, %v6268
        %v6270 = vrot.slane %v6253, 4
        %v6271 = vsel %vm302, %v6270, %v6229
        %v6272 = vrot.slane %v6229, 4
        %v6273 = vsel %vm302, %v6253, %v6272
        %v6274 = vrot.slane %v6257, 4
        %v6275 = vsel %vm302, %v6274, %v6233
        %v6276 = vrot.slane %v6233, 4
        %v6277 = vsel %vm302, %v6257, %v6276
        %v6278 = vrot.slane %v6265, 4
        %v6279 = vsel %vm302, %v6278, %v6241
        %v6280 = vrot.slane %v6241, 4
        %v6281 = vsel %vm302, %v6265, %v6280
        %v6282 = vrot.slane %v6269, 4
        %v6283 = vsel %vm302, %v6282, %v6245
        %v6284 = vrot.slane %v6245, 4
        %v6285 = vsel %vm302, %v6269, %v6284
        %v6286 = vrot.slane %v6137, 4
        %v6287 = vsel %vm302, %v6286, %v6129
        %v6288 = vrot.slane %v6129, 4
        %v6289 = vsel %vm302, %v6137, %v6288
        %v6291 = vunpack.c.l.s4 1983009808
        %v6292 = vunpack.c.0.s8 %v6291
        %v6293 = vperm.slane %v6287, %v6292
        %v6295 = vunpack.c.l.s4 1983009808
        %v6296 = vunpack.c.0.s8 %v6295
        %v6297 = vperm.slane %v6289, %v6296
        %v6298 = vrot.slane %v6141, 4
        %v6299 = vsel %vm302, %v6298, %v6133
        %v6300 = vrot.slane %v6133, 4
        %v6301 = vsel %vm302, %v6141, %v6300
        %v6303 = vunpack.c.l.s4 1983009808
        %v6304 = vunpack.c.0.s8 %v6303
        %v6305 = vperm.slane %v6299, %v6304
        %v6307 = vunpack.c.l.s4 1983009808
        %v6308 = vunpack.c.0.s8 %v6307
        %v6309 = vperm.slane %v6301, %v6308
        %v6310 = vrot.slane %v6153, 4
        %v6311 = vsel %vm302, %v6310, %v6145
        %v6312 = vrot.slane %v6145, 4
        %v6313 = vsel %vm302, %v6153, %v6312
        %v6315 = vunpack.c.l.s4 1983009808
        %v6316 = vunpack.c.0.s8 %v6315
        %v6317 = vperm.slane %v6311, %v6316
        %v6319 = vunpack.c.l.s4 1983009808
        %v6320 = vunpack.c.0.s8 %v6319
        %v6321 = vperm.slane %v6313, %v6320
        %v6322 = vrot.slane %v6157, 4
        %v6323 = vsel %vm302, %v6322, %v6149
        %v6324 = vrot.slane %v6149, 4
        %v6325 = vsel %vm302, %v6157, %v6324
        %v6327 = vunpack.c.l.s4 1983009808
        %v6328 = vunpack.c.0.s8 %v6327
        %v6329 = vperm.slane %v6323, %v6328
        %v6331 = vunpack.c.l.s4 1983009808
        %v6332 = vunpack.c.0.s8 %v6331
        %v6333 = vperm.slane %v6325, %v6332
        %v6334 = vrot.slane %v6305, 4
        %v6335 = vsel %vm302, %v6334, %v6293
        %v6336 = vrot.slane %v6293, 4
        %v6337 = vsel %vm302, %v6305, %v6336
        %v6339 = vunpack.c.l.s4 1934713408
        %v6340 = vunpack.c.0.s8 %v6339
        %v6341 = vperm.slane %v6335, %v6340
        %v6343 = vunpack.c.l.s4 1934713408
        %v6344 = vunpack.c.0.s8 %v6343
        %v6345 = vperm.slane %v6337, %v6344
        %v6346 = vrot.slane %v6309, 4
        %v6347 = vsel %vm302, %v6346, %v6297
        %v6348 = vrot.slane %v6297, 4
        %v6349 = vsel %vm302, %v6309, %v6348
        %v6351 = vunpack.c.l.s4 1934713408
        %v6352 = vunpack.c.0.s8 %v6351
        %v6353 = vperm.slane %v6347, %v6352
        %v6355 = vunpack.c.l.s4 1934713408
        %v6356 = vunpack.c.0.s8 %v6355
        %v6357 = vperm.slane %v6349, %v6356
        %v6358 = vrot.slane %v6329, 4
        %v6359 = vsel %vm302, %v6358, %v6317
        %v6360 = vrot.slane %v6317, 4
        %v6361 = vsel %vm302, %v6329, %v6360
        %v6363 = vunpack.c.l.s4 1934713408
        %v6364 = vunpack.c.0.s8 %v6363
        %v6365 = vperm.slane %v6359, %v6364
        %v6367 = vunpack.c.l.s4 1934713408
        %v6368 = vunpack.c.0.s8 %v6367
        %v6369 = vperm.slane %v6361, %v6368
        %v6370 = vrot.slane %v6333, 4
        %v6371 = vsel %vm302, %v6370, %v6321
        %v6372 = vrot.slane %v6321, 4
        %v6373 = vsel %vm302, %v6333, %v6372
        %v6375 = vunpack.c.l.s4 1934713408
        %v6376 = vunpack.c.0.s8 %v6375
        %v6377 = vperm.slane %v6371, %v6376
        %v6379 = vunpack.c.l.s4 1934713408
        %v6380 = vunpack.c.0.s8 %v6379
        %v6381 = vperm.slane %v6373, %v6380
        %v6382 = vrot.slane %v6365, 4
        %v6383 = vsel %vm302, %v6382, %v6341
        %v6384 = vrot.slane %v6341, 4
        %v6385 = vsel %vm302, %v6365, %v6384
        %v6386 = vrot.slane %v6369, 4
        %v6387 = vsel %vm302, %v6386, %v6345
        %v6388 = vrot.slane %v6345, 4
        %v6389 = vsel %vm302, %v6369, %v6388
        %v6390 = vrot.slane %v6377, 4
        %v6391 = vsel %vm302, %v6390, %v6353
        %v6392 = vrot.slane %v6353, 4
        %v6393 = vsel %vm302, %v6377, %v6392
        %v6394 = vrot.slane %v6381, 4
        %v6395 = vsel %vm302, %v6394, %v6357
        %v6396 = vrot.slane %v6357, 4
        %v6397 = vsel %vm302, %v6381, %v6396
        %6399 = vrot.lane.b32.xlu0 %v6273, 16
        %v6400 = vpop.permute.xlu0 %6399
        %6403 = vrot.lane.b32.xlu0 %v6275, 32
        %v6404 = vpop.permute.xlu0 %6403
        %6407 = vrot.lane.b32.xlu0 %v6277, 48
        %v6408 = vpop.permute.xlu0 %6407
        %6411 = vrot.lane.b32.xlu0 %v6279, 64
        %v6412 = vpop.permute.xlu0 %6411
        %6415 = vrot.lane.b32.xlu0 %v6281, 80
        %v6416 = vpop.permute.xlu0 %6415
        %6419 = vrot.lane.b32.xlu0 %v6283, 96
        %v6420 = vpop.permute.xlu0 %6419
        %6423 = vrot.lane.b32.xlu0 %v6285, 112
        %v6424 = vpop.permute.xlu0 %6423
        %6427 = vrot.lane.b32.xlu0 %v6385, 16
        %v6428 = vpop.permute.xlu0 %6427
        %6431 = vrot.lane.b32.xlu0 %v6387, 32
        %v6432 = vpop.permute.xlu0 %6431
        %6435 = vrot.lane.b32.xlu0 %v6389, 48
        %v6436 = vpop.permute.xlu0 %6435
        %6439 = vrot.lane.b32.xlu0 %v6391, 64
        %v6440 = vpop.permute.xlu0 %6439
        %6443 = vrot.lane.b32.xlu0 %v6393, 80
        %v6444 = vpop.permute.xlu0 %6443
        %6447 = vrot.lane.b32.xlu0 %v6395, 96
        %v6448 = vpop.permute.xlu0 %6447
        %6451 = vrot.lane.b32.xlu0 %v6397, 112
        %v6452 = vpop.permute.xlu0 %6451
        %v6454 = vsel %vm582, %v6271, %v6400
        %v6455 = vsel %vm584, %v6454, %v6404
        %v6456 = vsel %vm586, %v6455, %v6408
        %v6457 = vsel %vm588, %v6456, %v6412
        %v6458 = vsel %vm590, %v6457, %v6416
        %v6459 = vsel %vm592, %v6458, %v6420
        %v6460 = vsel %vm594, %v6459, %v6424
        %v6461 = vsel %vm582, %v6383, %v6428
        %v6462 = vsel %vm584, %v6461, %v6432
        %v6463 = vsel %vm586, %v6462, %v6436
        %v6464 = vsel %vm588, %v6463, %v6440
        %v6465 = vsel %vm590, %v6464, %v6444
        %v6466 = vsel %vm592, %v6465, %v6448
        %v6467 = vsel %vm594, %v6466, %v6452
        %6468 = vrot.lane.b32.xlu0 %v5436, 125
        %v6469 = vpop.permute.xlu0 %6468
        %6470 = vrot.lane.b32.xlu0 %v5438, 125
        %v6471 = vpop.permute.xlu0 %6470
        %6472 = vrot.lane.b32.xlu0 %v5441, 125
        %v6473 = vpop.permute.xlu0 %6472
        %6474 = vrot.lane.b32.xlu0 %v5443, 125
        %v6475 = vpop.permute.xlu0 %6474
        %6476 = vrot.lane.b32.xlu0 %v5446, 125
        %v6477 = vpop.permute.xlu0 %6476
        %6478 = vrot.lane.b32.xlu0 %v5448, 125
        %v6479 = vpop.permute.xlu0 %6478
        %6480 = vrot.lane.b32.xlu0 %v5451, 125
        %v6481 = vpop.permute.xlu0 %6480
        %6482 = vrot.lane.b32.xlu0 %v5453, 125
        %v6483 = vpop.permute.xlu0 %6482
        %6484 = vrot.lane.b32.xlu0 %v5456, 125
        %v6485 = vpop.permute.xlu0 %6484
        %6486 = vrot.lane.b32.xlu0 %v5458, 125
        %v6487 = vpop.permute.xlu0 %6486
        %6488 = vrot.lane.b32.xlu0 %v5461, 125
        %v6489 = vpop.permute.xlu0 %6488
        %6490 = vrot.lane.b32.xlu0 %v5463, 125
        %v6491 = vpop.permute.xlu0 %6490
        %6492 = vrot.lane.b32.xlu0 %v5466, 125
        %v6493 = vpop.permute.xlu0 %6492
        %6494 = vrot.lane.b32.xlu0 %v5468, 125
        %v6495 = vpop.permute.xlu0 %6494
        %6496 = vrot.lane.b32.xlu0 %v5471, 125
        %v6497 = vpop.permute.xlu0 %6496
        %6498 = vrot.lane.b32.xlu0 %v5473, 125
        %v6499 = vpop.permute.xlu0 %6498
        %v6516 = vrot.slane %v6477, 4
        %v6517 = vsel %vm302, %v6516, %v6469
        %v6518 = vrot.slane %v6469, 4
        %v6519 = vsel %vm302, %v6477, %v6518
        %v6521 = vunpack.c.l.s4 1983009808
        %v6522 = vunpack.c.0.s8 %v6521
        %v6523 = vperm.slane %v6517, %v6522
        %v6525 = vunpack.c.l.s4 1983009808
        %v6526 = vunpack.c.0.s8 %v6525
        %v6527 = vperm.slane %v6519, %v6526
        %v6528 = vrot.slane %v6481, 4
        %v6529 = vsel %vm302, %v6528, %v6473
        %v6530 = vrot.slane %v6473, 4
        %v6531 = vsel %vm302, %v6481, %v6530
        %v6533 = vunpack.c.l.s4 1983009808
        %v6534 = vunpack.c.0.s8 %v6533
        %v6535 = vperm.slane %v6529, %v6534
        %v6537 = vunpack.c.l.s4 1983009808
        %v6538 = vunpack.c.0.s8 %v6537
        %v6539 = vperm.slane %v6531, %v6538
        %v6540 = vrot.slane %v6493, 4
        %v6541 = vsel %vm302, %v6540, %v6485
        %v6542 = vrot.slane %v6485, 4
        %v6543 = vsel %vm302, %v6493, %v6542
        %v6545 = vunpack.c.l.s4 1983009808
        %v6546 = vunpack.c.0.s8 %v6545
        %v6547 = vperm.slane %v6541, %v6546
        %v6549 = vunpack.c.l.s4 1983009808
        %v6550 = vunpack.c.0.s8 %v6549
        %v6551 = vperm.slane %v6543, %v6550
        %v6552 = vrot.slane %v6497, 4
        %v6553 = vsel %vm302, %v6552, %v6489
        %v6554 = vrot.slane %v6489, 4
        %v6555 = vsel %vm302, %v6497, %v6554
        %v6557 = vunpack.c.l.s4 1983009808
        %v6558 = vunpack.c.0.s8 %v6557
        %v6559 = vperm.slane %v6553, %v6558
        %v6561 = vunpack.c.l.s4 1983009808
        %v6562 = vunpack.c.0.s8 %v6561
        %v6563 = vperm.slane %v6555, %v6562
        %v6564 = vrot.slane %v6535, 4
        %v6565 = vsel %vm302, %v6564, %v6523
        %v6566 = vrot.slane %v6523, 4
        %v6567 = vsel %vm302, %v6535, %v6566
        %v6569 = vunpack.c.l.s4 1934713408
        %v6570 = vunpack.c.0.s8 %v6569
        %v6571 = vperm.slane %v6565, %v6570
        %v6573 = vunpack.c.l.s4 1934713408
        %v6574 = vunpack.c.0.s8 %v6573
        %v6575 = vperm.slane %v6567, %v6574
        %v6576 = vrot.slane %v6539, 4
        %v6577 = vsel %vm302, %v6576, %v6527
        %v6578 = vrot.slane %v6527, 4
        %v6579 = vsel %vm302, %v6539, %v6578
        %v6581 = vunpack.c.l.s4 1934713408
        %v6582 = vunpack.c.0.s8 %v6581
        %v6583 = vperm.slane %v6577, %v6582
        %v6585 = vunpack.c.l.s4 1934713408
        %v6586 = vunpack.c.0.s8 %v6585
        %v6587 = vperm.slane %v6579, %v6586
        %v6588 = vrot.slane %v6559, 4
        %v6589 = vsel %vm302, %v6588, %v6547
        %v6590 = vrot.slane %v6547, 4
        %v6591 = vsel %vm302, %v6559, %v6590
        %v6593 = vunpack.c.l.s4 1934713408
        %v6594 = vunpack.c.0.s8 %v6593
        %v6595 = vperm.slane %v6589, %v6594
        %v6597 = vunpack.c.l.s4 1934713408
        %v6598 = vunpack.c.0.s8 %v6597
        %v6599 = vperm.slane %v6591, %v6598
        %v6600 = vrot.slane %v6563, 4
        %v6601 = vsel %vm302, %v6600, %v6551
        %v6602 = vrot.slane %v6551, 4
        %v6603 = vsel %vm302, %v6563, %v6602
        %v6605 = vunpack.c.l.s4 1934713408
        %v6606 = vunpack.c.0.s8 %v6605
        %v6607 = vperm.slane %v6601, %v6606
        %v6609 = vunpack.c.l.s4 1934713408
        %v6610 = vunpack.c.0.s8 %v6609
        %v6611 = vperm.slane %v6603, %v6610
        %v6612 = vrot.slane %v6595, 4
        %v6613 = vsel %vm302, %v6612, %v6571
        %v6614 = vrot.slane %v6571, 4
        %v6615 = vsel %vm302, %v6595, %v6614
        %v6616 = vrot.slane %v6599, 4
        %v6617 = vsel %vm302, %v6616, %v6575
        %v6618 = vrot.slane %v6575, 4
        %v6619 = vsel %vm302, %v6599, %v6618
        %v6620 = vrot.slane %v6607, 4
        %v6621 = vsel %vm302, %v6620, %v6583
        %v6622 = vrot.slane %v6583, 4
        %v6623 = vsel %vm302, %v6607, %v6622
        %v6624 = vrot.slane %v6611, 4
        %v6625 = vsel %vm302, %v6624, %v6587
        %v6626 = vrot.slane %v6587, 4
        %v6627 = vsel %vm302, %v6611, %v6626
        %v6628 = vrot.slane %v6479, 4
        %v6629 = vsel %vm302, %v6628, %v6471
        %v6630 = vrot.slane %v6471, 4
        %v6631 = vsel %vm302, %v6479, %v6630
        %v6633 = vunpack.c.l.s4 1983009808
        %v6634 = vunpack.c.0.s8 %v6633
        %v6635 = vperm.slane %v6629, %v6634
        %v6637 = vunpack.c.l.s4 1983009808
        %v6638 = vunpack.c.0.s8 %v6637
        %v6639 = vperm.slane %v6631, %v6638
        %v6640 = vrot.slane %v6483, 4
        %v6641 = vsel %vm302, %v6640, %v6475
        %v6642 = vrot.slane %v6475, 4
        %v6643 = vsel %vm302, %v6483, %v6642
        %v6645 = vunpack.c.l.s4 1983009808
        %v6646 = vunpack.c.0.s8 %v6645
        %v6647 = vperm.slane %v6641, %v6646
        %v6649 = vunpack.c.l.s4 1983009808
        %v6650 = vunpack.c.0.s8 %v6649
        %v6651 = vperm.slane %v6643, %v6650
        %v6652 = vrot.slane %v6495, 4
        %v6653 = vsel %vm302, %v6652, %v6487
        %v6654 = vrot.slane %v6487, 4
        %v6655 = vsel %vm302, %v6495, %v6654
        %v6657 = vunpack.c.l.s4 1983009808
        %v6658 = vunpack.c.0.s8 %v6657
        %v6659 = vperm.slane %v6653, %v6658
        %v6661 = vunpack.c.l.s4 1983009808
        %v6662 = vunpack.c.0.s8 %v6661
        %v6663 = vperm.slane %v6655, %v6662
        %v6664 = vrot.slane %v6499, 4
        %v6665 = vsel %vm302, %v6664, %v6491
        %v6666 = vrot.slane %v6491, 4
        %v6667 = vsel %vm302, %v6499, %v6666
        %v6669 = vunpack.c.l.s4 1983009808
        %v6670 = vunpack.c.0.s8 %v6669
        %v6671 = vperm.slane %v6665, %v6670
        %v6673 = vunpack.c.l.s4 1983009808
        %v6674 = vunpack.c.0.s8 %v6673
        %v6675 = vperm.slane %v6667, %v6674
        %v6676 = vrot.slane %v6647, 4
        %v6677 = vsel %vm302, %v6676, %v6635
        %v6678 = vrot.slane %v6635, 4
        %v6679 = vsel %vm302, %v6647, %v6678
        %v6681 = vunpack.c.l.s4 1934713408
        %v6682 = vunpack.c.0.s8 %v6681
        %v6683 = vperm.slane %v6677, %v6682
        %v6685 = vunpack.c.l.s4 1934713408
        %v6686 = vunpack.c.0.s8 %v6685
        %v6687 = vperm.slane %v6679, %v6686
        %v6688 = vrot.slane %v6651, 4
        %v6689 = vsel %vm302, %v6688, %v6639
        %v6690 = vrot.slane %v6639, 4
        %v6691 = vsel %vm302, %v6651, %v6690
        %v6693 = vunpack.c.l.s4 1934713408
        %v6694 = vunpack.c.0.s8 %v6693
        %v6695 = vperm.slane %v6689, %v6694
        %v6697 = vunpack.c.l.s4 1934713408
        %v6698 = vunpack.c.0.s8 %v6697
        %v6699 = vperm.slane %v6691, %v6698
        %v6700 = vrot.slane %v6671, 4
        %v6701 = vsel %vm302, %v6700, %v6659
        %v6702 = vrot.slane %v6659, 4
        %v6703 = vsel %vm302, %v6671, %v6702
        %v6705 = vunpack.c.l.s4 1934713408
        %v6706 = vunpack.c.0.s8 %v6705
        %v6707 = vperm.slane %v6701, %v6706
        %v6709 = vunpack.c.l.s4 1934713408
        %v6710 = vunpack.c.0.s8 %v6709
        %v6711 = vperm.slane %v6703, %v6710
        %v6712 = vrot.slane %v6675, 4
        %v6713 = vsel %vm302, %v6712, %v6663
        %v6714 = vrot.slane %v6663, 4
        %v6715 = vsel %vm302, %v6675, %v6714
        %v6717 = vunpack.c.l.s4 1934713408
        %v6718 = vunpack.c.0.s8 %v6717
        %v6719 = vperm.slane %v6713, %v6718
        %v6721 = vunpack.c.l.s4 1934713408
        %v6722 = vunpack.c.0.s8 %v6721
        %v6723 = vperm.slane %v6715, %v6722
        %v6724 = vrot.slane %v6707, 4
        %v6725 = vsel %vm302, %v6724, %v6683
        %v6726 = vrot.slane %v6683, 4
        %v6727 = vsel %vm302, %v6707, %v6726
        %v6728 = vrot.slane %v6711, 4
        %v6729 = vsel %vm302, %v6728, %v6687
        %v6730 = vrot.slane %v6687, 4
        %v6731 = vsel %vm302, %v6711, %v6730
        %v6732 = vrot.slane %v6719, 4
        %v6733 = vsel %vm302, %v6732, %v6695
        %v6734 = vrot.slane %v6695, 4
        %v6735 = vsel %vm302, %v6719, %v6734
        %v6736 = vrot.slane %v6723, 4
        %v6737 = vsel %vm302, %v6736, %v6699
        %v6738 = vrot.slane %v6699, 4
        %v6739 = vsel %vm302, %v6723, %v6738
        %6741 = vrot.lane.b32.xlu0 %v6615, 16
        %v6742 = vpop.permute.xlu0 %6741
        %6745 = vrot.lane.b32.xlu0 %v6617, 32
        %v6746 = vpop.permute.xlu0 %6745
        %6749 = vrot.lane.b32.xlu0 %v6619, 48
        %v6750 = vpop.permute.xlu0 %6749
        %6753 = vrot.lane.b32.xlu0 %v6621, 64
        %v6754 = vpop.permute.xlu0 %6753
        %6757 = vrot.lane.b32.xlu0 %v6623, 80
        %v6758 = vpop.permute.xlu0 %6757
        %6761 = vrot.lane.b32.xlu0 %v6625, 96
        %v6762 = vpop.permute.xlu0 %6761
        %6765 = vrot.lane.b32.xlu0 %v6627, 112
        %v6766 = vpop.permute.xlu0 %6765
        %6769 = vrot.lane.b32.xlu0 %v6727, 16
        %v6770 = vpop.permute.xlu0 %6769
        %6773 = vrot.lane.b32.xlu0 %v6729, 32
        %v6774 = vpop.permute.xlu0 %6773
        %6777 = vrot.lane.b32.xlu0 %v6731, 48
        %v6778 = vpop.permute.xlu0 %6777
        %6781 = vrot.lane.b32.xlu0 %v6733, 64
        %v6782 = vpop.permute.xlu0 %6781
        %6785 = vrot.lane.b32.xlu0 %v6735, 80
        %v6786 = vpop.permute.xlu0 %6785
        %6789 = vrot.lane.b32.xlu0 %v6737, 96
        %v6790 = vpop.permute.xlu0 %6789
        %6793 = vrot.lane.b32.xlu0 %v6739, 112
        %v6794 = vpop.permute.xlu0 %6793
        %v6796 = vsel %vm582, %v6613, %v6742
        %v6797 = vsel %vm584, %v6796, %v6746
        %v6798 = vsel %vm586, %v6797, %v6750
        %v6799 = vsel %vm588, %v6798, %v6754
        %v6800 = vsel %vm590, %v6799, %v6758
        %v6801 = vsel %vm592, %v6800, %v6762
        %v6802 = vsel %vm594, %v6801, %v6766
        %v6803 = vsel %vm582, %v6725, %v6770
        %v6804 = vsel %vm584, %v6803, %v6774
        %v6805 = vsel %vm586, %v6804, %v6778
        %v6806 = vsel %vm588, %v6805, %v6782
        %v6807 = vsel %vm590, %v6806, %v6786
        %v6808 = vsel %vm592, %v6807, %v6790
        %v6809 = vsel %vm594, %v6808, %v6794
        %6810 = vrot.lane.b32.xlu0 %v5436, 124
        %v6811 = vpop.permute.xlu0 %6810
        %6812 = vrot.lane.b32.xlu0 %v5438, 124
        %v6813 = vpop.permute.xlu0 %6812
        %6814 = vrot.lane.b32.xlu0 %v5441, 124
        %v6815 = vpop.permute.xlu0 %6814
        %6816 = vrot.lane.b32.xlu0 %v5443, 124
        %v6817 = vpop.permute.xlu0 %6816
        %6818 = vrot.lane.b32.xlu0 %v5446, 124
        %v6819 = vpop.permute.xlu0 %6818
        %6820 = vrot.lane.b32.xlu0 %v5448, 124
        %v6821 = vpop.permute.xlu0 %6820
        %6822 = vrot.lane.b32.xlu0 %v5451, 124
        %v6823 = vpop.permute.xlu0 %6822
        %6824 = vrot.lane.b32.xlu0 %v5453, 124
        %v6825 = vpop.permute.xlu0 %6824
        %6826 = vrot.lane.b32.xlu0 %v5456, 124
        %v6827 = vpop.permute.xlu0 %6826
        %6828 = vrot.lane.b32.xlu0 %v5458, 124
        %v6829 = vpop.permute.xlu0 %6828
        %6830 = vrot.lane.b32.xlu0 %v5461, 124
        %v6831 = vpop.permute.xlu0 %6830
        %6832 = vrot.lane.b32.xlu0 %v5463, 124
        %v6833 = vpop.permute.xlu0 %6832
        %6834 = vrot.lane.b32.xlu0 %v5466, 124
        %v6835 = vpop.permute.xlu0 %6834
        %6836 = vrot.lane.b32.xlu0 %v5468, 124
        %v6837 = vpop.permute.xlu0 %6836
        %6838 = vrot.lane.b32.xlu0 %v5471, 124
        %v6839 = vpop.permute.xlu0 %6838
        %6840 = vrot.lane.b32.xlu0 %v5473, 124
        %v6841 = vpop.permute.xlu0 %6840
        %v6858 = vrot.slane %v6819, 4
        %v6859 = vsel %vm302, %v6858, %v6811
        %v6860 = vrot.slane %v6811, 4
        %v6861 = vsel %vm302, %v6819, %v6860
        %v6863 = vunpack.c.l.s4 1983009808
        %v6864 = vunpack.c.0.s8 %v6863
        %v6865 = vperm.slane %v6859, %v6864
        %v6867 = vunpack.c.l.s4 1983009808
        %v6868 = vunpack.c.0.s8 %v6867
        %v6869 = vperm.slane %v6861, %v6868
        %v6870 = vrot.slane %v6823, 4
        %v6871 = vsel %vm302, %v6870, %v6815
        %v6872 = vrot.slane %v6815, 4
        %v6873 = vsel %vm302, %v6823, %v6872
        %v6875 = vunpack.c.l.s4 1983009808
        %v6876 = vunpack.c.0.s8 %v6875
        %v6877 = vperm.slane %v6871, %v6876
        %v6879 = vunpack.c.l.s4 1983009808
        %v6880 = vunpack.c.0.s8 %v6879
        %v6881 = vperm.slane %v6873, %v6880
        %v6882 = vrot.slane %v6835, 4
        %v6883 = vsel %vm302, %v6882, %v6827
        %v6884 = vrot.slane %v6827, 4
        %v6885 = vsel %vm302, %v6835, %v6884
        %v6887 = vunpack.c.l.s4 1983009808
        %v6888 = vunpack.c.0.s8 %v6887
        %v6889 = vperm.slane %v6883, %v6888
        %v6891 = vunpack.c.l.s4 1983009808
        %v6892 = vunpack.c.0.s8 %v6891
        %v6893 = vperm.slane %v6885, %v6892
        %v6894 = vrot.slane %v6839, 4
        %v6895 = vsel %vm302, %v6894, %v6831
        %v6896 = vrot.slane %v6831, 4
        %v6897 = vsel %vm302, %v6839, %v6896
        %v6899 = vunpack.c.l.s4 1983009808
        %v6900 = vunpack.c.0.s8 %v6899
        %v6901 = vperm.slane %v6895, %v6900
        %v6903 = vunpack.c.l.s4 1983009808
        %v6904 = vunpack.c.0.s8 %v6903
        %v6905 = vperm.slane %v6897, %v6904
        %v6906 = vrot.slane %v6877, 4
        %v6907 = vsel %vm302, %v6906, %v6865
        %v6908 = vrot.slane %v6865, 4
        %v6909 = vsel %vm302, %v6877, %v6908
        %v6911 = vunpack.c.l.s4 1934713408
        %v6912 = vunpack.c.0.s8 %v6911
        %v6913 = vperm.slane %v6907, %v6912
        %v6915 = vunpack.c.l.s4 1934713408
        %v6916 = vunpack.c.0.s8 %v6915
        %v6917 = vperm.slane %v6909, %v6916
        %v6918 = vrot.slane %v6881, 4
        %v6919 = vsel %vm302, %v6918, %v6869
        %v6920 = vrot.slane %v6869, 4
        %v6921 = vsel %vm302, %v6881, %v6920
        %v6923 = vunpack.c.l.s4 1934713408
        %v6924 = vunpack.c.0.s8 %v6923
        %v6925 = vperm.slane %v6919, %v6924
        %v6927 = vunpack.c.l.s4 1934713408
        %v6928 = vunpack.c.0.s8 %v6927
        %v6929 = vperm.slane %v6921, %v6928
        %v6930 = vrot.slane %v6901, 4
        %v6931 = vsel %vm302, %v6930, %v6889
        %v6932 = vrot.slane %v6889, 4
        %v6933 = vsel %vm302, %v6901, %v6932
        %v6935 = vunpack.c.l.s4 1934713408
        %v6936 = vunpack.c.0.s8 %v6935
        %v6937 = vperm.slane %v6931, %v6936
        %v6939 = vunpack.c.l.s4 1934713408
        %v6940 = vunpack.c.0.s8 %v6939
        %v6941 = vperm.slane %v6933, %v6940
        %v6942 = vrot.slane %v6905, 4
        %v6943 = vsel %vm302, %v6942, %v6893
        %v6944 = vrot.slane %v6893, 4
        %v6945 = vsel %vm302, %v6905, %v6944
        %v6947 = vunpack.c.l.s4 1934713408
        %v6948 = vunpack.c.0.s8 %v6947
        %v6949 = vperm.slane %v6943, %v6948
        %v6951 = vunpack.c.l.s4 1934713408
        %v6952 = vunpack.c.0.s8 %v6951
        %v6953 = vperm.slane %v6945, %v6952
        %v6954 = vrot.slane %v6937, 4
        %v6955 = vsel %vm302, %v6954, %v6913
        %v6956 = vrot.slane %v6913, 4
        %v6957 = vsel %vm302, %v6937, %v6956
        %v6958 = vrot.slane %v6941, 4
        %v6959 = vsel %vm302, %v6958, %v6917
        %v6960 = vrot.slane %v6917, 4
        %v6961 = vsel %vm302, %v6941, %v6960
        %v6962 = vrot.slane %v6949, 4
        %v6963 = vsel %vm302, %v6962, %v6925
        %v6964 = vrot.slane %v6925, 4
        %v6965 = vsel %vm302, %v6949, %v6964
        %v6966 = vrot.slane %v6953, 4
        %v6967 = vsel %vm302, %v6966, %v6929
        %v6968 = vrot.slane %v6929, 4
        %v6969 = vsel %vm302, %v6953, %v6968
        %v6970 = vrot.slane %v6821, 4
        %v6971 = vsel %vm302, %v6970, %v6813
        %v6972 = vrot.slane %v6813, 4
        %v6973 = vsel %vm302, %v6821, %v6972
        %v6975 = vunpack.c.l.s4 1983009808
        %v6976 = vunpack.c.0.s8 %v6975
        %v6977 = vperm.slane %v6971, %v6976
        %v6979 = vunpack.c.l.s4 1983009808
        %v6980 = vunpack.c.0.s8 %v6979
        %v6981 = vperm.slane %v6973, %v6980
        %v6982 = vrot.slane %v6825, 4
        %v6983 = vsel %vm302, %v6982, %v6817
        %v6984 = vrot.slane %v6817, 4
        %v6985 = vsel %vm302, %v6825, %v6984
        %v6987 = vunpack.c.l.s4 1983009808
        %v6988 = vunpack.c.0.s8 %v6987
        %v6989 = vperm.slane %v6983, %v6988
        %v6991 = vunpack.c.l.s4 1983009808
        %v6992 = vunpack.c.0.s8 %v6991
        %v6993 = vperm.slane %v6985, %v6992
        %v6994 = vrot.slane %v6837, 4
        %v6995 = vsel %vm302, %v6994, %v6829
        %v6996 = vrot.slane %v6829, 4
        %v6997 = vsel %vm302, %v6837, %v6996
        %v6999 = vunpack.c.l.s4 1983009808
        %v7000 = vunpack.c.0.s8 %v6999
        %v7001 = vperm.slane %v6995, %v7000
        %v7003 = vunpack.c.l.s4 1983009808
        %v7004 = vunpack.c.0.s8 %v7003
        %v7005 = vperm.slane %v6997, %v7004
        %v7006 = vrot.slane %v6841, 4
        %v7007 = vsel %vm302, %v7006, %v6833
        %v7008 = vrot.slane %v6833, 4
        %v7009 = vsel %vm302, %v6841, %v7008
        %v7011 = vunpack.c.l.s4 1983009808
        %v7012 = vunpack.c.0.s8 %v7011
        %v7013 = vperm.slane %v7007, %v7012
        %v7015 = vunpack.c.l.s4 1983009808
        %v7016 = vunpack.c.0.s8 %v7015
        %v7017 = vperm.slane %v7009, %v7016
        %v7018 = vrot.slane %v6989, 4
        %v7019 = vsel %vm302, %v7018, %v6977
        %v7020 = vrot.slane %v6977, 4
        %v7021 = vsel %vm302, %v6989, %v7020
        %v7023 = vunpack.c.l.s4 1934713408
        %v7024 = vunpack.c.0.s8 %v7023
        %v7025 = vperm.slane %v7019, %v7024
        %v7027 = vunpack.c.l.s4 1934713408
        %v7028 = vunpack.c.0.s8 %v7027
        %v7029 = vperm.slane %v7021, %v7028
        %v7030 = vrot.slane %v6993, 4
        %v7031 = vsel %vm302, %v7030, %v6981
        %v7032 = vrot.slane %v6981, 4
        %v7033 = vsel %vm302, %v6993, %v7032
        %v7035 = vunpack.c.l.s4 1934713408
        %v7036 = vunpack.c.0.s8 %v7035
        %v7037 = vperm.slane %v7031, %v7036
        %v7039 = vunpack.c.l.s4 1934713408
        %v7040 = vunpack.c.0.s8 %v7039
        %v7041 = vperm.slane %v7033, %v7040
        %v7042 = vrot.slane %v7013, 4
        %v7043 = vsel %vm302, %v7042, %v7001
        %v7044 = vrot.slane %v7001, 4
        %v7045 = vsel %vm302, %v7013, %v7044
        %v7047 = vunpack.c.l.s4 1934713408
        %v7048 = vunpack.c.0.s8 %v7047
        %v7049 = vperm.slane %v7043, %v7048
        %v7051 = vunpack.c.l.s4 1934713408
        %v7052 = vunpack.c.0.s8 %v7051
        %v7053 = vperm.slane %v7045, %v7052
        %v7054 = vrot.slane %v7017, 4
        %v7055 = vsel %vm302, %v7054, %v7005
        %v7056 = vrot.slane %v7005, 4
        %v7057 = vsel %vm302, %v7017, %v7056
        %v7059 = vunpack.c.l.s4 1934713408
        %v7060 = vunpack.c.0.s8 %v7059
        %v7061 = vperm.slane %v7055, %v7060
        %v7063 = vunpack.c.l.s4 1934713408
        %v7064 = vunpack.c.0.s8 %v7063
        %v7065 = vperm.slane %v7057, %v7064
        %v7066 = vrot.slane %v7049, 4
        %v7067 = vsel %vm302, %v7066, %v7025
        %v7068 = vrot.slane %v7025, 4
        %v7069 = vsel %vm302, %v7049, %v7068
        %v7070 = vrot.slane %v7053, 4
        %v7071 = vsel %vm302, %v7070, %v7029
        %v7072 = vrot.slane %v7029, 4
        %v7073 = vsel %vm302, %v7053, %v7072
        %v7074 = vrot.slane %v7061, 4
        %v7075 = vsel %vm302, %v7074, %v7037
        %v7076 = vrot.slane %v7037, 4
        %v7077 = vsel %vm302, %v7061, %v7076
        %v7078 = vrot.slane %v7065, 4
        %v7079 = vsel %vm302, %v7078, %v7041
        %v7080 = vrot.slane %v7041, 4
        %v7081 = vsel %vm302, %v7065, %v7080
        %7083 = vrot.lane.b32.xlu0 %v6957, 16
        %v7084 = vpop.permute.xlu0 %7083
        %7087 = vrot.lane.b32.xlu0 %v6959, 32
        %v7088 = vpop.permute.xlu0 %7087
        %7091 = vrot.lane.b32.xlu0 %v6961, 48
        %v7092 = vpop.permute.xlu0 %7091
        %7095 = vrot.lane.b32.xlu0 %v6963, 64
        %v7096 = vpop.permute.xlu0 %7095
        %7099 = vrot.lane.b32.xlu0 %v6965, 80
        %v7100 = vpop.permute.xlu0 %7099
        %7103 = vrot.lane.b32.xlu0 %v6967, 96
        %v7104 = vpop.permute.xlu0 %7103
        %7107 = vrot.lane.b32.xlu0 %v6969, 112
        %v7108 = vpop.permute.xlu0 %7107
        %7111 = vrot.lane.b32.xlu0 %v7069, 16
        %v7112 = vpop.permute.xlu0 %7111
        %7115 = vrot.lane.b32.xlu0 %v7071, 32
        %v7116 = vpop.permute.xlu0 %7115
        %7119 = vrot.lane.b32.xlu0 %v7073, 48
        %v7120 = vpop.permute.xlu0 %7119
        %7123 = vrot.lane.b32.xlu0 %v7075, 64
        %v7124 = vpop.permute.xlu0 %7123
        %7127 = vrot.lane.b32.xlu0 %v7077, 80
        %v7128 = vpop.permute.xlu0 %7127
        %7131 = vrot.lane.b32.xlu0 %v7079, 96
        %v7132 = vpop.permute.xlu0 %7131
        %7135 = vrot.lane.b32.xlu0 %v7081, 112
        %v7136 = vpop.permute.xlu0 %7135
        %v7138 = vsel %vm582, %v6955, %v7084
        %v7139 = vsel %vm584, %v7138, %v7088
        %v7140 = vsel %vm586, %v7139, %v7092
        %v7141 = vsel %vm588, %v7140, %v7096
        %v7142 = vsel %vm590, %v7141, %v7100
        %v7143 = vsel %vm592, %v7142, %v7104
        %v7144 = vsel %vm594, %v7143, %v7108
        %v7145 = vsel %vm582, %v7067, %v7112
        %v7146 = vsel %vm584, %v7145, %v7116
        %v7147 = vsel %vm586, %v7146, %v7120
        %v7148 = vsel %vm588, %v7147, %v7124
        %v7149 = vsel %vm590, %v7148, %v7128
        %v7150 = vsel %vm592, %v7149, %v7132
        %v7151 = vsel %vm594, %v7150, %v7136
        %vm7152 = vcmask 1043456
        %v7153 = vrot.slane %v277, 4
        %v7154 = vrot.slane %v278, 4
        %v7155 = vsel %vm7152, %v7153, %v7154
        %v7156 = vrot.slane %v279, 4
        %v7157 = vsel %vm7152, %v7154, %v7156
        %v7158 = vrot.slane %v280, 4
        %v7159 = vrot.slane %v281, 4
        %v7160 = vsel %vm7152, %v7158, %v7159
        %v7161 = vrot.slane %v282, 4
        %v7162 = vsel %vm7152, %v7159, %v7161
        %v7163 = vrot.slane %v283, 4
        %v7164 = vrot.slane %v284, 4
        %v7165 = vsel %vm7152, %v7163, %v7164
        %v7166 = vrot.slane %v285, 4
        %v7167 = vsel %vm7152, %v7164, %v7166
        %v7168 = vrot.slane %v286, 4
        %v7169 = vrot.slane %v287, 4
        %v7170 = vsel %vm7152, %v7168, %v7169
        %v7171 = vrot.slane %v288, 4
        %v7172 = vsel %vm7152, %v7169, %v7171
        %v7173 = vrot.slane %v289, 4
        %v7174 = vrot.slane %v290, 4
        %v7175 = vsel %vm7152, %v7173, %v7174
        %v7176 = vrot.slane %v291, 4
        %v7177 = vsel %vm7152, %v7174, %v7176
        %v7178 = vrot.slane %v292, 4
        %v7179 = vrot.slane %v293, 4
        %v7180 = vsel %vm7152, %v7178, %v7179
        %v7181 = vrot.slane %v294, 4
        %v7182 = vsel %vm7152, %v7179, %v7181
        %v7183 = vrot.slane %v295, 4
        %v7184 = vrot.slane %v296, 4
        %v7185 = vsel %vm7152, %v7183, %v7184
        %v7186 = vrot.slane %v297, 4
        %v7187 = vsel %vm7152, %v7184, %v7186
        %v7188 = vrot.slane %v298, 4
        %v7189 = vrot.slane %v299, 4
        %v7190 = vsel %vm7152, %v7188, %v7189
        %v7191 = vrot.slane %v300, 4
        %v7192 = vsel %vm7152, %v7189, %v7191
        %v7209 = vrot.slane %v7165, 4
        %v7210 = vsel %vm302, %v7209, %v7155
        %v7211 = vrot.slane %v7155, 4
        %v7212 = vsel %vm302, %v7165, %v7211
        %v7214 = vunpack.c.l.s4 1983009808
        %v7215 = vunpack.c.0.s8 %v7214
        %v7216 = vperm.slane %v7210, %v7215
        %v7218 = vunpack.c.l.s4 1983009808
        %v7219 = vunpack.c.0.s8 %v7218
        %v7220 = vperm.slane %v7212, %v7219
        %v7221 = vrot.slane %v7170, 4
        %v7222 = vsel %vm302, %v7221, %v7160
        %v7223 = vrot.slane %v7160, 4
        %v7224 = vsel %vm302, %v7170, %v7223
        %v7226 = vunpack.c.l.s4 1983009808
        %v7227 = vunpack.c.0.s8 %v7226
        %v7228 = vperm.slane %v7222, %v7227
        %v7230 = vunpack.c.l.s4 1983009808
        %v7231 = vunpack.c.0.s8 %v7230
        %v7232 = vperm.slane %v7224, %v7231
        %v7233 = vrot.slane %v7185, 4
        %v7234 = vsel %vm302, %v7233, %v7175
        %v7235 = vrot.slane %v7175, 4
        %v7236 = vsel %vm302, %v7185, %v7235
        %v7238 = vunpack.c.l.s4 1983009808
        %v7239 = vunpack.c.0.s8 %v7238
        %v7240 = vperm.slane %v7234, %v7239
        %v7242 = vunpack.c.l.s4 1983009808
        %v7243 = vunpack.c.0.s8 %v7242
        %v7244 = vperm.slane %v7236, %v7243
        %v7245 = vrot.slane %v7190, 4
        %v7246 = vsel %vm302, %v7245, %v7180
        %v7247 = vrot.slane %v7180, 4
        %v7248 = vsel %vm302, %v7190, %v7247
        %v7250 = vunpack.c.l.s4 1983009808
        %v7251 = vunpack.c.0.s8 %v7250
        %v7252 = vperm.slane %v7246, %v7251
        %v7254 = vunpack.c.l.s4 1983009808
        %v7255 = vunpack.c.0.s8 %v7254
        %v7256 = vperm.slane %v7248, %v7255
        %v7257 = vrot.slane %v7228, 4
        %v7258 = vsel %vm302, %v7257, %v7216
        %v7259 = vrot.slane %v7216, 4
        %v7260 = vsel %vm302, %v7228, %v7259
        %v7262 = vunpack.c.l.s4 1934713408
        %v7263 = vunpack.c.0.s8 %v7262
        %v7264 = vperm.slane %v7258, %v7263
        %v7266 = vunpack.c.l.s4 1934713408
        %v7267 = vunpack.c.0.s8 %v7266
        %v7268 = vperm.slane %v7260, %v7267
        %v7269 = vrot.slane %v7232, 4
        %v7270 = vsel %vm302, %v7269, %v7220
        %v7271 = vrot.slane %v7220, 4
        %v7272 = vsel %vm302, %v7232, %v7271
        %v7274 = vunpack.c.l.s4 1934713408
        %v7275 = vunpack.c.0.s8 %v7274
        %v7276 = vperm.slane %v7270, %v7275
        %v7278 = vunpack.c.l.s4 1934713408
        %v7279 = vunpack.c.0.s8 %v7278
        %v7280 = vperm.slane %v7272, %v7279
        %v7281 = vrot.slane %v7252, 4
        %v7282 = vsel %vm302, %v7281, %v7240
        %v7283 = vrot.slane %v7240, 4
        %v7284 = vsel %vm302, %v7252, %v7283
        %v7286 = vunpack.c.l.s4 1934713408
        %v7287 = vunpack.c.0.s8 %v7286
        %v7288 = vperm.slane %v7282, %v7287
        %v7290 = vunpack.c.l.s4 1934713408
        %v7291 = vunpack.c.0.s8 %v7290
        %v7292 = vperm.slane %v7284, %v7291
        %v7293 = vrot.slane %v7256, 4
        %v7294 = vsel %vm302, %v7293, %v7244
        %v7295 = vrot.slane %v7244, 4
        %v7296 = vsel %vm302, %v7256, %v7295
        %v7298 = vunpack.c.l.s4 1934713408
        %v7299 = vunpack.c.0.s8 %v7298
        %v7300 = vperm.slane %v7294, %v7299
        %v7302 = vunpack.c.l.s4 1934713408
        %v7303 = vunpack.c.0.s8 %v7302
        %v7304 = vperm.slane %v7296, %v7303
        %v7305 = vrot.slane %v7288, 4
        %v7306 = vsel %vm302, %v7305, %v7264
        %v7307 = vrot.slane %v7264, 4
        %v7308 = vsel %vm302, %v7288, %v7307
        %v7309 = vrot.slane %v7292, 4
        %v7310 = vsel %vm302, %v7309, %v7268
        %v7311 = vrot.slane %v7268, 4
        %v7312 = vsel %vm302, %v7292, %v7311
        %v7313 = vrot.slane %v7300, 4
        %v7314 = vsel %vm302, %v7313, %v7276
        %v7315 = vrot.slane %v7276, 4
        %v7316 = vsel %vm302, %v7300, %v7315
        %v7317 = vrot.slane %v7304, 4
        %v7318 = vsel %vm302, %v7317, %v7280
        %v7319 = vrot.slane %v7280, 4
        %v7320 = vsel %vm302, %v7304, %v7319
        %v7321 = vrot.slane %v7167, 4
        %v7322 = vsel %vm302, %v7321, %v7157
        %v7323 = vrot.slane %v7157, 4
        %v7324 = vsel %vm302, %v7167, %v7323
        %v7326 = vunpack.c.l.s4 1983009808
        %v7327 = vunpack.c.0.s8 %v7326
        %v7328 = vperm.slane %v7322, %v7327
        %v7330 = vunpack.c.l.s4 1983009808
        %v7331 = vunpack.c.0.s8 %v7330
        %v7332 = vperm.slane %v7324, %v7331
        %v7333 = vrot.slane %v7172, 4
        %v7334 = vsel %vm302, %v7333, %v7162
        %v7335 = vrot.slane %v7162, 4
        %v7336 = vsel %vm302, %v7172, %v7335
        %v7338 = vunpack.c.l.s4 1983009808
        %v7339 = vunpack.c.0.s8 %v7338
        %v7340 = vperm.slane %v7334, %v7339
        %v7342 = vunpack.c.l.s4 1983009808
        %v7343 = vunpack.c.0.s8 %v7342
        %v7344 = vperm.slane %v7336, %v7343
        %v7345 = vrot.slane %v7187, 4
        %v7346 = vsel %vm302, %v7345, %v7177
        %v7347 = vrot.slane %v7177, 4
        %v7348 = vsel %vm302, %v7187, %v7347
        %v7350 = vunpack.c.l.s4 1983009808
        %v7351 = vunpack.c.0.s8 %v7350
        %v7352 = vperm.slane %v7346, %v7351
        %v7354 = vunpack.c.l.s4 1983009808
        %v7355 = vunpack.c.0.s8 %v7354
        %v7356 = vperm.slane %v7348, %v7355
        %v7357 = vrot.slane %v7192, 4
        %v7358 = vsel %vm302, %v7357, %v7182
        %v7359 = vrot.slane %v7182, 4
        %v7360 = vsel %vm302, %v7192, %v7359
        %v7362 = vunpack.c.l.s4 1983009808
        %v7363 = vunpack.c.0.s8 %v7362
        %v7364 = vperm.slane %v7358, %v7363
        %v7366 = vunpack.c.l.s4 1983009808
        %v7367 = vunpack.c.0.s8 %v7366
        %v7368 = vperm.slane %v7360, %v7367
        %v7369 = vrot.slane %v7340, 4
        %v7370 = vsel %vm302, %v7369, %v7328
        %v7371 = vrot.slane %v7328, 4
        %v7372 = vsel %vm302, %v7340, %v7371
        %v7374 = vunpack.c.l.s4 1934713408
        %v7375 = vunpack.c.0.s8 %v7374
        %v7376 = vperm.slane %v7370, %v7375
        %v7378 = vunpack.c.l.s4 1934713408
        %v7379 = vunpack.c.0.s8 %v7378
        %v7380 = vperm.slane %v7372, %v7379
        %v7381 = vrot.slane %v7344, 4
        %v7382 = vsel %vm302, %v7381, %v7332
        %v7383 = vrot.slane %v7332, 4
        %v7384 = vsel %vm302, %v7344, %v7383
        %v7386 = vunpack.c.l.s4 1934713408
        %v7387 = vunpack.c.0.s8 %v7386
        %v7388 = vperm.slane %v7382, %v7387
        %v7390 = vunpack.c.l.s4 1934713408
        %v7391 = vunpack.c.0.s8 %v7390
        %v7392 = vperm.slane %v7384, %v7391
        %v7393 = vrot.slane %v7364, 4
        %v7394 = vsel %vm302, %v7393, %v7352
        %v7395 = vrot.slane %v7352, 4
        %v7396 = vsel %vm302, %v7364, %v7395
        %v7398 = vunpack.c.l.s4 1934713408
        %v7399 = vunpack.c.0.s8 %v7398
        %v7400 = vperm.slane %v7394, %v7399
        %v7402 = vunpack.c.l.s4 1934713408
        %v7403 = vunpack.c.0.s8 %v7402
        %v7404 = vperm.slane %v7396, %v7403
        %v7405 = vrot.slane %v7368, 4
        %v7406 = vsel %vm302, %v7405, %v7356
        %v7407 = vrot.slane %v7356, 4
        %v7408 = vsel %vm302, %v7368, %v7407
        %v7410 = vunpack.c.l.s4 1934713408
        %v7411 = vunpack.c.0.s8 %v7410
        %v7412 = vperm.slane %v7406, %v7411
        %v7414 = vunpack.c.l.s4 1934713408
        %v7415 = vunpack.c.0.s8 %v7414
        %v7416 = vperm.slane %v7408, %v7415
        %v7417 = vrot.slane %v7400, 4
        %v7418 = vsel %vm302, %v7417, %v7376
        %v7419 = vrot.slane %v7376, 4
        %v7420 = vsel %vm302, %v7400, %v7419
        %v7421 = vrot.slane %v7404, 4
        %v7422 = vsel %vm302, %v7421, %v7380
        %v7423 = vrot.slane %v7380, 4
        %v7424 = vsel %vm302, %v7404, %v7423
        %v7425 = vrot.slane %v7412, 4
        %v7426 = vsel %vm302, %v7425, %v7388
        %v7427 = vrot.slane %v7388, 4
        %v7428 = vsel %vm302, %v7412, %v7427
        %v7429 = vrot.slane %v7416, 4
        %v7430 = vsel %vm302, %v7429, %v7392
        %v7431 = vrot.slane %v7392, 4
        %v7432 = vsel %vm302, %v7416, %v7431
        %7434 = vrot.lane.b32.xlu0 %v7308, 16
        %v7435 = vpop.permute.xlu0 %7434
        %7438 = vrot.lane.b32.xlu0 %v7310, 32
        %v7439 = vpop.permute.xlu0 %7438
        %7442 = vrot.lane.b32.xlu0 %v7312, 48
        %v7443 = vpop.permute.xlu0 %7442
        %7446 = vrot.lane.b32.xlu0 %v7314, 64
        %v7447 = vpop.permute.xlu0 %7446
        %7450 = vrot.lane.b32.xlu0 %v7316, 80
        %v7451 = vpop.permute.xlu0 %7450
        %7454 = vrot.lane.b32.xlu0 %v7318, 96
        %v7455 = vpop.permute.xlu0 %7454
        %7458 = vrot.lane.b32.xlu0 %v7320, 112
        %v7459 = vpop.permute.xlu0 %7458
        %7462 = vrot.lane.b32.xlu0 %v7420, 16
        %v7463 = vpop.permute.xlu0 %7462
        %7466 = vrot.lane.b32.xlu0 %v7422, 32
        %v7467 = vpop.permute.xlu0 %7466
        %7470 = vrot.lane.b32.xlu0 %v7424, 48
        %v7471 = vpop.permute.xlu0 %7470
        %7474 = vrot.lane.b32.xlu0 %v7426, 64
        %v7475 = vpop.permute.xlu0 %7474
        %7478 = vrot.lane.b32.xlu0 %v7428, 80
        %v7479 = vpop.permute.xlu0 %7478
        %7482 = vrot.lane.b32.xlu0 %v7430, 96
        %v7483 = vpop.permute.xlu0 %7482
        %7486 = vrot.lane.b32.xlu0 %v7432, 112
        %v7487 = vpop.permute.xlu0 %7486
        %v7489 = vsel %vm582, %v7306, %v7435
        %v7490 = vsel %vm584, %v7489, %v7439
        %v7491 = vsel %vm586, %v7490, %v7443
        %v7492 = vsel %vm588, %v7491, %v7447
        %v7493 = vsel %vm590, %v7492, %v7451
        %v7494 = vsel %vm592, %v7493, %v7455
        %v7495 = vsel %vm594, %v7494, %v7459
        %v7496 = vsel %vm582, %v7418, %v7463
        %v7497 = vsel %vm584, %v7496, %v7467
        %v7498 = vsel %vm586, %v7497, %v7471
        %v7499 = vsel %vm588, %v7498, %v7475
        %v7500 = vsel %vm590, %v7499, %v7479
        %v7501 = vsel %vm592, %v7500, %v7483
        %v7502 = vsel %vm594, %v7501, %v7487
        %7503 = vrot.lane.b32.xlu0 %v7155, 127
        %v7504 = vpop.permute.xlu0 %7503
        %7505 = vrot.lane.b32.xlu0 %v7157, 127
        %v7506 = vpop.permute.xlu0 %7505
        %7507 = vrot.lane.b32.xlu0 %v7160, 127
        %v7508 = vpop.permute.xlu0 %7507
        %7509 = vrot.lane.b32.xlu0 %v7162, 127
        %v7510 = vpop.permute.xlu0 %7509
        %7511 = vrot.lane.b32.xlu0 %v7165, 127
        %v7512 = vpop.permute.xlu0 %7511
        %7513 = vrot.lane.b32.xlu0 %v7167, 127
        %v7514 = vpop.permute.xlu0 %7513
        %7515 = vrot.lane.b32.xlu0 %v7170, 127
        %v7516 = vpop.permute.xlu0 %7515
        %7517 = vrot.lane.b32.xlu0 %v7172, 127
        %v7518 = vpop.permute.xlu0 %7517
        %7519 = vrot.lane.b32.xlu0 %v7175, 127
        %v7520 = vpop.permute.xlu0 %7519
        %7521 = vrot.lane.b32.xlu0 %v7177, 127
        %v7522 = vpop.permute.xlu0 %7521
        %7523 = vrot.lane.b32.xlu0 %v7180, 127
        %v7524 = vpop.permute.xlu0 %7523
        %7525 = vrot.lane.b32.xlu0 %v7182, 127
        %v7526 = vpop.permute.xlu0 %7525
        %7527 = vrot.lane.b32.xlu0 %v7185, 127
        %v7528 = vpop.permute.xlu0 %7527
        %7529 = vrot.lane.b32.xlu0 %v7187, 127
        %v7530 = vpop.permute.xlu0 %7529
        %7531 = vrot.lane.b32.xlu0 %v7190, 127
        %v7532 = vpop.permute.xlu0 %7531
        %7533 = vrot.lane.b32.xlu0 %v7192, 127
        %v7534 = vpop.permute.xlu0 %7533
        %v7551 = vrot.slane %v7512, 4
        %v7552 = vsel %vm302, %v7551, %v7504
        %v7553 = vrot.slane %v7504, 4
        %v7554 = vsel %vm302, %v7512, %v7553
        %v7556 = vunpack.c.l.s4 1983009808
        %v7557 = vunpack.c.0.s8 %v7556
        %v7558 = vperm.slane %v7552, %v7557
        %v7560 = vunpack.c.l.s4 1983009808
        %v7561 = vunpack.c.0.s8 %v7560
        %v7562 = vperm.slane %v7554, %v7561
        %v7563 = vrot.slane %v7516, 4
        %v7564 = vsel %vm302, %v7563, %v7508
        %v7565 = vrot.slane %v7508, 4
        %v7566 = vsel %vm302, %v7516, %v7565
        %v7568 = vunpack.c.l.s4 1983009808
        %v7569 = vunpack.c.0.s8 %v7568
        %v7570 = vperm.slane %v7564, %v7569
        %v7572 = vunpack.c.l.s4 1983009808
        %v7573 = vunpack.c.0.s8 %v7572
        %v7574 = vperm.slane %v7566, %v7573
        %v7575 = vrot.slane %v7528, 4
        %v7576 = vsel %vm302, %v7575, %v7520
        %v7577 = vrot.slane %v7520, 4
        %v7578 = vsel %vm302, %v7528, %v7577
        %v7580 = vunpack.c.l.s4 1983009808
        %v7581 = vunpack.c.0.s8 %v7580
        %v7582 = vperm.slane %v7576, %v7581
        %v7584 = vunpack.c.l.s4 1983009808
        %v7585 = vunpack.c.0.s8 %v7584
        %v7586 = vperm.slane %v7578, %v7585
        %v7587 = vrot.slane %v7532, 4
        %v7588 = vsel %vm302, %v7587, %v7524
        %v7589 = vrot.slane %v7524, 4
        %v7590 = vsel %vm302, %v7532, %v7589
        %v7592 = vunpack.c.l.s4 1983009808
        %v7593 = vunpack.c.0.s8 %v7592
        %v7594 = vperm.slane %v7588, %v7593
        %v7596 = vunpack.c.l.s4 1983009808
        %v7597 = vunpack.c.0.s8 %v7596
        %v7598 = vperm.slane %v7590, %v7597
        %v7599 = vrot.slane %v7570, 4
        %v7600 = vsel %vm302, %v7599, %v7558
        %v7601 = vrot.slane %v7558, 4
        %v7602 = vsel %vm302, %v7570, %v7601
        %v7604 = vunpack.c.l.s4 1934713408
        %v7605 = vunpack.c.0.s8 %v7604
        %v7606 = vperm.slane %v7600, %v7605
        %v7608 = vunpack.c.l.s4 1934713408
        %v7609 = vunpack.c.0.s8 %v7608
        %v7610 = vperm.slane %v7602, %v7609
        %v7611 = vrot.slane %v7574, 4
        %v7612 = vsel %vm302, %v7611, %v7562
        %v7613 = vrot.slane %v7562, 4
        %v7614 = vsel %vm302, %v7574, %v7613
        %v7616 = vunpack.c.l.s4 1934713408
        %v7617 = vunpack.c.0.s8 %v7616
        %v7618 = vperm.slane %v7612, %v7617
        %v7620 = vunpack.c.l.s4 1934713408
        %v7621 = vunpack.c.0.s8 %v7620
        %v7622 = vperm.slane %v7614, %v7621
        %v7623 = vrot.slane %v7594, 4
        %v7624 = vsel %vm302, %v7623, %v7582
        %v7625 = vrot.slane %v7582, 4
        %v7626 = vsel %vm302, %v7594, %v7625
        %v7628 = vunpack.c.l.s4 1934713408
        %v7629 = vunpack.c.0.s8 %v7628
        %v7630 = vperm.slane %v7624, %v7629
        %v7632 = vunpack.c.l.s4 1934713408
        %v7633 = vunpack.c.0.s8 %v7632
        %v7634 = vperm.slane %v7626, %v7633
        %v7635 = vrot.slane %v7598, 4
        %v7636 = vsel %vm302, %v7635, %v7586
        %v7637 = vrot.slane %v7586, 4
        %v7638 = vsel %vm302, %v7598, %v7637
        %v7640 = vunpack.c.l.s4 1934713408
        %v7641 = vunpack.c.0.s8 %v7640
        %v7642 = vperm.slane %v7636, %v7641
        %v7644 = vunpack.c.l.s4 1934713408
        %v7645 = vunpack.c.0.s8 %v7644
        %v7646 = vperm.slane %v7638, %v7645
        %v7647 = vrot.slane %v7630, 4
        %v7648 = vsel %vm302, %v7647, %v7606
        %v7649 = vrot.slane %v7606, 4
        %v7650 = vsel %vm302, %v7630, %v7649
        %v7651 = vrot.slane %v7634, 4
        %v7652 = vsel %vm302, %v7651, %v7610
        %v7653 = vrot.slane %v7610, 4
        %v7654 = vsel %vm302, %v7634, %v7653
        %v7655 = vrot.slane %v7642, 4
        %v7656 = vsel %vm302, %v7655, %v7618
        %v7657 = vrot.slane %v7618, 4
        %v7658 = vsel %vm302, %v7642, %v7657
        %v7659 = vrot.slane %v7646, 4
        %v7660 = vsel %vm302, %v7659, %v7622
        %v7661 = vrot.slane %v7622, 4
        %v7662 = vsel %vm302, %v7646, %v7661
        %v7663 = vrot.slane %v7514, 4
        %v7664 = vsel %vm302, %v7663, %v7506
        %v7665 = vrot.slane %v7506, 4
        %v7666 = vsel %vm302, %v7514, %v7665
        %v7668 = vunpack.c.l.s4 1983009808
        %v7669 = vunpack.c.0.s8 %v7668
        %v7670 = vperm.slane %v7664, %v7669
        %v7672 = vunpack.c.l.s4 1983009808
        %v7673 = vunpack.c.0.s8 %v7672
        %v7674 = vperm.slane %v7666, %v7673
        %v7675 = vrot.slane %v7518, 4
        %v7676 = vsel %vm302, %v7675, %v7510
        %v7677 = vrot.slane %v7510, 4
        %v7678 = vsel %vm302, %v7518, %v7677
        %v7680 = vunpack.c.l.s4 1983009808
        %v7681 = vunpack.c.0.s8 %v7680
        %v7682 = vperm.slane %v7676, %v7681
        %v7684 = vunpack.c.l.s4 1983009808
        %v7685 = vunpack.c.0.s8 %v7684
        %v7686 = vperm.slane %v7678, %v7685
        %v7687 = vrot.slane %v7530, 4
        %v7688 = vsel %vm302, %v7687, %v7522
        %v7689 = vrot.slane %v7522, 4
        %v7690 = vsel %vm302, %v7530, %v7689
        %v7692 = vunpack.c.l.s4 1983009808
        %v7693 = vunpack.c.0.s8 %v7692
        %v7694 = vperm.slane %v7688, %v7693
        %v7696 = vunpack.c.l.s4 1983009808
        %v7697 = vunpack.c.0.s8 %v7696
        %v7698 = vperm.slane %v7690, %v7697
        %v7699 = vrot.slane %v7534, 4
        %v7700 = vsel %vm302, %v7699, %v7526
        %v7701 = vrot.slane %v7526, 4
        %v7702 = vsel %vm302, %v7534, %v7701
        %v7704 = vunpack.c.l.s4 1983009808
        %v7705 = vunpack.c.0.s8 %v7704
        %v7706 = vperm.slane %v7700, %v7705
        %v7708 = vunpack.c.l.s4 1983009808
        %v7709 = vunpack.c.0.s8 %v7708
        %v7710 = vperm.slane %v7702, %v7709
        %v7711 = vrot.slane %v7682, 4
        %v7712 = vsel %vm302, %v7711, %v7670
        %v7713 = vrot.slane %v7670, 4
        %v7714 = vsel %vm302, %v7682, %v7713
        %v7716 = vunpack.c.l.s4 1934713408
        %v7717 = vunpack.c.0.s8 %v7716
        %v7718 = vperm.slane %v7712, %v7717
        %v7720 = vunpack.c.l.s4 1934713408
        %v7721 = vunpack.c.0.s8 %v7720
        %v7722 = vperm.slane %v7714, %v7721
        %v7723 = vrot.slane %v7686, 4
        %v7724 = vsel %vm302, %v7723, %v7674
        %v7725 = vrot.slane %v7674, 4
        %v7726 = vsel %vm302, %v7686, %v7725
        %v7728 = vunpack.c.l.s4 1934713408
        %v7729 = vunpack.c.0.s8 %v7728
        %v7730 = vperm.slane %v7724, %v7729
        %v7732 = vunpack.c.l.s4 1934713408
        %v7733 = vunpack.c.0.s8 %v7732
        %v7734 = vperm.slane %v7726, %v7733
        %v7735 = vrot.slane %v7706, 4
        %v7736 = vsel %vm302, %v7735, %v7694
        %v7737 = vrot.slane %v7694, 4
        %v7738 = vsel %vm302, %v7706, %v7737
        %v7740 = vunpack.c.l.s4 1934713408
        %v7741 = vunpack.c.0.s8 %v7740
        %v7742 = vperm.slane %v7736, %v7741
        %v7744 = vunpack.c.l.s4 1934713408
        %v7745 = vunpack.c.0.s8 %v7744
        %v7746 = vperm.slane %v7738, %v7745
        %v7747 = vrot.slane %v7710, 4
        %v7748 = vsel %vm302, %v7747, %v7698
        %v7749 = vrot.slane %v7698, 4
        %v7750 = vsel %vm302, %v7710, %v7749
        %v7752 = vunpack.c.l.s4 1934713408
        %v7753 = vunpack.c.0.s8 %v7752
        %v7754 = vperm.slane %v7748, %v7753
        %v7756 = vunpack.c.l.s4 1934713408
        %v7757 = vunpack.c.0.s8 %v7756
        %v7758 = vperm.slane %v7750, %v7757
        %v7759 = vrot.slane %v7742, 4
        %v7760 = vsel %vm302, %v7759, %v7718
        %v7761 = vrot.slane %v7718, 4
        %v7762 = vsel %vm302, %v7742, %v7761
        %v7763 = vrot.slane %v7746, 4
        %v7764 = vsel %vm302, %v7763, %v7722
        %v7765 = vrot.slane %v7722, 4
        %v7766 = vsel %vm302, %v7746, %v7765
        %v7767 = vrot.slane %v7754, 4
        %v7768 = vsel %vm302, %v7767, %v7730
        %v7769 = vrot.slane %v7730, 4
        %v7770 = vsel %vm302, %v7754, %v7769
        %v7771 = vrot.slane %v7758, 4
        %v7772 = vsel %vm302, %v7771, %v7734
        %v7773 = vrot.slane %v7734, 4
        %v7774 = vsel %vm302, %v7758, %v7773
        %7776 = vrot.lane.b32.xlu0 %v7650, 16
        %v7777 = vpop.permute.xlu0 %7776
        %7780 = vrot.lane.b32.xlu0 %v7652, 32
        %v7781 = vpop.permute.xlu0 %7780
        %7784 = vrot.lane.b32.xlu0 %v7654, 48
        %v7785 = vpop.permute.xlu0 %7784
        %7788 = vrot.lane.b32.xlu0 %v7656, 64
        %v7789 = vpop.permute.xlu0 %7788
        %7792 = vrot.lane.b32.xlu0 %v7658, 80
        %v7793 = vpop.permute.xlu0 %7792
        %7796 = vrot.lane.b32.xlu0 %v7660, 96
        %v7797 = vpop.permute.xlu0 %7796
        %7800 = vrot.lane.b32.xlu0 %v7662, 112
        %v7801 = vpop.permute.xlu0 %7800
        %7804 = vrot.lane.b32.xlu0 %v7762, 16
        %v7805 = vpop.permute.xlu0 %7804
        %7808 = vrot.lane.b32.xlu0 %v7764, 32
        %v7809 = vpop.permute.xlu0 %7808
        %7812 = vrot.lane.b32.xlu0 %v7766, 48
        %v7813 = vpop.permute.xlu0 %7812
        %7816 = vrot.lane.b32.xlu0 %v7768, 64
        %v7817 = vpop.permute.xlu0 %7816
        %7820 = vrot.lane.b32.xlu0 %v7770, 80
        %v7821 = vpop.permute.xlu0 %7820
        %7824 = vrot.lane.b32.xlu0 %v7772, 96
        %v7825 = vpop.permute.xlu0 %7824
        %7828 = vrot.lane.b32.xlu0 %v7774, 112
        %v7829 = vpop.permute.xlu0 %7828
        %v7831 = vsel %vm582, %v7648, %v7777
        %v7832 = vsel %vm584, %v7831, %v7781
        %v7833 = vsel %vm586, %v7832, %v7785
        %v7834 = vsel %vm588, %v7833, %v7789
        %v7835 = vsel %vm590, %v7834, %v7793
        %v7836 = vsel %vm592, %v7835, %v7797
        %v7837 = vsel %vm594, %v7836, %v7801
        %v7838 = vsel %vm582, %v7760, %v7805
        %v7839 = vsel %vm584, %v7838, %v7809
        %v7840 = vsel %vm586, %v7839, %v7813
        %v7841 = vsel %vm588, %v7840, %v7817
        %v7842 = vsel %vm590, %v7841, %v7821
        %v7843 = vsel %vm592, %v7842, %v7825
        %v7844 = vsel %vm594, %v7843, %v7829
        %7845 = vrot.lane.b32.xlu0 %v7155, 126
        %v7846 = vpop.permute.xlu0 %7845
        %7847 = vrot.lane.b32.xlu0 %v7157, 126
        %v7848 = vpop.permute.xlu0 %7847
        %7849 = vrot.lane.b32.xlu0 %v7160, 126
        %v7850 = vpop.permute.xlu0 %7849
        %7851 = vrot.lane.b32.xlu0 %v7162, 126
        %v7852 = vpop.permute.xlu0 %7851
        %7853 = vrot.lane.b32.xlu0 %v7165, 126
        %v7854 = vpop.permute.xlu0 %7853
        %7855 = vrot.lane.b32.xlu0 %v7167, 126
        %v7856 = vpop.permute.xlu0 %7855
        %7857 = vrot.lane.b32.xlu0 %v7170, 126
        %v7858 = vpop.permute.xlu0 %7857
        %7859 = vrot.lane.b32.xlu0 %v7172, 126
        %v7860 = vpop.permute.xlu0 %7859
        %7861 = vrot.lane.b32.xlu0 %v7175, 126
        %v7862 = vpop.permute.xlu0 %7861
        %7863 = vrot.lane.b32.xlu0 %v7177, 126
        %v7864 = vpop.permute.xlu0 %7863
        %7865 = vrot.lane.b32.xlu0 %v7180, 126
        %v7866 = vpop.permute.xlu0 %7865
        %7867 = vrot.lane.b32.xlu0 %v7182, 126
        %v7868 = vpop.permute.xlu0 %7867
        %7869 = vrot.lane.b32.xlu0 %v7185, 126
        %v7870 = vpop.permute.xlu0 %7869
        %7871 = vrot.lane.b32.xlu0 %v7187, 126
        %v7872 = vpop.permute.xlu0 %7871
        %7873 = vrot.lane.b32.xlu0 %v7190, 126
        %v7874 = vpop.permute.xlu0 %7873
        %7875 = vrot.lane.b32.xlu0 %v7192, 126
        %v7876 = vpop.permute.xlu0 %7875
        %v7893 = vrot.slane %v7854, 4
        %v7894 = vsel %vm302, %v7893, %v7846
        %v7895 = vrot.slane %v7846, 4
        %v7896 = vsel %vm302, %v7854, %v7895
        %v7898 = vunpack.c.l.s4 1983009808
        %v7899 = vunpack.c.0.s8 %v7898
        %v7900 = vperm.slane %v7894, %v7899
        %v7902 = vunpack.c.l.s4 1983009808
        %v7903 = vunpack.c.0.s8 %v7902
        %v7904 = vperm.slane %v7896, %v7903
        %v7905 = vrot.slane %v7858, 4
        %v7906 = vsel %vm302, %v7905, %v7850
        %v7907 = vrot.slane %v7850, 4
        %v7908 = vsel %vm302, %v7858, %v7907
        %v7910 = vunpack.c.l.s4 1983009808
        %v7911 = vunpack.c.0.s8 %v7910
        %v7912 = vperm.slane %v7906, %v7911
        %v7914 = vunpack.c.l.s4 1983009808
        %v7915 = vunpack.c.0.s8 %v7914
        %v7916 = vperm.slane %v7908, %v7915
        %v7917 = vrot.slane %v7870, 4
        %v7918 = vsel %vm302, %v7917, %v7862
        %v7919 = vrot.slane %v7862, 4
        %v7920 = vsel %vm302, %v7870, %v7919
        %v7922 = vunpack.c.l.s4 1983009808
        %v7923 = vunpack.c.0.s8 %v7922
        %v7924 = vperm.slane %v7918, %v7923
        %v7926 = vunpack.c.l.s4 1983009808
        %v7927 = vunpack.c.0.s8 %v7926
        %v7928 = vperm.slane %v7920, %v7927
        %v7929 = vrot.slane %v7874, 4
        %v7930 = vsel %vm302, %v7929, %v7866
        %v7931 = vrot.slane %v7866, 4
        %v7932 = vsel %vm302, %v7874, %v7931
        %v7934 = vunpack.c.l.s4 1983009808
        %v7935 = vunpack.c.0.s8 %v7934
        %v7936 = vperm.slane %v7930, %v7935
        %v7938 = vunpack.c.l.s4 1983009808
        %v7939 = vunpack.c.0.s8 %v7938
        %v7940 = vperm.slane %v7932, %v7939
        %v7941 = vrot.slane %v7912, 4
        %v7942 = vsel %vm302, %v7941, %v7900
        %v7943 = vrot.slane %v7900, 4
        %v7944 = vsel %vm302, %v7912, %v7943
        %v7946 = vunpack.c.l.s4 1934713408
        %v7947 = vunpack.c.0.s8 %v7946
        %v7948 = vperm.slane %v7942, %v7947
        %v7950 = vunpack.c.l.s4 1934713408
        %v7951 = vunpack.c.0.s8 %v7950
        %v7952 = vperm.slane %v7944, %v7951
        %v7953 = vrot.slane %v7916, 4
        %v7954 = vsel %vm302, %v7953, %v7904
        %v7955 = vrot.slane %v7904, 4
        %v7956 = vsel %vm302, %v7916, %v7955
        %v7958 = vunpack.c.l.s4 1934713408
        %v7959 = vunpack.c.0.s8 %v7958
        %v7960 = vperm.slane %v7954, %v7959
        %v7962 = vunpack.c.l.s4 1934713408
        %v7963 = vunpack.c.0.s8 %v7962
        %v7964 = vperm.slane %v7956, %v7963
        %v7965 = vrot.slane %v7936, 4
        %v7966 = vsel %vm302, %v7965, %v7924
        %v7967 = vrot.slane %v7924, 4
        %v7968 = vsel %vm302, %v7936, %v7967
        %v7970 = vunpack.c.l.s4 1934713408
        %v7971 = vunpack.c.0.s8 %v7970
        %v7972 = vperm.slane %v7966, %v7971
        %v7974 = vunpack.c.l.s4 1934713408
        %v7975 = vunpack.c.0.s8 %v7974
        %v7976 = vperm.slane %v7968, %v7975
        %v7977 = vrot.slane %v7940, 4
        %v7978 = vsel %vm302, %v7977, %v7928
        %v7979 = vrot.slane %v7928, 4
        %v7980 = vsel %vm302, %v7940, %v7979
        %v7982 = vunpack.c.l.s4 1934713408
        %v7983 = vunpack.c.0.s8 %v7982
        %v7984 = vperm.slane %v7978, %v7983
        %v7986 = vunpack.c.l.s4 1934713408
        %v7987 = vunpack.c.0.s8 %v7986
        %v7988 = vperm.slane %v7980, %v7987
        %v7989 = vrot.slane %v7972, 4
        %v7990 = vsel %vm302, %v7989, %v7948
        %v7991 = vrot.slane %v7948, 4
        %v7992 = vsel %vm302, %v7972, %v7991
        %v7993 = vrot.slane %v7976, 4
        %v7994 = vsel %vm302, %v7993, %v7952
        %v7995 = vrot.slane %v7952, 4
        %v7996 = vsel %vm302, %v7976, %v7995
        %v7997 = vrot.slane %v7984, 4
        %v7998 = vsel %vm302, %v7997, %v7960
        %v7999 = vrot.slane %v7960, 4
        %v8000 = vsel %vm302, %v7984, %v7999
        %v8001 = vrot.slane %v7988, 4
        %v8002 = vsel %vm302, %v8001, %v7964
        %v8003 = vrot.slane %v7964, 4
        %v8004 = vsel %vm302, %v7988, %v8003
        %v8005 = vrot.slane %v7856, 4
        %v8006 = vsel %vm302, %v8005, %v7848
        %v8007 = vrot.slane %v7848, 4
        %v8008 = vsel %vm302, %v7856, %v8007
        %v8010 = vunpack.c.l.s4 1983009808
        %v8011 = vunpack.c.0.s8 %v8010
        %v8012 = vperm.slane %v8006, %v8011
        %v8014 = vunpack.c.l.s4 1983009808
        %v8015 = vunpack.c.0.s8 %v8014
        %v8016 = vperm.slane %v8008, %v8015
        %v8017 = vrot.slane %v7860, 4
        %v8018 = vsel %vm302, %v8017, %v7852
        %v8019 = vrot.slane %v7852, 4
        %v8020 = vsel %vm302, %v7860, %v8019
        %v8022 = vunpack.c.l.s4 1983009808
        %v8023 = vunpack.c.0.s8 %v8022
        %v8024 = vperm.slane %v8018, %v8023
        %v8026 = vunpack.c.l.s4 1983009808
        %v8027 = vunpack.c.0.s8 %v8026
        %v8028 = vperm.slane %v8020, %v8027
        %v8029 = vrot.slane %v7872, 4
        %v8030 = vsel %vm302, %v8029, %v7864
        %v8031 = vrot.slane %v7864, 4
        %v8032 = vsel %vm302, %v7872, %v8031
        %v8034 = vunpack.c.l.s4 1983009808
        %v8035 = vunpack.c.0.s8 %v8034
        %v8036 = vperm.slane %v8030, %v8035
        %v8038 = vunpack.c.l.s4 1983009808
        %v8039 = vunpack.c.0.s8 %v8038
        %v8040 = vperm.slane %v8032, %v8039
        %v8041 = vrot.slane %v7876, 4
        %v8042 = vsel %vm302, %v8041, %v7868
        %v8043 = vrot.slane %v7868, 4
        %v8044 = vsel %vm302, %v7876, %v8043
        %v8046 = vunpack.c.l.s4 1983009808
        %v8047 = vunpack.c.0.s8 %v8046
        %v8048 = vperm.slane %v8042, %v8047
        %v8050 = vunpack.c.l.s4 1983009808
        %v8051 = vunpack.c.0.s8 %v8050
        %v8052 = vperm.slane %v8044, %v8051
        %v8053 = vrot.slane %v8024, 4
        %v8054 = vsel %vm302, %v8053, %v8012
        %v8055 = vrot.slane %v8012, 4
        %v8056 = vsel %vm302, %v8024, %v8055
        %v8058 = vunpack.c.l.s4 1934713408
        %v8059 = vunpack.c.0.s8 %v8058
        %v8060 = vperm.slane %v8054, %v8059
        %v8062 = vunpack.c.l.s4 1934713408
        %v8063 = vunpack.c.0.s8 %v8062
        %v8064 = vperm.slane %v8056, %v8063
        %v8065 = vrot.slane %v8028, 4
        %v8066 = vsel %vm302, %v8065, %v8016
        %v8067 = vrot.slane %v8016, 4
        %v8068 = vsel %vm302, %v8028, %v8067
        %v8070 = vunpack.c.l.s4 1934713408
        %v8071 = vunpack.c.0.s8 %v8070
        %v8072 = vperm.slane %v8066, %v8071
        %v8074 = vunpack.c.l.s4 1934713408
        %v8075 = vunpack.c.0.s8 %v8074
        %v8076 = vperm.slane %v8068, %v8075
        %v8077 = vrot.slane %v8048, 4
        %v8078 = vsel %vm302, %v8077, %v8036
        %v8079 = vrot.slane %v8036, 4
        %v8080 = vsel %vm302, %v8048, %v8079
        %v8082 = vunpack.c.l.s4 1934713408
        %v8083 = vunpack.c.0.s8 %v8082
        %v8084 = vperm.slane %v8078, %v8083
        %v8086 = vunpack.c.l.s4 1934713408
        %v8087 = vunpack.c.0.s8 %v8086
        %v8088 = vperm.slane %v8080, %v8087
        %v8089 = vrot.slane %v8052, 4
        %v8090 = vsel %vm302, %v8089, %v8040
        %v8091 = vrot.slane %v8040, 4
        %v8092 = vsel %vm302, %v8052, %v8091
        %v8094 = vunpack.c.l.s4 1934713408
        %v8095 = vunpack.c.0.s8 %v8094
        %v8096 = vperm.slane %v8090, %v8095
        %v8098 = vunpack.c.l.s4 1934713408
        %v8099 = vunpack.c.0.s8 %v8098
        %v8100 = vperm.slane %v8092, %v8099
        %v8101 = vrot.slane %v8084, 4
        %v8102 = vsel %vm302, %v8101, %v8060
        %v8103 = vrot.slane %v8060, 4
        %v8104 = vsel %vm302, %v8084, %v8103
        %v8105 = vrot.slane %v8088, 4
        %v8106 = vsel %vm302, %v8105, %v8064
        %v8107 = vrot.slane %v8064, 4
        %v8108 = vsel %vm302, %v8088, %v8107
        %v8109 = vrot.slane %v8096, 4
        %v8110 = vsel %vm302, %v8109, %v8072
        %v8111 = vrot.slane %v8072, 4
        %v8112 = vsel %vm302, %v8096, %v8111
        %v8113 = vrot.slane %v8100, 4
        %v8114 = vsel %vm302, %v8113, %v8076
        %v8115 = vrot.slane %v8076, 4
        %v8116 = vsel %vm302, %v8100, %v8115
        %8118 = vrot.lane.b32.xlu0 %v7992, 16
        %v8119 = vpop.permute.xlu0 %8118
        %8122 = vrot.lane.b32.xlu0 %v7994, 32
        %v8123 = vpop.permute.xlu0 %8122
        %8126 = vrot.lane.b32.xlu0 %v7996, 48
        %v8127 = vpop.permute.xlu0 %8126
        %8130 = vrot.lane.b32.xlu0 %v7998, 64
        %v8131 = vpop.permute.xlu0 %8130
        %8134 = vrot.lane.b32.xlu0 %v8000, 80
        %v8135 = vpop.permute.xlu0 %8134
        %8138 = vrot.lane.b32.xlu0 %v8002, 96
        %v8139 = vpop.permute.xlu0 %8138
        %8142 = vrot.lane.b32.xlu0 %v8004, 112
        %v8143 = vpop.permute.xlu0 %8142
        %8146 = vrot.lane.b32.xlu0 %v8104, 16
        %v8147 = vpop.permute.xlu0 %8146
        %8150 = vrot.lane.b32.xlu0 %v8106, 32
        %v8151 = vpop.permute.xlu0 %8150
        %8154 = vrot.lane.b32.xlu0 %v8108, 48
        %v8155 = vpop.permute.xlu0 %8154
        %8158 = vrot.lane.b32.xlu0 %v8110, 64
        %v8159 = vpop.permute.xlu0 %8158
        %8162 = vrot.lane.b32.xlu0 %v8112, 80
        %v8163 = vpop.permute.xlu0 %8162
        %8166 = vrot.lane.b32.xlu0 %v8114, 96
        %v8167 = vpop.permute.xlu0 %8166
        %8170 = vrot.lane.b32.xlu0 %v8116, 112
        %v8171 = vpop.permute.xlu0 %8170
        %v8173 = vsel %vm582, %v7990, %v8119
        %v8174 = vsel %vm584, %v8173, %v8123
        %v8175 = vsel %vm586, %v8174, %v8127
        %v8176 = vsel %vm588, %v8175, %v8131
        %v8177 = vsel %vm590, %v8176, %v8135
        %v8178 = vsel %vm592, %v8177, %v8139
        %v8179 = vsel %vm594, %v8178, %v8143
        %v8180 = vsel %vm582, %v8102, %v8147
        %v8181 = vsel %vm584, %v8180, %v8151
        %v8182 = vsel %vm586, %v8181, %v8155
        %v8183 = vsel %vm588, %v8182, %v8159
        %v8184 = vsel %vm590, %v8183, %v8163
        %v8185 = vsel %vm592, %v8184, %v8167
        %v8186 = vsel %vm594, %v8185, %v8171
        %8187 = vrot.lane.b32.xlu0 %v7155, 125
        %v8188 = vpop.permute.xlu0 %8187
        %8189 = vrot.lane.b32.xlu0 %v7157, 125
        %v8190 = vpop.permute.xlu0 %8189
        %8191 = vrot.lane.b32.xlu0 %v7160, 125
        %v8192 = vpop.permute.xlu0 %8191
        %8193 = vrot.lane.b32.xlu0 %v7162, 125
        %v8194 = vpop.permute.xlu0 %8193
        %8195 = vrot.lane.b32.xlu0 %v7165, 125
        %v8196 = vpop.permute.xlu0 %8195
        %8197 = vrot.lane.b32.xlu0 %v7167, 125
        %v8198 = vpop.permute.xlu0 %8197
        %8199 = vrot.lane.b32.xlu0 %v7170, 125
        %v8200 = vpop.permute.xlu0 %8199
        %8201 = vrot.lane.b32.xlu0 %v7172, 125
        %v8202 = vpop.permute.xlu0 %8201
        %8203 = vrot.lane.b32.xlu0 %v7175, 125
        %v8204 = vpop.permute.xlu0 %8203
        %8205 = vrot.lane.b32.xlu0 %v7177, 125
        %v8206 = vpop.permute.xlu0 %8205
        %8207 = vrot.lane.b32.xlu0 %v7180, 125
        %v8208 = vpop.permute.xlu0 %8207
        %8209 = vrot.lane.b32.xlu0 %v7182, 125
        %v8210 = vpop.permute.xlu0 %8209
        %8211 = vrot.lane.b32.xlu0 %v7185, 125
        %v8212 = vpop.permute.xlu0 %8211
        %8213 = vrot.lane.b32.xlu0 %v7187, 125
        %v8214 = vpop.permute.xlu0 %8213
        %8215 = vrot.lane.b32.xlu0 %v7190, 125
        %v8216 = vpop.permute.xlu0 %8215
        %8217 = vrot.lane.b32.xlu0 %v7192, 125
        %v8218 = vpop.permute.xlu0 %8217
        %v8235 = vrot.slane %v8196, 4
        %v8236 = vsel %vm302, %v8235, %v8188
        %v8237 = vrot.slane %v8188, 4
        %v8238 = vsel %vm302, %v8196, %v8237
        %v8240 = vunpack.c.l.s4 1983009808
        %v8241 = vunpack.c.0.s8 %v8240
        %v8242 = vperm.slane %v8236, %v8241
        %v8244 = vunpack.c.l.s4 1983009808
        %v8245 = vunpack.c.0.s8 %v8244
        %v8246 = vperm.slane %v8238, %v8245
        %v8247 = vrot.slane %v8200, 4
        %v8248 = vsel %vm302, %v8247, %v8192
        %v8249 = vrot.slane %v8192, 4
        %v8250 = vsel %vm302, %v8200, %v8249
        %v8252 = vunpack.c.l.s4 1983009808
        %v8253 = vunpack.c.0.s8 %v8252
        %v8254 = vperm.slane %v8248, %v8253
        %v8256 = vunpack.c.l.s4 1983009808
        %v8257 = vunpack.c.0.s8 %v8256
        %v8258 = vperm.slane %v8250, %v8257
        %v8259 = vrot.slane %v8212, 4
        %v8260 = vsel %vm302, %v8259, %v8204
        %v8261 = vrot.slane %v8204, 4
        %v8262 = vsel %vm302, %v8212, %v8261
        %v8264 = vunpack.c.l.s4 1983009808
        %v8265 = vunpack.c.0.s8 %v8264
        %v8266 = vperm.slane %v8260, %v8265
        %v8268 = vunpack.c.l.s4 1983009808
        %v8269 = vunpack.c.0.s8 %v8268
        %v8270 = vperm.slane %v8262, %v8269
        %v8271 = vrot.slane %v8216, 4
        %v8272 = vsel %vm302, %v8271, %v8208
        %v8273 = vrot.slane %v8208, 4
        %v8274 = vsel %vm302, %v8216, %v8273
        %v8276 = vunpack.c.l.s4 1983009808
        %v8277 = vunpack.c.0.s8 %v8276
        %v8278 = vperm.slane %v8272, %v8277
        %v8280 = vunpack.c.l.s4 1983009808
        %v8281 = vunpack.c.0.s8 %v8280
        %v8282 = vperm.slane %v8274, %v8281
        %v8283 = vrot.slane %v8254, 4
        %v8284 = vsel %vm302, %v8283, %v8242
        %v8285 = vrot.slane %v8242, 4
        %v8286 = vsel %vm302, %v8254, %v8285
        %v8288 = vunpack.c.l.s4 1934713408
        %v8289 = vunpack.c.0.s8 %v8288
        %v8290 = vperm.slane %v8284, %v8289
        %v8292 = vunpack.c.l.s4 1934713408
        %v8293 = vunpack.c.0.s8 %v8292
        %v8294 = vperm.slane %v8286, %v8293
        %v8295 = vrot.slane %v8258, 4
        %v8296 = vsel %vm302, %v8295, %v8246
        %v8297 = vrot.slane %v8246, 4
        %v8298 = vsel %vm302, %v8258, %v8297
        %v8300 = vunpack.c.l.s4 1934713408
        %v8301 = vunpack.c.0.s8 %v8300
        %v8302 = vperm.slane %v8296, %v8301
        %v8304 = vunpack.c.l.s4 1934713408
        %v8305 = vunpack.c.0.s8 %v8304
        %v8306 = vperm.slane %v8298, %v8305
        %v8307 = vrot.slane %v8278, 4
        %v8308 = vsel %vm302, %v8307, %v8266
        %v8309 = vrot.slane %v8266, 4
        %v8310 = vsel %vm302, %v8278, %v8309
        %v8312 = vunpack.c.l.s4 1934713408
        %v8313 = vunpack.c.0.s8 %v8312
        %v8314 = vperm.slane %v8308, %v8313
        %v8316 = vunpack.c.l.s4 1934713408
        %v8317 = vunpack.c.0.s8 %v8316
        %v8318 = vperm.slane %v8310, %v8317
        %v8319 = vrot.slane %v8282, 4
        %v8320 = vsel %vm302, %v8319, %v8270
        %v8321 = vrot.slane %v8270, 4
        %v8322 = vsel %vm302, %v8282, %v8321
        %v8324 = vunpack.c.l.s4 1934713408
        %v8325 = vunpack.c.0.s8 %v8324
        %v8326 = vperm.slane %v8320, %v8325
        %v8328 = vunpack.c.l.s4 1934713408
        %v8329 = vunpack.c.0.s8 %v8328
        %v8330 = vperm.slane %v8322, %v8329
        %v8331 = vrot.slane %v8314, 4
        %v8332 = vsel %vm302, %v8331, %v8290
        %v8333 = vrot.slane %v8290, 4
        %v8334 = vsel %vm302, %v8314, %v8333
        %v8335 = vrot.slane %v8318, 4
        %v8336 = vsel %vm302, %v8335, %v8294
        %v8337 = vrot.slane %v8294, 4
        %v8338 = vsel %vm302, %v8318, %v8337
        %v8339 = vrot.slane %v8326, 4
        %v8340 = vsel %vm302, %v8339, %v8302
        %v8341 = vrot.slane %v8302, 4
        %v8342 = vsel %vm302, %v8326, %v8341
        %v8343 = vrot.slane %v8330, 4
        %v8344 = vsel %vm302, %v8343, %v8306
        %v8345 = vrot.slane %v8306, 4
        %v8346 = vsel %vm302, %v8330, %v8345
        %v8347 = vrot.slane %v8198, 4
        %v8348 = vsel %vm302, %v8347, %v8190
        %v8349 = vrot.slane %v8190, 4
        %v8350 = vsel %vm302, %v8198, %v8349
        %v8352 = vunpack.c.l.s4 1983009808
        %v8353 = vunpack.c.0.s8 %v8352
        %v8354 = vperm.slane %v8348, %v8353
        %v8356 = vunpack.c.l.s4 1983009808
        %v8357 = vunpack.c.0.s8 %v8356
        %v8358 = vperm.slane %v8350, %v8357
        %v8359 = vrot.slane %v8202, 4
        %v8360 = vsel %vm302, %v8359, %v8194
        %v8361 = vrot.slane %v8194, 4
        %v8362 = vsel %vm302, %v8202, %v8361
        %v8364 = vunpack.c.l.s4 1983009808
        %v8365 = vunpack.c.0.s8 %v8364
        %v8366 = vperm.slane %v8360, %v8365
        %v8368 = vunpack.c.l.s4 1983009808
        %v8369 = vunpack.c.0.s8 %v8368
        %v8370 = vperm.slane %v8362, %v8369
        %v8371 = vrot.slane %v8214, 4
        %v8372 = vsel %vm302, %v8371, %v8206
        %v8373 = vrot.slane %v8206, 4
        %v8374 = vsel %vm302, %v8214, %v8373
        %v8376 = vunpack.c.l.s4 1983009808
        %v8377 = vunpack.c.0.s8 %v8376
        %v8378 = vperm.slane %v8372, %v8377
        %v8380 = vunpack.c.l.s4 1983009808
        %v8381 = vunpack.c.0.s8 %v8380
        %v8382 = vperm.slane %v8374, %v8381
        %v8383 = vrot.slane %v8218, 4
        %v8384 = vsel %vm302, %v8383, %v8210
        %v8385 = vrot.slane %v8210, 4
        %v8386 = vsel %vm302, %v8218, %v8385
        %v8388 = vunpack.c.l.s4 1983009808
        %v8389 = vunpack.c.0.s8 %v8388
        %v8390 = vperm.slane %v8384, %v8389
        %v8392 = vunpack.c.l.s4 1983009808
        %v8393 = vunpack.c.0.s8 %v8392
        %v8394 = vperm.slane %v8386, %v8393
        %v8395 = vrot.slane %v8366, 4
        %v8396 = vsel %vm302, %v8395, %v8354
        %v8397 = vrot.slane %v8354, 4
        %v8398 = vsel %vm302, %v8366, %v8397
        %v8400 = vunpack.c.l.s4 1934713408
        %v8401 = vunpack.c.0.s8 %v8400
        %v8402 = vperm.slane %v8396, %v8401
        %v8404 = vunpack.c.l.s4 1934713408
        %v8405 = vunpack.c.0.s8 %v8404
        %v8406 = vperm.slane %v8398, %v8405
        %v8407 = vrot.slane %v8370, 4
        %v8408 = vsel %vm302, %v8407, %v8358
        %v8409 = vrot.slane %v8358, 4
        %v8410 = vsel %vm302, %v8370, %v8409
        %v8412 = vunpack.c.l.s4 1934713408
        %v8413 = vunpack.c.0.s8 %v8412
        %v8414 = vperm.slane %v8408, %v8413
        %v8416 = vunpack.c.l.s4 1934713408
        %v8417 = vunpack.c.0.s8 %v8416
        %v8418 = vperm.slane %v8410, %v8417
        %v8419 = vrot.slane %v8390, 4
        %v8420 = vsel %vm302, %v8419, %v8378
        %v8421 = vrot.slane %v8378, 4
        %v8422 = vsel %vm302, %v8390, %v8421
        %v8424 = vunpack.c.l.s4 1934713408
        %v8425 = vunpack.c.0.s8 %v8424
        %v8426 = vperm.slane %v8420, %v8425
        %v8428 = vunpack.c.l.s4 1934713408
        %v8429 = vunpack.c.0.s8 %v8428
        %v8430 = vperm.slane %v8422, %v8429
        %v8431 = vrot.slane %v8394, 4
        %v8432 = vsel %vm302, %v8431, %v8382
        %v8433 = vrot.slane %v8382, 4
        %v8434 = vsel %vm302, %v8394, %v8433
        %v8436 = vunpack.c.l.s4 1934713408
        %v8437 = vunpack.c.0.s8 %v8436
        %v8438 = vperm.slane %v8432, %v8437
        %v8440 = vunpack.c.l.s4 1934713408
        %v8441 = vunpack.c.0.s8 %v8440
        %v8442 = vperm.slane %v8434, %v8441
        %v8443 = vrot.slane %v8426, 4
        %v8444 = vsel %vm302, %v8443, %v8402
        %v8445 = vrot.slane %v8402, 4
        %v8446 = vsel %vm302, %v8426, %v8445
        %v8447 = vrot.slane %v8430, 4
        %v8448 = vsel %vm302, %v8447, %v8406
        %v8449 = vrot.slane %v8406, 4
        %v8450 = vsel %vm302, %v8430, %v8449
        %v8451 = vrot.slane %v8438, 4
        %v8452 = vsel %vm302, %v8451, %v8414
        %v8453 = vrot.slane %v8414, 4
        %v8454 = vsel %vm302, %v8438, %v8453
        %v8455 = vrot.slane %v8442, 4
        %v8456 = vsel %vm302, %v8455, %v8418
        %v8457 = vrot.slane %v8418, 4
        %v8458 = vsel %vm302, %v8442, %v8457
        %8460 = vrot.lane.b32.xlu0 %v8334, 16
        %v8461 = vpop.permute.xlu0 %8460
        %8464 = vrot.lane.b32.xlu0 %v8336, 32
        %v8465 = vpop.permute.xlu0 %8464
        %8468 = vrot.lane.b32.xlu0 %v8338, 48
        %v8469 = vpop.permute.xlu0 %8468
        %8472 = vrot.lane.b32.xlu0 %v8340, 64
        %v8473 = vpop.permute.xlu0 %8472
        %8476 = vrot.lane.b32.xlu0 %v8342, 80
        %v8477 = vpop.permute.xlu0 %8476
        %8480 = vrot.lane.b32.xlu0 %v8344, 96
        %v8481 = vpop.permute.xlu0 %8480
        %8484 = vrot.lane.b32.xlu0 %v8346, 112
        %v8485 = vpop.permute.xlu0 %8484
        %8488 = vrot.lane.b32.xlu0 %v8446, 16
        %v8489 = vpop.permute.xlu0 %8488
        %8492 = vrot.lane.b32.xlu0 %v8448, 32
        %v8493 = vpop.permute.xlu0 %8492
        %8496 = vrot.lane.b32.xlu0 %v8450, 48
        %v8497 = vpop.permute.xlu0 %8496
        %8500 = vrot.lane.b32.xlu0 %v8452, 64
        %v8501 = vpop.permute.xlu0 %8500
        %8504 = vrot.lane.b32.xlu0 %v8454, 80
        %v8505 = vpop.permute.xlu0 %8504
        %8508 = vrot.lane.b32.xlu0 %v8456, 96
        %v8509 = vpop.permute.xlu0 %8508
        %8512 = vrot.lane.b32.xlu0 %v8458, 112
        %v8513 = vpop.permute.xlu0 %8512
        %v8515 = vsel %vm582, %v8332, %v8461
        %v8516 = vsel %vm584, %v8515, %v8465
        %v8517 = vsel %vm586, %v8516, %v8469
        %v8518 = vsel %vm588, %v8517, %v8473
        %v8519 = vsel %vm590, %v8518, %v8477
        %v8520 = vsel %vm592, %v8519, %v8481
        %v8521 = vsel %vm594, %v8520, %v8485
        %v8522 = vsel %vm582, %v8444, %v8489
        %v8523 = vsel %vm584, %v8522, %v8493
        %v8524 = vsel %vm586, %v8523, %v8497
        %v8525 = vsel %vm588, %v8524, %v8501
        %v8526 = vsel %vm590, %v8525, %v8505
        %v8527 = vsel %vm592, %v8526, %v8509
        %v8528 = vsel %vm594, %v8527, %v8513
        %8529 = vrot.lane.b32.xlu0 %v7155, 124
        %v8530 = vpop.permute.xlu0 %8529
        %8531 = vrot.lane.b32.xlu0 %v7157, 124
        %v8532 = vpop.permute.xlu0 %8531
        %8533 = vrot.lane.b32.xlu0 %v7160, 124
        %v8534 = vpop.permute.xlu0 %8533
        %8535 = vrot.lane.b32.xlu0 %v7162, 124
        %v8536 = vpop.permute.xlu0 %8535
        %8537 = vrot.lane.b32.xlu0 %v7165, 124
        %v8538 = vpop.permute.xlu0 %8537
        %8539 = vrot.lane.b32.xlu0 %v7167, 124
        %v8540 = vpop.permute.xlu0 %8539
        %8541 = vrot.lane.b32.xlu0 %v7170, 124
        %v8542 = vpop.permute.xlu0 %8541
        %8543 = vrot.lane.b32.xlu0 %v7172, 124
        %v8544 = vpop.permute.xlu0 %8543
        %8545 = vrot.lane.b32.xlu0 %v7175, 124
        %v8546 = vpop.permute.xlu0 %8545
        %8547 = vrot.lane.b32.xlu0 %v7177, 124
        %v8548 = vpop.permute.xlu0 %8547
        %8549 = vrot.lane.b32.xlu0 %v7180, 124
        %v8550 = vpop.permute.xlu0 %8549
        %8551 = vrot.lane.b32.xlu0 %v7182, 124
        %v8552 = vpop.permute.xlu0 %8551
        %8553 = vrot.lane.b32.xlu0 %v7185, 124
        %v8554 = vpop.permute.xlu0 %8553
        %8555 = vrot.lane.b32.xlu0 %v7187, 124
        %v8556 = vpop.permute.xlu0 %8555
        %8557 = vrot.lane.b32.xlu0 %v7190, 124
        %v8558 = vpop.permute.xlu0 %8557
        %8559 = vrot.lane.b32.xlu0 %v7192, 124
        %v8560 = vpop.permute.xlu0 %8559
        %v8577 = vrot.slane %v8538, 4
        %v8578 = vsel %vm302, %v8577, %v8530
        %v8579 = vrot.slane %v8530, 4
        %v8580 = vsel %vm302, %v8538, %v8579
        %v8582 = vunpack.c.l.s4 1983009808
        %v8583 = vunpack.c.0.s8 %v8582
        %v8584 = vperm.slane %v8578, %v8583
        %v8586 = vunpack.c.l.s4 1983009808
        %v8587 = vunpack.c.0.s8 %v8586
        %v8588 = vperm.slane %v8580, %v8587
        %v8589 = vrot.slane %v8542, 4
        %v8590 = vsel %vm302, %v8589, %v8534
        %v8591 = vrot.slane %v8534, 4
        %v8592 = vsel %vm302, %v8542, %v8591
        %v8594 = vunpack.c.l.s4 1983009808
        %v8595 = vunpack.c.0.s8 %v8594
        %v8596 = vperm.slane %v8590, %v8595
        %v8598 = vunpack.c.l.s4 1983009808
        %v8599 = vunpack.c.0.s8 %v8598
        %v8600 = vperm.slane %v8592, %v8599
        %v8601 = vrot.slane %v8554, 4
        %v8602 = vsel %vm302, %v8601, %v8546
        %v8603 = vrot.slane %v8546, 4
        %v8604 = vsel %vm302, %v8554, %v8603
        %v8606 = vunpack.c.l.s4 1983009808
        %v8607 = vunpack.c.0.s8 %v8606
        %v8608 = vperm.slane %v8602, %v8607
        %v8610 = vunpack.c.l.s4 1983009808
        %v8611 = vunpack.c.0.s8 %v8610
        %v8612 = vperm.slane %v8604, %v8611
        %v8613 = vrot.slane %v8558, 4
        %v8614 = vsel %vm302, %v8613, %v8550
        %v8615 = vrot.slane %v8550, 4
        %v8616 = vsel %vm302, %v8558, %v8615
        %v8618 = vunpack.c.l.s4 1983009808
        %v8619 = vunpack.c.0.s8 %v8618
        %v8620 = vperm.slane %v8614, %v8619
        %v8622 = vunpack.c.l.s4 1983009808
        %v8623 = vunpack.c.0.s8 %v8622
        %v8624 = vperm.slane %v8616, %v8623
        %v8625 = vrot.slane %v8596, 4
        %v8626 = vsel %vm302, %v8625, %v8584
        %v8627 = vrot.slane %v8584, 4
        %v8628 = vsel %vm302, %v8596, %v8627
        %v8630 = vunpack.c.l.s4 1934713408
        %v8631 = vunpack.c.0.s8 %v8630
        %v8632 = vperm.slane %v8626, %v8631
        %v8634 = vunpack.c.l.s4 1934713408
        %v8635 = vunpack.c.0.s8 %v8634
        %v8636 = vperm.slane %v8628, %v8635
        %v8637 = vrot.slane %v8600, 4
        %v8638 = vsel %vm302, %v8637, %v8588
        %v8639 = vrot.slane %v8588, 4
        %v8640 = vsel %vm302, %v8600, %v8639
        %v8642 = vunpack.c.l.s4 1934713408
        %v8643 = vunpack.c.0.s8 %v8642
        %v8644 = vperm.slane %v8638, %v8643
        %v8646 = vunpack.c.l.s4 1934713408
        %v8647 = vunpack.c.0.s8 %v8646
        %v8648 = vperm.slane %v8640, %v8647
        %v8649 = vrot.slane %v8620, 4
        %v8650 = vsel %vm302, %v8649, %v8608
        %v8651 = vrot.slane %v8608, 4
        %v8652 = vsel %vm302, %v8620, %v8651
        %v8654 = vunpack.c.l.s4 1934713408
        %v8655 = vunpack.c.0.s8 %v8654
        %v8656 = vperm.slane %v8650, %v8655
        %v8658 = vunpack.c.l.s4 1934713408
        %v8659 = vunpack.c.0.s8 %v8658
        %v8660 = vperm.slane %v8652, %v8659
        %v8661 = vrot.slane %v8624, 4
        %v8662 = vsel %vm302, %v8661, %v8612
        %v8663 = vrot.slane %v8612, 4
        %v8664 = vsel %vm302, %v8624, %v8663
        %v8666 = vunpack.c.l.s4 1934713408
        %v8667 = vunpack.c.0.s8 %v8666
        %v8668 = vperm.slane %v8662, %v8667
        %v8670 = vunpack.c.l.s4 1934713408
        %v8671 = vunpack.c.0.s8 %v8670
        %v8672 = vperm.slane %v8664, %v8671
        %v8673 = vrot.slane %v8656, 4
        %v8674 = vsel %vm302, %v8673, %v8632
        %v8675 = vrot.slane %v8632, 4
        %v8676 = vsel %vm302, %v8656, %v8675
        %v8677 = vrot.slane %v8660, 4
        %v8678 = vsel %vm302, %v8677, %v8636
        %v8679 = vrot.slane %v8636, 4
        %v8680 = vsel %vm302, %v8660, %v8679
        %v8681 = vrot.slane %v8668, 4
        %v8682 = vsel %vm302, %v8681, %v8644
        %v8683 = vrot.slane %v8644, 4
        %v8684 = vsel %vm302, %v8668, %v8683
        %v8685 = vrot.slane %v8672, 4
        %v8686 = vsel %vm302, %v8685, %v8648
        %v8687 = vrot.slane %v8648, 4
        %v8688 = vsel %vm302, %v8672, %v8687
        %v8689 = vrot.slane %v8540, 4
        %v8690 = vsel %vm302, %v8689, %v8532
        %v8691 = vrot.slane %v8532, 4
        %v8692 = vsel %vm302, %v8540, %v8691
        %v8694 = vunpack.c.l.s4 1983009808
        %v8695 = vunpack.c.0.s8 %v8694
        %v8696 = vperm.slane %v8690, %v8695
        %v8698 = vunpack.c.l.s4 1983009808
        %v8699 = vunpack.c.0.s8 %v8698
        %v8700 = vperm.slane %v8692, %v8699
        %v8701 = vrot.slane %v8544, 4
        %v8702 = vsel %vm302, %v8701, %v8536
        %v8703 = vrot.slane %v8536, 4
        %v8704 = vsel %vm302, %v8544, %v8703
        %v8706 = vunpack.c.l.s4 1983009808
        %v8707 = vunpack.c.0.s8 %v8706
        %v8708 = vperm.slane %v8702, %v8707
        %v8710 = vunpack.c.l.s4 1983009808
        %v8711 = vunpack.c.0.s8 %v8710
        %v8712 = vperm.slane %v8704, %v8711
        %v8713 = vrot.slane %v8556, 4
        %v8714 = vsel %vm302, %v8713, %v8548
        %v8715 = vrot.slane %v8548, 4
        %v8716 = vsel %vm302, %v8556, %v8715
        %v8718 = vunpack.c.l.s4 1983009808
        %v8719 = vunpack.c.0.s8 %v8718
        %v8720 = vperm.slane %v8714, %v8719
        %v8722 = vunpack.c.l.s4 1983009808
        %v8723 = vunpack.c.0.s8 %v8722
        %v8724 = vperm.slane %v8716, %v8723
        %v8725 = vrot.slane %v8560, 4
        %v8726 = vsel %vm302, %v8725, %v8552
        %v8727 = vrot.slane %v8552, 4
        %v8728 = vsel %vm302, %v8560, %v8727
        %v8730 = vunpack.c.l.s4 1983009808
        %v8731 = vunpack.c.0.s8 %v8730
        %v8732 = vperm.slane %v8726, %v8731
        %v8734 = vunpack.c.l.s4 1983009808
        %v8735 = vunpack.c.0.s8 %v8734
        %v8736 = vperm.slane %v8728, %v8735
        %v8737 = vrot.slane %v8708, 4
        %v8738 = vsel %vm302, %v8737, %v8696
        %v8739 = vrot.slane %v8696, 4
        %v8740 = vsel %vm302, %v8708, %v8739
        %v8742 = vunpack.c.l.s4 1934713408
        %v8743 = vunpack.c.0.s8 %v8742
        %v8744 = vperm.slane %v8738, %v8743
        %v8746 = vunpack.c.l.s4 1934713408
        %v8747 = vunpack.c.0.s8 %v8746
        %v8748 = vperm.slane %v8740, %v8747
        %v8749 = vrot.slane %v8712, 4
        %v8750 = vsel %vm302, %v8749, %v8700
        %v8751 = vrot.slane %v8700, 4
        %v8752 = vsel %vm302, %v8712, %v8751
        %v8754 = vunpack.c.l.s4 1934713408
        %v8755 = vunpack.c.0.s8 %v8754
        %v8756 = vperm.slane %v8750, %v8755
        %v8758 = vunpack.c.l.s4 1934713408
        %v8759 = vunpack.c.0.s8 %v8758
        %v8760 = vperm.slane %v8752, %v8759
        %v8761 = vrot.slane %v8732, 4
        %v8762 = vsel %vm302, %v8761, %v8720
        %v8763 = vrot.slane %v8720, 4
        %v8764 = vsel %vm302, %v8732, %v8763
        %v8766 = vunpack.c.l.s4 1934713408
        %v8767 = vunpack.c.0.s8 %v8766
        %v8768 = vperm.slane %v8762, %v8767
        %v8770 = vunpack.c.l.s4 1934713408
        %v8771 = vunpack.c.0.s8 %v8770
        %v8772 = vperm.slane %v8764, %v8771
        %v8773 = vrot.slane %v8736, 4
        %v8774 = vsel %vm302, %v8773, %v8724
        %v8775 = vrot.slane %v8724, 4
        %v8776 = vsel %vm302, %v8736, %v8775
        %v8778 = vunpack.c.l.s4 1934713408
        %v8779 = vunpack.c.0.s8 %v8778
        %v8780 = vperm.slane %v8774, %v8779
        %v8782 = vunpack.c.l.s4 1934713408
        %v8783 = vunpack.c.0.s8 %v8782
        %v8784 = vperm.slane %v8776, %v8783
        %v8785 = vrot.slane %v8768, 4
        %v8786 = vsel %vm302, %v8785, %v8744
        %v8787 = vrot.slane %v8744, 4
        %v8788 = vsel %vm302, %v8768, %v8787
        %v8789 = vrot.slane %v8772, 4
        %v8790 = vsel %vm302, %v8789, %v8748
        %v8791 = vrot.slane %v8748, 4
        %v8792 = vsel %vm302, %v8772, %v8791
        %v8793 = vrot.slane %v8780, 4
        %v8794 = vsel %vm302, %v8793, %v8756
        %v8795 = vrot.slane %v8756, 4
        %v8796 = vsel %vm302, %v8780, %v8795
        %v8797 = vrot.slane %v8784, 4
        %v8798 = vsel %vm302, %v8797, %v8760
        %v8799 = vrot.slane %v8760, 4
        %v8800 = vsel %vm302, %v8784, %v8799
        %8802 = vrot.lane.b32.xlu0 %v8676, 16
        %v8803 = vpop.permute.xlu0 %8802
        %8806 = vrot.lane.b32.xlu0 %v8678, 32
        %v8807 = vpop.permute.xlu0 %8806
        %8810 = vrot.lane.b32.xlu0 %v8680, 48
        %v8811 = vpop.permute.xlu0 %8810
        %8814 = vrot.lane.b32.xlu0 %v8682, 64
        %v8815 = vpop.permute.xlu0 %8814
        %8818 = vrot.lane.b32.xlu0 %v8684, 80
        %v8819 = vpop.permute.xlu0 %8818
        %8822 = vrot.lane.b32.xlu0 %v8686, 96
        %v8823 = vpop.permute.xlu0 %8822
        %8826 = vrot.lane.b32.xlu0 %v8688, 112
        %v8827 = vpop.permute.xlu0 %8826
        %8830 = vrot.lane.b32.xlu0 %v8788, 16
        %v8831 = vpop.permute.xlu0 %8830
        %8834 = vrot.lane.b32.xlu0 %v8790, 32
        %v8835 = vpop.permute.xlu0 %8834
        %8838 = vrot.lane.b32.xlu0 %v8792, 48
        %v8839 = vpop.permute.xlu0 %8838
        %8842 = vrot.lane.b32.xlu0 %v8794, 64
        %v8843 = vpop.permute.xlu0 %8842
        %8846 = vrot.lane.b32.xlu0 %v8796, 80
        %v8847 = vpop.permute.xlu0 %8846
        %8850 = vrot.lane.b32.xlu0 %v8798, 96
        %v8851 = vpop.permute.xlu0 %8850
        %8854 = vrot.lane.b32.xlu0 %v8800, 112
        %v8855 = vpop.permute.xlu0 %8854
        %v8857 = vsel %vm582, %v8674, %v8803
        %v8858 = vsel %vm584, %v8857, %v8807
        %v8859 = vsel %vm586, %v8858, %v8811
        %v8860 = vsel %vm588, %v8859, %v8815
        %v8861 = vsel %vm590, %v8860, %v8819
        %v8862 = vsel %vm592, %v8861, %v8823
        %v8863 = vsel %vm594, %v8862, %v8827
        %v8864 = vsel %vm582, %v8786, %v8831
        %v8865 = vsel %vm584, %v8864, %v8835
        %v8866 = vsel %vm586, %v8865, %v8839
        %v8867 = vsel %vm588, %v8866, %v8843
        %v8868 = vsel %vm590, %v8867, %v8847
        %v8869 = vsel %vm592, %v8868, %v8851
        %v8870 = vsel %vm594, %v8869, %v8855
        %v8871 = vld [vmem:[%s1] sm:$0xff]
        %v8872 = vld [vmem:[%s1 + $0x8] sm:$0xff]
        %v8873 = vld [vmem:[%s1 + $0x10] sm:$0xff]
        %v8874 = vld [vmem:[%s1 + $0x18] sm:$0xff]
        %v8875 = vld [vmem:[%s1 + $0x20] sm:$0xff]
        %v8876 = vld [vmem:[%s1 + $0x28] sm:$0xff]
        %v8877 = vld [vmem:[%s1 + $0x30] sm:$0xff]
        %v8878 = vld [vmem:[%s1 + $0x38] sm:$0xff]
        %v8879 = vld [vmem:[%s1 + $0x40] sm:$0xff]
        %v8880 = vld [vmem:[%s1 + $0x48] sm:$0xff]
        %v8881 = vld [vmem:[%s2] sm:$0xff]
        %v8882 = vld [vmem:[%s2 + $0x8] sm:$0xff]
        %v8883 = vld [vmem:[%s2 + $0x10] sm:$0xff]
        %v8884 = vld [vmem:[%s2 + $0x18] sm:$0xff]
        %v8885 = vld [vmem:[%s2 + $0x20] sm:$0xff]
        %8887 = vset.pattern.permute.xlu0 0
        %8888 = vperm.xlu0 %8887, %v8881
        %v8889 = vpop.permute.xlu0 %8888
        %8892 = vset.pattern.permute.xlu0 0
        %8893 = vperm.xlu0 %8892, %v8882
        %v8894 = vpop.permute.xlu0 %8893
        %8897 = vset.pattern.permute.xlu0 0
        %8898 = vperm.xlu0 %8897, %v8883
        %v8899 = vpop.permute.xlu0 %8898
        %8902 = vset.pattern.permute.xlu0 0
        %8903 = vperm.xlu0 %8902, %v8884
        %v8904 = vpop.permute.xlu0 %8903
        %8907 = vset.pattern.permute.xlu0 0
        %8908 = vperm.xlu0 %8907, %v8885
        %v8909 = vpop.permute.xlu0 %8908
        %vm8911 = vcmask 588800
        %v8913 = vsel %vm8911, %v8872, 0
        %v8916 = vsel %vm8911, %v8874, 0
        %v8919 = vsel %vm8911, %v8876, 0
        %v8922 = vsel %vm8911, %v8878, 0
        %v8925 = vsel %vm8911, %v8880, 0
        %8927 = vmatpush.msra.mxu0 %v5776
        %8928 = vmatpush.msra.mxu0 %v5425
        %8929 = vmatpush.msra.mxu0 %v5083
        %8930 = vmatpush.msra.mxu0 %v4741
        %8931 = vmatpush.msra.mxu0 %v4399
        %8932 = vmatpush.msra.mxu0 %v4057
        %8933 = vmatpush.msra.mxu0 %v3706
        %8934 = vmatpush.msra.mxu0 %v3364
        %8935 = vmatpush.msra.mxu0 %v3022
        %8936 = vmatpush.msra.mxu0 %v2680
        %8937 = vmatpush.msra.mxu0 %v2338
        %8938 = vmatpush.msra.mxu0 %v1979
        %8939 = vmatpush.msra.mxu0 %v1637
        %8940 = vmatpush.msra.mxu0 %v1295
        %8941 = vmatpush.msra.mxu0 %v953
        %8942 = vmatpush.msra.mxu0 %v595
        %8943 = vmatmul.f32.gmra.mxu0 %v8871
        %v8944 = vpop.f32.mrf.mxu0
        %v8945 = vadd.f32 %v8889, %v8944
        %8946 = vmatmul.f32.gmra.mxu0 %v8873
        %v8947 = vpop.f32.mrf.mxu0
        %v8948 = vadd.f32 %v8894, %v8947
        %8949 = vmatmul.f32.gmra.mxu0 %v8875
        %v8950 = vpop.f32.mrf.mxu0
        %v8951 = vadd.f32 %v8899, %v8950
        %8952 = vmatmul.f32.gmra.mxu0 %v8877
        %v8953 = vpop.f32.mrf.mxu0
        %v8954 = vadd.f32 %v8904, %v8953
        %8955 = vmatmul.f32.gmra.mxu0 %v8879
        %v8956 = vpop.f32.mrf.mxu0
        %v8957 = vadd.f32 %v8909, %v8956
        %8958 = vdwg.mxu0
        %8959 = vmatpush.msra.mxu0 0.0
        %8960 = vmatpush.msra.mxu0 0.0
        %8961 = vmatpush.msra.mxu0 0.0
        %8962 = vmatpush.msra.mxu0 0.0
        %8963 = vmatpush.msra.mxu0 0.0
        %8964 = vmatpush.msra.mxu0 0.0
        %8965 = vmatpush.msra.mxu0 0.0
        %8966 = vmatpush.msra.mxu0 %v8863
        %8967 = vmatpush.msra.mxu0 %v8521
        %8968 = vmatpush.msra.mxu0 %v8179
        %8969 = vmatpush.msra.mxu0 %v7837
        %8970 = vmatpush.msra.mxu0 %v7495
        %8971 = vmatpush.msra.mxu0 %v7144
        %8972 = vmatpush.msra.mxu0 %v6802
        %8973 = vmatpush.msra.mxu0 %v6460
        %8974 = vmatpush.msra.mxu0 %v6118
        %8975 = vmatmul.f32.gmra.mxu0 %v8913
        %v8976 = vpop.f32.mrf.mxu0
        %v8977 = vadd.f32 %v8945, %v8976
        %8978 = vmatmul.f32.gmra.mxu0 %v8916
        %v8979 = vpop.f32.mrf.mxu0
        %v8980 = vadd.f32 %v8948, %v8979
        %8981 = vmatmul.f32.gmra.mxu0 %v8919
        %v8982 = vpop.f32.mrf.mxu0
        %v8983 = vadd.f32 %v8951, %v8982
        %8984 = vmatmul.f32.gmra.mxu0 %v8922
        %v8985 = vpop.f32.mrf.mxu0
        %v8986 = vadd.f32 %v8954, %v8985
        %8987 = vmatmul.f32.gmra.mxu0 %v8925
        %v8988 = vpop.f32.mrf.mxu0
        %v8989 = vadd.f32 %v8957, %v8988
        %8990 = vdwg.mxu0
        %8991 = vmatpush.msra.mxu0 %v5783
        %8992 = vmatpush.msra.mxu0 %v5432
        %8993 = vmatpush.msra.mxu0 %v5090
        %8994 = vmatpush.msra.mxu0 %v4748
        %8995 = vmatpush.msra.mxu0 %v4406
        %8996 = vmatpush.msra.mxu0 %v4064
        %8997 = vmatpush.msra.mxu0 %v3713
        %8998 = vmatpush.msra.mxu0 %v3371
        %8999 = vmatpush.msra.mxu0 %v3029
        %9000 = vmatpush.msra.mxu0 %v2687
        %9001 = vmatpush.msra.mxu0 %v2345
        %9002 = vmatpush.msra.mxu0 %v1986
        %9003 = vmatpush.msra.mxu0 %v1644
        %9004 = vmatpush.msra.mxu0 %v1302
        %9005 = vmatpush.msra.mxu0 %v960
        %9006 = vmatpush.msra.mxu0 %v602
        %9007 = vmatmul.f32.gmra.mxu0 %v8871
        %v9008 = vpop.f32.mrf.mxu0
        %v9009 = vadd.f32 %v8889, %v9008
        %9010 = vmatmul.f32.gmra.mxu0 %v8873
        %v9011 = vpop.f32.mrf.mxu0
        %v9012 = vadd.f32 %v8894, %v9011
        %9013 = vmatmul.f32.gmra.mxu0 %v8875
        %v9014 = vpop.f32.mrf.mxu0
        %v9015 = vadd.f32 %v8899, %v9014
        %9016 = vmatmul.f32.gmra.mxu0 %v8877
        %v9017 = vpop.f32.mrf.mxu0
        %v9018 = vadd.f32 %v8904, %v9017
        %9019 = vmatmul.f32.gmra.mxu0 %v8879
        %v9020 = vpop.f32.mrf.mxu0
        %v9021 = vadd.f32 %v8909, %v9020
        %9022 = vdwg.mxu0
        %9023 = vmatpush.msra.mxu0 0.0
        %9024 = vmatpush.msra.mxu0 0.0
        %9025 = vmatpush.msra.mxu0 0.0
        %9026 = vmatpush.msra.mxu0 0.0
        %9027 = vmatpush.msra.mxu0 0.0
        %9028 = vmatpush.msra.mxu0 0.0
        %9029 = vmatpush.msra.mxu0 0.0
        %9030 = vmatpush.msra.mxu0 %v8870
        %9031 = vmatpush.msra.mxu0 %v8528
        %9032 = vmatpush.msra.mxu0 %v8186
        %9033 = vmatpush.msra.mxu0 %v7844
        %9034 = vmatpush.msra.mxu0 %v7502
        %9035 = vmatpush.msra.mxu0 %v7151
        %9036 = vmatpush.msra.mxu0 %v6809
        %9037 = vmatpush.msra.mxu0 %v6467
        %9038 = vmatpush.msra.mxu0 %v6125
        %9039 = vmatmul.f32.gmra.mxu0 %v8913
        %v9040 = vpop.f32.mrf.mxu0
        %v9041 = vadd.f32 %v9009, %v9040
        %9042 = vmatmul.f32.gmra.mxu0 %v8916
        %v9043 = vpop.f32.mrf.mxu0
        %v9044 = vadd.f32 %v9012, %v9043
        %9045 = vmatmul.f32.gmra.mxu0 %v8919
        %v9046 = vpop.f32.mrf.mxu0
        %v9047 = vadd.f32 %v9015, %v9046
        %9048 = vmatmul.f32.gmra.mxu0 %v8922
        %v9049 = vpop.f32.mrf.mxu0
        %v9050 = vadd.f32 %v9018, %v9049
        %9051 = vmatmul.f32.gmra.mxu0 %v8925
        %v9052 = vpop.f32.mrf.mxu0
        %v9053 = vadd.f32 %v9021, %v9052
        %9054 = vdwg.mxu0
        %v9055 = vmax.f32 %v8977, 0.0
        %v9056 = vmax.f32 %v9041, 0.0
        %v9057 = vmax.f32 %v8980, 0.0
        %v9058 = vmax.f32 %v9044, 0.0
        %v9059 = vmax.f32 %v8983, 0.0
        %v9060 = vmax.f32 %v9047, 0.0
        %v9061 = vmax.f32 %v8986, 0.0
        %v9062 = vmax.f32 %v9050, 0.0
        %v9063 = vmax.f32 %v8989, 0.0
        %v9064 = vmax.f32 %v9053, 0.0
        %v9065 = vld [vmem:[%s3] sm:$0xff]
        %v9066 = vld [vmem:[%s3 + $0x8] sm:$0xff]
        %v9067 = vld [vmem:[%s3 + $0x10] sm:$0xff]
        %v9068 = vld [vmem:[%s3 + $0x18] sm:$0xff]
        %v9069 = vld [vmem:[%s3 + $0x20] sm:$0xff]
        %9071 = vset.pattern.permute.xlu0 0
        %9072 = vperm.xlu0 %9071, %v9065
        %v9073 = vpop.permute.xlu0 %9072
        %9076 = vset.pattern.permute.xlu0 0
        %9077 = vperm.xlu0 %9076, %v9066
        %v9078 = vpop.permute.xlu0 %9077
        %9081 = vset.pattern.permute.xlu0 0
        %9082 = vperm.xlu0 %9081, %v9067
        %v9083 = vpop.permute.xlu0 %9082
        %9086 = vset.pattern.permute.xlu0 0
        %9087 = vperm.xlu0 %9086, %v9068
        %v9088 = vpop.permute.xlu0 %9087
        %9091 = vset.pattern.permute.xlu0 0
        %9092 = vperm.xlu0 %9091, %v9069
        %v9093 = vpop.permute.xlu0 %9092
        %v9095 = vmul.f32 %v9055, %v9073
        %v9096 = vmul.f32 %v9056, %v9073
        %v9097 = vmul.f32 %v9057, %v9078
        %v9098 = vmul.f32 %v9058, %v9078
        %v9099 = vmul.f32 %v9059, %v9083
        %v9100 = vmul.f32 %v9060, %v9083
        %v9101 = vmul.f32 %v9061, %v9088
        %v9102 = vmul.f32 %v9062, %v9088
        %v9103 = vmul.f32 %v9063, %v9093
        %v9104 = vmul.f32 %v9064, %v9093
        %v9105 = vld [vmem:[%s4] sm:$0xff]
        %v9106 = vld [vmem:[%s4 + $0x8] sm:$0xff]
        %v9107 = vld [vmem:[%s4 + $0x10] sm:$0xff]
        %v9108 = vld [vmem:[%s4 + $0x18] sm:$0xff]
        %v9109 = vld [vmem:[%s4 + $0x20] sm:$0xff]
        %9111 = vset.pattern.permute.xlu0 0
        %9112 = vperm.xlu0 %9111, %v9105
        %v9113 = vpop.permute.xlu0 %9112
        %9116 = vset.pattern.permute.xlu0 0
        %9117 = vperm.xlu0 %9116, %v9106
        %v9118 = vpop.permute.xlu0 %9117
        %9121 = vset.pattern.permute.xlu0 0
        %9122 = vperm.xlu0 %9121, %v9107
        %v9123 = vpop.permute.xlu0 %9122
        %9126 = vset.pattern.permute.xlu0 0
        %9127 = vperm.xlu0 %9126, %v9108
        %v9128 = vpop.permute.xlu0 %9127
        %9131 = vset.pattern.permute.xlu0 0
        %9132 = vperm.xlu0 %9131, %v9109
        %v9133 = vpop.permute.xlu0 %9132
        %v9135 = vadd.f32 %v9095, %v9113
        %v9136 = vadd.f32 %v9096, %v9113
        %v9137 = vadd.f32 %v9097, %v9118
        %v9138 = vadd.f32 %v9098, %v9118
        %v9139 = vadd.f32 %v9099, %v9123
        %v9140 = vadd.f32 %v9100, %v9123
        %v9141 = vadd.f32 %v9101, %v9128
        %v9142 = vadd.f32 %v9102, %v9128
        %v9143 = vadd.f32 %v9103, %v9133
        %v9144 = vadd.f32 %v9104, %v9133
        %v9145 = vmax.f32 %v9135, 0.0
        %v9146 = vmax.f32 %v9136, 0.0
        %v9147 = vmax.f32 %v9137, 0.0
        %v9148 = vmax.f32 %v9138, 0.0
        %v9149 = vmax.f32 %v9139, 0.0
        %v9150 = vmax.f32 %v9140, 0.0
        %v9151 = vmax.f32 %v9141, 0.0
        %v9152 = vmax.f32 %v9142, 0.0
        %v9153 = vmax.f32 %v9143, 0.0
        %v9154 = vmax.f32 %v9144, 0.0
        %9155 = vst [vmem:[%s271] sm:$0xff] %v9145
        %9156 = vst [vmem:[%s271 + $0x8] sm:$0xff] %v9146
        %9157 = vst [vmem:[%s271 + $0x10] sm:$0xff] %v9147
        %9158 = vst [vmem:[%s271 + $0x18] sm:$0xff] %v9148
        %9159 = vst [vmem:[%s271 + $0x20] sm:$0xff] %v9149
        %9160 = vst [vmem:[%s271 + $0x28] sm:$0xff] %v9150
        %9161 = vst [vmem:[%s271 + $0x30] sm:$0xff] %v9151
        %9162 = vst [vmem:[%s271 + $0x38] sm:$0xff] %v9152
        %9163 = vst [vmem:[%s271 + $0x40] sm:$0xff] %v9153
        %9164 = vst [vmem:[%s271 + $0x48] sm:$0xff] %v9154
        %v9165 = vlaneseq
        %v9166 = vshrl.u32 %v9165, 7
        %v9167 = vadd.s32 %v9166, 8
        %v9168 = vadd.s32 %v9166, 16
        %v9169 = vlaneseq
        %v9170 = vand.u32 %v9169, 127
        %vm9171 = vcmp.eq.s32.totalorder %v9166, 0
        %vm9172 = vcmp.eq.s32.totalorder %v9167, 0
        %vm9173 = vcmp.eq.s32.totalorder %v9168, 0
        %vm9174 = vcmp.eq.s32.totalorder %v9166, 17
        %vm9175 = vcmp.eq.s32.totalorder %v9167, 17
        %vm9176 = vcmp.eq.s32.totalorder %v9168, 17
        %vm9177 = vmor %vm9171, %vm9174
        %vm9178 = vmor %vm9172, %vm9175
        %vm9179 = vmor %vm9173, %vm9176
        %vm9180 = vcmp.eq.s32.totalorder %v9170, 0
        %vm9181 = vmor %vm9177, %vm9180
        %vm9182 = vmor %vm9178, %vm9180
        %vm9183 = vmor %vm9179, %vm9180
        %vm9184 = vcmp.eq.s32.totalorder %v9170, 17
        %vm9185 = vmor %vm9181, %vm9184
        %vm9186 = vmor %vm9182, %vm9184
        %vm9187 = vmor %vm9183, %vm9184
        %9188 = vrot.lane.b32.xlu0 %v1999, 127
        %v9189 = vpop.permute.xlu0 %9188
        %9190 = vrot.lane.b32.xlu0 %v2004, 127
        %v9191 = vpop.permute.xlu0 %9190
        %9192 = vrot.lane.b32.xlu0 %v2009, 127
        %v9193 = vpop.permute.xlu0 %9192
        %9194 = vrot.lane.b32.xlu0 %v2014, 127
        %v9195 = vpop.permute.xlu0 %9194
        %9196 = vrot.lane.b32.xlu0 %v2019, 127
        %v9197 = vpop.permute.xlu0 %9196
        %9198 = vrot.lane.b32.xlu0 %v2024, 127
        %v9199 = vpop.permute.xlu0 %9198
        %9200 = vrot.lane.b32.xlu0 %v2029, 127
        %v9201 = vpop.permute.xlu0 %9200
        %9202 = vrot.lane.b32.xlu0 %v2034, 127
        %v9203 = vpop.permute.xlu0 %9202
        %v9212 = vsel %vm9185, -inf, %v2347
        %v9213 = vsel %vm9186, -inf, %v2349
        %v9214 = vsel %vm9187, -inf, %v9189
        %v9215 = vsel %vm9185, -inf, %v2351
        %v9216 = vsel %vm9186, -inf, %v2353
        %v9217 = vsel %vm9187, -inf, %v9191
        %v9218 = vsel %vm9185, -inf, %v2355
        %v9219 = vsel %vm9186, -inf, %v2357
        %v9220 = vsel %vm9187, -inf, %v9193
        %v9221 = vsel %vm9185, -inf, %v2359
        %v9222 = vsel %vm9186, -inf, %v2361
        %v9223 = vsel %vm9187, -inf, %v9195
        %v9224 = vsel %vm9185, -inf, %v2363
        %v9225 = vsel %vm9186, -inf, %v2365
        %v9226 = vsel %vm9187, -inf, %v9197
        %v9227 = vsel %vm9185, -inf, %v2367
        %v9228 = vsel %vm9186, -inf, %v2369
        %v9229 = vsel %vm9187, -inf, %v9199
        %v9230 = vsel %vm9185, -inf, %v2371
        %v9231 = vsel %vm9186, -inf, %v2373
        %v9232 = vsel %vm9187, -inf, %v9201
        %v9233 = vsel %vm9185, -inf, %v2375
        %v9234 = vsel %vm9186, -inf, %v2377
        %v9235 = vsel %vm9187, -inf, %v9203
        %9252 = vrot.lane.b32.xlu0 %v9212, 127
        %v9253 = vpop.permute.xlu0 %9252
        %9254 = vrot.lane.b32.xlu0 %v9213, 127
        %v9255 = vpop.permute.xlu0 %9254
        %9256 = vrot.lane.b32.xlu0 %v9215, 127
        %v9257 = vpop.permute.xlu0 %9256
        %9258 = vrot.lane.b32.xlu0 %v9216, 127
        %v9259 = vpop.permute.xlu0 %9258
        %9260 = vrot.lane.b32.xlu0 %v9218, 127
        %v9261 = vpop.permute.xlu0 %9260
        %9262 = vrot.lane.b32.xlu0 %v9219, 127
        %v9263 = vpop.permute.xlu0 %9262
        %9264 = vrot.lane.b32.xlu0 %v9221, 127
        %v9265 = vpop.permute.xlu0 %9264
        %9266 = vrot.lane.b32.xlu0 %v9222, 127
        %v9267 = vpop.permute.xlu0 %9266
        %9268 = vrot.lane.b32.xlu0 %v9224, 127
        %v9269 = vpop.permute.xlu0 %9268
        %9270 = vrot.lane.b32.xlu0 %v9225, 127
        %v9271 = vpop.permute.xlu0 %9270
        %9272 = vrot.lane.b32.xlu0 %v9227, 127
        %v9273 = vpop.permute.xlu0 %9272
        %9274 = vrot.lane.b32.xlu0 %v9228, 127
        %v9275 = vpop.permute.xlu0 %9274
        %9276 = vrot.lane.b32.xlu0 %v9230, 127
        %v9277 = vpop.permute.xlu0 %9276
        %9278 = vrot.lane.b32.xlu0 %v9231, 127
        %v9279 = vpop.permute.xlu0 %9278
        %9280 = vrot.lane.b32.xlu0 %v9233, 127
        %v9281 = vpop.permute.xlu0 %9280
        %9282 = vrot.lane.b32.xlu0 %v9234, 127
        %v9283 = vpop.permute.xlu0 %9282
        %v9300 = vmax.f32 %v9212, %v9253
        %v9301 = vmax.f32 %v9213, %v9255
        %v9302 = vmax.f32 %v9215, %v9257
        %v9303 = vmax.f32 %v9216, %v9259
        %v9304 = vmax.f32 %v9218, %v9261
        %v9305 = vmax.f32 %v9219, %v9263
        %v9306 = vmax.f32 %v9221, %v9265
        %v9307 = vmax.f32 %v9222, %v9267
        %v9308 = vmax.f32 %v9224, %v9269
        %v9309 = vmax.f32 %v9225, %v9271
        %v9310 = vmax.f32 %v9227, %v9273
        %v9311 = vmax.f32 %v9228, %v9275
        %v9312 = vmax.f32 %v9230, %v9277
        %v9313 = vmax.f32 %v9231, %v9279
        %v9314 = vmax.f32 %v9233, %v9281
        %v9315 = vmax.f32 %v9234, %v9283
        %9316 = vrot.lane.b32.xlu0 %v9212, 126
        %v9317 = vpop.permute.xlu0 %9316
        %9318 = vrot.lane.b32.xlu0 %v9213, 126
        %v9319 = vpop.permute.xlu0 %9318
        %9320 = vrot.lane.b32.xlu0 %v9215, 126
        %v9321 = vpop.permute.xlu0 %9320
        %9322 = vrot.lane.b32.xlu0 %v9216, 126
        %v9323 = vpop.permute.xlu0 %9322
        %9324 = vrot.lane.b32.xlu0 %v9218, 126
        %v9325 = vpop.permute.xlu0 %9324
        %9326 = vrot.lane.b32.xlu0 %v9219, 126
        %v9327 = vpop.permute.xlu0 %9326
        %9328 = vrot.lane.b32.xlu0 %v9221, 126
        %v9329 = vpop.permute.xlu0 %9328
        %9330 = vrot.lane.b32.xlu0 %v9222, 126
        %v9331 = vpop.permute.xlu0 %9330
        %9332 = vrot.lane.b32.xlu0 %v9224, 126
        %v9333 = vpop.permute.xlu0 %9332
        %9334 = vrot.lane.b32.xlu0 %v9225, 126
        %v9335 = vpop.permute.xlu0 %9334
        %9336 = vrot.lane.b32.xlu0 %v9227, 126
        %v9337 = vpop.permute.xlu0 %9336
        %9338 = vrot.lane.b32.xlu0 %v9228, 126
        %v9339 = vpop.permute.xlu0 %9338
        %9340 = vrot.lane.b32.xlu0 %v9230, 126
        %v9341 = vpop.permute.xlu0 %9340
        %9342 = vrot.lane.b32.xlu0 %v9231, 126
        %v9343 = vpop.permute.xlu0 %9342
        %9344 = vrot.lane.b32.xlu0 %v9233, 126
        %v9345 = vpop.permute.xlu0 %9344
        %9346 = vrot.lane.b32.xlu0 %v9234, 126
        %v9347 = vpop.permute.xlu0 %9346
        %v9364 = vmax.f32 %v9300, %v9317
        %v9365 = vmax.f32 %v9301, %v9319
        %v9366 = vmax.f32 %v9302, %v9321
        %v9367 = vmax.f32 %v9303, %v9323
        %v9368 = vmax.f32 %v9304, %v9325
        %v9369 = vmax.f32 %v9305, %v9327
        %v9370 = vmax.f32 %v9306, %v9329
        %v9371 = vmax.f32 %v9307, %v9331
        %v9372 = vmax.f32 %v9308, %v9333
        %v9373 = vmax.f32 %v9309, %v9335
        %v9374 = vmax.f32 %v9310, %v9337
        %v9375 = vmax.f32 %v9311, %v9339
        %v9376 = vmax.f32 %v9312, %v9341
        %v9377 = vmax.f32 %v9313, %v9343
        %v9378 = vmax.f32 %v9314, %v9345
        %v9379 = vmax.f32 %v9315, %v9347
        %v9388 = vrot.slane %v9212, 1
        %v9389 = vrot.slane %v9213, 1
        %v9390 = vsel %vm1995, %v9388, %v9389
        %v9391 = vrot.slane %v9214, 1
        %v9392 = vsel %vm1995, %v9389, %v9391
        %v9393 = vrot.slane %v9215, 1
        %v9394 = vrot.slane %v9216, 1
        %v9395 = vsel %vm1995, %v9393, %v9394
        %v9396 = vrot.slane %v9217, 1
        %v9397 = vsel %vm1995, %v9394, %v9396
        %v9398 = vrot.slane %v9218, 1
        %v9399 = vrot.slane %v9219, 1
        %v9400 = vsel %vm1995, %v9398, %v9399
        %v9401 = vrot.slane %v9220, 1
        %v9402 = vsel %vm1995, %v9399, %v9401
        %v9403 = vrot.slane %v9221, 1
        %v9404 = vrot.slane %v9222, 1
        %v9405 = vsel %vm1995, %v9403, %v9404
        %v9406 = vrot.slane %v9223, 1
        %v9407 = vsel %vm1995, %v9404, %v9406
        %v9408 = vrot.slane %v9224, 1
        %v9409 = vrot.slane %v9225, 1
        %v9410 = vsel %vm1995, %v9408, %v9409
        %v9411 = vrot.slane %v9226, 1
        %v9412 = vsel %vm1995, %v9409, %v9411
        %v9413 = vrot.slane %v9227, 1
        %v9414 = vrot.slane %v9228, 1
        %v9415 = vsel %vm1995, %v9413, %v9414
        %v9416 = vrot.slane %v9229, 1
        %v9417 = vsel %vm1995, %v9414, %v9416
        %v9418 = vrot.slane %v9230, 1
        %v9419 = vrot.slane %v9231, 1
        %v9420 = vsel %vm1995, %v9418, %v9419
        %v9421 = vrot.slane %v9232, 1
        %v9422 = vsel %vm1995, %v9419, %v9421
        %v9423 = vrot.slane %v9233, 1
        %v9424 = vrot.slane %v9234, 1
        %v9425 = vsel %vm1995, %v9423, %v9424
        %v9426 = vrot.slane %v9235, 1
        %v9427 = vsel %vm1995, %v9424, %v9426
        %v9444 = vmax.f32 %v9364, %v9390
        %v9445 = vmax.f32 %v9365, %v9392
        %v9446 = vmax.f32 %v9366, %v9395
        %v9447 = vmax.f32 %v9367, %v9397
        %v9448 = vmax.f32 %v9368, %v9400
        %v9449 = vmax.f32 %v9369, %v9402
        %v9450 = vmax.f32 %v9370, %v9405
        %v9451 = vmax.f32 %v9371, %v9407
        %v9452 = vmax.f32 %v9372, %v9410
        %v9453 = vmax.f32 %v9373, %v9412
        %v9454 = vmax.f32 %v9374, %v9415
        %v9455 = vmax.f32 %v9375, %v9417
        %v9456 = vmax.f32 %v9376, %v9420
        %v9457 = vmax.f32 %v9377, %v9422
        %v9458 = vmax.f32 %v9378, %v9425
        %v9459 = vmax.f32 %v9379, %v9427
        %9460 = vrot.lane.b32.xlu0 %v9390, 127
        %v9461 = vpop.permute.xlu0 %9460
        %9462 = vrot.lane.b32.xlu0 %v9392, 127
        %v9463 = vpop.permute.xlu0 %9462
        %9464 = vrot.lane.b32.xlu0 %v9395, 127
        %v9465 = vpop.permute.xlu0 %9464
        %9466 = vrot.lane.b32.xlu0 %v9397, 127
        %v9467 = vpop.permute.xlu0 %9466
        %9468 = vrot.lane.b32.xlu0 %v9400, 127
        %v9469 = vpop.permute.xlu0 %9468
        %9470 = vrot.lane.b32.xlu0 %v9402, 127
        %v9471 = vpop.permute.xlu0 %9470
        %9472 = vrot.lane.b32.xlu0 %v9405, 127
        %v9473 = vpop.permute.xlu0 %9472
        %9474 = vrot.lane.b32.xlu0 %v9407, 127
        %v9475 = vpop.permute.xlu0 %9474
        %9476 = vrot.lane.b32.xlu0 %v9410, 127
        %v9477 = vpop.permute.xlu0 %9476
        %9478 = vrot.lane.b32.xlu0 %v9412, 127
        %v9479 = vpop.permute.xlu0 %9478
        %9480 = vrot.lane.b32.xlu0 %v9415, 127
        %v9481 = vpop.permute.xlu0 %9480
        %9482 = vrot.lane.b32.xlu0 %v9417, 127
        %v9483 = vpop.permute.xlu0 %9482
        %9484 = vrot.lane.b32.xlu0 %v9420, 127
        %v9485 = vpop.permute.xlu0 %9484
        %9486 = vrot.lane.b32.xlu0 %v9422, 127
        %v9487 = vpop.permute.xlu0 %9486
        %9488 = vrot.lane.b32.xlu0 %v9425, 127
        %v9489 = vpop.permute.xlu0 %9488
        %9490 = vrot.lane.b32.xlu0 %v9427, 127
        %v9491 = vpop.permute.xlu0 %9490
        %v9508 = vmax.f32 %v9444, %v9461
        %v9509 = vmax.f32 %v9445, %v9463
        %v9510 = vmax.f32 %v9446, %v9465
        %v9511 = vmax.f32 %v9447, %v9467
        %v9512 = vmax.f32 %v9448, %v9469
        %v9513 = vmax.f32 %v9449, %v9471
        %v9514 = vmax.f32 %v9450, %v9473
        %v9515 = vmax.f32 %v9451, %v9475
        %v9516 = vmax.f32 %v9452, %v9477
        %v9517 = vmax.f32 %v9453, %v9479
        %v9518 = vmax.f32 %v9454, %v9481
        %v9519 = vmax.f32 %v9455, %v9483
        %v9520 = vmax.f32 %v9456, %v9485
        %v9521 = vmax.f32 %v9457, %v9487
        %v9522 = vmax.f32 %v9458, %v9489
        %v9523 = vmax.f32 %v9459, %v9491
        %9524 = vrot.lane.b32.xlu0 %v9390, 126
        %v9525 = vpop.permute.xlu0 %9524
        %9526 = vrot.lane.b32.xlu0 %v9392, 126
        %v9527 = vpop.permute.xlu0 %9526
        %9528 = vrot.lane.b32.xlu0 %v9395, 126
        %v9529 = vpop.permute.xlu0 %9528
        %9530 = vrot.lane.b32.xlu0 %v9397, 126
        %v9531 = vpop.permute.xlu0 %9530
        %9532 = vrot.lane.b32.xlu0 %v9400, 126
        %v9533 = vpop.permute.xlu0 %9532
        %9534 = vrot.lane.b32.xlu0 %v9402, 126
        %v9535 = vpop.permute.xlu0 %9534
        %9536 = vrot.lane.b32.xlu0 %v9405, 126
        %v9537 = vpop.permute.xlu0 %9536
        %9538 = vrot.lane.b32.xlu0 %v9407, 126
        %v9539 = vpop.permute.xlu0 %9538
        %9540 = vrot.lane.b32.xlu0 %v9410, 126
        %v9541 = vpop.permute.xlu0 %9540
        %9542 = vrot.lane.b32.xlu0 %v9412, 126
        %v9543 = vpop.permute.xlu0 %9542
        %9544 = vrot.lane.b32.xlu0 %v9415, 126
        %v9545 = vpop.permute.xlu0 %9544
        %9546 = vrot.lane.b32.xlu0 %v9417, 126
        %v9547 = vpop.permute.xlu0 %9546
        %9548 = vrot.lane.b32.xlu0 %v9420, 126
        %v9549 = vpop.permute.xlu0 %9548
        %9550 = vrot.lane.b32.xlu0 %v9422, 126
        %v9551 = vpop.permute.xlu0 %9550
        %9552 = vrot.lane.b32.xlu0 %v9425, 126
        %v9553 = vpop.permute.xlu0 %9552
        %9554 = vrot.lane.b32.xlu0 %v9427, 126
        %v9555 = vpop.permute.xlu0 %9554
        %v9572 = vmax.f32 %v9508, %v9525
        %v9573 = vmax.f32 %v9509, %v9527
        %v9574 = vmax.f32 %v9510, %v9529
        %v9575 = vmax.f32 %v9511, %v9531
        %v9576 = vmax.f32 %v9512, %v9533
        %v9577 = vmax.f32 %v9513, %v9535
        %v9578 = vmax.f32 %v9514, %v9537
        %v9579 = vmax.f32 %v9515, %v9539
        %v9580 = vmax.f32 %v9516, %v9541
        %v9581 = vmax.f32 %v9517, %v9543
        %v9582 = vmax.f32 %v9518, %v9545
        %v9583 = vmax.f32 %v9519, %v9547
        %v9584 = vmax.f32 %v9520, %v9549
        %v9585 = vmax.f32 %v9521, %v9551
        %v9586 = vmax.f32 %v9522, %v9553
        %v9587 = vmax.f32 %v9523, %v9555
        %v9588 = vrot.slane %v9212, 2
        %v9589 = vrot.slane %v9213, 2
        %v9590 = vsel %vm3714, %v9588, %v9589
        %v9591 = vrot.slane %v9214, 2
        %v9592 = vsel %vm3714, %v9589, %v9591
        %v9593 = vrot.slane %v9215, 2
        %v9594 = vrot.slane %v9216, 2
        %v9595 = vsel %vm3714, %v9593, %v9594
        %v9596 = vrot.slane %v9217, 2
        %v9597 = vsel %vm3714, %v9594, %v9596
        %v9598 = vrot.slane %v9218, 2
        %v9599 = vrot.slane %v9219, 2
        %v9600 = vsel %vm3714, %v9598, %v9599
        %v9601 = vrot.slane %v9220, 2
        %v9602 = vsel %vm3714, %v9599, %v9601
        %v9603 = vrot.slane %v9221, 2
        %v9604 = vrot.slane %v9222, 2
        %v9605 = vsel %vm3714, %v9603, %v9604
        %v9606 = vrot.slane %v9223, 2
        %v9607 = vsel %vm3714, %v9604, %v9606
        %v9608 = vrot.slane %v9224, 2
        %v9609 = vrot.slane %v9225, 2
        %v9610 = vsel %vm3714, %v9608, %v9609
        %v9611 = vrot.slane %v9226, 2
        %v9612 = vsel %vm3714, %v9609, %v9611
        %v9613 = vrot.slane %v9227, 2
        %v9614 = vrot.slane %v9228, 2
        %v9615 = vsel %vm3714, %v9613, %v9614
        %v9616 = vrot.slane %v9229, 2
        %v9617 = vsel %vm3714, %v9614, %v9616
        %v9618 = vrot.slane %v9230, 2
        %v9619 = vrot.slane %v9231, 2
        %v9620 = vsel %vm3714, %v9618, %v9619
        %v9621 = vrot.slane %v9232, 2
        %v9622 = vsel %vm3714, %v9619, %v9621
        %v9623 = vrot.slane %v9233, 2
        %v9624 = vrot.slane %v9234, 2
        %v9625 = vsel %vm3714, %v9623, %v9624
        %v9626 = vrot.slane %v9235, 2
        %v9627 = vsel %vm3714, %v9624, %v9626
        %v9644 = vmax.f32 %v9572, %v9590
        %v9645 = vmax.f32 %v9573, %v9592
        %v9646 = vmax.f32 %v9574, %v9595
        %v9647 = vmax.f32 %v9575, %v9597
        %v9648 = vmax.f32 %v9576, %v9600
        %v9649 = vmax.f32 %v9577, %v9602
        %v9650 = vmax.f32 %v9578, %v9605
        %v9651 = vmax.f32 %v9579, %v9607
        %v9652 = vmax.f32 %v9580, %v9610
        %v9653 = vmax.f32 %v9581, %v9612
        %v9654 = vmax.f32 %v9582, %v9615
        %v9655 = vmax.f32 %v9583, %v9617
        %v9656 = vmax.f32 %v9584, %v9620
        %v9657 = vmax.f32 %v9585, %v9622
        %v9658 = vmax.f32 %v9586, %v9625
        %v9659 = vmax.f32 %v9587, %v9627
        %9660 = vrot.lane.b32.xlu0 %v9590, 127
        %v9661 = vpop.permute.xlu0 %9660
        %9662 = vrot.lane.b32.xlu0 %v9592, 127
        %v9663 = vpop.permute.xlu0 %9662
        %9664 = vrot.lane.b32.xlu0 %v9595, 127
        %v9665 = vpop.permute.xlu0 %9664
        %9666 = vrot.lane.b32.xlu0 %v9597, 127
        %v9667 = vpop.permute.xlu0 %9666
        %9668 = vrot.lane.b32.xlu0 %v9600, 127
        %v9669 = vpop.permute.xlu0 %9668
        %9670 = vrot.lane.b32.xlu0 %v9602, 127
        %v9671 = vpop.permute.xlu0 %9670
        %9672 = vrot.lane.b32.xlu0 %v9605, 127
        %v9673 = vpop.permute.xlu0 %9672
        %9674 = vrot.lane.b32.xlu0 %v9607, 127
        %v9675 = vpop.permute.xlu0 %9674
        %9676 = vrot.lane.b32.xlu0 %v9610, 127
        %v9677 = vpop.permute.xlu0 %9676
        %9678 = vrot.lane.b32.xlu0 %v9612, 127
        %v9679 = vpop.permute.xlu0 %9678
        %9680 = vrot.lane.b32.xlu0 %v9615, 127
        %v9681 = vpop.permute.xlu0 %9680
        %9682 = vrot.lane.b32.xlu0 %v9617, 127
        %v9683 = vpop.permute.xlu0 %9682
        %9684 = vrot.lane.b32.xlu0 %v9620, 127
        %v9685 = vpop.permute.xlu0 %9684
        %9686 = vrot.lane.b32.xlu0 %v9622, 127
        %v9687 = vpop.permute.xlu0 %9686
        %9688 = vrot.lane.b32.xlu0 %v9625, 127
        %v9689 = vpop.permute.xlu0 %9688
        %9690 = vrot.lane.b32.xlu0 %v9627, 127
        %v9691 = vpop.permute.xlu0 %9690
        %v9708 = vmax.f32 %v9644, %v9661
        %v9709 = vmax.f32 %v9645, %v9663
        %v9710 = vmax.f32 %v9646, %v9665
        %v9711 = vmax.f32 %v9647, %v9667
        %v9712 = vmax.f32 %v9648, %v9669
        %v9713 = vmax.f32 %v9649, %v9671
        %v9714 = vmax.f32 %v9650, %v9673
        %v9715 = vmax.f32 %v9651, %v9675
        %v9716 = vmax.f32 %v9652, %v9677
        %v9717 = vmax.f32 %v9653, %v9679
        %v9718 = vmax.f32 %v9654, %v9681
        %v9719 = vmax.f32 %v9655, %v9683
        %v9720 = vmax.f32 %v9656, %v9685
        %v9721 = vmax.f32 %v9657, %v9687
        %v9722 = vmax.f32 %v9658, %v9689
        %v9723 = vmax.f32 %v9659, %v9691
        %9724 = vrot.lane.b32.xlu0 %v9590, 126
        %v9725 = vpop.permute.xlu0 %9724
        %9726 = vrot.lane.b32.xlu0 %v9592, 126
        %v9727 = vpop.permute.xlu0 %9726
        %9728 = vrot.lane.b32.xlu0 %v9595, 126
        %v9729 = vpop.permute.xlu0 %9728
        %9730 = vrot.lane.b32.xlu0 %v9597, 126
        %v9731 = vpop.permute.xlu0 %9730
        %9732 = vrot.lane.b32.xlu0 %v9600, 126
        %v9733 = vpop.permute.xlu0 %9732
        %9734 = vrot.lane.b32.xlu0 %v9602, 126
        %v9735 = vpop.permute.xlu0 %9734
        %9736 = vrot.lane.b32.xlu0 %v9605, 126
        %v9737 = vpop.permute.xlu0 %9736
        %9738 = vrot.lane.b32.xlu0 %v9607, 126
        %v9739 = vpop.permute.xlu0 %9738
        %9740 = vrot.lane.b32.xlu0 %v9610, 126
        %v9741 = vpop.permute.xlu0 %9740
        %9742 = vrot.lane.b32.xlu0 %v9612, 126
        %v9743 = vpop.permute.xlu0 %9742
        %9744 = vrot.lane.b32.xlu0 %v9615, 126
        %v9745 = vpop.permute.xlu0 %9744
        %9746 = vrot.lane.b32.xlu0 %v9617, 126
        %v9747 = vpop.permute.xlu0 %9746
        %9748 = vrot.lane.b32.xlu0 %v9620, 126
        %v9749 = vpop.permute.xlu0 %9748
        %9750 = vrot.lane.b32.xlu0 %v9622, 126
        %v9751 = vpop.permute.xlu0 %9750
        %9752 = vrot.lane.b32.xlu0 %v9625, 126
        %v9753 = vpop.permute.xlu0 %9752
        %9754 = vrot.lane.b32.xlu0 %v9627, 126
        %v9755 = vpop.permute.xlu0 %9754
        %v9772 = vmax.f32 %v9708, %v9725
        %v9773 = vmax.f32 %v9709, %v9727
        %v9774 = vmax.f32 %v9710, %v9729
        %v9775 = vmax.f32 %v9711, %v9731
        %v9776 = vmax.f32 %v9712, %v9733
        %v9777 = vmax.f32 %v9713, %v9735
        %v9778 = vmax.f32 %v9714, %v9737
        %v9779 = vmax.f32 %v9715, %v9739
        %v9780 = vmax.f32 %v9716, %v9741
        %v9781 = vmax.f32 %v9717, %v9743
        %v9782 = vmax.f32 %v9718, %v9745
        %v9783 = vmax.f32 %v9719, %v9747
        %v9784 = vmax.f32 %v9720, %v9749
        %v9785 = vmax.f32 %v9721, %v9751
        %v9786 = vmax.f32 %v9722, %v9753
        %v9787 = vmax.f32 %v9723, %v9755
        %v9788 = vrot.slane %v9776, 4
        %v9789 = vsel %vm302, %v9788, %v9772
        %v9790 = vrot.slane %v9772, 4
        %v9791 = vsel %vm302, %v9776, %v9790
        %v9793 = vunpack.c.l.s4 1983009808
        %v9794 = vunpack.c.0.s8 %v9793
        %v9795 = vperm.slane %v9789, %v9794
        %v9797 = vunpack.c.l.s4 1983009808
        %v9798 = vunpack.c.0.s8 %v9797
        %v9799 = vperm.slane %v9791, %v9798
        %v9800 = vrot.slane %v9778, 4
        %v9801 = vsel %vm302, %v9800, %v9774
        %v9802 = vrot.slane %v9774, 4
        %v9803 = vsel %vm302, %v9778, %v9802
        %v9805 = vunpack.c.l.s4 1983009808
        %v9806 = vunpack.c.0.s8 %v9805
        %v9807 = vperm.slane %v9801, %v9806
        %v9809 = vunpack.c.l.s4 1983009808
        %v9810 = vunpack.c.0.s8 %v9809
        %v9811 = vperm.slane %v9803, %v9810
        %v9812 = vrot.slane %v9784, 4
        %v9813 = vsel %vm302, %v9812, %v9780
        %v9814 = vrot.slane %v9780, 4
        %v9815 = vsel %vm302, %v9784, %v9814
        %v9817 = vunpack.c.l.s4 1983009808
        %v9818 = vunpack.c.0.s8 %v9817
        %v9819 = vperm.slane %v9813, %v9818
        %v9821 = vunpack.c.l.s4 1983009808
        %v9822 = vunpack.c.0.s8 %v9821
        %v9823 = vperm.slane %v9815, %v9822
        %v9824 = vrot.slane %v9786, 4
        %v9825 = vsel %vm302, %v9824, %v9782
        %v9826 = vrot.slane %v9782, 4
        %v9827 = vsel %vm302, %v9786, %v9826
        %v9829 = vunpack.c.l.s4 1983009808
        %v9830 = vunpack.c.0.s8 %v9829
        %v9831 = vperm.slane %v9825, %v9830
        %v9833 = vunpack.c.l.s4 1983009808
        %v9834 = vunpack.c.0.s8 %v9833
        %v9835 = vperm.slane %v9827, %v9834
        %v9836 = vrot.slane %v9807, 4
        %v9837 = vsel %vm302, %v9836, %v9795
        %v9838 = vrot.slane %v9795, 4
        %v9839 = vsel %vm302, %v9807, %v9838
        %v9841 = vunpack.c.l.s4 1934713408
        %v9842 = vunpack.c.0.s8 %v9841
        %v9843 = vperm.slane %v9837, %v9842
        %v9845 = vunpack.c.l.s4 1934713408
        %v9846 = vunpack.c.0.s8 %v9845
        %v9847 = vperm.slane %v9839, %v9846
        %v9848 = vrot.slane %v9811, 4
        %v9849 = vsel %vm302, %v9848, %v9799
        %v9850 = vrot.slane %v9799, 4
        %v9851 = vsel %vm302, %v9811, %v9850
        %v9853 = vunpack.c.l.s4 1934713408
        %v9854 = vunpack.c.0.s8 %v9853
        %v9855 = vperm.slane %v9849, %v9854
        %v9857 = vunpack.c.l.s4 1934713408
        %v9858 = vunpack.c.0.s8 %v9857
        %v9859 = vperm.slane %v9851, %v9858
        %v9860 = vrot.slane %v9831, 4
        %v9861 = vsel %vm302, %v9860, %v9819
        %v9862 = vrot.slane %v9819, 4
        %v9863 = vsel %vm302, %v9831, %v9862
        %v9865 = vunpack.c.l.s4 1934713408
        %v9866 = vunpack.c.0.s8 %v9865
        %v9867 = vperm.slane %v9861, %v9866
        %v9869 = vunpack.c.l.s4 1934713408
        %v9870 = vunpack.c.0.s8 %v9869
        %v9871 = vperm.slane %v9863, %v9870
        %v9872 = vrot.slane %v9835, 4
        %v9873 = vsel %vm302, %v9872, %v9823
        %v9874 = vrot.slane %v9823, 4
        %v9875 = vsel %vm302, %v9835, %v9874
        %v9877 = vunpack.c.l.s4 1934713408
        %v9878 = vunpack.c.0.s8 %v9877
        %v9879 = vperm.slane %v9873, %v9878
        %v9881 = vunpack.c.l.s4 1934713408
        %v9882 = vunpack.c.0.s8 %v9881
        %v9883 = vperm.slane %v9875, %v9882
        %v9884 = vrot.slane %v9867, 4
        %v9885 = vsel %vm302, %v9884, %v9843
        %v9886 = vrot.slane %v9843, 4
        %v9887 = vsel %vm302, %v9867, %v9886
        %v9888 = vrot.slane %v9871, 4
        %v9889 = vsel %vm302, %v9888, %v9847
        %v9890 = vrot.slane %v9847, 4
        %v9891 = vsel %vm302, %v9871, %v9890
        %v9892 = vrot.slane %v9879, 4
        %v9893 = vsel %vm302, %v9892, %v9855
        %v9894 = vrot.slane %v9855, 4
        %v9895 = vsel %vm302, %v9879, %v9894
        %v9896 = vrot.slane %v9883, 4
        %v9897 = vsel %vm302, %v9896, %v9859
        %v9898 = vrot.slane %v9859, 4
        %v9899 = vsel %vm302, %v9883, %v9898
        %v9900 = vrot.slane %v9777, 4
        %v9901 = vsel %vm302, %v9900, %v9773
        %v9902 = vrot.slane %v9773, 4
        %v9903 = vsel %vm302, %v9777, %v9902
        %v9905 = vunpack.c.l.s4 1983009808
        %v9906 = vunpack.c.0.s8 %v9905
        %v9907 = vperm.slane %v9901, %v9906
        %v9909 = vunpack.c.l.s4 1983009808
        %v9910 = vunpack.c.0.s8 %v9909
        %v9911 = vperm.slane %v9903, %v9910
        %v9912 = vrot.slane %v9779, 4
        %v9913 = vsel %vm302, %v9912, %v9775
        %v9914 = vrot.slane %v9775, 4
        %v9915 = vsel %vm302, %v9779, %v9914
        %v9917 = vunpack.c.l.s4 1983009808
        %v9918 = vunpack.c.0.s8 %v9917
        %v9919 = vperm.slane %v9913, %v9918
        %v9921 = vunpack.c.l.s4 1983009808
        %v9922 = vunpack.c.0.s8 %v9921
        %v9923 = vperm.slane %v9915, %v9922
        %v9924 = vrot.slane %v9785, 4
        %v9925 = vsel %vm302, %v9924, %v9781
        %v9926 = vrot.slane %v9781, 4
        %v9927 = vsel %vm302, %v9785, %v9926
        %v9929 = vunpack.c.l.s4 1983009808
        %v9930 = vunpack.c.0.s8 %v9929
        %v9931 = vperm.slane %v9925, %v9930
        %v9933 = vunpack.c.l.s4 1983009808
        %v9934 = vunpack.c.0.s8 %v9933
        %v9935 = vperm.slane %v9927, %v9934
        %v9936 = vrot.slane %v9787, 4
        %v9937 = vsel %vm302, %v9936, %v9783
        %v9938 = vrot.slane %v9783, 4
        %v9939 = vsel %vm302, %v9787, %v9938
        %v9941 = vunpack.c.l.s4 1983009808
        %v9942 = vunpack.c.0.s8 %v9941
        %v9943 = vperm.slane %v9937, %v9942
        %v9945 = vunpack.c.l.s4 1983009808
        %v9946 = vunpack.c.0.s8 %v9945
        %v9947 = vperm.slane %v9939, %v9946
        %v9948 = vrot.slane %v9919, 4
        %v9949 = vsel %vm302, %v9948, %v9907
        %v9950 = vrot.slane %v9907, 4
        %v9951 = vsel %vm302, %v9919, %v9950
        %v9953 = vunpack.c.l.s4 1934713408
        %v9954 = vunpack.c.0.s8 %v9953
        %v9955 = vperm.slane %v9949, %v9954
        %v9957 = vunpack.c.l.s4 1934713408
        %v9958 = vunpack.c.0.s8 %v9957
        %v9959 = vperm.slane %v9951, %v9958
        %v9960 = vrot.slane %v9923, 4
        %v9961 = vsel %vm302, %v9960, %v9911
        %v9962 = vrot.slane %v9911, 4
        %v9963 = vsel %vm302, %v9923, %v9962
        %v9965 = vunpack.c.l.s4 1934713408
        %v9966 = vunpack.c.0.s8 %v9965
        %v9967 = vperm.slane %v9961, %v9966
        %v9969 = vunpack.c.l.s4 1934713408
        %v9970 = vunpack.c.0.s8 %v9969
        %v9971 = vperm.slane %v9963, %v9970
        %v9972 = vrot.slane %v9943, 4
        %v9973 = vsel %vm302, %v9972, %v9931
        %v9974 = vrot.slane %v9931, 4
        %v9975 = vsel %vm302, %v9943, %v9974
        %v9977 = vunpack.c.l.s4 1934713408
        %v9978 = vunpack.c.0.s8 %v9977
        %v9979 = vperm.slane %v9973, %v9978
        %v9981 = vunpack.c.l.s4 1934713408
        %v9982 = vunpack.c.0.s8 %v9981
        %v9983 = vperm.slane %v9975, %v9982
        %v9984 = vrot.slane %v9947, 4
        %v9985 = vsel %vm302, %v9984, %v9935
        %v9986 = vrot.slane %v9935, 4
        %v9987 = vsel %vm302, %v9947, %v9986
        %v9989 = vunpack.c.l.s4 1934713408
        %v9990 = vunpack.c.0.s8 %v9989
        %v9991 = vperm.slane %v9985, %v9990
        %v9993 = vunpack.c.l.s4 1934713408
        %v9994 = vunpack.c.0.s8 %v9993
        %v9995 = vperm.slane %v9987, %v9994
        %v9996 = vrot.slane %v9979, 4
        %v9997 = vsel %vm302, %v9996, %v9955
        %v9998 = vrot.slane %v9955, 4
        %v9999 = vsel %vm302, %v9979, %v9998
        %v10000 = vrot.slane %v9983, 4
        %v10001 = vsel %vm302, %v10000, %v9959
        %v10002 = vrot.slane %v9959, 4
        %v10003 = vsel %vm302, %v9983, %v10002
        %v10004 = vrot.slane %v9991, 4
        %v10005 = vsel %vm302, %v10004, %v9967
        %v10006 = vrot.slane %v9967, 4
        %v10007 = vsel %vm302, %v9991, %v10006
        %v10008 = vrot.slane %v9995, 4
        %v10009 = vsel %vm302, %v10008, %v9971
        %v10010 = vrot.slane %v9971, 4
        %v10011 = vsel %vm302, %v9995, %v10010
        %10013 = vrot.lane.b32.xlu0 %v9887, 16
        %v10014 = vpop.permute.xlu0 %10013
        %10017 = vrot.lane.b32.xlu0 %v9889, 32
        %v10018 = vpop.permute.xlu0 %10017
        %10021 = vrot.lane.b32.xlu0 %v9891, 48
        %v10022 = vpop.permute.xlu0 %10021
        %10025 = vrot.lane.b32.xlu0 %v9893, 64
        %v10026 = vpop.permute.xlu0 %10025
        %10029 = vrot.lane.b32.xlu0 %v9895, 80
        %v10030 = vpop.permute.xlu0 %10029
        %10033 = vrot.lane.b32.xlu0 %v9897, 96
        %v10034 = vpop.permute.xlu0 %10033
        %10037 = vrot.lane.b32.xlu0 %v9899, 112
        %v10038 = vpop.permute.xlu0 %10037
        %10041 = vrot.lane.b32.xlu0 %v9999, 16
        %v10042 = vpop.permute.xlu0 %10041
        %10045 = vrot.lane.b32.xlu0 %v10001, 32
        %v10046 = vpop.permute.xlu0 %10045
        %10049 = vrot.lane.b32.xlu0 %v10003, 48
        %v10050 = vpop.permute.xlu0 %10049
        %10053 = vrot.lane.b32.xlu0 %v10005, 64
        %v10054 = vpop.permute.xlu0 %10053
        %10057 = vrot.lane.b32.xlu0 %v10007, 80
        %v10058 = vpop.permute.xlu0 %10057
        %10061 = vrot.lane.b32.xlu0 %v10009, 96
        %v10062 = vpop.permute.xlu0 %10061
        %10065 = vrot.lane.b32.xlu0 %v10011, 112
        %v10066 = vpop.permute.xlu0 %10065
        %v10068 = vsel %vm582, %v9885, %v10014
        %v10069 = vsel %vm584, %v10068, %v10018
        %v10070 = vsel %vm586, %v10069, %v10022
        %v10071 = vsel %vm588, %v10070, %v10026
        %v10072 = vsel %vm590, %v10071, %v10030
        %v10073 = vsel %vm592, %v10072, %v10034
        %v10074 = vsel %vm594, %v10073, %v10038
        %v10075 = vsel %vm582, %v9997, %v10042
        %v10076 = vsel %vm584, %v10075, %v10046
        %v10077 = vsel %vm586, %v10076, %v10050
        %v10078 = vsel %vm588, %v10077, %v10054
        %v10079 = vsel %vm590, %v10078, %v10058
        %v10080 = vsel %vm592, %v10079, %v10062
        %v10081 = vsel %vm594, %v10080, %v10066
        %v10082 = vld [vmem:[%s5] sm:$0xff]
        %10084 = vset.pattern.permute.xlu0 0
        %10085 = vperm.xlu0 %10084, %v10082
        %v10086 = vpop.permute.xlu0 %10085
        %v10088 = vmul.f32 %v10074, %v10086
        %v10089 = vmul.f32 %v10081, %v10086
        %v10090 = vld [vmem:[%s6] sm:$0xff]
        %10092 = vset.pattern.permute.xlu0 0
        %10093 = vperm.xlu0 %10092, %v10090
        %v10094 = vpop.permute.xlu0 %10093
        %v10096 = vadd.f32 %v10088, %v10094
        %v10097 = vadd.f32 %v10089, %v10094
        %v10098 = vmax.f32 %v10096, 0.0
        %v10099 = vmax.f32 %v10097, 0.0
        %10100 = vst [vmem:[%s271 + $0x50] sm:$0xff] %v10098
        %10101 = vst [vmem:[%s271 + $0x58] sm:$0xff] %v10099
        %s10102 = sand.u32 %s181, 1
        %s10103 = scalar_lea.sflag [#allocation3], %s10102
        %s10104 = sand.u32 %s181, 1
        %s10105 = smul.addr %s10104, 96
        %s10106 = scalar_lea.vmem [#allocation2], %s10105
        // Predicated region
        $region49: #{tpu_custom_call.1} parent=47 // pred_check
          %p10107 = pneg %p191
        $region50: #{tpu_custom_call.1} parent=47 // pred_check_branch
          %10109 = sbr.rel (%p10107) target = $region52
        $region51: #{tpu_custom_call.1} parent=47 // pred_region
          %10111 = vsyncadd %s10103, 0
          %s10112 = smul.addr %s21, 12
          %s10113 = smul.addr %s10112, 8
          %s10114 = scalar_lea.hbm %s7, %s10113
          %s10115 = sshll.u32 %s10106, 4
          %s10116 = int_to_ptr.vmem [resolvable:$true] %s10115
          %s10117 = sshll.u32 %s10114, 4
          %s10118 = int_to_ptr.hbm [resolvable:$true] %s10117
          %10123 = dma.vmem_to_hbm [thread:$0]  %s10116, 1536, %s10118, %s10103, 256, 256, 16
        $region52: #{tpu_custom_call.1} parent=47 // pred_fallthru
          _
      $region48: #{tpu_custom_call.1} parent=5 // pred_fallthru
        _
      %p10124 = scmp.le.s32.totalorder 2, %s16
      // Predicated region
      $region53: #{tpu_custom_call.1} parent=5 // pred_check
        %p10125 = pneg %p10124
      $region54: #{tpu_custom_call.1} parent=5 // pred_check_branch
        %10127 = sbr.rel (%p10125) target = $region56
      $region55: #{tpu_custom_call.1} parent=5 // pred_region
        %s10128 = ssub.s32 %s16, 2
        // Predicated region
        $region57: #{tpu_custom_call.1} parent=55 // pred_check
          %p10129 = pneg %p197
        $region58: #{tpu_custom_call.1} parent=55 // pred_check_branch
          %10131 = sbr.rel (%p10129) target = $region60
        $region59: #{tpu_custom_call.1} parent=55 // pred_region
          %s10132 = sand.u32 %s182, 1
          %s10133 = scalar_lea.sflag [#allocation3], %s10132
          %s10134 = sand.u32 %s182, 1
          %s10135 = smul.addr %s10134, 96
          %s10136 = scalar_lea.vmem [#allocation2], %s10135
          %10138 = dma.done %s10133, 1536
        $region60: #{tpu_custom_call.1} parent=55 // pred_fallthru
          _
      $region56: #{tpu_custom_call.1} parent=5 // pred_fallthru
        _
    $region6: #{tpu_custom_call.1} parent=1 // loop_footer
      %s20 = sadd.s32 1, %s16
    $region7: #{tpu_custom_call.1} parent=1 // loop_footer_branch
      %15 = sbr.rel target = $region3
    $region8: #{tpu_custom_call.1} parent=1 // loop_exit
      _
    %10139 = vsyncpa [#allocation3], 1
    %s10140 = scalar_lea.sflag [#allocation3], 1
    %10141 = vsyncpa %s10140, 1

</llo_original>
